<compile_context>
chip_gen: v7x
topology: tpu7x:2x2x1
jax: 0.10.0
libtpu: 0.0.40
codegen_flags: <defaults>
</compile_context>

<pallas_src>
import math

import jax
import jax.numpy as jnp
from jax import lax
from jax.experimental import pallas as pl
from jax.experimental.pallas import tpu as pltpu


# -----------------------------------------------------------------------------
# Fused LeNet kernel (one grid step == one image)
# -----------------------------------------------------------------------------
def lenet_fused_kernel(p1_ref, w1_ref, b1_ref, w2_ref, b2_ref,
                       wf1_ref, bf1_ref, wf2_ref, bf2_ref, wf3_ref, bf3_ref,
                       o_ref, y1_ref, acc_ref, pool_ref):
    f32 = jnp.float32

    # ---- conv1 as ONE merged im2col matmul + pool-slot max + bias + ReLU ----
    # p1_ref[0]: (4*144, 25); rows [s*144:(s+1)*144] = pool slot s, (ph, pw) order
    z = jnp.dot(p1_ref[0], w1_ref[...], preferred_element_type=f32)      # (576, 6)
    y1 = jnp.maximum(jnp.maximum(z[0:144], z[144:288]),
                     jnp.maximum(z[288:432], z[432:576]))                # 2x2 max-pool
    y1 = jnp.maximum(y1 + b1_ref[...], 0.0)                              # bias + ReLU
    y1_ref[...] = y1                                                     # (144, 6): row = i*12 + j

    # ---- conv2 via 25 shifted small matmuls (in-kernel im2col) ----
    # acc[r] = conv2 pre-activation at spatial r = oh*12 + ow; only rows <= 91
    # ever feed the 4x4 pooled outputs, so 92 rows suffice (52 + 92 == 144).
    acc = jnp.zeros((92, 16), f32)
    for kh in range(5):
        for kw in range(5):
            off = kh * 12 + kw
            acc = acc + jnp.dot(y1_ref[off:off + 92, :],
                                w2_ref[kh * 5 + kw],                     # (6, 16)
                                preferred_element_type=f32)
    acc_ref[...] = acc

    # ---- conv2 bias + ReLU + 2x2 max-pool (window offsets {0,1,12,13}) ----
    pooled = jnp.maximum(jnp.maximum(acc_ref[0:79, :], acc_ref[1:80, :]),
                         jnp.maximum(acc_ref[12:91, :], acc_ref[13:92, :]))
    pool_ref[...] = jnp.maximum(pooled + b2_ref[...], 0.0)               # valid rows: 24*ph + 2*pw

    # ---- classifier: (c,h,w)-flatten fused into fc1, then fc2, fc3 ----
    h1 = bf1_ref[...]                                                    # (1, 120), bias as init
    for p in range(16):                                                  # p = ph*4 + pw
        base = (p // 4) * 24 + (p % 4) * 2
        h1 = h1 + jnp.dot(pool_ref[base:base + 1, :], wf1_ref[p],
                          preferred_element_type=f32)
    h1 = jnp.maximum(h1, 0.0)
    h2 = jnp.maximum(jnp.dot(h1, wf2_ref[...], preferred_element_type=f32)
                     + bf2_ref[...], 0.0)                                # (1, 84)
    out = jnp.dot(h2, wf3_ref[...], preferred_element_type=f32) + bf3_ref[...]  # (1, 128)
    o_ref[0] = out


# -----------------------------------------------------------------------------
# JAX-side prep: conv1 im2col with rows grouped per 2x2 pooling window
# -----------------------------------------------------------------------------
def im2col_pool_grouped(x_nhwc, k):
    """(B, H, W, C) -> (B, 4*PH*PW, C*k*k); slot-major, (ph, pw) row order."""
    B, H, W, C = x_nhwc.shape
    OH, OW = H - k + 1, W - k + 1
    slices = [x_nhwc[:, i:i + OH, j:j + OW, :] for i in range(k) for j in range(k)]
    p = jnp.stack(slices, axis=-1)                 # (B, OH, OW, C, k*k)
    p = p.reshape(B, OH, OW, C * k * k)            # feature order (c, kh, kw)
    PH, PW = OH // 2, OW // 2
    p = p.reshape(B, PH, 2, PW, 2, C * k * k)
    p = p.transpose(0, 2, 4, 1, 3, 5)              # (B, dh, dw, PH, PW, F)
    return p.reshape(B, 4 * PH * PW, C * k * k)


# -----------------------------------------------------------------------------
# LeNet forward (wrapper)
# -----------------------------------------------------------------------------
def lenet_forward(x_nchw, params):
    B = x_nchw.shape[0]
    x = jnp.transpose(x_nchw, (0, 2, 3, 1)).astype(jnp.float32)          # NHWC
    p1 = im2col_pool_grouped(x, 5)                                        # (B, 576, 25)

    # Weight re-layouts (pure reshapes/transposes, done once per call).
    w1 = params["conv1_w"].reshape(6, 25).T                               # (25, 6)
    b1 = params["conv1_b"].reshape(1, 6)
    w2 = jnp.transpose(params["conv2_w"], (2, 3, 1, 0)).reshape(25, 6, 16)  # (kh*kw, cin, cout)
    b2 = params["conv2_b"].reshape(1, 16)
    wf1 = jnp.transpose(params["fc1_w"].reshape(120, 16, 16), (2, 1, 0))  # (spatial, cin, 120)
    bf1 = params["fc1_b"].reshape(1, 120)
    wf2 = params["fc2_w"].T                                               # (120, 84)
    bf2 = params["fc2_b"].reshape(1, 84)
    wf3 = jnp.zeros((84, 128), jnp.float32).at[:, :10].set(params["fc3_w"].T)
    bf3 = jnp.zeros((1, 128), jnp.float32).at[:, :10].set(params["fc3_b"])

    def full(shape):
        n = len(shape)
        return pl.BlockSpec(shape, lambda b, _n=n: (0,) * _n)

    out = pl.pallas_call(
        lenet_fused_kernel,
        out_shape=jax.ShapeDtypeStruct((B, 1, 128), jnp.float32),
        grid_spec=pltpu.PrefetchScalarGridSpec(
            num_scalar_prefetch=0,
            grid=(B,),
            in_specs=[
                pl.BlockSpec((1, 576, 25), lambda b: (b, 0, 0)),   # conv1 patches (per image)
                full((25, 6)), full((1, 6)),                       # conv1 w, b
                full((25, 6, 16)), full((1, 16)),                  # conv2 w (per kh,kw), b
                full((16, 16, 120)), full((1, 120)),               # fc1 w (per spatial), b
                full((120, 84)), full((1, 84)),                    # fc2 w, b
                full((84, 128)), full((1, 128)),                   # fc3 w, b (padded to 128)
            ],
            out_specs=pl.BlockSpec((1, 1, 128), lambda b: (b, 0, 0)),
            scratch_shapes=[
                pltpu.VMEM((144, 6), jnp.float32),   # conv1 pooled output y1
                pltpu.VMEM((92, 16), jnp.float32),   # conv2 pre-pool rows 0..91
                pltpu.VMEM((79, 16), jnp.float32),   # conv2 pooled rows 0..78
            ],
        ),
        compiler_params=pltpu.CompilerParams(
            dimension_semantics=("parallel",)),
    )(p1, w1, b1, w2, b2, wf1, bf1, wf2, bf2, wf3, bf3)
    return out[:, 0, :10]


# -----------------------------------------------------------------------------
# Pure-JAX reference (f32 / HIGHEST precision, for correctness check)
# -----------------------------------------------------------------------------
def lenet_reference(x, params):
    def conv(x, w, b):
        y = lax.conv_general_dilated(
            x, w, window_strides=(1, 1), padding="VALID",
            dimension_numbers=("NCHW", "OIHW", "NCHW"),
            precision=lax.Precision.HIGHEST)
        return y + b[None, :, None, None]

    def pool(x):
        return lax.reduce_window(x, -jnp.inf, lax.max,
                                 (1, 1, 2, 2), (1, 1, 2, 2), "VALID")

    hp = lax.Precision.HIGHEST
    h = pool(jnp.maximum(conv(x, params["conv1_w"], params["conv1_b"]), 0.0))
    h = pool(jnp.maximum(conv(h, params["conv2_w"], params["conv2_b"]), 0.0))
    h = h.reshape(x.shape[0], -1)
    h = jnp.maximum(jnp.dot(h, params["fc1_w"].T, precision=hp) + params["fc1_b"], 0.0)
    h = jnp.maximum(jnp.dot(h, params["fc2_w"].T, precision=hp) + params["fc2_b"], 0.0)
    return jnp.dot(h, params["fc3_w"].T, precision=hp) + params["fc3_b"]


# -----------------------------------------------------------------------------
# Deterministic parameter init (mirrors the module's __init__)
# -----------------------------------------------------------------------------
def init_params(key):
    ks = jax.random.split(key, 10)

    def xavier(k, shape):  # torch xavier_uniform on (out, in)
        fan_out, fan_in = shape
        a = math.sqrt(6.0 / (fan_in + fan_out))
        return jax.random.uniform(k, shape, jnp.float32, minval=-a, maxval=a)

    def bias(k, n, fan_in):  # torch default bias init: U(-1/sqrt(fan_in), ..)
        bnd = 1.0 / math.sqrt(fan_in)
        return jax.random.uniform(k, (n,), jnp.float32, minval=-bnd, maxval=bnd)

    return {
        "conv1_w": jax.random.normal(ks[0], (6, 1, 5, 5), jnp.float32)
                   * math.sqrt(2.0 / (5 * 5 * 6)),
        "conv1_b": bias(ks[1], 6, 25),
        "conv2_w": jax.random.normal(ks[2], (16, 6, 5, 5), jnp.float32)
                   * math.sqrt(2.0 / (5 * 5 * 16)),
        "conv2_b": bias(ks[3], 16, 150),
        "fc1_w": xavier(ks[4], (120, 256)),
        "fc1_b": bias(ks[5], 120, 256),
        "fc2_w": xavier(ks[6], (84, 120)),
        "fc2_b": bias(ks[7], 84, 120),
        "fc3_w": xavier(ks[8], (10, 84)),
        "fc3_b": bias(ks[9], 10, 84),
    }


if __name__ == "__main__":
    key = jax.random.PRNGKey(0)
    pkey, xkey = jax.random.split(key)
    params = init_params(pkey)

    # LeNet's 16*4*4 flatten implies 1x28x28 input; batch=2.
    x = jax.random.normal(xkey, (2, 1, 28, 28), jnp.float32)

    out = jax.block_until_ready(jax.jit(lenet_forward)(x, params))
    ref = jax.block_until_ready(jax.jit(lenet_reference)(x, params))

    assert out.shape == (2, 10), out.shape
    # Kernel matmuls use the MXU's default single-pass bf16 feed (per perf
    # review) while the reference is f32/HIGHEST, so allow bf16-level drift
    # accumulated across the 5 layers (~1e-2 absolute on O(0.3) logits).
    max_err = float(jnp.max(jnp.abs(out - ref)))
    assert jnp.allclose(out, ref, atol=2e-2, rtol=2e-2), max_err

    print("KERNEL_OK")
</pallas_src>

<mosaic_0001>
module attributes {stable_mosaic.version = 11 : i64} {
  func.func @lenet_fused_kernel(%arg0: i32, %arg1: memref<1x576x25xf32, #tpu.memory_space<vmem>>, %arg2: memref<25x6xf32, #tpu.memory_space<vmem>>, %arg3: memref<1x6xf32, #tpu.memory_space<vmem>>, %arg4: memref<25x6x16xf32, #tpu.memory_space<vmem>>, %arg5: memref<1x16xf32, #tpu.memory_space<vmem>>, %arg6: memref<16x16x120xf32, #tpu.memory_space<vmem>>, %arg7: memref<1x120xf32, #tpu.memory_space<vmem>>, %arg8: memref<120x84xf32, #tpu.memory_space<vmem>>, %arg9: memref<1x84xf32, #tpu.memory_space<vmem>>, %arg10: memref<84x128xf32, #tpu.memory_space<vmem>>, %arg11: memref<1x128xf32, #tpu.memory_space<vmem>>, %arg12: memref<1x1x128xf32, #tpu.memory_space<vmem>>, %arg13: memref<144x6xf32, #tpu.memory_space<vmem>>, %arg14: memref<92x16xf32, #tpu.memory_space<vmem>>, %arg15: memref<79x16xf32, #tpu.memory_space<vmem>>) attributes {dimension_semantics = [#tpu.dimension_semantics<parallel>], iteration_bounds = array<i64: 2>, scalar_prefetch = 0 : i64, scratch_operands = 3 : i64, tpu.core_type = #tpu.core_type<tc>, window_params = [{transform_indices = @transform_0, window_bounds = array<i64: 1, 576, 25>}, {pipeline_mode = #tpu.pipeline_mode<synchronous>, transform_indices = @transform_1, window_bounds = array<i64: 25, 6>}, {pipeline_mode = #tpu.pipeline_mode<synchronous>, transform_indices = @transform_2, window_bounds = array<i64: 1, 6>}, {pipeline_mode = #tpu.pipeline_mode<synchronous>, transform_indices = @transform_3, window_bounds = array<i64: 25, 6, 16>}, {pipeline_mode = #tpu.pipeline_mode<synchronous>, transform_indices = @transform_4, window_bounds = array<i64: 1, 16>}, {pipeline_mode = #tpu.pipeline_mode<synchronous>, transform_indices = @transform_5, window_bounds = array<i64: 16, 16, 120>}, {pipeline_mode = #tpu.pipeline_mode<synchronous>, transform_indices = @transform_6, window_bounds = array<i64: 1, 120>}, {pipeline_mode = #tpu.pipeline_mode<synchronous>, transform_indices = @transform_7, window_bounds = array<i64: 120, 84>}, {pipeline_mode = #tpu.pipeline_mode<synchronous>, transform_indices = @transform_8, window_bounds = array<i64: 1, 84>}, {pipeline_mode = #tpu.pipeline_mode<synchronous>, transform_indices = @transform_9, window_bounds = array<i64: 84, 128>}, {pipeline_mode = #tpu.pipeline_mode<synchronous>, transform_indices = @transform_10, window_bounds = array<i64: 1, 128>}, {transform_indices = @transform_11, window_bounds = array<i64: 1, 1, 128>}]} {
    %c0 = arith.constant 0 : index
    %c0_0 = arith.constant 0 : index
    %c0_1 = arith.constant 0 : index
    %0 = vector.load %arg1[%c0, %c0_0, %c0_1] : memref<1x576x25xf32, #tpu.memory_space<vmem>>, vector<1x576x25xf32>
    %1 = vector.shape_cast %0 : vector<1x576x25xf32> to vector<576x25xf32>
    %c0_2 = arith.constant 0 : index
    %c0_3 = arith.constant 0 : index
    %2 = vector.load %arg2[%c0_2, %c0_3] : memref<25x6xf32, #tpu.memory_space<vmem>>, vector<25x6xf32>
    %cst = arith.constant dense<0.000000e+00> : vector<576x6xf32>
    %3 = tpu.matmul %1, %2, %cst {dimension_numbers = #tpu.dot_dimension_numbers<[1], [0], [0], [1], [0, 0, 1, 1], [], []>} : vector<576x25xf32>, vector<25x6xf32>, vector<576x6xf32> -> vector<576x6xf32>
    %4 = vector.extract_strided_slice %3 {offsets = [0, 0], sizes = [144, 6], strides = [1, 1]} : vector<576x6xf32> to vector<144x6xf32>
    %5 = vector.extract_strided_slice %3 {offsets = [144, 0], sizes = [144, 6], strides = [1, 1]} : vector<576x6xf32> to vector<144x6xf32>
    %6 = arith.maximumf %4, %5 : vector<144x6xf32>
    %7 = vector.extract_strided_slice %3 {offsets = [288, 0], sizes = [144, 6], strides = [1, 1]} : vector<576x6xf32> to vector<144x6xf32>
    %8 = vector.extract_strided_slice %3 {offsets = [432, 0], sizes = [144, 6], strides = [1, 1]} : vector<576x6xf32> to vector<144x6xf32>
    %9 = arith.maximumf %7, %8 : vector<144x6xf32>
    %10 = arith.maximumf %6, %9 : vector<144x6xf32>
    %c0_4 = arith.constant 0 : index
    %c0_5 = arith.constant 0 : index
    %11 = vector.load %arg3[%c0_4, %c0_5] : memref<1x6xf32, #tpu.memory_space<vmem>>, vector<1x6xf32>
    %12 = vector.broadcast %11 : vector<1x6xf32> to vector<144x6xf32>
    %13 = arith.addf %10, %12 : vector<144x6xf32>
    %cst_6 = arith.constant 0.000000e+00 : f32
    %14 = vector.broadcast %cst_6 : f32 to vector<144x6xf32>
    %15 = arith.maximumf %13, %14 : vector<144x6xf32>
    %c0_7 = arith.constant 0 : index
    %c0_8 = arith.constant 0 : index
    %16 = vector.load %arg13[%c0_7, %c0_8] : memref<144x6xf32, #tpu.memory_space<vmem>>, vector<144x6xf32>
    tpu.vector_store %arg13[%c0_7, %c0_8], %15 {strides = array<i32>} : memref<144x6xf32, #tpu.memory_space<vmem>>, vector<144x6xf32>,
    %cst_9 = arith.constant 0.000000e+00 : f32
    %17 = vector.broadcast %cst_9 : f32 to vector<92x16xf32>
    %c0_10 = arith.constant 0 : index
    %c0_11 = arith.constant 0 : index
    %18 = vector.load %arg13[%c0_10, %c0_11] : memref<144x6xf32, #tpu.memory_space<vmem>>, vector<92x6xf32>
    %c0_12 = arith.constant 0 : index
    %c0_13 = arith.constant 0 : index
    %c0_14 = arith.constant 0 : index
    %19 = vector.load %arg4[%c0_12, %c0_13, %c0_14] : memref<25x6x16xf32, #tpu.memory_space<vmem>>, vector<1x6x16xf32>
    %20 = vector.shape_cast %19 : vector<1x6x16xf32> to vector<6x16xf32>
    %cst_15 = arith.constant dense<0.000000e+00> : vector<92x16xf32>
    %21 = tpu.matmul %18, %20, %cst_15 {dimension_numbers = #tpu.dot_dimension_numbers<[1], [0], [0], [1], [0, 0, 1, 1], [], []>} : vector<92x6xf32>, vector<6x16xf32>, vector<92x16xf32> -> vector<92x16xf32>
    %22 = arith.addf %17, %21 : vector<92x16xf32>
    %c1 = arith.constant 1 : index
    %c0_16 = arith.constant 0 : index
    %23 = vector.load %arg13[%c1, %c0_16] : memref<144x6xf32, #tpu.memory_space<vmem>>, vector<92x6xf32>
    %c1_17 = arith.constant 1 : index
    %c0_18 = arith.constant 0 : index
    %c0_19 = arith.constant 0 : index
    %24 = vector.load %arg4[%c1_17, %c0_18, %c0_19] : memref<25x6x16xf32, #tpu.memory_space<vmem>>, vector<1x6x16xf32>
    %25 = vector.shape_cast %24 : vector<1x6x16xf32> to vector<6x16xf32>
    %cst_20 = arith.constant dense<0.000000e+00> : vector<92x16xf32>
    %26 = tpu.matmul %23, %25, %cst_20 {dimension_numbers = #tpu.dot_dimension_numbers<[1], [0], [0], [1], [0, 0, 1, 1], [], []>} : vector<92x6xf32>, vector<6x16xf32>, vector<92x16xf32> -> vector<92x16xf32>
    %27 = arith.addf %22, %26 : vector<92x16xf32>
    %c2 = arith.constant 2 : index
    %c0_21 = arith.constant 0 : index
    %28 = vector.load %arg13[%c2, %c0_21] : memref<144x6xf32, #tpu.memory_space<vmem>>, vector<92x6xf32>
    %c2_22 = arith.constant 2 : index
    %c0_23 = arith.constant 0 : index
    %c0_24 = arith.constant 0 : index
    %29 = vector.load %arg4[%c2_22, %c0_23, %c0_24] : memref<25x6x16xf32, #tpu.memory_space<vmem>>, vector<1x6x16xf32>
    %30 = vector.shape_cast %29 : vector<1x6x16xf32> to vector<6x16xf32>
    %cst_25 = arith.constant dense<0.000000e+00> : vector<92x16xf32>
    %31 = tpu.matmul %28, %30, %cst_25 {dimension_numbers = #tpu.dot_dimension_numbers<[1], [0], [0], [1], [0, 0, 1, 1], [], []>} : vector<92x6xf32>, vector<6x16xf32>, vector<92x16xf32> -> vector<92x16xf32>
    %32 = arith.addf %27, %31 : vector<92x16xf32>
    %c3 = arith.constant 3 : index
    %c0_26 = arith.constant 0 : index
    %33 = vector.load %arg13[%c3, %c0_26] : memref<144x6xf32, #tpu.memory_space<vmem>>, vector<92x6xf32>
    %c3_27 = arith.constant 3 : index
    %c0_28 = arith.constant 0 : index
    %c0_29 = arith.constant 0 : index
    %34 = vector.load %arg4[%c3_27, %c0_28, %c0_29] : memref<25x6x16xf32, #tpu.memory_space<vmem>>, vector<1x6x16xf32>
    %35 = vector.shape_cast %34 : vector<1x6x16xf32> to vector<6x16xf32>
    %cst_30 = arith.constant dense<0.000000e+00> : vector<92x16xf32>
    %36 = tpu.matmul %33, %35, %cst_30 {dimension_numbers = #tpu.dot_dimension_numbers<[1], [0], [0], [1], [0, 0, 1, 1], [], []>} : vector<92x6xf32>, vector<6x16xf32>, vector<92x16xf32> -> vector<92x16xf32>
    %37 = arith.addf %32, %36 : vector<92x16xf32>
    %c4 = arith.constant 4 : index
    %c0_31 = arith.constant 0 : index
    %38 = vector.load %arg13[%c4, %c0_31] : memref<144x6xf32, #tpu.memory_space<vmem>>, vector<92x6xf32>
    %c4_32 = arith.constant 4 : index
    %c0_33 = arith.constant 0 : index
    %c0_34 = arith.constant 0 : index
    %39 = vector.load %arg4[%c4_32, %c0_33, %c0_34] : memref<25x6x16xf32, #tpu.memory_space<vmem>>, vector<1x6x16xf32>
    %40 = vector.shape_cast %39 : vector<1x6x16xf32> to vector<6x16xf32>
    %cst_35 = arith.constant dense<0.000000e+00> : vector<92x16xf32>
    %41 = tpu.matmul %38, %40, %cst_35 {dimension_numbers = #tpu.dot_dimension_numbers<[1], [0], [0], [1], [0, 0, 1, 1], [], []>} : vector<92x6xf32>, vector<6x16xf32>, vector<92x16xf32> -> vector<92x16xf32>
    %42 = arith.addf %37, %41 : vector<92x16xf32>
    %c12 = arith.constant 12 : index
    %c0_36 = arith.constant 0 : index
    %43 = vector.load %arg13[%c12, %c0_36] : memref<144x6xf32, #tpu.memory_space<vmem>>, vector<92x6xf32>
    %c5 = arith.constant 5 : index
    %c0_37 = arith.constant 0 : index
    %c0_38 = arith.constant 0 : index
    %44 = vector.load %arg4[%c5, %c0_37, %c0_38] : memref<25x6x16xf32, #tpu.memory_space<vmem>>, vector<1x6x16xf32>
    %45 = vector.shape_cast %44 : vector<1x6x16xf32> to vector<6x16xf32>
    %cst_39 = arith.constant dense<0.000000e+00> : vector<92x16xf32>
    %46 = tpu.matmul %43, %45, %cst_39 {dimension_numbers = #tpu.dot_dimension_numbers<[1], [0], [0], [1], [0, 0, 1, 1], [], []>} : vector<92x6xf32>, vector<6x16xf32>, vector<92x16xf32> -> vector<92x16xf32>
    %47 = arith.addf %42, %46 : vector<92x16xf32>
    %c13 = arith.constant 13 : index
    %c0_40 = arith.constant 0 : index
    %48 = vector.load %arg13[%c13, %c0_40] : memref<144x6xf32, #tpu.memory_space<vmem>>, vector<92x6xf32>
    %c6 = arith.constant 6 : index
    %c0_41 = arith.constant 0 : index
    %c0_42 = arith.constant 0 : index
    %49 = vector.load %arg4[%c6, %c0_41, %c0_42] : memref<25x6x16xf32, #tpu.memory_space<vmem>>, vector<1x6x16xf32>
    %50 = vector.shape_cast %49 : vector<1x6x16xf32> to vector<6x16xf32>
    %cst_43 = arith.constant dense<0.000000e+00> : vector<92x16xf32>
    %51 = tpu.matmul %48, %50, %cst_43 {dimension_numbers = #tpu.dot_dimension_numbers<[1], [0], [0], [1], [0, 0, 1, 1], [], []>} : vector<92x6xf32>, vector<6x16xf32>, vector<92x16xf32> -> vector<92x16xf32>
    %52 = arith.addf %47, %51 : vector<92x16xf32>
    %c14 = arith.constant 14 : index
    %c0_44 = arith.constant 0 : index
    %53 = vector.load %arg13[%c14, %c0_44] : memref<144x6xf32, #tpu.memory_space<vmem>>, vector<92x6xf32>
    %c7 = arith.constant 7 : index
    %c0_45 = arith.constant 0 : index
    %c0_46 = arith.constant 0 : index
    %54 = vector.load %arg4[%c7, %c0_45, %c0_46] : memref<25x6x16xf32, #tpu.memory_space<vmem>>, vector<1x6x16xf32>
    %55 = vector.shape_cast %54 : vector<1x6x16xf32> to vector<6x16xf32>
    %cst_47 = arith.constant dense<0.000000e+00> : vector<92x16xf32>
    %56 = tpu.matmul %53, %55, %cst_47 {dimension_numbers = #tpu.dot_dimension_numbers<[1], [0], [0], [1], [0, 0, 1, 1], [], []>} : vector<92x6xf32>, vector<6x16xf32>, vector<92x16xf32> -> vector<92x16xf32>
    %57 = arith.addf %52, %56 : vector<92x16xf32>
    %c15 = arith.constant 15 : index
    %c0_48 = arith.constant 0 : index
    %58 = vector.load %arg13[%c15, %c0_48] : memref<144x6xf32, #tpu.memory_space<vmem>>, vector<92x6xf32>
    %c8 = arith.constant 8 : index
    %c0_49 = arith.constant 0 : index
    %c0_50 = arith.constant 0 : index
    %59 = vector.load %arg4[%c8, %c0_49, %c0_50] : memref<25x6x16xf32, #tpu.memory_space<vmem>>, vector<1x6x16xf32>
    %60 = vector.shape_cast %59 : vector<1x6x16xf32> to vector<6x16xf32>
    %cst_51 = arith.constant dense<0.000000e+00> : vector<92x16xf32>
    %61 = tpu.matmul %58, %60, %cst_51 {dimension_numbers = #tpu.dot_dimension_numbers<[1], [0], [0], [1], [0, 0, 1, 1], [], []>} : vector<92x6xf32>, vector<6x16xf32>, vector<92x16xf32> -> vector<92x16xf32>
    %62 = arith.addf %57, %61 : vector<92x16xf32>
    %c16 = arith.constant 16 : index
    %c0_52 = arith.constant 0 : index
    %63 = vector.load %arg13[%c16, %c0_52] : memref<144x6xf32, #tpu.memory_space<vmem>>, vector<92x6xf32>
    %c9 = arith.constant 9 : index
    %c0_53 = arith.constant 0 : index
    %c0_54 = arith.constant 0 : index
    %64 = vector.load %arg4[%c9, %c0_53, %c0_54] : memref<25x6x16xf32, #tpu.memory_space<vmem>>, vector<1x6x16xf32>
    %65 = vector.shape_cast %64 : vector<1x6x16xf32> to vector<6x16xf32>
    %cst_55 = arith.constant dense<0.000000e+00> : vector<92x16xf32>
    %66 = tpu.matmul %63, %65, %cst_55 {dimension_numbers = #tpu.dot_dimension_numbers<[1], [0], [0], [1], [0, 0, 1, 1], [], []>} : vector<92x6xf32>, vector<6x16xf32>, vector<92x16xf32> -> vector<92x16xf32>
    %67 = arith.addf %62, %66 : vector<92x16xf32>
    %c24 = arith.constant 24 : index
    %c0_56 = arith.constant 0 : index
    %68 = vector.load %arg13[%c24, %c0_56] : memref<144x6xf32, #tpu.memory_space<vmem>>, vector<92x6xf32>
    %c10 = arith.constant 10 : index
    %c0_57 = arith.constant 0 : index
    %c0_58 = arith.constant 0 : index
    %69 = vector.load %arg4[%c10, %c0_57, %c0_58] : memref<25x6x16xf32, #tpu.memory_space<vmem>>, vector<1x6x16xf32>
    %70 = vector.shape_cast %69 : vector<1x6x16xf32> to vector<6x16xf32>
    %cst_59 = arith.constant dense<0.000000e+00> : vector<92x16xf32>
    %71 = tpu.matmul %68, %70, %cst_59 {dimension_numbers = #tpu.dot_dimension_numbers<[1], [0], [0], [1], [0, 0, 1, 1], [], []>} : vector<92x6xf32>, vector<6x16xf32>, vector<92x16xf32> -> vector<92x16xf32>
    %72 = arith.addf %67, %71 : vector<92x16xf32>
    %c25 = arith.constant 25 : index
    %c0_60 = arith.constant 0 : index
    %73 = vector.load %arg13[%c25, %c0_60] : memref<144x6xf32, #tpu.memory_space<vmem>>, vector<92x6xf32>
    %c11 = arith.constant 11 : index
    %c0_61 = arith.constant 0 : index
    %c0_62 = arith.constant 0 : index
    %74 = vector.load %arg4[%c11, %c0_61, %c0_62] : memref<25x6x16xf32, #tpu.memory_space<vmem>>, vector<1x6x16xf32>
    %75 = vector.shape_cast %74 : vector<1x6x16xf32> to vector<6x16xf32>
    %cst_63 = arith.constant dense<0.000000e+00> : vector<92x16xf32>
    %76 = tpu.matmul %73, %75, %cst_63 {dimension_numbers = #tpu.dot_dimension_numbers<[1], [0], [0], [1], [0, 0, 1, 1], [], []>} : vector<92x6xf32>, vector<6x16xf32>, vector<92x16xf32> -> vector<92x16xf32>
    %77 = arith.addf %72, %76 : vector<92x16xf32>
    %c26 = arith.constant 26 : index
    %c0_64 = arith.constant 0 : index
    %78 = vector.load %arg13[%c26, %c0_64] : memref<144x6xf32, #tpu.memory_space<vmem>>, vector<92x6xf32>
    %c12_65 = arith.constant 12 : index
    %c0_66 = arith.constant 0 : index
    %c0_67 = arith.constant 0 : index
    %79 = vector.load %arg4[%c12_65, %c0_66, %c0_67] : memref<25x6x16xf32, #tpu.memory_space<vmem>>, vector<1x6x16xf32>
    %80 = vector.shape_cast %79 : vector<1x6x16xf32> to vector<6x16xf32>
    %cst_68 = arith.constant dense<0.000000e+00> : vector<92x16xf32>
    %81 = tpu.matmul %78, %80, %cst_68 {dimension_numbers = #tpu.dot_dimension_numbers<[1], [0], [0], [1], [0, 0, 1, 1], [], []>} : vector<92x6xf32>, vector<6x16xf32>, vector<92x16xf32> -> vector<92x16xf32>
    %82 = arith.addf %77, %81 : vector<92x16xf32>
    %c27 = arith.constant 27 : index
    %c0_69 = arith.constant 0 : index
    %83 = vector.load %arg13[%c27, %c0_69] : memref<144x6xf32, #tpu.memory_space<vmem>>, vector<92x6xf32>
    %c13_70 = arith.constant 13 : index
    %c0_71 = arith.constant 0 : index
    %c0_72 = arith.constant 0 : index
    %84 = vector.load %arg4[%c13_70, %c0_71, %c0_72] : memref<25x6x16xf32, #tpu.memory_space<vmem>>, vector<1x6x16xf32>
    %85 = vector.shape_cast %84 : vector<1x6x16xf32> to vector<6x16xf32>
    %cst_73 = arith.constant dense<0.000000e+00> : vector<92x16xf32>
    %86 = tpu.matmul %83, %85, %cst_73 {dimension_numbers = #tpu.dot_dimension_numbers<[1], [0], [0], [1], [0, 0, 1, 1], [], []>} : vector<92x6xf32>, vector<6x16xf32>, vector<92x16xf32> -> vector<92x16xf32>
    %87 = arith.addf %82, %86 : vector<92x16xf32>
    %c28 = arith.constant 28 : index
    %c0_74 = arith.constant 0 : index
    %88 = vector.load %arg13[%c28, %c0_74] : memref<144x6xf32, #tpu.memory_space<vmem>>, vector<92x6xf32>
    %c14_75 = arith.constant 14 : index
    %c0_76 = arith.constant 0 : index
    %c0_77 = arith.constant 0 : index
    %89 = vector.load %arg4[%c14_75, %c0_76, %c0_77] : memref<25x6x16xf32, #tpu.memory_space<vmem>>, vector<1x6x16xf32>
    %90 = vector.shape_cast %89 : vector<1x6x16xf32> to vector<6x16xf32>
    %cst_78 = arith.constant dense<0.000000e+00> : vector<92x16xf32>
    %91 = tpu.matmul %88, %90, %cst_78 {dimension_numbers = #tpu.dot_dimension_numbers<[1], [0], [0], [1], [0, 0, 1, 1], [], []>} : vector<92x6xf32>, vector<6x16xf32>, vector<92x16xf32> -> vector<92x16xf32>
    %92 = arith.addf %87, %91 : vector<92x16xf32>
    %c36 = arith.constant 36 : index
    %c0_79 = arith.constant 0 : index
    %93 = vector.load %arg13[%c36, %c0_79] : memref<144x6xf32, #tpu.memory_space<vmem>>, vector<92x6xf32>
    %c15_80 = arith.constant 15 : index
    %c0_81 = arith.constant 0 : index
    %c0_82 = arith.constant 0 : index
    %94 = vector.load %arg4[%c15_80, %c0_81, %c0_82] : memref<25x6x16xf32, #tpu.memory_space<vmem>>, vector<1x6x16xf32>
    %95 = vector.shape_cast %94 : vector<1x6x16xf32> to vector<6x16xf32>
    %cst_83 = arith.constant dense<0.000000e+00> : vector<92x16xf32>
    %96 = tpu.matmul %93, %95, %cst_83 {dimension_numbers = #tpu.dot_dimension_numbers<[1], [0], [0], [1], [0, 0, 1, 1], [], []>} : vector<92x6xf32>, vector<6x16xf32>, vector<92x16xf32> -> vector<92x16xf32>
    %97 = arith.addf %92, %96 : vector<92x16xf32>
    %c37 = arith.constant 37 : index
    %c0_84 = arith.constant 0 : index
    %98 = vector.load %arg13[%c37, %c0_84] : memref<144x6xf32, #tpu.memory_space<vmem>>, vector<92x6xf32>
    %c16_85 = arith.constant 16 : index
    %c0_86 = arith.constant 0 : index
    %c0_87 = arith.constant 0 : index
    %99 = vector.load %arg4[%c16_85, %c0_86, %c0_87] : memref<25x6x16xf32, #tpu.memory_space<vmem>>, vector<1x6x16xf32>
    %100 = vector.shape_cast %99 : vector<1x6x16xf32> to vector<6x16xf32>
    %cst_88 = arith.constant dense<0.000000e+00> : vector<92x16xf32>
    %101 = tpu.matmul %98, %100, %cst_88 {dimension_numbers = #tpu.dot_dimension_numbers<[1], [0], [0], [1], [0, 0, 1, 1], [], []>} : vector<92x6xf32>, vector<6x16xf32>, vector<92x16xf32> -> vector<92x16xf32>
    %102 = arith.addf %97, %101 : vector<92x16xf32>
    %c38 = arith.constant 38 : index
    %c0_89 = arith.constant 0 : index
    %103 = vector.load %arg13[%c38, %c0_89] : memref<144x6xf32, #tpu.memory_space<vmem>>, vector<92x6xf32>
    %c17 = arith.constant 17 : index
    %c0_90 = arith.constant 0 : index
    %c0_91 = arith.constant 0 : index
    %104 = vector.load %arg4[%c17, %c0_90, %c0_91] : memref<25x6x16xf32, #tpu.memory_space<vmem>>, vector<1x6x16xf32>
    %105 = vector.shape_cast %104 : vector<1x6x16xf32> to vector<6x16xf32>
    %cst_92 = arith.constant dense<0.000000e+00> : vector<92x16xf32>
    %106 = tpu.matmul %103, %105, %cst_92 {dimension_numbers = #tpu.dot_dimension_numbers<[1], [0], [0], [1], [0, 0, 1, 1], [], []>} : vector<92x6xf32>, vector<6x16xf32>, vector<92x16xf32> -> vector<92x16xf32>
    %107 = arith.addf %102, %106 : vector<92x16xf32>
    %c39 = arith.constant 39 : index
    %c0_93 = arith.constant 0 : index
    %108 = vector.load %arg13[%c39, %c0_93] : memref<144x6xf32, #tpu.memory_space<vmem>>, vector<92x6xf32>
    %c18 = arith.constant 18 : index
    %c0_94 = arith.constant 0 : index
    %c0_95 = arith.constant 0 : index
    %109 = vector.load %arg4[%c18, %c0_94, %c0_95] : memref<25x6x16xf32, #tpu.memory_space<vmem>>, vector<1x6x16xf32>
    %110 = vector.shape_cast %109 : vector<1x6x16xf32> to vector<6x16xf32>
    %cst_96 = arith.constant dense<0.000000e+00> : vector<92x16xf32>
    %111 = tpu.matmul %108, %110, %cst_96 {dimension_numbers = #tpu.dot_dimension_numbers<[1], [0], [0], [1], [0, 0, 1, 1], [], []>} : vector<92x6xf32>, vector<6x16xf32>, vector<92x16xf32> -> vector<92x16xf32>
    %112 = arith.addf %107, %111 : vector<92x16xf32>
    %c40 = arith.constant 40 : index
    %c0_97 = arith.constant 0 : index
    %113 = vector.load %arg13[%c40, %c0_97] : memref<144x6xf32, #tpu.memory_space<vmem>>, vector<92x6xf32>
    %c19 = arith.constant 19 : index
    %c0_98 = arith.constant 0 : index
    %c0_99 = arith.constant 0 : index
    %114 = vector.load %arg4[%c19, %c0_98, %c0_99] : memref<25x6x16xf32, #tpu.memory_space<vmem>>, vector<1x6x16xf32>
    %115 = vector.shape_cast %114 : vector<1x6x16xf32> to vector<6x16xf32>
    %cst_100 = arith.constant dense<0.000000e+00> : vector<92x16xf32>
    %116 = tpu.matmul %113, %115, %cst_100 {dimension_numbers = #tpu.dot_dimension_numbers<[1], [0], [0], [1], [0, 0, 1, 1], [], []>} : vector<92x6xf32>, vector<6x16xf32>, vector<92x16xf32> -> vector<92x16xf32>
    %117 = arith.addf %112, %116 : vector<92x16xf32>
    %c48 = arith.constant 48 : index
    %c0_101 = arith.constant 0 : index
    %118 = vector.load %arg13[%c48, %c0_101] : memref<144x6xf32, #tpu.memory_space<vmem>>, vector<92x6xf32>
    %c20 = arith.constant 20 : index
    %c0_102 = arith.constant 0 : index
    %c0_103 = arith.constant 0 : index
    %119 = vector.load %arg4[%c20, %c0_102, %c0_103] : memref<25x6x16xf32, #tpu.memory_space<vmem>>, vector<1x6x16xf32>
    %120 = vector.shape_cast %119 : vector<1x6x16xf32> to vector<6x16xf32>
    %cst_104 = arith.constant dense<0.000000e+00> : vector<92x16xf32>
    %121 = tpu.matmul %118, %120, %cst_104 {dimension_numbers = #tpu.dot_dimension_numbers<[1], [0], [0], [1], [0, 0, 1, 1], [], []>} : vector<92x6xf32>, vector<6x16xf32>, vector<92x16xf32> -> vector<92x16xf32>
    %122 = arith.addf %117, %121 : vector<92x16xf32>
    %c49 = arith.constant 49 : index
    %c0_105 = arith.constant 0 : index
    %123 = vector.load %arg13[%c49, %c0_105] : memref<144x6xf32, #tpu.memory_space<vmem>>, vector<92x6xf32>
    %c21 = arith.constant 21 : index
    %c0_106 = arith.constant 0 : index
    %c0_107 = arith.constant 0 : index
    %124 = vector.load %arg4[%c21, %c0_106, %c0_107] : memref<25x6x16xf32, #tpu.memory_space<vmem>>, vector<1x6x16xf32>
    %125 = vector.shape_cast %124 : vector<1x6x16xf32> to vector<6x16xf32>
    %cst_108 = arith.constant dense<0.000000e+00> : vector<92x16xf32>
    %126 = tpu.matmul %123, %125, %cst_108 {dimension_numbers = #tpu.dot_dimension_numbers<[1], [0], [0], [1], [0, 0, 1, 1], [], []>} : vector<92x6xf32>, vector<6x16xf32>, vector<92x16xf32> -> vector<92x16xf32>
    %127 = arith.addf %122, %126 : vector<92x16xf32>
    %c50 = arith.constant 50 : index
    %c0_109 = arith.constant 0 : index
    %128 = vector.load %arg13[%c50, %c0_109] : memref<144x6xf32, #tpu.memory_space<vmem>>, vector<92x6xf32>
    %c22 = arith.constant 22 : index
    %c0_110 = arith.constant 0 : index
    %c0_111 = arith.constant 0 : index
    %129 = vector.load %arg4[%c22, %c0_110, %c0_111] : memref<25x6x16xf32, #tpu.memory_space<vmem>>, vector<1x6x16xf32>
    %130 = vector.shape_cast %129 : vector<1x6x16xf32> to vector<6x16xf32>
    %cst_112 = arith.constant dense<0.000000e+00> : vector<92x16xf32>
    %131 = tpu.matmul %128, %130, %cst_112 {dimension_numbers = #tpu.dot_dimension_numbers<[1], [0], [0], [1], [0, 0, 1, 1], [], []>} : vector<92x6xf32>, vector<6x16xf32>, vector<92x16xf32> -> vector<92x16xf32>
    %132 = arith.addf %127, %131 : vector<92x16xf32>
    %c51 = arith.constant 51 : index
    %c0_113 = arith.constant 0 : index
    %133 = vector.load %arg13[%c51, %c0_113] : memref<144x6xf32, #tpu.memory_space<vmem>>, vector<92x6xf32>
    %c23 = arith.constant 23 : index
    %c0_114 = arith.constant 0 : index
    %c0_115 = arith.constant 0 : index
    %134 = vector.load %arg4[%c23, %c0_114, %c0_115] : memref<25x6x16xf32, #tpu.memory_space<vmem>>, vector<1x6x16xf32>
    %135 = vector.shape_cast %134 : vector<1x6x16xf32> to vector<6x16xf32>
    %cst_116 = arith.constant dense<0.000000e+00> : vector<92x16xf32>
    %136 = tpu.matmul %133, %135, %cst_116 {dimension_numbers = #tpu.dot_dimension_numbers<[1], [0], [0], [1], [0, 0, 1, 1], [], []>} : vector<92x6xf32>, vector<6x16xf32>, vector<92x16xf32> -> vector<92x16xf32>
    %137 = arith.addf %132, %136 : vector<92x16xf32>
    %c52 = arith.constant 52 : index
    %c0_117 = arith.constant 0 : index
    %138 = vector.load %arg13[%c52, %c0_117] : memref<144x6xf32, #tpu.memory_space<vmem>>, vector<92x6xf32>
    %c24_118 = arith.constant 24 : index
    %c0_119 = arith.constant 0 : index
    %c0_120 = arith.constant 0 : index
    %139 = vector.load %arg4[%c24_118, %c0_119, %c0_120] : memref<25x6x16xf32, #tpu.memory_space<vmem>>, vector<1x6x16xf32>
    %140 = vector.shape_cast %139 : vector<1x6x16xf32> to vector<6x16xf32>
    %cst_121 = arith.constant dense<0.000000e+00> : vector<92x16xf32>
    %141 = tpu.matmul %138, %140, %cst_121 {dimension_numbers = #tpu.dot_dimension_numbers<[1], [0], [0], [1], [0, 0, 1, 1], [], []>} : vector<92x6xf32>, vector<6x16xf32>, vector<92x16xf32> -> vector<92x16xf32>
    %142 = arith.addf %137, %141 : vector<92x16xf32>
    %c0_122 = arith.constant 0 : index
    %c0_123 = arith.constant 0 : index
    %143 = vector.load %arg14[%c0_122, %c0_123] : memref<92x16xf32, #tpu.memory_space<vmem>>, vector<92x16xf32>
    tpu.vector_store %arg14[%c0_122, %c0_123], %142 {strides = array<i32>} : memref<92x16xf32, #tpu.memory_space<vmem>>, vector<92x16xf32>,
    %c0_124 = arith.constant 0 : index
    %c0_125 = arith.constant 0 : index
    %144 = vector.load %arg14[%c0_124, %c0_125] : memref<92x16xf32, #tpu.memory_space<vmem>>, vector<79x16xf32>
    %c1_126 = arith.constant 1 : index
    %c0_127 = arith.constant 0 : index
    %145 = vector.load %arg14[%c1_126, %c0_127] : memref<92x16xf32, #tpu.memory_space<vmem>>, vector<79x16xf32>
    %146 = arith.maximumf %144, %145 : vector<79x16xf32>
    %c12_128 = arith.constant 12 : index
    %c0_129 = arith.constant 0 : index
    %147 = vector.load %arg14[%c12_128, %c0_129] : memref<92x16xf32, #tpu.memory_space<vmem>>, vector<79x16xf32>
    %c13_130 = arith.constant 13 : index
    %c0_131 = arith.constant 0 : index
    %148 = vector.load %arg14[%c13_130, %c0_131] : memref<92x16xf32, #tpu.memory_space<vmem>>, vector<79x16xf32>
    %149 = arith.maximumf %147, %148 : vector<79x16xf32>
    %150 = arith.maximumf %146, %149 : vector<79x16xf32>
    %c0_132 = arith.constant 0 : index
    %c0_133 = arith.constant 0 : index
    %151 = vector.load %arg5[%c0_132, %c0_133] : memref<1x16xf32, #tpu.memory_space<vmem>>, vector<1x16xf32>
    %152 = vector.broadcast %151 : vector<1x16xf32> to vector<79x16xf32>
    %153 = arith.addf %150, %152 : vector<79x16xf32>
    %cst_134 = arith.constant 0.000000e+00 : f32
    %154 = vector.broadcast %cst_134 : f32 to vector<79x16xf32>
    %155 = arith.maximumf %153, %154 : vector<79x16xf32>
    %c0_135 = arith.constant 0 : index
    %c0_136 = arith.constant 0 : index
    %156 = vector.load %arg15[%c0_135, %c0_136] : memref<79x16xf32, #tpu.memory_space<vmem>>, vector<79x16xf32>
    tpu.vector_store %arg15[%c0_135, %c0_136], %155 {strides = array<i32>} : memref<79x16xf32, #tpu.memory_space<vmem>>, vector<79x16xf32>,
    %c0_137 = arith.constant 0 : index
    %c0_138 = arith.constant 0 : index
    %157 = vector.load %arg7[%c0_137, %c0_138] : memref<1x120xf32, #tpu.memory_space<vmem>>, vector<1x120xf32>
    %c0_139 = arith.constant 0 : index
    %c0_140 = arith.constant 0 : index
    %158 = vector.load %arg15[%c0_139, %c0_140] : memref<79x16xf32, #tpu.memory_space<vmem>>, vector<1x16xf32>
    %c0_141 = arith.constant 0 : index
    %c0_142 = arith.constant 0 : index
    %c0_143 = arith.constant 0 : index
    %159 = vector.load %arg6[%c0_141, %c0_142, %c0_143] : memref<16x16x120xf32, #tpu.memory_space<vmem>>, vector<1x16x120xf32>
    %160 = vector.shape_cast %159 : vector<1x16x120xf32> to vector<16x120xf32>
    %cst_144 = arith.constant dense<0.000000e+00> : vector<1x120xf32>
    %161 = tpu.matmul %158, %160, %cst_144 {dimension_numbers = #tpu.dot_dimension_numbers<[1], [0], [0], [1], [0, 0, 1, 1], [], []>} : vector<1x16xf32>, vector<16x120xf32>, vector<1x120xf32> -> vector<1x120xf32>
    %162 = arith.addf %157, %161 : vector<1x120xf32>
    %c2_145 = arith.constant 2 : index
    %c0_146 = arith.constant 0 : index
    %163 = vector.load %arg15[%c2_145, %c0_146] : memref<79x16xf32, #tpu.memory_space<vmem>>, vector<1x16xf32>
    %c1_147 = arith.constant 1 : index
    %c0_148 = arith.constant 0 : index
    %c0_149 = arith.constant 0 : index
    %164 = vector.load %arg6[%c1_147, %c0_148, %c0_149] : memref<16x16x120xf32, #tpu.memory_space<vmem>>, vector<1x16x120xf32>
    %165 = vector.shape_cast %164 : vector<1x16x120xf32> to vector<16x120xf32>
    %cst_150 = arith.constant dense<0.000000e+00> : vector<1x120xf32>
    %166 = tpu.matmul %163, %165, %cst_150 {dimension_numbers = #tpu.dot_dimension_numbers<[1], [0], [0], [1], [0, 0, 1, 1], [], []>} : vector<1x16xf32>, vector<16x120xf32>, vector<1x120xf32> -> vector<1x120xf32>
    %167 = arith.addf %162, %166 : vector<1x120xf32>
    %c4_151 = arith.constant 4 : index
    %c0_152 = arith.constant 0 : index
    %168 = vector.load %arg15[%c4_151, %c0_152] : memref<79x16xf32, #tpu.memory_space<vmem>>, vector<1x16xf32>
    %c2_153 = arith.constant 2 : index
    %c0_154 = arith.constant 0 : index
    %c0_155 = arith.constant 0 : index
    %169 = vector.load %arg6[%c2_153, %c0_154, %c0_155] : memref<16x16x120xf32, #tpu.memory_space<vmem>>, vector<1x16x120xf32>
    %170 = vector.shape_cast %169 : vector<1x16x120xf32> to vector<16x120xf32>
    %cst_156 = arith.constant dense<0.000000e+00> : vector<1x120xf32>
    %171 = tpu.matmul %168, %170, %cst_156 {dimension_numbers = #tpu.dot_dimension_numbers<[1], [0], [0], [1], [0, 0, 1, 1], [], []>} : vector<1x16xf32>, vector<16x120xf32>, vector<1x120xf32> -> vector<1x120xf32>
    %172 = arith.addf %167, %171 : vector<1x120xf32>
    %c6_157 = arith.constant 6 : index
    %c0_158 = arith.constant 0 : index
    %173 = vector.load %arg15[%c6_157, %c0_158] : memref<79x16xf32, #tpu.memory_space<vmem>>, vector<1x16xf32>
    %c3_159 = arith.constant 3 : index
    %c0_160 = arith.constant 0 : index
    %c0_161 = arith.constant 0 : index
    %174 = vector.load %arg6[%c3_159, %c0_160, %c0_161] : memref<16x16x120xf32, #tpu.memory_space<vmem>>, vector<1x16x120xf32>
    %175 = vector.shape_cast %174 : vector<1x16x120xf32> to vector<16x120xf32>
    %cst_162 = arith.constant dense<0.000000e+00> : vector<1x120xf32>
    %176 = tpu.matmul %173, %175, %cst_162 {dimension_numbers = #tpu.dot_dimension_numbers<[1], [0], [0], [1], [0, 0, 1, 1], [], []>} : vector<1x16xf32>, vector<16x120xf32>, vector<1x120xf32> -> vector<1x120xf32>
    %177 = arith.addf %172, %176 : vector<1x120xf32>
    %c24_163 = arith.constant 24 : index
    %c0_164 = arith.constant 0 : index
    %178 = vector.load %arg15[%c24_163, %c0_164] : memref<79x16xf32, #tpu.memory_space<vmem>>, vector<1x16xf32>
    %c4_165 = arith.constant 4 : index
    %c0_166 = arith.constant 0 : index
    %c0_167 = arith.constant 0 : index
    %179 = vector.load %arg6[%c4_165, %c0_166, %c0_167] : memref<16x16x120xf32, #tpu.memory_space<vmem>>, vector<1x16x120xf32>
    %180 = vector.shape_cast %179 : vector<1x16x120xf32> to vector<16x120xf32>
    %cst_168 = arith.constant dense<0.000000e+00> : vector<1x120xf32>
    %181 = tpu.matmul %178, %180, %cst_168 {dimension_numbers = #tpu.dot_dimension_numbers<[1], [0], [0], [1], [0, 0, 1, 1], [], []>} : vector<1x16xf32>, vector<16x120xf32>, vector<1x120xf32> -> vector<1x120xf32>
    %182 = arith.addf %177, %181 : vector<1x120xf32>
    %c26_169 = arith.constant 26 : index
    %c0_170 = arith.constant 0 : index
    %183 = vector.load %arg15[%c26_169, %c0_170] : memref<79x16xf32, #tpu.memory_space<vmem>>, vector<1x16xf32>
    %c5_171 = arith.constant 5 : index
    %c0_172 = arith.constant 0 : index
    %c0_173 = arith.constant 0 : index
    %184 = vector.load %arg6[%c5_171, %c0_172, %c0_173] : memref<16x16x120xf32, #tpu.memory_space<vmem>>, vector<1x16x120xf32>
    %185 = vector.shape_cast %184 : vector<1x16x120xf32> to vector<16x120xf32>
    %cst_174 = arith.constant dense<0.000000e+00> : vector<1x120xf32>
    %186 = tpu.matmul %183, %185, %cst_174 {dimension_numbers = #tpu.dot_dimension_numbers<[1], [0], [0], [1], [0, 0, 1, 1], [], []>} : vector<1x16xf32>, vector<16x120xf32>, vector<1x120xf32> -> vector<1x120xf32>
    %187 = arith.addf %182, %186 : vector<1x120xf32>
    %c28_175 = arith.constant 28 : index
    %c0_176 = arith.constant 0 : index
    %188 = vector.load %arg15[%c28_175, %c0_176] : memref<79x16xf32, #tpu.memory_space<vmem>>, vector<1x16xf32>
    %c6_177 = arith.constant 6 : index
    %c0_178 = arith.constant 0 : index
    %c0_179 = arith.constant 0 : index
    %189 = vector.load %arg6[%c6_177, %c0_178, %c0_179] : memref<16x16x120xf32, #tpu.memory_space<vmem>>, vector<1x16x120xf32>
    %190 = vector.shape_cast %189 : vector<1x16x120xf32> to vector<16x120xf32>
    %cst_180 = arith.constant dense<0.000000e+00> : vector<1x120xf32>
    %191 = tpu.matmul %188, %190, %cst_180 {dimension_numbers = #tpu.dot_dimension_numbers<[1], [0], [0], [1], [0, 0, 1, 1], [], []>} : vector<1x16xf32>, vector<16x120xf32>, vector<1x120xf32> -> vector<1x120xf32>
    %192 = arith.addf %187, %191 : vector<1x120xf32>
    %c30 = arith.constant 30 : index
    %c0_181 = arith.constant 0 : index
    %193 = vector.load %arg15[%c30, %c0_181] : memref<79x16xf32, #tpu.memory_space<vmem>>, vector<1x16xf32>
    %c7_182 = arith.constant 7 : index
    %c0_183 = arith.constant 0 : index
    %c0_184 = arith.constant 0 : index
    %194 = vector.load %arg6[%c7_182, %c0_183, %c0_184] : memref<16x16x120xf32, #tpu.memory_space<vmem>>, vector<1x16x120xf32>
    %195 = vector.shape_cast %194 : vector<1x16x120xf32> to vector<16x120xf32>
    %cst_185 = arith.constant dense<0.000000e+00> : vector<1x120xf32>
    %196 = tpu.matmul %193, %195, %cst_185 {dimension_numbers = #tpu.dot_dimension_numbers<[1], [0], [0], [1], [0, 0, 1, 1], [], []>} : vector<1x16xf32>, vector<16x120xf32>, vector<1x120xf32> -> vector<1x120xf32>
    %197 = arith.addf %192, %196 : vector<1x120xf32>
    %c48_186 = arith.constant 48 : index
    %c0_187 = arith.constant 0 : index
    %198 = vector.load %arg15[%c48_186, %c0_187] : memref<79x16xf32, #tpu.memory_space<vmem>>, vector<1x16xf32>
    %c8_188 = arith.constant 8 : index
    %c0_189 = arith.constant 0 : index
    %c0_190 = arith.constant 0 : index
    %199 = vector.load %arg6[%c8_188, %c0_189, %c0_190] : memref<16x16x120xf32, #tpu.memory_space<vmem>>, vector<1x16x120xf32>
    %200 = vector.shape_cast %199 : vector<1x16x120xf32> to vector<16x120xf32>
    %cst_191 = arith.constant dense<0.000000e+00> : vector<1x120xf32>
    %201 = tpu.matmul %198, %200, %cst_191 {dimension_numbers = #tpu.dot_dimension_numbers<[1], [0], [0], [1], [0, 0, 1, 1], [], []>} : vector<1x16xf32>, vector<16x120xf32>, vector<1x120xf32> -> vector<1x120xf32>
    %202 = arith.addf %197, %201 : vector<1x120xf32>
    %c50_192 = arith.constant 50 : index
    %c0_193 = arith.constant 0 : index
    %203 = vector.load %arg15[%c50_192, %c0_193] : memref<79x16xf32, #tpu.memory_space<vmem>>, vector<1x16xf32>
    %c9_194 = arith.constant 9 : index
    %c0_195 = arith.constant 0 : index
    %c0_196 = arith.constant 0 : index
    %204 = vector.load %arg6[%c9_194, %c0_195, %c0_196] : memref<16x16x120xf32, #tpu.memory_space<vmem>>, vector<1x16x120xf32>
    %205 = vector.shape_cast %204 : vector<1x16x120xf32> to vector<16x120xf32>
    %cst_197 = arith.constant dense<0.000000e+00> : vector<1x120xf32>
    %206 = tpu.matmul %203, %205, %cst_197 {dimension_numbers = #tpu.dot_dimension_numbers<[1], [0], [0], [1], [0, 0, 1, 1], [], []>} : vector<1x16xf32>, vector<16x120xf32>, vector<1x120xf32> -> vector<1x120xf32>
    %207 = arith.addf %202, %206 : vector<1x120xf32>
    %c52_198 = arith.constant 52 : index
    %c0_199 = arith.constant 0 : index
    %208 = vector.load %arg15[%c52_198, %c0_199] : memref<79x16xf32, #tpu.memory_space<vmem>>, vector<1x16xf32>
    %c10_200 = arith.constant 10 : index
    %c0_201 = arith.constant 0 : index
    %c0_202 = arith.constant 0 : index
    %209 = vector.load %arg6[%c10_200, %c0_201, %c0_202] : memref<16x16x120xf32, #tpu.memory_space<vmem>>, vector<1x16x120xf32>
    %210 = vector.shape_cast %209 : vector<1x16x120xf32> to vector<16x120xf32>
    %cst_203 = arith.constant dense<0.000000e+00> : vector<1x120xf32>
    %211 = tpu.matmul %208, %210, %cst_203 {dimension_numbers = #tpu.dot_dimension_numbers<[1], [0], [0], [1], [0, 0, 1, 1], [], []>} : vector<1x16xf32>, vector<16x120xf32>, vector<1x120xf32> -> vector<1x120xf32>
    %212 = arith.addf %207, %211 : vector<1x120xf32>
    %c54 = arith.constant 54 : index
    %c0_204 = arith.constant 0 : index
    %213 = vector.load %arg15[%c54, %c0_204] : memref<79x16xf32, #tpu.memory_space<vmem>>, vector<1x16xf32>
    %c11_205 = arith.constant 11 : index
    %c0_206 = arith.constant 0 : index
    %c0_207 = arith.constant 0 : index
    %214 = vector.load %arg6[%c11_205, %c0_206, %c0_207] : memref<16x16x120xf32, #tpu.memory_space<vmem>>, vector<1x16x120xf32>
    %215 = vector.shape_cast %214 : vector<1x16x120xf32> to vector<16x120xf32>
    %cst_208 = arith.constant dense<0.000000e+00> : vector<1x120xf32>
    %216 = tpu.matmul %213, %215, %cst_208 {dimension_numbers = #tpu.dot_dimension_numbers<[1], [0], [0], [1], [0, 0, 1, 1], [], []>} : vector<1x16xf32>, vector<16x120xf32>, vector<1x120xf32> -> vector<1x120xf32>
    %217 = arith.addf %212, %216 : vector<1x120xf32>
    %c72 = arith.constant 72 : index
    %c0_209 = arith.constant 0 : index
    %218 = vector.load %arg15[%c72, %c0_209] : memref<79x16xf32, #tpu.memory_space<vmem>>, vector<1x16xf32>
    %c12_210 = arith.constant 12 : index
    %c0_211 = arith.constant 0 : index
    %c0_212 = arith.constant 0 : index
    %219 = vector.load %arg6[%c12_210, %c0_211, %c0_212] : memref<16x16x120xf32, #tpu.memory_space<vmem>>, vector<1x16x120xf32>
    %220 = vector.shape_cast %219 : vector<1x16x120xf32> to vector<16x120xf32>
    %cst_213 = arith.constant dense<0.000000e+00> : vector<1x120xf32>
    %221 = tpu.matmul %218, %220, %cst_213 {dimension_numbers = #tpu.dot_dimension_numbers<[1], [0], [0], [1], [0, 0, 1, 1], [], []>} : vector<1x16xf32>, vector<16x120xf32>, vector<1x120xf32> -> vector<1x120xf32>
    %222 = arith.addf %217, %221 : vector<1x120xf32>
    %c74 = arith.constant 74 : index
    %c0_214 = arith.constant 0 : index
    %223 = vector.load %arg15[%c74, %c0_214] : memref<79x16xf32, #tpu.memory_space<vmem>>, vector<1x16xf32>
    %c13_215 = arith.constant 13 : index
    %c0_216 = arith.constant 0 : index
    %c0_217 = arith.constant 0 : index
    %224 = vector.load %arg6[%c13_215, %c0_216, %c0_217] : memref<16x16x120xf32, #tpu.memory_space<vmem>>, vector<1x16x120xf32>
    %225 = vector.shape_cast %224 : vector<1x16x120xf32> to vector<16x120xf32>
    %cst_218 = arith.constant dense<0.000000e+00> : vector<1x120xf32>
    %226 = tpu.matmul %223, %225, %cst_218 {dimension_numbers = #tpu.dot_dimension_numbers<[1], [0], [0], [1], [0, 0, 1, 1], [], []>} : vector<1x16xf32>, vector<16x120xf32>, vector<1x120xf32> -> vector<1x120xf32>
    %227 = arith.addf %222, %226 : vector<1x120xf32>
    %c76 = arith.constant 76 : index
    %c0_219 = arith.constant 0 : index
    %228 = vector.load %arg15[%c76, %c0_219] : memref<79x16xf32, #tpu.memory_space<vmem>>, vector<1x16xf32>
    %c14_220 = arith.constant 14 : index
    %c0_221 = arith.constant 0 : index
    %c0_222 = arith.constant 0 : index
    %229 = vector.load %arg6[%c14_220, %c0_221, %c0_222] : memref<16x16x120xf32, #tpu.memory_space<vmem>>, vector<1x16x120xf32>
    %230 = vector.shape_cast %229 : vector<1x16x120xf32> to vector<16x120xf32>
    %cst_223 = arith.constant dense<0.000000e+00> : vector<1x120xf32>
    %231 = tpu.matmul %228, %230, %cst_223 {dimension_numbers = #tpu.dot_dimension_numbers<[1], [0], [0], [1], [0, 0, 1, 1], [], []>} : vector<1x16xf32>, vector<16x120xf32>, vector<1x120xf32> -> vector<1x120xf32>
    %232 = arith.addf %227, %231 : vector<1x120xf32>
    %c78 = arith.constant 78 : index
    %c0_224 = arith.constant 0 : index
    %233 = vector.load %arg15[%c78, %c0_224] : memref<79x16xf32, #tpu.memory_space<vmem>>, vector<1x16xf32>
    %c15_225 = arith.constant 15 : index
    %c0_226 = arith.constant 0 : index
    %c0_227 = arith.constant 0 : index
    %234 = vector.load %arg6[%c15_225, %c0_226, %c0_227] : memref<16x16x120xf32, #tpu.memory_space<vmem>>, vector<1x16x120xf32>
    %235 = vector.shape_cast %234 : vector<1x16x120xf32> to vector<16x120xf32>
    %cst_228 = arith.constant dense<0.000000e+00> : vector<1x120xf32>
    %236 = tpu.matmul %233, %235, %cst_228 {dimension_numbers = #tpu.dot_dimension_numbers<[1], [0], [0], [1], [0, 0, 1, 1], [], []>} : vector<1x16xf32>, vector<16x120xf32>, vector<1x120xf32> -> vector<1x120xf32>
    %237 = arith.addf %232, %236 : vector<1x120xf32>
    %cst_229 = arith.constant 0.000000e+00 : f32
    %238 = vector.broadcast %cst_229 : f32 to vector<1x120xf32>
    %239 = arith.maximumf %237, %238 : vector<1x120xf32>
    %c0_230 = arith.constant 0 : index
    %c0_231 = arith.constant 0 : index
    %240 = vector.load %arg8[%c0_230, %c0_231] : memref<120x84xf32, #tpu.memory_space<vmem>>, vector<120x84xf32>
    %cst_232 = arith.constant dense<0.000000e+00> : vector<1x84xf32>
    %241 = tpu.matmul %239, %240, %cst_232 {dimension_numbers = #tpu.dot_dimension_numbers<[1], [0], [0], [1], [0, 0, 1, 1], [], []>} : vector<1x120xf32>, vector<120x84xf32>, vector<1x84xf32> -> vector<1x84xf32>
    %c0_233 = arith.constant 0 : index
    %c0_234 = arith.constant 0 : index
    %242 = vector.load %arg9[%c0_233, %c0_234] : memref<1x84xf32, #tpu.memory_space<vmem>>, vector<1x84xf32>
    %243 = arith.addf %241, %242 : vector<1x84xf32>
    %cst_235 = arith.constant 0.000000e+00 : f32
    %244 = vector.broadcast %cst_235 : f32 to vector<1x84xf32>
    %245 = arith.maximumf %243, %244 : vector<1x84xf32>
    %c0_236 = arith.constant 0 : index
    %c0_237 = arith.constant 0 : index
    %246 = vector.load %arg10[%c0_236, %c0_237] : memref<84x128xf32, #tpu.memory_space<vmem>>, vector<84x128xf32>
    %cst_238 = arith.constant dense<0.000000e+00> : vector<1x128xf32>
    %247 = tpu.matmul %245, %246, %cst_238 {dimension_numbers = #tpu.dot_dimension_numbers<[1], [0], [0], [1], [0, 0, 1, 1], [], []>} : vector<1x84xf32>, vector<84x128xf32>, vector<1x128xf32> -> vector<1x128xf32>
    %c0_239 = arith.constant 0 : index
    %c0_240 = arith.constant 0 : index
    %248 = vector.load %arg11[%c0_239, %c0_240] : memref<1x128xf32, #tpu.memory_space<vmem>>, vector<1x128xf32>
    %249 = arith.addf %247, %248 : vector<1x128xf32>
    %c0_241 = arith.constant 0 : index
    %c0_242 = arith.constant 0 : index
    %c0_243 = arith.constant 0 : index
    %250 = vector.load %arg12[%c0_241, %c0_242, %c0_243] : memref<1x1x128xf32, #tpu.memory_space<vmem>>, vector<1x1x128xf32>
    %251 = vector.shape_cast %250 : vector<1x1x128xf32> to vector<1x128xf32>
    %252 = vector.shape_cast %249 : vector<1x128xf32> to vector<1x1x128xf32>
    tpu.vector_store %arg12[%c0_241, %c0_242, %c0_243], %252 {strides = array<i32>} : memref<1x1x128xf32, #tpu.memory_space<vmem>>, vector<1x1x128xf32>,
    return
  }
  func.func @transform_0(%arg0: i32) -> (i32, i32, i32) {
    %c0_i32 = arith.constant 0 : i32
    %c0_i32_0 = arith.constant 0 : i32
    %c0_i32_1 = arith.constant 0 : i32
    return %arg0, %c0_i32, %c0_i32_0 : i32, i32, i32
  }
  func.func @transform_1(%arg0: i32) -> (i32, i32) {
    %c0_i32 = arith.constant 0 : i32
    %c0_i32_0 = arith.constant 0 : i32
    %c0_i32_1 = arith.constant 0 : i32
    return %c0_i32, %c0_i32_0 : i32, i32
  }
  func.func @transform_2(%arg0: i32) -> (i32, i32) {
    %c0_i32 = arith.constant 0 : i32
    %c0_i32_0 = arith.constant 0 : i32
    %c0_i32_1 = arith.constant 0 : i32
    return %c0_i32, %c0_i32_0 : i32, i32
  }
  func.func @transform_3(%arg0: i32) -> (i32, i32, i32) {
    %c0_i32 = arith.constant 0 : i32
    %c0_i32_0 = arith.constant 0 : i32
    %c0_i32_1 = arith.constant 0 : i32
    %c0_i32_2 = arith.constant 0 : i32
    return %c0_i32, %c0_i32_0, %c0_i32_1 : i32, i32, i32
  }
  func.func @transform_4(%arg0: i32) -> (i32, i32) {
    %c0_i32 = arith.constant 0 : i32
    %c0_i32_0 = arith.constant 0 : i32
    %c0_i32_1 = arith.constant 0 : i32
    return %c0_i32, %c0_i32_0 : i32, i32
  }
  func.func @transform_5(%arg0: i32) -> (i32, i32, i32) {
    %c0_i32 = arith.constant 0 : i32
    %c0_i32_0 = arith.constant 0 : i32
    %c0_i32_1 = arith.constant 0 : i32
    %c0_i32_2 = arith.constant 0 : i32
    return %c0_i32, %c0_i32_0, %c0_i32_1 : i32, i32, i32
  }
  func.func @transform_6(%arg0: i32) -> (i32, i32) {
    %c0_i32 = arith.constant 0 : i32
    %c0_i32_0 = arith.constant 0 : i32
    %c0_i32_1 = arith.constant 0 : i32
    return %c0_i32, %c0_i32_0 : i32, i32
  }
  func.func @transform_7(%arg0: i32) -> (i32, i32) {
    %c0_i32 = arith.constant 0 : i32
    %c0_i32_0 = arith.constant 0 : i32
    %c0_i32_1 = arith.constant 0 : i32
    return %c0_i32, %c0_i32_0 : i32, i32
  }
  func.func @transform_8(%arg0: i32) -> (i32, i32) {
    %c0_i32 = arith.constant 0 : i32
    %c0_i32_0 = arith.constant 0 : i32
    %c0_i32_1 = arith.constant 0 : i32
    return %c0_i32, %c0_i32_0 : i32, i32
  }
  func.func @transform_9(%arg0: i32) -> (i32, i32) {
    %c0_i32 = arith.constant 0 : i32
    %c0_i32_0 = arith.constant 0 : i32
    %c0_i32_1 = arith.constant 0 : i32
    return %c0_i32, %c0_i32_0 : i32, i32
  }
  func.func @transform_10(%arg0: i32) -> (i32, i32) {
    %c0_i32 = arith.constant 0 : i32
    %c0_i32_0 = arith.constant 0 : i32
    %c0_i32_1 = arith.constant 0 : i32
    return %c0_i32, %c0_i32_0 : i32, i32
  }
  func.func @transform_11(%arg0: i32) -> (i32, i32, i32) {
    %c0_i32 = arith.constant 0 : i32
    %c0_i32_0 = arith.constant 0 : i32
    %c0_i32_1 = arith.constant 0 : i32
    return %arg0, %c0_i32, %c0_i32_0 : i32, i32, i32
  }
}

</mosaic_0001>

<llo_original>
// kernel: lenet_forward.1
$region0: #{lenet_forward.1}
  #allocation0 [shape = 'u32[]', space=smem, size = 0x4, offset = 0x4, fixed_abs, tag = 'smem constant byte address 0x4 - core index']
  #allocation1 [shape = 'u32[144,128]{1,0:T(1,128)}', space=vmem, size = 0x12000, scoped, tag = 'internal scratch']
  #allocation2 [shape = 'f32[144,6]{1,0:T(8,128)}', space=vmem, size = 0x12000, scoped, tag = 'scratch operand']
  #allocation3 [shape = 'f32[92,16]{1,0:T(8,128)}', space=vmem, size = 0xc000, scoped, tag = 'scratch operand']
  #allocation4 [shape = 'f32[79,16]{1,0:T(8,128)}', space=vmem, size = 0xa000, scoped, tag = 'scratch operand']
  %s0 = inlined_call_operand.vmem [shape: f32[2,576,25], index: 0, kind: input, shape index: {}]
  %s1 = inlined_call_operand.vmem [shape: f32[25,6], index: 1, kind: input, shape index: {}]
  %s2 = inlined_call_operand.vmem [shape: f32[1,6], index: 2, kind: input, shape index: {}]
  %s3 = inlined_call_operand.vmem [shape: f32[25,6,16], index: 3, kind: input, shape index: {}]
  %s4 = inlined_call_operand.vmem [shape: f32[1,16], index: 4, kind: input, shape index: {}]
  %s5 = inlined_call_operand.vmem [shape: f32[16,16,120], index: 5, kind: input, shape index: {}]
  %s6 = inlined_call_operand.vmem [shape: f32[1,120], index: 6, kind: input, shape index: {}]
  %s7 = inlined_call_operand.vmem [shape: f32[120,84], index: 7, kind: input, shape index: {}]
  %s8 = inlined_call_operand.vmem [shape: f32[1,84], index: 8, kind: input, shape index: {}]
  %s9 = inlined_call_operand.vmem [shape: f32[84,128], index: 9, kind: input, shape index: {}]
  %s10 = inlined_call_operand.vmem [shape: f32[1,128], index: 10, kind: input, shape index: {}]
  %s11 = inlined_call_operand.hbm [shape: f32[2,1,128], index: 11, kind: output, shape index: {}]
  %s12 = sld [smem:[#allocation0]]
  $region77: #{lenet_forward.1} parent=0
    _
  %s14 = ssub.s32 1, %s12
  %s15 = scalar_select 0, %s14, %s12
  $region1: #{lenet_forward.1} parent=0
    #allocation5 [shape = 'u8[1024]{0}', space=vmem, size = 0x400, scoped, tag = 'output window, operand 0']
    #allocation6 [shape = 's32[2]{0}', space=sflag, size = 0x8, scoped, tag = 'scoped memory for lenet_forward.1']
    %16 = vsyncpa [#allocation6], 0
    %s17 = scalar_lea.sflag [#allocation6], 1
    %18 = vsyncpa %s17, 0
    loop: start=0, step=1, limit=4
    $region2: #{lenet_forward.1} parent=1 // loop_pre_header
      _
    $region3: #{lenet_forward.1} parent=1 // loop_header
      %s20 = sphi 0, %s24
      %p21 = scmp.ge.s32.totalorder %s20, 4
      %s30 = sphi 0, %s32
      %s33 = sphi 0, %s30
      %s34 = sphi 0, %s33
      %s50 = sphi 0, %s34
      %s54 = sphi 0, %s54
      %s56 = sphi 0, %s54
      %s57 = sphi 0, %s56
      %s71 = sphi 0, %s57
      %s75 = sphi 0, %s75
      %s77 = sphi 0, %s75
      %s78 = sphi 0, %s77
      %s92 = sphi 0, %s78
      %s96 = sphi 0, %s96
      %s98 = sphi 0, %s96
      %s99 = sphi 0, %s98
      %s113 = sphi 0, %s99
      %s117 = sphi 0, %s117
      %s119 = sphi 0, %s117
      %s120 = sphi 0, %s119
      %s134 = sphi 0, %s120
      %s138 = sphi 0, %s138
      %s140 = sphi 0, %s138
      %s141 = sphi 0, %s140
      %s155 = sphi 0, %s141
      %s159 = sphi 0, %s159
      %s161 = sphi 0, %s159
      %s162 = sphi 0, %s161
      %s176 = sphi 0, %s162
      %s180 = sphi 0, %s180
      %s182 = sphi 0, %s180
      %s183 = sphi 0, %s182
      %s197 = sphi 0, %s183
      %s201 = sphi 0, %s201
      %s203 = sphi 0, %s201
      %s204 = sphi 0, %s203
      %s218 = sphi 0, %s204
      %s222 = sphi 0, %s222
      %s224 = sphi 0, %s222
      %s225 = sphi 0, %s224
      %s239 = sphi 0, %s225
      %s243 = sphi 0, %s243
      %s245 = sphi 0, %s243
      %s246 = sphi 0, %s245
      %s260 = sphi 0, %s246
      %s266 = sphi 0, %s268
      %s269 = sphi 0, %s266
      %s270 = sphi 0, %s269
      %s286 = sphi 0, %s270
    $region4: #{lenet_forward.1} parent=1 // loop_header_branch
      %23 = sbr.rel (%p21) target = $region8
    $region5: #{lenet_forward.1} parent=1 // loop_body
      %s25 = ssub.s32 %s20, 1
      %s26 = ssub.s32 %s20, 2
      %s27 = sadd.s32 %s20, 1
      %s28 = ssub.s32 %s20, %s27
      %p29 = scmp.eq.s32.totalorder %s28, 0
      %s31 = sadd.s32 %s30, 1
      %s32 = scalar_select %p29, %s30, %s31
      %p35 = pneg %p29
      %p36 = scmp.eq.s32.totalorder %s20, 1
      %p37 = por %p35, %p36
      %p38 = scmp.ne.s32.totalorder %s30, %s33
      %p39 = scmp.eq.s32.totalorder %s20, 0
      %p40 = por %p38, %p39
      %p41 = scmp.ne.s32.totalorder %s30, %s33
      %p42 = scmp.eq.s32.totalorder %s25, 1
      %p43 = por %p41, %p42
      %p44 = scmp.ne.s32.totalorder %s33, %s34
      %p45 = scmp.eq.s32.totalorder %s25, 0
      %p46 = por %p44, %p45
      %p47 = scmp.ne.s32.totalorder %s33, %s34
      %p48 = scmp.eq.s32.totalorder %s26, 1
      %p49 = por %p47, %p48
      %p51 = scmp.ne.s32.totalorder %s34, %s50
      %p52 = scmp.eq.s32.totalorder %s26, 0
      %p53 = por %p51, %p52
      %s55 = sadd.s32 %s54, 1
      %p58 = scmp.eq.s32.totalorder %s20, 1
      %p59 = scmp.ne.s32.totalorder %s54, %s56
      %p60 = scmp.eq.s32.totalorder %s20, 0
      %p61 = por %p59, %p60
      %p62 = scmp.ne.s32.totalorder %s54, %s56
      %p63 = scmp.eq.s32.totalorder %s25, 1
      %p64 = por %p62, %p63
      %p65 = scmp.ne.s32.totalorder %s56, %s57
      %p66 = scmp.eq.s32.totalorder %s25, 0
      %p67 = por %p65, %p66
      %p68 = scmp.ne.s32.totalorder %s56, %s57
      %p69 = scmp.eq.s32.totalorder %s26, 1
      %p70 = por %p68, %p69
      %p72 = scmp.ne.s32.totalorder %s57, %s71
      %p73 = scmp.eq.s32.totalorder %s26, 0
      %p74 = por %p72, %p73
      %s76 = sadd.s32 %s75, 1
      %p79 = scmp.eq.s32.totalorder %s20, 1
      %p80 = scmp.ne.s32.totalorder %s75, %s77
      %p81 = scmp.eq.s32.totalorder %s20, 0
      %p82 = por %p80, %p81
      %p83 = scmp.ne.s32.totalorder %s75, %s77
      %p84 = scmp.eq.s32.totalorder %s25, 1
      %p85 = por %p83, %p84
      %p86 = scmp.ne.s32.totalorder %s77, %s78
      %p87 = scmp.eq.s32.totalorder %s25, 0
      %p88 = por %p86, %p87
      %p89 = scmp.ne.s32.totalorder %s77, %s78
      %p90 = scmp.eq.s32.totalorder %s26, 1
      %p91 = por %p89, %p90
      %p93 = scmp.ne.s32.totalorder %s78, %s92
      %p94 = scmp.eq.s32.totalorder %s26, 0
      %p95 = por %p93, %p94
      %s97 = sadd.s32 %s96, 1
      %p100 = scmp.eq.s32.totalorder %s20, 1
      %p101 = scmp.ne.s32.totalorder %s96, %s98
      %p102 = scmp.eq.s32.totalorder %s20, 0
      %p103 = por %p101, %p102
      %p104 = scmp.ne.s32.totalorder %s96, %s98
      %p105 = scmp.eq.s32.totalorder %s25, 1
      %p106 = por %p104, %p105
      %p107 = scmp.ne.s32.totalorder %s98, %s99
      %p108 = scmp.eq.s32.totalorder %s25, 0
      %p109 = por %p107, %p108
      %p110 = scmp.ne.s32.totalorder %s98, %s99
      %p111 = scmp.eq.s32.totalorder %s26, 1
      %p112 = por %p110, %p111
      %p114 = scmp.ne.s32.totalorder %s99, %s113
      %p115 = scmp.eq.s32.totalorder %s26, 0
      %p116 = por %p114, %p115
      %s118 = sadd.s32 %s117, 1
      %p121 = scmp.eq.s32.totalorder %s20, 1
      %p122 = scmp.ne.s32.totalorder %s117, %s119
      %p123 = scmp.eq.s32.totalorder %s20, 0
      %p124 = por %p122, %p123
      %p125 = scmp.ne.s32.totalorder %s117, %s119
      %p126 = scmp.eq.s32.totalorder %s25, 1
      %p127 = por %p125, %p126
      %p128 = scmp.ne.s32.totalorder %s119, %s120
      %p129 = scmp.eq.s32.totalorder %s25, 0
      %p130 = por %p128, %p129
      %p131 = scmp.ne.s32.totalorder %s119, %s120
      %p132 = scmp.eq.s32.totalorder %s26, 1
      %p133 = por %p131, %p132
      %p135 = scmp.ne.s32.totalorder %s120, %s134
      %p136 = scmp.eq.s32.totalorder %s26, 0
      %p137 = por %p135, %p136
      %s139 = sadd.s32 %s138, 1
      %p142 = scmp.eq.s32.totalorder %s20, 1
      %p143 = scmp.ne.s32.totalorder %s138, %s140
      %p144 = scmp.eq.s32.totalorder %s20, 0
      %p145 = por %p143, %p144
      %p146 = scmp.ne.s32.totalorder %s138, %s140
      %p147 = scmp.eq.s32.totalorder %s25, 1
      %p148 = por %p146, %p147
      %p149 = scmp.ne.s32.totalorder %s140, %s141
      %p150 = scmp.eq.s32.totalorder %s25, 0
      %p151 = por %p149, %p150
      %p152 = scmp.ne.s32.totalorder %s140, %s141
      %p153 = scmp.eq.s32.totalorder %s26, 1
      %p154 = por %p152, %p153
      %p156 = scmp.ne.s32.totalorder %s141, %s155
      %p157 = scmp.eq.s32.totalorder %s26, 0
      %p158 = por %p156, %p157
      %s160 = sadd.s32 %s159, 1
      %p163 = scmp.eq.s32.totalorder %s20, 1
      %p164 = scmp.ne.s32.totalorder %s159, %s161
      %p165 = scmp.eq.s32.totalorder %s20, 0
      %p166 = por %p164, %p165
      %p167 = scmp.ne.s32.totalorder %s159, %s161
      %p168 = scmp.eq.s32.totalorder %s25, 1
      %p169 = por %p167, %p168
      %p170 = scmp.ne.s32.totalorder %s161, %s162
      %p171 = scmp.eq.s32.totalorder %s25, 0
      %p172 = por %p170, %p171
      %p173 = scmp.ne.s32.totalorder %s161, %s162
      %p174 = scmp.eq.s32.totalorder %s26, 1
      %p175 = por %p173, %p174
      %p177 = scmp.ne.s32.totalorder %s162, %s176
      %p178 = scmp.eq.s32.totalorder %s26, 0
      %p179 = por %p177, %p178
      %s181 = sadd.s32 %s180, 1
      %p184 = scmp.eq.s32.totalorder %s20, 1
      %p185 = scmp.ne.s32.totalorder %s180, %s182
      %p186 = scmp.eq.s32.totalorder %s20, 0
      %p187 = por %p185, %p186
      %p188 = scmp.ne.s32.totalorder %s180, %s182
      %p189 = scmp.eq.s32.totalorder %s25, 1
      %p190 = por %p188, %p189
      %p191 = scmp.ne.s32.totalorder %s182, %s183
      %p192 = scmp.eq.s32.totalorder %s25, 0
      %p193 = por %p191, %p192
      %p194 = scmp.ne.s32.totalorder %s182, %s183
      %p195 = scmp.eq.s32.totalorder %s26, 1
      %p196 = por %p194, %p195
      %p198 = scmp.ne.s32.totalorder %s183, %s197
      %p199 = scmp.eq.s32.totalorder %s26, 0
      %p200 = por %p198, %p199
      %s202 = sadd.s32 %s201, 1
      %p205 = scmp.eq.s32.totalorder %s20, 1
      %p206 = scmp.ne.s32.totalorder %s201, %s203
      %p207 = scmp.eq.s32.totalorder %s20, 0
      %p208 = por %p206, %p207
      %p209 = scmp.ne.s32.totalorder %s201, %s203
      %p210 = scmp.eq.s32.totalorder %s25, 1
      %p211 = por %p209, %p210
      %p212 = scmp.ne.s32.totalorder %s203, %s204
      %p213 = scmp.eq.s32.totalorder %s25, 0
      %p214 = por %p212, %p213
      %p215 = scmp.ne.s32.totalorder %s203, %s204
      %p216 = scmp.eq.s32.totalorder %s26, 1
      %p217 = por %p215, %p216
      %p219 = scmp.ne.s32.totalorder %s204, %s218
      %p220 = scmp.eq.s32.totalorder %s26, 0
      %p221 = por %p219, %p220
      %s223 = sadd.s32 %s222, 1
      %p226 = scmp.eq.s32.totalorder %s20, 1
      %p227 = scmp.ne.s32.totalorder %s222, %s224
      %p228 = scmp.eq.s32.totalorder %s20, 0
      %p229 = por %p227, %p228
      %p230 = scmp.ne.s32.totalorder %s222, %s224
      %p231 = scmp.eq.s32.totalorder %s25, 1
      %p232 = por %p230, %p231
      %p233 = scmp.ne.s32.totalorder %s224, %s225
      %p234 = scmp.eq.s32.totalorder %s25, 0
      %p235 = por %p233, %p234
      %p236 = scmp.ne.s32.totalorder %s224, %s225
      %p237 = scmp.eq.s32.totalorder %s26, 1
      %p238 = por %p236, %p237
      %p240 = scmp.ne.s32.totalorder %s225, %s239
      %p241 = scmp.eq.s32.totalorder %s26, 0
      %p242 = por %p240, %p241
      %s244 = sadd.s32 %s243, 1
      %p247 = scmp.eq.s32.totalorder %s20, 1
      %p248 = scmp.ne.s32.totalorder %s243, %s245
      %p249 = scmp.eq.s32.totalorder %s20, 0
      %p250 = por %p248, %p249
      %p251 = scmp.ne.s32.totalorder %s243, %s245
      %p252 = scmp.eq.s32.totalorder %s25, 1
      %p253 = por %p251, %p252
      %p254 = scmp.ne.s32.totalorder %s245, %s246
      %p255 = scmp.eq.s32.totalorder %s25, 0
      %p256 = por %p254, %p255
      %p257 = scmp.ne.s32.totalorder %s245, %s246
      %p258 = scmp.eq.s32.totalorder %s26, 1
      %p259 = por %p257, %p258
      %p261 = scmp.ne.s32.totalorder %s246, %s260
      %p262 = scmp.eq.s32.totalorder %s26, 0
      %p263 = por %p261, %p262
      %s264 = ssub.s32 %s20, %s27
      %p265 = scmp.eq.s32.totalorder %s264, 0
      %s267 = sadd.s32 %s266, 1
      %s268 = scalar_select %p265, %s266, %s267
      %p271 = pneg %p265
      %p272 = scmp.eq.s32.totalorder %s20, 1
      %p273 = por %p271, %p272
      %p274 = scmp.ne.s32.totalorder %s266, %s269
      %p275 = scmp.eq.s32.totalorder %s20, 0
      %p276 = por %p274, %p275
      %p277 = scmp.ne.s32.totalorder %s266, %s269
      %p278 = scmp.eq.s32.totalorder %s25, 1
      %p279 = por %p277, %p278
      %p280 = scmp.ne.s32.totalorder %s269, %s270
      %p281 = scmp.eq.s32.totalorder %s25, 0
      %p282 = por %p280, %p281
      %p283 = scmp.ne.s32.totalorder %s269, %s270
      %p284 = scmp.eq.s32.totalorder %s26, 1
      %p285 = por %p283, %p284
      %p287 = scmp.ne.s32.totalorder %s270, %s286
      %p288 = scmp.eq.s32.totalorder %s26, 0
      %p289 = por %p287, %p288
      %p290 = scmp.le.s32.totalorder 1, %s20
      %p291 = scmp.lt.s32.totalorder %s20, 3
      %p292 = pnand %p290, %p291
      %p293 = pneg %p292
      // Predicated region
      $region9: #{lenet_forward.1} parent=5 // pred_check
        _
      $region10: #{lenet_forward.1} parent=5 // pred_check_branch
        %295 = sbr.rel (%p292) target = $region12
      $region11: #{lenet_forward.1} parent=5 // pred_region
        %s296 = ssub.s32 %s20, 1
        // Predicated region
        $region13: #{lenet_forward.1} parent=11 // pred_check
          %p297 = pneg %p67
        $region14: #{lenet_forward.1} parent=11 // pred_check_branch
          %299 = sbr.rel (%p297) target = $region16
        $region15: #{lenet_forward.1} parent=11 // pred_region
          _
        $region16: #{lenet_forward.1} parent=11 // pred_fallthru
          _
        // Predicated region
        $region17: #{lenet_forward.1} parent=11 // pred_check
          %p300 = pneg %p88
        $region18: #{lenet_forward.1} parent=11 // pred_check_branch
          %302 = sbr.rel (%p300) target = $region20
        $region19: #{lenet_forward.1} parent=11 // pred_region
          _
        $region20: #{lenet_forward.1} parent=11 // pred_fallthru
          _
        // Predicated region
        $region21: #{lenet_forward.1} parent=11 // pred_check
          %p303 = pneg %p109
        $region22: #{lenet_forward.1} parent=11 // pred_check_branch
          %305 = sbr.rel (%p303) target = $region24
        $region23: #{lenet_forward.1} parent=11 // pred_region
          _
        $region24: #{lenet_forward.1} parent=11 // pred_fallthru
          _
        // Predicated region
        $region25: #{lenet_forward.1} parent=11 // pred_check
          %p306 = pneg %p130
        $region26: #{lenet_forward.1} parent=11 // pred_check_branch
          %308 = sbr.rel (%p306) target = $region28
        $region27: #{lenet_forward.1} parent=11 // pred_region
          _
        $region28: #{lenet_forward.1} parent=11 // pred_fallthru
          _
        // Predicated region
        $region29: #{lenet_forward.1} parent=11 // pred_check
          %p309 = pneg %p151
        $region30: #{lenet_forward.1} parent=11 // pred_check_branch
          %311 = sbr.rel (%p309) target = $region32
        $region31: #{lenet_forward.1} parent=11 // pred_region
          _
        $region32: #{lenet_forward.1} parent=11 // pred_fallthru
          _
        // Predicated region
        $region33: #{lenet_forward.1} parent=11 // pred_check
          %p312 = pneg %p172
        $region34: #{lenet_forward.1} parent=11 // pred_check_branch
          %314 = sbr.rel (%p312) target = $region36
        $region35: #{lenet_forward.1} parent=11 // pred_region
          _
        $region36: #{lenet_forward.1} parent=11 // pred_fallthru
          _
        // Predicated region
        $region37: #{lenet_forward.1} parent=11 // pred_check
          %p315 = pneg %p193
        $region38: #{lenet_forward.1} parent=11 // pred_check_branch
          %317 = sbr.rel (%p315) target = $region40
        $region39: #{lenet_forward.1} parent=11 // pred_region
          _
        $region40: #{lenet_forward.1} parent=11 // pred_fallthru
          _
        // Predicated region
        $region41: #{lenet_forward.1} parent=11 // pred_check
          %p318 = pneg %p214
        $region42: #{lenet_forward.1} parent=11 // pred_check_branch
          %320 = sbr.rel (%p318) target = $region44
        $region43: #{lenet_forward.1} parent=11 // pred_region
          _
        $region44: #{lenet_forward.1} parent=11 // pred_fallthru
          _
        // Predicated region
        $region45: #{lenet_forward.1} parent=11 // pred_check
          %p321 = pneg %p235
        $region46: #{lenet_forward.1} parent=11 // pred_check_branch
          %323 = sbr.rel (%p321) target = $region48
        $region47: #{lenet_forward.1} parent=11 // pred_region
          _
        $region48: #{lenet_forward.1} parent=11 // pred_fallthru
          _
        // Predicated region
        $region49: #{lenet_forward.1} parent=11 // pred_check
          %p324 = pneg %p256
        $region50: #{lenet_forward.1} parent=11 // pred_check_branch
          %326 = sbr.rel (%p324) target = $region52
        $region51: #{lenet_forward.1} parent=11 // pred_region
          _
        $region52: #{lenet_forward.1} parent=11 // pred_fallthru
          _
      $region12: #{lenet_forward.1} parent=5 // pred_fallthru
        _
      %p327 = scmp.lt.s32.totalorder %s20, 2
      // Predicated region
      $region53: #{lenet_forward.1} parent=5 // pred_check
        %p328 = pneg %p327
      $region54: #{lenet_forward.1} parent=5 // pred_check_branch
        %330 = sbr.rel (%p328) target = $region56
      $region55: #{lenet_forward.1} parent=5 // pred_region
        // Predicated region
        $region57: #{lenet_forward.1} parent=55 // pred_check
          %p331 = pneg %p40
        $region58: #{lenet_forward.1} parent=55 // pred_check_branch
          %333 = sbr.rel (%p331) target = $region60
        $region59: #{lenet_forward.1} parent=55 // pred_region
          %p334 = scmp.lt.s32.totalorder %s20, 1
          %s335 = scalar_select %p334, %s20, 1
          %s336 = smul.addr %s335, 72
          %s337 = smul.addr %s336, 8
          %s338 = scalar_lea.vmem %s0, %s337
        $region60: #{lenet_forward.1} parent=55 // pred_fallthru
          _
      $region56: #{lenet_forward.1} parent=5 // pred_fallthru
        _
      %p339 = scmp.le.s32.totalorder 1, %s20
      %p340 = scmp.lt.s32.totalorder %s20, 3
      %p341 = pnand %p339, %p340
      %p342 = pneg %p341
      // Predicated region
      $region61: #{lenet_forward.1} parent=5 // pred_check
        _
      $region62: #{lenet_forward.1} parent=5 // pred_check_branch
        %344 = sbr.rel (%p341) target = $region64
      $region63: #{lenet_forward.1} parent=5 // pred_region
        %s345 = ssub.s32 %s20, 1
        %p346 = scmp.lt.s32.totalorder %s25, 1
        %s347 = scalar_select %p346, %s25, 1
        %s348 = smul.addr %s347, 72
        %s349 = smul.addr %s348, 8
        %s350 = scalar_lea.vmem %s0, %s349
        %p351 = pneg %p46
        %p352 = pneg %p43
        %p353 = pneg %p67
        %p354 = pneg %p64
        %p355 = pneg %p88
        %p356 = pneg %p85
        %p357 = pneg %p109
        %p358 = pneg %p106
        %p359 = pneg %p130
        %p360 = pneg %p127
        %p361 = pneg %p151
        %p362 = pneg %p148
        %p363 = pneg %p172
        %p364 = pneg %p169
        %p365 = pneg %p193
        %p366 = pneg %p190
        %p367 = pneg %p214
        %p368 = pneg %p211
        %p369 = pneg %p235
        %p370 = pneg %p232
        %p371 = pneg %p256
        %p372 = pneg %p253
        %p373 = pneg %p282
        %p374 = pneg %p279
        %s375 = sand.u32 %s269, 1
        %s376 = scalar_lea.sflag [#allocation6], %s375
        %s377 = sand.u32 %s269, 1
        %s378 = scalar_lea.vmem [#allocation5], %s377
        %p379 = scmp.lt.s32.totalorder %s25, 1
        %s380 = scalar_select %p379, %s25, 1
        %s381 = smul.addr %s380, 72
        %s382 = smul.addr %s381, 8
        %s383 = scalar_lea.vmem %s0, %s382
        %v384 = vld [vmem:[%s383] sm:$0xff]
        %v385 = vld [vmem:[%s383 + $0x8] sm:$0xff]
        %v386 = vld [vmem:[%s383 + $0x10] sm:$0xff]
        %v387 = vld [vmem:[%s383 + $0x18] sm:$0xff]
        %v388 = vld [vmem:[%s383 + $0x20] sm:$0xff]
        %v389 = vld [vmem:[%s383 + $0x28] sm:$0xff]
        %v390 = vld [vmem:[%s383 + $0x30] sm:$0xff]
        %v391 = vld [vmem:[%s383 + $0x38] sm:$0xff]
        %v392 = vld [vmem:[%s383 + $0x40] sm:$0xff]
        %v393 = vld [vmem:[%s383 + $0x48] sm:$0xff]
        %v394 = vld [vmem:[%s383 + $0x50] sm:$0xff]
        %v395 = vld [vmem:[%s383 + $0x58] sm:$0xff]
        %v396 = vld [vmem:[%s383 + $0x60] sm:$0xff]
        %v397 = vld [vmem:[%s383 + $0x68] sm:$0xff]
        %v398 = vld [vmem:[%s383 + $0x70] sm:$0xff]
        %v399 = vld [vmem:[%s383 + $0x78] sm:$0xff]
        %v400 = vld [vmem:[%s383 + $0x80] sm:$0xff]
        %v401 = vld [vmem:[%s383 + $0x88] sm:$0xff]
        %v402 = vld [vmem:[%s383 + $0x90] sm:$0xff]
        %v403 = vld [vmem:[%s383 + $0x98] sm:$0xff]
        %v404 = vld [vmem:[%s383 + $0xa0] sm:$0xff]
        %v405 = vld [vmem:[%s383 + $0xa8] sm:$0xff]
        %v406 = vld [vmem:[%s383 + $0xb0] sm:$0xff]
        %v407 = vld [vmem:[%s383 + $0xb8] sm:$0xff]
        %v408 = vld [vmem:[%s383 + $0xc0] sm:$0xff]
        %v409 = vld [vmem:[%s383 + $0xc8] sm:$0xff]
        %v410 = vld [vmem:[%s383 + $0xd0] sm:$0xff]
        %v411 = vld [vmem:[%s383 + $0xd8] sm:$0xff]
        %v412 = vld [vmem:[%s383 + $0xe0] sm:$0xff]
        %v413 = vld [vmem:[%s383 + $0xe8] sm:$0xff]
        %v414 = vld [vmem:[%s383 + $0xf0] sm:$0xff]
        %v415 = vld [vmem:[%s383 + $0xf8] sm:$0xff]
        %v416 = vld [vmem:[%s383 + $0x100] sm:$0xff]
        %v417 = vld [vmem:[%s383 + $0x108] sm:$0xff]
        %v418 = vld [vmem:[%s383 + $0x110] sm:$0xff]
        %v419 = vld [vmem:[%s383 + $0x118] sm:$0xff]
        %v420 = vld [vmem:[%s383 + $0x120] sm:$0xff]
        %v421 = vld [vmem:[%s383 + $0x128] sm:$0xff]
        %v422 = vld [vmem:[%s383 + $0x130] sm:$0xff]
        %v423 = vld [vmem:[%s383 + $0x138] sm:$0xff]
        %v424 = vld [vmem:[%s383 + $0x140] sm:$0xff]
        %v425 = vld [vmem:[%s383 + $0x148] sm:$0xff]
        %v426 = vld [vmem:[%s383 + $0x150] sm:$0xff]
        %v427 = vld [vmem:[%s383 + $0x158] sm:$0xff]
        %v428 = vld [vmem:[%s383 + $0x160] sm:$0xff]
        %v429 = vld [vmem:[%s383 + $0x168] sm:$0xff]
        %v430 = vld [vmem:[%s383 + $0x170] sm:$0xff]
        %v431 = vld [vmem:[%s383 + $0x178] sm:$0xff]
        %v432 = vld [vmem:[%s383 + $0x180] sm:$0xff]
        %v433 = vld [vmem:[%s383 + $0x188] sm:$0xff]
        %v434 = vld [vmem:[%s383 + $0x190] sm:$0xff]
        %v435 = vld [vmem:[%s383 + $0x198] sm:$0xff]
        %v436 = vld [vmem:[%s383 + $0x1a0] sm:$0xff]
        %v437 = vld [vmem:[%s383 + $0x1a8] sm:$0xff]
        %v438 = vld [vmem:[%s383 + $0x1b0] sm:$0xff]
        %v439 = vld [vmem:[%s383 + $0x1b8] sm:$0xff]
        %v440 = vld [vmem:[%s383 + $0x1c0] sm:$0xff]
        %v441 = vld [vmem:[%s383 + $0x1c8] sm:$0xff]
        %v442 = vld [vmem:[%s383 + $0x1d0] sm:$0xff]
        %v443 = vld [vmem:[%s383 + $0x1d8] sm:$0xff]
        %v444 = vld [vmem:[%s383 + $0x1e0] sm:$0xff]
        %v445 = vld [vmem:[%s383 + $0x1e8] sm:$0xff]
        %v446 = vld [vmem:[%s383 + $0x1f0] sm:$0xff]
        %v447 = vld [vmem:[%s383 + $0x1f8] sm:$0xff]
        %v448 = vld [vmem:[%s383 + $0x200] sm:$0xff]
        %v449 = vld [vmem:[%s383 + $0x208] sm:$0xff]
        %v450 = vld [vmem:[%s383 + $0x210] sm:$0xff]
        %v451 = vld [vmem:[%s383 + $0x218] sm:$0xff]
        %v452 = vld [vmem:[%s383 + $0x220] sm:$0xff]
        %v453 = vld [vmem:[%s383 + $0x228] sm:$0xff]
        %v454 = vld [vmem:[%s383 + $0x230] sm:$0xff]
        %v455 = vld [vmem:[%s383 + $0x238] sm:$0xff]
        %v456 = vld [vmem:[%s1] sm:$0xff]
        %v457 = vld [vmem:[%s1 + $0x8] sm:$0xff]
        %v458 = vld [vmem:[%s1 + $0x10] sm:$0xff]
        %v459 = vld [vmem:[%s1 + $0x18] sm:$0x1]
        %vm460 = vcmask 203776
        %v462 = vsel %vm460, %v384, 0
        %v465 = vsel %vm460, %v385, 0
        %v468 = vsel %vm460, %v386, 0
        %v471 = vsel %vm460, %v387, 0
        %v474 = vsel %vm460, %v388, 0
        %v477 = vsel %vm460, %v389, 0
        %v480 = vsel %vm460, %v390, 0
        %v483 = vsel %vm460, %v391, 0
        %v486 = vsel %vm460, %v392, 0
        %v489 = vsel %vm460, %v393, 0
        %v492 = vsel %vm460, %v394, 0
        %v495 = vsel %vm460, %v395, 0
        %v498 = vsel %vm460, %v396, 0
        %v501 = vsel %vm460, %v397, 0
        %v504 = vsel %vm460, %v398, 0
        %v507 = vsel %vm460, %v399, 0
        %v510 = vsel %vm460, %v400, 0
        %v513 = vsel %vm460, %v401, 0
        %v516 = vsel %vm460, %v402, 0
        %v519 = vsel %vm460, %v403, 0
        %v522 = vsel %vm460, %v404, 0
        %v525 = vsel %vm460, %v405, 0
        %v528 = vsel %vm460, %v406, 0
        %v531 = vsel %vm460, %v407, 0
        %v534 = vsel %vm460, %v408, 0
        %v537 = vsel %vm460, %v409, 0
        %v540 = vsel %vm460, %v410, 0
        %v543 = vsel %vm460, %v411, 0
        %v546 = vsel %vm460, %v412, 0
        %v549 = vsel %vm460, %v413, 0
        %v552 = vsel %vm460, %v414, 0
        %v555 = vsel %vm460, %v415, 0
        %v558 = vsel %vm460, %v416, 0
        %v561 = vsel %vm460, %v417, 0
        %v564 = vsel %vm460, %v418, 0
        %v567 = vsel %vm460, %v419, 0
        %v570 = vsel %vm460, %v420, 0
        %v573 = vsel %vm460, %v421, 0
        %v576 = vsel %vm460, %v422, 0
        %v579 = vsel %vm460, %v423, 0
        %v582 = vsel %vm460, %v424, 0
        %v585 = vsel %vm460, %v425, 0
        %v588 = vsel %vm460, %v426, 0
        %v591 = vsel %vm460, %v427, 0
        %v594 = vsel %vm460, %v428, 0
        %v597 = vsel %vm460, %v429, 0
        %v600 = vsel %vm460, %v430, 0
        %v603 = vsel %vm460, %v431, 0
        %v606 = vsel %vm460, %v432, 0
        %v609 = vsel %vm460, %v433, 0
        %v612 = vsel %vm460, %v434, 0
        %v615 = vsel %vm460, %v435, 0
        %v618 = vsel %vm460, %v436, 0
        %v621 = vsel %vm460, %v437, 0
        %v624 = vsel %vm460, %v438, 0
        %v627 = vsel %vm460, %v439, 0
        %v630 = vsel %vm460, %v440, 0
        %v633 = vsel %vm460, %v441, 0
        %v636 = vsel %vm460, %v442, 0
        %v639 = vsel %vm460, %v443, 0
        %v642 = vsel %vm460, %v444, 0
        %v645 = vsel %vm460, %v445, 0
        %v648 = vsel %vm460, %v446, 0
        %v651 = vsel %vm460, %v447, 0
        %v654 = vsel %vm460, %v448, 0
        %v657 = vsel %vm460, %v449, 0
        %v660 = vsel %vm460, %v450, 0
        %v663 = vsel %vm460, %v451, 0
        %v666 = vsel %vm460, %v452, 0
        %v669 = vsel %vm460, %v453, 0
        %v672 = vsel %vm460, %v454, 0
        %v675 = vsel %vm460, %v455, 0
        %vm677 = vcmask 1040384
        %v679 = vsel %vm677, %v459, 0
        %681 = vmatprep.subr.mxu0 0.0
        %682 = vmatpush1.msra.mxu0 %v456
        %683 = vmatprep.subr.mxu0 0.0
        %684 = vmatpush1.msra.mxu0 %v457
        %685 = vmatprep.subr.mxu0 0.0
        %686 = vmatpush1.msra.mxu0 %v458
        %687 = vmatprep.subr.mxu0 0.0
        %688 = vmatpush1.msra.mxu0 %v679
        %689 = vmatprep.subr.mxu0 0.0
        %690 = vmatpush1.msra.mxu0 0.0
        %691 = vmatprep.subr.mxu0 0.0
        %692 = vmatpush1.msra.mxu0 0.0
        %693 = vmatprep.subr.mxu0 0.0
        %694 = vmatpush1.msra.mxu0 0.0
        %695 = vmatprep.subr.mxu0 0.0
        %696 = vmatpush1.msra.mxu0 0.0
        %697 = vmatprep.subr.mxu0 0.0
        %698 = vmatpush1.msra.mxu0 0.0
        %699 = vmatprep.subr.mxu0 0.0
        %700 = vmatpush1.msra.mxu0 0.0
        %701 = vmatprep.subr.mxu0 0.0
        %702 = vmatpush1.msra.mxu0 0.0
        %703 = vmatprep.subr.mxu0 0.0
        %704 = vmatpush1.msra.mxu0 0.0
        %705 = vmatprep.subr.mxu0 0.0
        %706 = vmatpush1.msra.mxu0 0.0
        %707 = vmatprep.subr.mxu0 0.0
        %708 = vmatpush1.msra.mxu0 0.0
        %709 = vmatprep.subr.mxu0 0.0
        %710 = vmatpush1.msra.mxu0 0.0
        %711 = vmatprep.subr.mxu0 0.0
        %712 = vmatpush1.msra.mxu0 0.0
        %713 = vmatprep.subr.mxu0 0.0
        %714 = vmatpush1.msra.mxu0 0.0
        %715 = vmatprep.subr.mxu0 0.0
        %716 = vmatpush1.msra.mxu0 0.0
        %717 = vmatprep.subr.mxu0 0.0
        %718 = vmatpush1.msra.mxu0 0.0
        %719 = vmatprep.subr.mxu0 0.0
        %720 = vmatpush1.msra.mxu0 0.0
        %721 = vmatprep.subr.mxu0 0.0
        %722 = vmatpush1.msra.mxu0 0.0
        %723 = vmatprep.subr.mxu0 0.0
        %724 = vmatpush1.msra.mxu0 0.0
        %725 = vmatprep.subr.mxu0 0.0
        %726 = vmatpush1.msra.mxu0 0.0
        %727 = vmatprep.subr.mxu0 0.0
        %728 = vmatpush1.msra.mxu0 0.0
        %729 = vmatprep.subr.mxu0 0.0
        %730 = vmatpush1.msra.mxu0 0.0
        %731 = vmatprep.subr.mxu0 0.0
        %732 = vmatpush1.msra.mxu0 0.0
        %733 = vmatprep.subr.mxu0 0.0
        %734 = vmatpush1.msra.mxu0 0.0
        %735 = vmatprep.subr.mxu0 0.0
        %736 = vmatpush1.msra.mxu0 0.0
        %737 = vmatprep.subr.mxu0 0.0
        %738 = vmatpush1.msra.mxu0 0.0
        %739 = vmatprep.subr.mxu0 0.0
        %740 = vmatpush1.msra.mxu0 0.0
        %741 = vmatprep.subr.mxu0 0.0
        %742 = vmatpush1.msra.mxu0 0.0
        %743 = vmatprep.subr.mxu0 0.0
        %744 = vmatpush1.msra.mxu0 0.0
        %745 = vmatprep.mubr.f32.mxu0 0.0
        %746 = vmatmul.mubr.f32.gmra.mrb[0].mxu0 %v462
        %v747 = vpop.f32.mrb[0].mxu0
        %v748 = vadd.f32 0.0, %v747
        %v749 = vpop.f32.mrb[0].mxu0
        %750 = vmatprep.mubr.f32.mxu0 0.0
        %751 = vmatmul.mubr.f32.gmra.mrb[0].mxu0 %v465
        %v752 = vpop.f32.mrb[0].mxu0
        %v753 = vadd.f32 0.0, %v752
        %v754 = vpop.f32.mrb[0].mxu0
        %755 = vmatprep.mubr.f32.mxu0 0.0
        %756 = vmatmul.mubr.f32.gmra.mrb[0].mxu0 %v468
        %v757 = vpop.f32.mrb[0].mxu0
        %v758 = vadd.f32 0.0, %v757
        %v759 = vpop.f32.mrb[0].mxu0
        %760 = vmatprep.mubr.f32.mxu0 0.0
        %761 = vmatmul.mubr.f32.gmra.mrb[0].mxu0 %v471
        %v762 = vpop.f32.mrb[0].mxu0
        %v763 = vadd.f32 0.0, %v762
        %v764 = vpop.f32.mrb[0].mxu0
        %765 = vmatprep.mubr.f32.mxu0 0.0
        %766 = vmatmul.mubr.f32.gmra.mrb[0].mxu0 %v474
        %v767 = vpop.f32.mrb[0].mxu0
        %v768 = vadd.f32 0.0, %v767
        %v769 = vpop.f32.mrb[0].mxu0
        %770 = vmatprep.mubr.f32.mxu0 0.0
        %771 = vmatmul.mubr.f32.gmra.mrb[0].mxu0 %v477
        %v772 = vpop.f32.mrb[0].mxu0
        %v773 = vadd.f32 0.0, %v772
        %v774 = vpop.f32.mrb[0].mxu0
        %775 = vmatprep.mubr.f32.mxu0 0.0
        %776 = vmatmul.mubr.f32.gmra.mrb[0].mxu0 %v480
        %v777 = vpop.f32.mrb[0].mxu0
        %v778 = vadd.f32 0.0, %v777
        %v779 = vpop.f32.mrb[0].mxu0
        %780 = vmatprep.mubr.f32.mxu0 0.0
        %781 = vmatmul.mubr.f32.gmra.mrb[0].mxu0 %v483
        %v782 = vpop.f32.mrb[0].mxu0
        %v783 = vadd.f32 0.0, %v782
        %v784 = vpop.f32.mrb[0].mxu0
        %785 = vmatprep.mubr.f32.mxu0 0.0
        %786 = vmatmul.mubr.f32.gmra.mrb[0].mxu0 %v486
        %v787 = vpop.f32.mrb[0].mxu0
        %v788 = vadd.f32 0.0, %v787
        %v789 = vpop.f32.mrb[0].mxu0
        %790 = vmatprep.mubr.f32.mxu0 0.0
        %791 = vmatmul.mubr.f32.gmra.mrb[0].mxu0 %v489
        %v792 = vpop.f32.mrb[0].mxu0
        %v793 = vadd.f32 0.0, %v792
        %v794 = vpop.f32.mrb[0].mxu0
        %795 = vmatprep.mubr.f32.mxu0 0.0
        %796 = vmatmul.mubr.f32.gmra.mrb[0].mxu0 %v492
        %v797 = vpop.f32.mrb[0].mxu0
        %v798 = vadd.f32 0.0, %v797
        %v799 = vpop.f32.mrb[0].mxu0
        %800 = vmatprep.mubr.f32.mxu0 0.0
        %801 = vmatmul.mubr.f32.gmra.mrb[0].mxu0 %v495
        %v802 = vpop.f32.mrb[0].mxu0
        %v803 = vadd.f32 0.0, %v802
        %v804 = vpop.f32.mrb[0].mxu0
        %805 = vmatprep.mubr.f32.mxu0 0.0
        %806 = vmatmul.mubr.f32.gmra.mrb[0].mxu0 %v498
        %v807 = vpop.f32.mrb[0].mxu0
        %v808 = vadd.f32 0.0, %v807
        %v809 = vpop.f32.mrb[0].mxu0
        %810 = vmatprep.mubr.f32.mxu0 0.0
        %811 = vmatmul.mubr.f32.gmra.mrb[0].mxu0 %v501
        %v812 = vpop.f32.mrb[0].mxu0
        %v813 = vadd.f32 0.0, %v812
        %v814 = vpop.f32.mrb[0].mxu0
        %815 = vmatprep.mubr.f32.mxu0 0.0
        %816 = vmatmul.mubr.f32.gmra.mrb[0].mxu0 %v504
        %v817 = vpop.f32.mrb[0].mxu0
        %v818 = vadd.f32 0.0, %v817
        %v819 = vpop.f32.mrb[0].mxu0
        %820 = vmatprep.mubr.f32.mxu0 0.0
        %821 = vmatmul.mubr.f32.gmra.mrb[0].mxu0 %v507
        %v822 = vpop.f32.mrb[0].mxu0
        %v823 = vadd.f32 0.0, %v822
        %v824 = vpop.f32.mrb[0].mxu0
        %825 = vmatprep.mubr.f32.mxu0 0.0
        %826 = vmatmul.mubr.f32.gmra.mrb[0].mxu0 %v510
        %v827 = vpop.f32.mrb[0].mxu0
        %v828 = vadd.f32 0.0, %v827
        %v829 = vpop.f32.mrb[0].mxu0
        %830 = vmatprep.mubr.f32.mxu0 0.0
        %831 = vmatmul.mubr.f32.gmra.mrb[0].mxu0 %v513
        %v832 = vpop.f32.mrb[0].mxu0
        %v833 = vadd.f32 0.0, %v832
        %v834 = vpop.f32.mrb[0].mxu0
        %835 = vmatprep.mubr.f32.mxu0 0.0
        %836 = vmatmul.mubr.f32.gmra.mrb[0].mxu0 %v516
        %v837 = vpop.f32.mrb[0].mxu0
        %v838 = vadd.f32 0.0, %v837
        %v839 = vpop.f32.mrb[0].mxu0
        %840 = vmatprep.mubr.f32.mxu0 0.0
        %841 = vmatmul.mubr.f32.gmra.mrb[0].mxu0 %v519
        %v842 = vpop.f32.mrb[0].mxu0
        %v843 = vadd.f32 0.0, %v842
        %v844 = vpop.f32.mrb[0].mxu0
        %845 = vmatprep.mubr.f32.mxu0 0.0
        %846 = vmatmul.mubr.f32.gmra.mrb[0].mxu0 %v522
        %v847 = vpop.f32.mrb[0].mxu0
        %v848 = vadd.f32 0.0, %v847
        %v849 = vpop.f32.mrb[0].mxu0
        %850 = vmatprep.mubr.f32.mxu0 0.0
        %851 = vmatmul.mubr.f32.gmra.mrb[0].mxu0 %v525
        %v852 = vpop.f32.mrb[0].mxu0
        %v853 = vadd.f32 0.0, %v852
        %v854 = vpop.f32.mrb[0].mxu0
        %855 = vmatprep.mubr.f32.mxu0 0.0
        %856 = vmatmul.mubr.f32.gmra.mrb[0].mxu0 %v528
        %v857 = vpop.f32.mrb[0].mxu0
        %v858 = vadd.f32 0.0, %v857
        %v859 = vpop.f32.mrb[0].mxu0
        %860 = vmatprep.mubr.f32.mxu0 0.0
        %861 = vmatmul.mubr.f32.gmra.mrb[0].mxu0 %v531
        %v862 = vpop.f32.mrb[0].mxu0
        %v863 = vadd.f32 0.0, %v862
        %v864 = vpop.f32.mrb[0].mxu0
        %865 = vmatprep.mubr.f32.mxu0 0.0
        %866 = vmatmul.mubr.f32.gmra.mrb[0].mxu0 %v534
        %v867 = vpop.f32.mrb[0].mxu0
        %v868 = vadd.f32 0.0, %v867
        %v869 = vpop.f32.mrb[0].mxu0
        %870 = vmatprep.mubr.f32.mxu0 0.0
        %871 = vmatmul.mubr.f32.gmra.mrb[0].mxu0 %v537
        %v872 = vpop.f32.mrb[0].mxu0
        %v873 = vadd.f32 0.0, %v872
        %v874 = vpop.f32.mrb[0].mxu0
        %875 = vmatprep.mubr.f32.mxu0 0.0
        %876 = vmatmul.mubr.f32.gmra.mrb[0].mxu0 %v540
        %v877 = vpop.f32.mrb[0].mxu0
        %v878 = vadd.f32 0.0, %v877
        %v879 = vpop.f32.mrb[0].mxu0
        %880 = vmatprep.mubr.f32.mxu0 0.0
        %881 = vmatmul.mubr.f32.gmra.mrb[0].mxu0 %v543
        %v882 = vpop.f32.mrb[0].mxu0
        %v883 = vadd.f32 0.0, %v882
        %v884 = vpop.f32.mrb[0].mxu0
        %885 = vmatprep.mubr.f32.mxu0 0.0
        %886 = vmatmul.mubr.f32.gmra.mrb[0].mxu0 %v546
        %v887 = vpop.f32.mrb[0].mxu0
        %v888 = vadd.f32 0.0, %v887
        %v889 = vpop.f32.mrb[0].mxu0
        %890 = vmatprep.mubr.f32.mxu0 0.0
        %891 = vmatmul.mubr.f32.gmra.mrb[0].mxu0 %v549
        %v892 = vpop.f32.mrb[0].mxu0
        %v893 = vadd.f32 0.0, %v892
        %v894 = vpop.f32.mrb[0].mxu0
        %895 = vmatprep.mubr.f32.mxu0 0.0
        %896 = vmatmul.mubr.f32.gmra.mrb[0].mxu0 %v552
        %v897 = vpop.f32.mrb[0].mxu0
        %v898 = vadd.f32 0.0, %v897
        %v899 = vpop.f32.mrb[0].mxu0
        %900 = vmatprep.mubr.f32.mxu0 0.0
        %901 = vmatmul.mubr.f32.gmra.mrb[0].mxu0 %v555
        %v902 = vpop.f32.mrb[0].mxu0
        %v903 = vadd.f32 0.0, %v902
        %v904 = vpop.f32.mrb[0].mxu0
        %905 = vmatprep.mubr.f32.mxu0 0.0
        %906 = vmatmul.mubr.f32.gmra.mrb[0].mxu0 %v558
        %v907 = vpop.f32.mrb[0].mxu0
        %v908 = vadd.f32 0.0, %v907
        %v909 = vpop.f32.mrb[0].mxu0
        %910 = vmatprep.mubr.f32.mxu0 0.0
        %911 = vmatmul.mubr.f32.gmra.mrb[0].mxu0 %v561
        %v912 = vpop.f32.mrb[0].mxu0
        %v913 = vadd.f32 0.0, %v912
        %v914 = vpop.f32.mrb[0].mxu0
        %915 = vmatprep.mubr.f32.mxu0 0.0
        %916 = vmatmul.mubr.f32.gmra.mrb[0].mxu0 %v564
        %v917 = vpop.f32.mrb[0].mxu0
        %v918 = vadd.f32 0.0, %v917
        %v919 = vpop.f32.mrb[0].mxu0
        %920 = vmatprep.mubr.f32.mxu0 0.0
        %921 = vmatmul.mubr.f32.gmra.mrb[0].mxu0 %v567
        %v922 = vpop.f32.mrb[0].mxu0
        %v923 = vadd.f32 0.0, %v922
        %v924 = vpop.f32.mrb[0].mxu0
        %925 = vmatprep.mubr.f32.mxu0 0.0
        %926 = vmatmul.mubr.f32.gmra.mrb[0].mxu0 %v570
        %v927 = vpop.f32.mrb[0].mxu0
        %v928 = vadd.f32 0.0, %v927
        %v929 = vpop.f32.mrb[0].mxu0
        %930 = vmatprep.mubr.f32.mxu0 0.0
        %931 = vmatmul.mubr.f32.gmra.mrb[0].mxu0 %v573
        %v932 = vpop.f32.mrb[0].mxu0
        %v933 = vadd.f32 0.0, %v932
        %v934 = vpop.f32.mrb[0].mxu0
        %935 = vmatprep.mubr.f32.mxu0 0.0
        %936 = vmatmul.mubr.f32.gmra.mrb[0].mxu0 %v576
        %v937 = vpop.f32.mrb[0].mxu0
        %v938 = vadd.f32 0.0, %v937
        %v939 = vpop.f32.mrb[0].mxu0
        %940 = vmatprep.mubr.f32.mxu0 0.0
        %941 = vmatmul.mubr.f32.gmra.mrb[0].mxu0 %v579
        %v942 = vpop.f32.mrb[0].mxu0
        %v943 = vadd.f32 0.0, %v942
        %v944 = vpop.f32.mrb[0].mxu0
        %945 = vmatprep.mubr.f32.mxu0 0.0
        %946 = vmatmul.mubr.f32.gmra.mrb[0].mxu0 %v582
        %v947 = vpop.f32.mrb[0].mxu0
        %v948 = vadd.f32 0.0, %v947
        %v949 = vpop.f32.mrb[0].mxu0
        %950 = vmatprep.mubr.f32.mxu0 0.0
        %951 = vmatmul.mubr.f32.gmra.mrb[0].mxu0 %v585
        %v952 = vpop.f32.mrb[0].mxu0
        %v953 = vadd.f32 0.0, %v952
        %v954 = vpop.f32.mrb[0].mxu0
        %955 = vmatprep.mubr.f32.mxu0 0.0
        %956 = vmatmul.mubr.f32.gmra.mrb[0].mxu0 %v588
        %v957 = vpop.f32.mrb[0].mxu0
        %v958 = vadd.f32 0.0, %v957
        %v959 = vpop.f32.mrb[0].mxu0
        %960 = vmatprep.mubr.f32.mxu0 0.0
        %961 = vmatmul.mubr.f32.gmra.mrb[0].mxu0 %v591
        %v962 = vpop.f32.mrb[0].mxu0
        %v963 = vadd.f32 0.0, %v962
        %v964 = vpop.f32.mrb[0].mxu0
        %965 = vmatprep.mubr.f32.mxu0 0.0
        %966 = vmatmul.mubr.f32.gmra.mrb[0].mxu0 %v594
        %v967 = vpop.f32.mrb[0].mxu0
        %v968 = vadd.f32 0.0, %v967
        %v969 = vpop.f32.mrb[0].mxu0
        %970 = vmatprep.mubr.f32.mxu0 0.0
        %971 = vmatmul.mubr.f32.gmra.mrb[0].mxu0 %v597
        %v972 = vpop.f32.mrb[0].mxu0
        %v973 = vadd.f32 0.0, %v972
        %v974 = vpop.f32.mrb[0].mxu0
        %975 = vmatprep.mubr.f32.mxu0 0.0
        %976 = vmatmul.mubr.f32.gmra.mrb[0].mxu0 %v600
        %v977 = vpop.f32.mrb[0].mxu0
        %v978 = vadd.f32 0.0, %v977
        %v979 = vpop.f32.mrb[0].mxu0
        %980 = vmatprep.mubr.f32.mxu0 0.0
        %981 = vmatmul.mubr.f32.gmra.mrb[0].mxu0 %v603
        %v982 = vpop.f32.mrb[0].mxu0
        %v983 = vadd.f32 0.0, %v982
        %v984 = vpop.f32.mrb[0].mxu0
        %985 = vmatprep.mubr.f32.mxu0 0.0
        %986 = vmatmul.mubr.f32.gmra.mrb[0].mxu0 %v606
        %v987 = vpop.f32.mrb[0].mxu0
        %v988 = vadd.f32 0.0, %v987
        %v989 = vpop.f32.mrb[0].mxu0
        %990 = vmatprep.mubr.f32.mxu0 0.0
        %991 = vmatmul.mubr.f32.gmra.mrb[0].mxu0 %v609
        %v992 = vpop.f32.mrb[0].mxu0
        %v993 = vadd.f32 0.0, %v992
        %v994 = vpop.f32.mrb[0].mxu0
        %995 = vmatprep.mubr.f32.mxu0 0.0
        %996 = vmatmul.mubr.f32.gmra.mrb[0].mxu0 %v612
        %v997 = vpop.f32.mrb[0].mxu0
        %v998 = vadd.f32 0.0, %v997
        %v999 = vpop.f32.mrb[0].mxu0
        %1000 = vmatprep.mubr.f32.mxu0 0.0
        %1001 = vmatmul.mubr.f32.gmra.mrb[0].mxu0 %v615
        %v1002 = vpop.f32.mrb[0].mxu0
        %v1003 = vadd.f32 0.0, %v1002
        %v1004 = vpop.f32.mrb[0].mxu0
        %1005 = vmatprep.mubr.f32.mxu0 0.0
        %1006 = vmatmul.mubr.f32.gmra.mrb[0].mxu0 %v618
        %v1007 = vpop.f32.mrb[0].mxu0
        %v1008 = vadd.f32 0.0, %v1007
        %v1009 = vpop.f32.mrb[0].mxu0
        %1010 = vmatprep.mubr.f32.mxu0 0.0
        %1011 = vmatmul.mubr.f32.gmra.mrb[0].mxu0 %v621
        %v1012 = vpop.f32.mrb[0].mxu0
        %v1013 = vadd.f32 0.0, %v1012
        %v1014 = vpop.f32.mrb[0].mxu0
        %1015 = vmatprep.mubr.f32.mxu0 0.0
        %1016 = vmatmul.mubr.f32.gmra.mrb[0].mxu0 %v624
        %v1017 = vpop.f32.mrb[0].mxu0
        %v1018 = vadd.f32 0.0, %v1017
        %v1019 = vpop.f32.mrb[0].mxu0
        %1020 = vmatprep.mubr.f32.mxu0 0.0
        %1021 = vmatmul.mubr.f32.gmra.mrb[0].mxu0 %v627
        %v1022 = vpop.f32.mrb[0].mxu0
        %v1023 = vadd.f32 0.0, %v1022
        %v1024 = vpop.f32.mrb[0].mxu0
        %1025 = vmatprep.mubr.f32.mxu0 0.0
        %1026 = vmatmul.mubr.f32.gmra.mrb[0].mxu0 %v630
        %v1027 = vpop.f32.mrb[0].mxu0
        %v1028 = vadd.f32 0.0, %v1027
        %v1029 = vpop.f32.mrb[0].mxu0
        %1030 = vmatprep.mubr.f32.mxu0 0.0
        %1031 = vmatmul.mubr.f32.gmra.mrb[0].mxu0 %v633
        %v1032 = vpop.f32.mrb[0].mxu0
        %v1033 = vadd.f32 0.0, %v1032
        %v1034 = vpop.f32.mrb[0].mxu0
        %1035 = vmatprep.mubr.f32.mxu0 0.0
        %1036 = vmatmul.mubr.f32.gmra.mrb[0].mxu0 %v636
        %v1037 = vpop.f32.mrb[0].mxu0
        %v1038 = vadd.f32 0.0, %v1037
        %v1039 = vpop.f32.mrb[0].mxu0
        %1040 = vmatprep.mubr.f32.mxu0 0.0
        %1041 = vmatmul.mubr.f32.gmra.mrb[0].mxu0 %v639
        %v1042 = vpop.f32.mrb[0].mxu0
        %v1043 = vadd.f32 0.0, %v1042
        %v1044 = vpop.f32.mrb[0].mxu0
        %1045 = vmatprep.mubr.f32.mxu0 0.0
        %1046 = vmatmul.mubr.f32.gmra.mrb[0].mxu0 %v642
        %v1047 = vpop.f32.mrb[0].mxu0
        %v1048 = vadd.f32 0.0, %v1047
        %v1049 = vpop.f32.mrb[0].mxu0
        %1050 = vmatprep.mubr.f32.mxu0 0.0
        %1051 = vmatmul.mubr.f32.gmra.mrb[0].mxu0 %v645
        %v1052 = vpop.f32.mrb[0].mxu0
        %v1053 = vadd.f32 0.0, %v1052
        %v1054 = vpop.f32.mrb[0].mxu0
        %1055 = vmatprep.mubr.f32.mxu0 0.0
        %1056 = vmatmul.mubr.f32.gmra.mrb[0].mxu0 %v648
        %v1057 = vpop.f32.mrb[0].mxu0
        %v1058 = vadd.f32 0.0, %v1057
        %v1059 = vpop.f32.mrb[0].mxu0
        %1060 = vmatprep.mubr.f32.mxu0 0.0
        %1061 = vmatmul.mubr.f32.gmra.mrb[0].mxu0 %v651
        %v1062 = vpop.f32.mrb[0].mxu0
        %v1063 = vadd.f32 0.0, %v1062
        %v1064 = vpop.f32.mrb[0].mxu0
        %1065 = vmatprep.mubr.f32.mxu0 0.0
        %1066 = vmatmul.mubr.f32.gmra.mrb[0].mxu0 %v654
        %v1067 = vpop.f32.mrb[0].mxu0
        %v1068 = vadd.f32 0.0, %v1067
        %v1069 = vpop.f32.mrb[0].mxu0
        %1070 = vmatprep.mubr.f32.mxu0 0.0
        %1071 = vmatmul.mubr.f32.gmra.mrb[0].mxu0 %v657
        %v1072 = vpop.f32.mrb[0].mxu0
        %v1073 = vadd.f32 0.0, %v1072
        %v1074 = vpop.f32.mrb[0].mxu0
        %1075 = vmatprep.mubr.f32.mxu0 0.0
        %1076 = vmatmul.mubr.f32.gmra.mrb[0].mxu0 %v660
        %v1077 = vpop.f32.mrb[0].mxu0
        %v1078 = vadd.f32 0.0, %v1077
        %v1079 = vpop.f32.mrb[0].mxu0
        %1080 = vmatprep.mubr.f32.mxu0 0.0
        %1081 = vmatmul.mubr.f32.gmra.mrb[0].mxu0 %v663
        %v1082 = vpop.f32.mrb[0].mxu0
        %v1083 = vadd.f32 0.0, %v1082
        %v1084 = vpop.f32.mrb[0].mxu0
        %1085 = vmatprep.mubr.f32.mxu0 0.0
        %1086 = vmatmul.mubr.f32.gmra.mrb[0].mxu0 %v666
        %v1087 = vpop.f32.mrb[0].mxu0
        %v1088 = vadd.f32 0.0, %v1087
        %v1089 = vpop.f32.mrb[0].mxu0
        %1090 = vmatprep.mubr.f32.mxu0 0.0
        %1091 = vmatmul.mubr.f32.gmra.mrb[0].mxu0 %v669
        %v1092 = vpop.f32.mrb[0].mxu0
        %v1093 = vadd.f32 0.0, %v1092
        %v1094 = vpop.f32.mrb[0].mxu0
        %1095 = vmatprep.mubr.f32.mxu0 0.0
        %1096 = vmatmul.mubr.f32.gmra.mrb[0].mxu0 %v672
        %v1097 = vpop.f32.mrb[0].mxu0
        %v1098 = vadd.f32 0.0, %v1097
        %v1099 = vpop.f32.mrb[0].mxu0
        %1100 = vmatprep.mubr.f32.mxu0 0.0
        %1101 = vmatmul.mubr.f32.gmra.mrb[0].mxu0 %v675
        %v1102 = vpop.f32.mrb[0].mxu0
        %v1103 = vadd.f32 0.0, %v1102
        %v1104 = vpop.f32.mrb[0].mxu0
        %1105 = vdwg.mxu0
        %v1106 = vmax.f32 %v748, %v838
        %v1107 = vmax.f32 %v753, %v843
        %v1108 = vmax.f32 %v758, %v848
        %v1109 = vmax.f32 %v763, %v853
        %v1110 = vmax.f32 %v768, %v858
        %v1111 = vmax.f32 %v773, %v863
        %v1112 = vmax.f32 %v778, %v868
        %v1113 = vmax.f32 %v783, %v873
        %v1114 = vmax.f32 %v788, %v878
        %v1115 = vmax.f32 %v793, %v883
        %v1116 = vmax.f32 %v798, %v888
        %v1117 = vmax.f32 %v803, %v893
        %v1118 = vmax.f32 %v808, %v898
        %v1119 = vmax.f32 %v813, %v903
        %v1120 = vmax.f32 %v818, %v908
        %v1121 = vmax.f32 %v823, %v913
        %v1122 = vmax.f32 %v828, %v918
        %v1123 = vmax.f32 %v833, %v923
        %v1124 = vmax.f32 %v928, %v1018
        %v1125 = vmax.f32 %v933, %v1023
        %v1126 = vmax.f32 %v938, %v1028
        %v1127 = vmax.f32 %v943, %v1033
        %v1128 = vmax.f32 %v948, %v1038
        %v1129 = vmax.f32 %v953, %v1043
        %v1130 = vmax.f32 %v958, %v1048
        %v1131 = vmax.f32 %v963, %v1053
        %v1132 = vmax.f32 %v968, %v1058
        %v1133 = vmax.f32 %v973, %v1063
        %v1134 = vmax.f32 %v978, %v1068
        %v1135 = vmax.f32 %v983, %v1073
        %v1136 = vmax.f32 %v988, %v1078
        %v1137 = vmax.f32 %v993, %v1083
        %v1138 = vmax.f32 %v998, %v1088
        %v1139 = vmax.f32 %v1003, %v1093
        %v1140 = vmax.f32 %v1008, %v1098
        %v1141 = vmax.f32 %v1013, %v1103
        %v1142 = vmax.f32 %v1106, %v1124
        %v1143 = vmax.f32 %v1107, %v1125
        %v1144 = vmax.f32 %v1108, %v1126
        %v1145 = vmax.f32 %v1109, %v1127
        %v1146 = vmax.f32 %v1110, %v1128
        %v1147 = vmax.f32 %v1111, %v1129
        %v1148 = vmax.f32 %v1112, %v1130
        %v1149 = vmax.f32 %v1113, %v1131
        %v1150 = vmax.f32 %v1114, %v1132
        %v1151 = vmax.f32 %v1115, %v1133
        %v1152 = vmax.f32 %v1116, %v1134
        %v1153 = vmax.f32 %v1117, %v1135
        %v1154 = vmax.f32 %v1118, %v1136
        %v1155 = vmax.f32 %v1119, %v1137
        %v1156 = vmax.f32 %v1120, %v1138
        %v1157 = vmax.f32 %v1121, %v1139
        %v1158 = vmax.f32 %v1122, %v1140
        %v1159 = vmax.f32 %v1123, %v1141
        %v1160 = vld [vmem:[%s2] sm:$0x1]
        %v1162 = vlaneseq
        %v1163 = vshrl.u32 %v1162, 7
        %v1164 = vsub.s32 0, %v1163
        %v1165 = vrot.slane %v1160, %v1164
        %v1167 = vadd.f32 %v1142, %v1165
        %v1168 = vadd.f32 %v1143, %v1165
        %v1169 = vadd.f32 %v1144, %v1165
        %v1170 = vadd.f32 %v1145, %v1165
        %v1171 = vadd.f32 %v1146, %v1165
        %v1172 = vadd.f32 %v1147, %v1165
        %v1173 = vadd.f32 %v1148, %v1165
        %v1174 = vadd.f32 %v1149, %v1165
        %v1175 = vadd.f32 %v1150, %v1165
        %v1176 = vadd.f32 %v1151, %v1165
        %v1177 = vadd.f32 %v1152, %v1165
        %v1178 = vadd.f32 %v1153, %v1165
        %v1179 = vadd.f32 %v1154, %v1165
        %v1180 = vadd.f32 %v1155, %v1165
        %v1181 = vadd.f32 %v1156, %v1165
        %v1182 = vadd.f32 %v1157, %v1165
        %v1183 = vadd.f32 %v1158, %v1165
        %v1184 = vadd.f32 %v1159, %v1165
        %v1185 = vmax.f32 %v1167, 0.0
        %v1186 = vmax.f32 %v1168, 0.0
        %v1187 = vmax.f32 %v1169, 0.0
        %v1188 = vmax.f32 %v1170, 0.0
        %v1189 = vmax.f32 %v1171, 0.0
        %v1190 = vmax.f32 %v1172, 0.0
        %v1191 = vmax.f32 %v1173, 0.0
        %v1192 = vmax.f32 %v1174, 0.0
        %v1193 = vmax.f32 %v1175, 0.0
        %v1194 = vmax.f32 %v1176, 0.0
        %v1195 = vmax.f32 %v1177, 0.0
        %v1196 = vmax.f32 %v1178, 0.0
        %v1197 = vmax.f32 %v1179, 0.0
        %v1198 = vmax.f32 %v1180, 0.0
        %v1199 = vmax.f32 %v1181, 0.0
        %v1200 = vmax.f32 %v1182, 0.0
        %v1201 = vmax.f32 %v1183, 0.0
        %v1202 = vmax.f32 %v1184, 0.0
        %vm1203 = vcmask 48128
        %1204 = vst.msk [vmem:[#allocation2] sm:$0xff] %vm1203, %v1185
        %1205 = vst.msk [vmem:[#allocation2 + $0x8] sm:$0xff] %vm1203, %v1186
        %1206 = vst.msk [vmem:[#allocation2 + $0x10] sm:$0xff] %vm1203, %v1187
        %1207 = vst.msk [vmem:[#allocation2 + $0x18] sm:$0xff] %vm1203, %v1188
        %1208 = vst.msk [vmem:[#allocation2 + $0x20] sm:$0xff] %vm1203, %v1189
        %1209 = vst.msk [vmem:[#allocation2 + $0x28] sm:$0xff] %vm1203, %v1190
        %1210 = vst.msk [vmem:[#allocation2 + $0x30] sm:$0xff] %vm1203, %v1191
        %1211 = vst.msk [vmem:[#allocation2 + $0x38] sm:$0xff] %vm1203, %v1192
        %1212 = vst.msk [vmem:[#allocation2 + $0x40] sm:$0xff] %vm1203, %v1193
        %1213 = vst.msk [vmem:[#allocation2 + $0x48] sm:$0xff] %vm1203, %v1194
        %1214 = vst.msk [vmem:[#allocation2 + $0x50] sm:$0xff] %vm1203, %v1195
        %1215 = vst.msk [vmem:[#allocation2 + $0x58] sm:$0xff] %vm1203, %v1196
        %1216 = vst.msk [vmem:[#allocation2 + $0x60] sm:$0xff] %vm1203, %v1197
        %1217 = vst.msk [vmem:[#allocation2 + $0x68] sm:$0xff] %vm1203, %v1198
        %1218 = vst.msk [vmem:[#allocation2 + $0x70] sm:$0xff] %vm1203, %v1199
        %1219 = vst.msk [vmem:[#allocation2 + $0x78] sm:$0xff] %vm1203, %v1200
        %1220 = vst.msk [vmem:[#allocation2 + $0x80] sm:$0xff] %vm1203, %v1201
        %1221 = vst.msk [vmem:[#allocation2 + $0x88] sm:$0xff] %vm1203, %v1202
        %v1222 = vld [vmem:[#allocation2] sm:$0xff]
        %v1223 = vld [vmem:[#allocation2 + $0x8] sm:$0xff]
        %v1224 = vld [vmem:[#allocation2 + $0x10] sm:$0xff]
        %v1225 = vld [vmem:[#allocation2 + $0x18] sm:$0xff]
        %v1226 = vld [vmem:[#allocation2 + $0x20] sm:$0xff]
        %v1227 = vld [vmem:[#allocation2 + $0x28] sm:$0xff]
        %v1228 = vld [vmem:[#allocation2 + $0x30] sm:$0xff]
        %v1229 = vld [vmem:[#allocation2 + $0x38] sm:$0xff]
        %v1230 = vld [vmem:[#allocation2 + $0x40] sm:$0xff]
        %v1231 = vld [vmem:[#allocation2 + $0x48] sm:$0xff]
        %v1232 = vld [vmem:[#allocation2 + $0x50] sm:$0xff]
        %v1233 = vld [vmem:[#allocation2 + $0x58] sm:$0xf]
        %v1234 = vld [vmem:[%s3] sm:$0x3f]
        %v1235 = vld [vmem:[#allocation2 + $0x1] sm:$0xff]
        %v1236 = vld [vmem:[#allocation2 + $0x9] sm:$0xff]
        %v1237 = vld [vmem:[#allocation2 + $0x11] sm:$0xff]
        %v1238 = vld [vmem:[#allocation2 + $0x19] sm:$0xff]
        %v1239 = vld [vmem:[#allocation2 + $0x21] sm:$0xff]
        %v1240 = vld [vmem:[#allocation2 + $0x29] sm:$0xff]
        %v1241 = vld [vmem:[#allocation2 + $0x31] sm:$0xff]
        %v1242 = vld [vmem:[#allocation2 + $0x39] sm:$0xff]
        %v1243 = vld [vmem:[#allocation2 + $0x41] sm:$0xff]
        %v1244 = vld [vmem:[#allocation2 + $0x49] sm:$0xff]
        %v1245 = vld [vmem:[#allocation2 + $0x51] sm:$0xff]
        %v1246 = vld [vmem:[#allocation2 + $0x59] sm:$0xf]
        %s1247 = scalar_lea.vmem %s3, 8
        %v1248 = vld [vmem:[%s1247] sm:$0x3f]
        %v1250 = vsel %vm1203, %v1235, 0
        %v1253 = vsel %vm1203, %v1236, 0
        %v1256 = vsel %vm1203, %v1237, 0
        %v1259 = vsel %vm1203, %v1238, 0
        %v1262 = vsel %vm1203, %v1239, 0
        %v1265 = vsel %vm1203, %v1240, 0
        %v1268 = vsel %vm1203, %v1241, 0
        %v1271 = vsel %vm1203, %v1242, 0
        %v1274 = vsel %vm1203, %v1243, 0
        %v1277 = vsel %vm1203, %v1244, 0
        %v1280 = vsel %vm1203, %v1245, 0
        %v1283 = vsel %vm1203, %v1246, 0
        %vm1285 = vcmask 1045504
        %v1287 = vsel %vm1285, %v1248, 0
        %1289 = vmatprep.subr.mxu0 0.0
        %1290 = vmatpush1.msra.mxu0 %v1287
        %1291 = vmatprep.subr.mxu0 0.0
        %1292 = vmatpush1.msra.mxu0 0.0
        %1293 = vmatprep.subr.mxu0 0.0
        %1294 = vmatpush1.msra.mxu0 0.0
        %1295 = vmatprep.subr.mxu0 0.0
        %1296 = vmatpush1.msra.mxu0 0.0
        %1297 = vmatprep.subr.mxu0 0.0
        %1298 = vmatpush1.msra.mxu0 0.0
        %1299 = vmatprep.subr.mxu0 0.0
        %1300 = vmatpush1.msra.mxu0 0.0
        %1301 = vmatprep.subr.mxu0 0.0
        %1302 = vmatpush1.msra.mxu0 0.0
        %1303 = vmatprep.subr.mxu0 0.0
        %1304 = vmatpush1.msra.mxu0 0.0
        %1305 = vmatprep.subr.mxu0 0.0
        %1306 = vmatpush1.msra.mxu0 0.0
        %1307 = vmatprep.subr.mxu0 0.0
        %1308 = vmatpush1.msra.mxu0 0.0
        %1309 = vmatprep.subr.mxu0 0.0
        %1310 = vmatpush1.msra.mxu0 0.0
        %1311 = vmatprep.subr.mxu0 0.0
        %1312 = vmatpush1.msra.mxu0 0.0
        %1313 = vmatprep.subr.mxu0 0.0
        %1314 = vmatpush1.msra.mxu0 0.0
        %1315 = vmatprep.subr.mxu0 0.0
        %1316 = vmatpush1.msra.mxu0 0.0
        %1317 = vmatprep.subr.mxu0 0.0
        %1318 = vmatpush1.msra.mxu0 0.0
        %1319 = vmatprep.subr.mxu0 0.0
        %1320 = vmatpush1.msra.mxu0 0.0
        %1321 = vmatprep.subr.mxu0 0.0
        %1322 = vmatpush1.msra.mxu0 0.0
        %1323 = vmatprep.subr.mxu0 0.0
        %1324 = vmatpush1.msra.mxu0 0.0
        %1325 = vmatprep.subr.mxu0 0.0
        %1326 = vmatpush1.msra.mxu0 0.0
        %1327 = vmatprep.subr.mxu0 0.0
        %1328 = vmatpush1.msra.mxu0 0.0
        %1329 = vmatprep.subr.mxu0 0.0
        %1330 = vmatpush1.msra.mxu0 0.0
        %1331 = vmatprep.subr.mxu0 0.0
        %1332 = vmatpush1.msra.mxu0 0.0
        %1333 = vmatprep.subr.mxu0 0.0
        %1334 = vmatpush1.msra.mxu0 0.0
        %1335 = vmatprep.subr.mxu0 0.0
        %1336 = vmatpush1.msra.mxu0 0.0
        %1337 = vmatprep.subr.mxu0 0.0
        %1338 = vmatpush1.msra.mxu0 0.0
        %1339 = vmatprep.subr.mxu0 0.0
        %1340 = vmatpush1.msra.mxu0 0.0
        %1341 = vmatprep.subr.mxu0 0.0
        %1342 = vmatpush1.msra.mxu0 0.0
        %1343 = vmatprep.subr.mxu0 0.0
        %1344 = vmatpush1.msra.mxu0 0.0
        %1345 = vmatprep.subr.mxu0 0.0
        %1346 = vmatpush1.msra.mxu0 0.0
        %1347 = vmatprep.subr.mxu0 0.0
        %1348 = vmatpush1.msra.mxu0 0.0
        %1349 = vmatprep.subr.mxu0 0.0
        %1350 = vmatpush1.msra.mxu0 0.0
        %1351 = vmatprep.subr.mxu0 0.0
        %1352 = vmatpush1.msra.mxu0 0.0
        %1353 = vmatprep.mubr.f32.mxu0 0.0
        %1354 = vmatmul.mubr.f32.gmra.mrb[0].mxu0 %v1250
        %v1355 = vpop.f32.mrb[0].mxu0
        %v1356 = vadd.f32 0.0, %v1355
        %v1357 = vpop.f32.mrb[0].mxu0
        %1358 = vmatprep.mubr.f32.mxu0 0.0
        %1359 = vmatmul.mubr.f32.gmra.mrb[0].mxu0 %v1253
        %v1360 = vpop.f32.mrb[0].mxu0
        %v1361 = vadd.f32 0.0, %v1360
        %v1362 = vpop.f32.mrb[0].mxu0
        %1363 = vmatprep.mubr.f32.mxu0 0.0
        %1364 = vmatmul.mubr.f32.gmra.mrb[0].mxu0 %v1256
        %v1365 = vpop.f32.mrb[0].mxu0
        %v1366 = vadd.f32 0.0, %v1365
        %v1367 = vpop.f32.mrb[0].mxu0
        %1368 = vmatprep.mubr.f32.mxu0 0.0
        %1369 = vmatmul.mubr.f32.gmra.mrb[0].mxu0 %v1259
        %v1370 = vpop.f32.mrb[0].mxu0
        %v1371 = vadd.f32 0.0, %v1370
        %v1372 = vpop.f32.mrb[0].mxu0
        %1373 = vmatprep.mubr.f32.mxu0 0.0
        %1374 = vmatmul.mubr.f32.gmra.mrb[0].mxu0 %v1262
        %v1375 = vpop.f32.mrb[0].mxu0
        %v1376 = vadd.f32 0.0, %v1375
        %v1377 = vpop.f32.mrb[0].mxu0
        %1378 = vmatprep.mubr.f32.mxu0 0.0
        %1379 = vmatmul.mubr.f32.gmra.mrb[0].mxu0 %v1265
        %v1380 = vpop.f32.mrb[0].mxu0
        %v1381 = vadd.f32 0.0, %v1380
        %v1382 = vpop.f32.mrb[0].mxu0
        %1383 = vmatprep.mubr.f32.mxu0 0.0
        %1384 = vmatmul.mubr.f32.gmra.mrb[0].mxu0 %v1268
        %v1385 = vpop.f32.mrb[0].mxu0
        %v1386 = vadd.f32 0.0, %v1385
        %v1387 = vpop.f32.mrb[0].mxu0
        %1388 = vmatprep.mubr.f32.mxu0 0.0
        %1389 = vmatmul.mubr.f32.gmra.mrb[0].mxu0 %v1271
        %v1390 = vpop.f32.mrb[0].mxu0
        %v1391 = vadd.f32 0.0, %v1390
        %v1392 = vpop.f32.mrb[0].mxu0
        %1393 = vmatprep.mubr.f32.mxu0 0.0
        %1394 = vmatmul.mubr.f32.gmra.mrb[0].mxu0 %v1274
        %v1395 = vpop.f32.mrb[0].mxu0
        %v1396 = vadd.f32 0.0, %v1395
        %v1397 = vpop.f32.mrb[0].mxu0
        %1398 = vmatprep.mubr.f32.mxu0 0.0
        %1399 = vmatmul.mubr.f32.gmra.mrb[0].mxu0 %v1277
        %v1400 = vpop.f32.mrb[0].mxu0
        %v1401 = vadd.f32 0.0, %v1400
        %v1402 = vpop.f32.mrb[0].mxu0
        %1403 = vmatprep.mubr.f32.mxu0 0.0
        %1404 = vmatmul.mubr.f32.gmra.mrb[0].mxu0 %v1280
        %v1405 = vpop.f32.mrb[0].mxu0
        %v1406 = vadd.f32 0.0, %v1405
        %v1407 = vpop.f32.mrb[0].mxu0
        %1408 = vmatprep.mubr.f32.mxu0 0.0
        %1409 = vmatmul.mubr.f32.gmra.mrb[0].mxu0 %v1283
        %v1410 = vpop.f32.mrb[0].mxu0
        %v1411 = vadd.f32 0.0, %v1410
        %v1412 = vpop.f32.mrb[0].mxu0
        %1413 = vdwg.mxu0
        %v1415 = vsel %vm1203, %v1222, 0
        %v1418 = vsel %vm1203, %v1223, 0
        %v1421 = vsel %vm1203, %v1224, 0
        %v1424 = vsel %vm1203, %v1225, 0
        %v1427 = vsel %vm1203, %v1226, 0
        %v1430 = vsel %vm1203, %v1227, 0
        %v1433 = vsel %vm1203, %v1228, 0
        %v1436 = vsel %vm1203, %v1229, 0
        %v1439 = vsel %vm1203, %v1230, 0
        %v1442 = vsel %vm1203, %v1231, 0
        %v1445 = vsel %vm1203, %v1232, 0
        %v1448 = vsel %vm1203, %v1233, 0
        %v1451 = vsel %vm1285, %v1234, 0
        %1453 = vmatprep.subr.mxu0 0.0
        %1454 = vmatpush1.msra.mxu0 %v1451
        %1455 = vmatprep.subr.mxu0 0.0
        %1456 = vmatpush1.msra.mxu0 0.0
        %1457 = vmatprep.subr.mxu0 0.0
        %1458 = vmatpush1.msra.mxu0 0.0
        %1459 = vmatprep.subr.mxu0 0.0
        %1460 = vmatpush1.msra.mxu0 0.0
        %1461 = vmatprep.subr.mxu0 0.0
        %1462 = vmatpush1.msra.mxu0 0.0
        %1463 = vmatprep.subr.mxu0 0.0
        %1464 = vmatpush1.msra.mxu0 0.0
        %1465 = vmatprep.subr.mxu0 0.0
        %1466 = vmatpush1.msra.mxu0 0.0
        %1467 = vmatprep.subr.mxu0 0.0
        %1468 = vmatpush1.msra.mxu0 0.0
        %1469 = vmatprep.subr.mxu0 0.0
        %1470 = vmatpush1.msra.mxu0 0.0
        %1471 = vmatprep.subr.mxu0 0.0
        %1472 = vmatpush1.msra.mxu0 0.0
        %1473 = vmatprep.subr.mxu0 0.0
        %1474 = vmatpush1.msra.mxu0 0.0
        %1475 = vmatprep.subr.mxu0 0.0
        %1476 = vmatpush1.msra.mxu0 0.0
        %1477 = vmatprep.subr.mxu0 0.0
        %1478 = vmatpush1.msra.mxu0 0.0
        %1479 = vmatprep.subr.mxu0 0.0
        %1480 = vmatpush1.msra.mxu0 0.0
        %1481 = vmatprep.subr.mxu0 0.0
        %1482 = vmatpush1.msra.mxu0 0.0
        %1483 = vmatprep.subr.mxu0 0.0
        %1484 = vmatpush1.msra.mxu0 0.0
        %1485 = vmatprep.subr.mxu0 0.0
        %1486 = vmatpush1.msra.mxu0 0.0
        %1487 = vmatprep.subr.mxu0 0.0
        %1488 = vmatpush1.msra.mxu0 0.0
        %1489 = vmatprep.subr.mxu0 0.0
        %1490 = vmatpush1.msra.mxu0 0.0
        %1491 = vmatprep.subr.mxu0 0.0
        %1492 = vmatpush1.msra.mxu0 0.0
        %1493 = vmatprep.subr.mxu0 0.0
        %1494 = vmatpush1.msra.mxu0 0.0
        %1495 = vmatprep.subr.mxu0 0.0
        %1496 = vmatpush1.msra.mxu0 0.0
        %1497 = vmatprep.subr.mxu0 0.0
        %1498 = vmatpush1.msra.mxu0 0.0
        %1499 = vmatprep.subr.mxu0 0.0
        %1500 = vmatpush1.msra.mxu0 0.0
        %1501 = vmatprep.subr.mxu0 0.0
        %1502 = vmatpush1.msra.mxu0 0.0
        %1503 = vmatprep.subr.mxu0 0.0
        %1504 = vmatpush1.msra.mxu0 0.0
        %1505 = vmatprep.subr.mxu0 0.0
        %1506 = vmatpush1.msra.mxu0 0.0
        %1507 = vmatprep.subr.mxu0 0.0
        %1508 = vmatpush1.msra.mxu0 0.0
        %1509 = vmatprep.subr.mxu0 0.0
        %1510 = vmatpush1.msra.mxu0 0.0
        %1511 = vmatprep.subr.mxu0 0.0
        %1512 = vmatpush1.msra.mxu0 0.0
        %1513 = vmatprep.subr.mxu0 0.0
        %1514 = vmatpush1.msra.mxu0 0.0
        %1515 = vmatprep.subr.mxu0 0.0
        %1516 = vmatpush1.msra.mxu0 0.0
        %1517 = vmatprep.mubr.f32.mxu0 0.0
        %1518 = vmatmul.mubr.f32.gmra.mrb[0].mxu0 %v1415
        %v1519 = vpop.f32.mrb[0].mxu0
        %v1520 = vadd.f32 %v1356, %v1519
        %v1521 = vpop.f32.mrb[0].mxu0
        %1522 = vmatprep.mubr.f32.mxu0 0.0
        %1523 = vmatmul.mubr.f32.gmra.mrb[0].mxu0 %v1418
        %v1524 = vpop.f32.mrb[0].mxu0
        %v1525 = vadd.f32 %v1361, %v1524
        %v1526 = vpop.f32.mrb[0].mxu0
        %1527 = vmatprep.mubr.f32.mxu0 0.0
        %1528 = vmatmul.mubr.f32.gmra.mrb[0].mxu0 %v1421
        %v1529 = vpop.f32.mrb[0].mxu0
        %v1530 = vadd.f32 %v1366, %v1529
        %v1531 = vpop.f32.mrb[0].mxu0
        %1532 = vmatprep.mubr.f32.mxu0 0.0
        %1533 = vmatmul.mubr.f32.gmra.mrb[0].mxu0 %v1424
        %v1534 = vpop.f32.mrb[0].mxu0
        %v1535 = vadd.f32 %v1371, %v1534
        %v1536 = vpop.f32.mrb[0].mxu0
        %1537 = vmatprep.mubr.f32.mxu0 0.0
        %1538 = vmatmul.mubr.f32.gmra.mrb[0].mxu0 %v1427
        %v1539 = vpop.f32.mrb[0].mxu0
        %v1540 = vadd.f32 %v1376, %v1539
        %v1541 = vpop.f32.mrb[0].mxu0
        %1542 = vmatprep.mubr.f32.mxu0 0.0
        %1543 = vmatmul.mubr.f32.gmra.mrb[0].mxu0 %v1430
        %v1544 = vpop.f32.mrb[0].mxu0
        %v1545 = vadd.f32 %v1381, %v1544
        %v1546 = vpop.f32.mrb[0].mxu0
        %1547 = vmatprep.mubr.f32.mxu0 0.0
        %1548 = vmatmul.mubr.f32.gmra.mrb[0].mxu0 %v1433
        %v1549 = vpop.f32.mrb[0].mxu0
        %v1550 = vadd.f32 %v1386, %v1549
        %v1551 = vpop.f32.mrb[0].mxu0
        %1552 = vmatprep.mubr.f32.mxu0 0.0
        %1553 = vmatmul.mubr.f32.gmra.mrb[0].mxu0 %v1436
        %v1554 = vpop.f32.mrb[0].mxu0
        %v1555 = vadd.f32 %v1391, %v1554
        %v1556 = vpop.f32.mrb[0].mxu0
        %1557 = vmatprep.mubr.f32.mxu0 0.0
        %1558 = vmatmul.mubr.f32.gmra.mrb[0].mxu0 %v1439
        %v1559 = vpop.f32.mrb[0].mxu0
        %v1560 = vadd.f32 %v1396, %v1559
        %v1561 = vpop.f32.mrb[0].mxu0
        %1562 = vmatprep.mubr.f32.mxu0 0.0
        %1563 = vmatmul.mubr.f32.gmra.mrb[0].mxu0 %v1442
        %v1564 = vpop.f32.mrb[0].mxu0
        %v1565 = vadd.f32 %v1401, %v1564
        %v1566 = vpop.f32.mrb[0].mxu0
        %1567 = vmatprep.mubr.f32.mxu0 0.0
        %1568 = vmatmul.mubr.f32.gmra.mrb[0].mxu0 %v1445
        %v1569 = vpop.f32.mrb[0].mxu0
        %v1570 = vadd.f32 %v1406, %v1569
        %v1571 = vpop.f32.mrb[0].mxu0
        %1572 = vmatprep.mubr.f32.mxu0 0.0
        %1573 = vmatmul.mubr.f32.gmra.mrb[0].mxu0 %v1448
        %v1574 = vpop.f32.mrb[0].mxu0
        %v1575 = vadd.f32 %v1411, %v1574
        %v1576 = vpop.f32.mrb[0].mxu0
        %1577 = vdwg.mxu0
        %v1578 = vld [vmem:[#allocation2 + $0x2] sm:$0xff]
        %v1579 = vld [vmem:[#allocation2 + $0xa] sm:$0xff]
        %v1580 = vld [vmem:[#allocation2 + $0x12] sm:$0xff]
        %v1581 = vld [vmem:[#allocation2 + $0x1a] sm:$0xff]
        %v1582 = vld [vmem:[#allocation2 + $0x22] sm:$0xff]
        %v1583 = vld [vmem:[#allocation2 + $0x2a] sm:$0xff]
        %v1584 = vld [vmem:[#allocation2 + $0x32] sm:$0xff]
        %v1585 = vld [vmem:[#allocation2 + $0x3a] sm:$0xff]
        %v1586 = vld [vmem:[#allocation2 + $0x42] sm:$0xff]
        %v1587 = vld [vmem:[#allocation2 + $0x4a] sm:$0xff]
        %v1588 = vld [vmem:[#allocation2 + $0x52] sm:$0xff]
        %v1589 = vld [vmem:[#allocation2 + $0x5a] sm:$0xf]
        %s1590 = scalar_lea.vmem %s3, 16
        %v1591 = vld [vmem:[%s1590] sm:$0x3f]
        %v1593 = vsel %vm1203, %v1578, 0
        %v1596 = vsel %vm1203, %v1579, 0
        %v1599 = vsel %vm1203, %v1580, 0
        %v1602 = vsel %vm1203, %v1581, 0
        %v1605 = vsel %vm1203, %v1582, 0
        %v1608 = vsel %vm1203, %v1583, 0
        %v1611 = vsel %vm1203, %v1584, 0
        %v1614 = vsel %vm1203, %v1585, 0
        %v1617 = vsel %vm1203, %v1586, 0
        %v1620 = vsel %vm1203, %v1587, 0
        %v1623 = vsel %vm1203, %v1588, 0
        %v1626 = vsel %vm1203, %v1589, 0
        %v1629 = vsel %vm1285, %v1591, 0
        %1631 = vmatprep.subr.mxu0 0.0
        %1632 = vmatpush1.msra.mxu0 %v1629
        %1633 = vmatprep.subr.mxu0 0.0
        %1634 = vmatpush1.msra.mxu0 0.0
        %1635 = vmatprep.subr.mxu0 0.0
        %1636 = vmatpush1.msra.mxu0 0.0
        %1637 = vmatprep.subr.mxu0 0.0
        %1638 = vmatpush1.msra.mxu0 0.0
        %1639 = vmatprep.subr.mxu0 0.0
        %1640 = vmatpush1.msra.mxu0 0.0
        %1641 = vmatprep.subr.mxu0 0.0
        %1642 = vmatpush1.msra.mxu0 0.0
        %1643 = vmatprep.subr.mxu0 0.0
        %1644 = vmatpush1.msra.mxu0 0.0
        %1645 = vmatprep.subr.mxu0 0.0
        %1646 = vmatpush1.msra.mxu0 0.0
        %1647 = vmatprep.subr.mxu0 0.0
        %1648 = vmatpush1.msra.mxu0 0.0
        %1649 = vmatprep.subr.mxu0 0.0
        %1650 = vmatpush1.msra.mxu0 0.0
        %1651 = vmatprep.subr.mxu0 0.0
        %1652 = vmatpush1.msra.mxu0 0.0
        %1653 = vmatprep.subr.mxu0 0.0
        %1654 = vmatpush1.msra.mxu0 0.0
        %1655 = vmatprep.subr.mxu0 0.0
        %1656 = vmatpush1.msra.mxu0 0.0
        %1657 = vmatprep.subr.mxu0 0.0
        %1658 = vmatpush1.msra.mxu0 0.0
        %1659 = vmatprep.subr.mxu0 0.0
        %1660 = vmatpush1.msra.mxu0 0.0
        %1661 = vmatprep.subr.mxu0 0.0
        %1662 = vmatpush1.msra.mxu0 0.0
        %1663 = vmatprep.subr.mxu0 0.0
        %1664 = vmatpush1.msra.mxu0 0.0
        %1665 = vmatprep.subr.mxu0 0.0
        %1666 = vmatpush1.msra.mxu0 0.0
        %1667 = vmatprep.subr.mxu0 0.0
        %1668 = vmatpush1.msra.mxu0 0.0
        %1669 = vmatprep.subr.mxu0 0.0
        %1670 = vmatpush1.msra.mxu0 0.0
        %1671 = vmatprep.subr.mxu0 0.0
        %1672 = vmatpush1.msra.mxu0 0.0
        %1673 = vmatprep.subr.mxu0 0.0
        %1674 = vmatpush1.msra.mxu0 0.0
        %1675 = vmatprep.subr.mxu0 0.0
        %1676 = vmatpush1.msra.mxu0 0.0
        %1677 = vmatprep.subr.mxu0 0.0
        %1678 = vmatpush1.msra.mxu0 0.0
        %1679 = vmatprep.subr.mxu0 0.0
        %1680 = vmatpush1.msra.mxu0 0.0
        %1681 = vmatprep.subr.mxu0 0.0
        %1682 = vmatpush1.msra.mxu0 0.0
        %1683 = vmatprep.subr.mxu0 0.0
        %1684 = vmatpush1.msra.mxu0 0.0
        %1685 = vmatprep.subr.mxu0 0.0
        %1686 = vmatpush1.msra.mxu0 0.0
        %1687 = vmatprep.subr.mxu0 0.0
        %1688 = vmatpush1.msra.mxu0 0.0
        %1689 = vmatprep.subr.mxu0 0.0
        %1690 = vmatpush1.msra.mxu0 0.0
        %1691 = vmatprep.subr.mxu0 0.0
        %1692 = vmatpush1.msra.mxu0 0.0
        %1693 = vmatprep.subr.mxu0 0.0
        %1694 = vmatpush1.msra.mxu0 0.0
        %1695 = vmatprep.mubr.f32.mxu0 0.0
        %1696 = vmatmul.mubr.f32.gmra.mrb[0].mxu0 %v1593
        %v1697 = vpop.f32.mrb[0].mxu0
        %v1698 = vadd.f32 0.0, %v1697
        %v1699 = vpop.f32.mrb[0].mxu0
        %1700 = vmatprep.mubr.f32.mxu0 0.0
        %1701 = vmatmul.mubr.f32.gmra.mrb[0].mxu0 %v1596
        %v1702 = vpop.f32.mrb[0].mxu0
        %v1703 = vadd.f32 0.0, %v1702
        %v1704 = vpop.f32.mrb[0].mxu0
        %1705 = vmatprep.mubr.f32.mxu0 0.0
        %1706 = vmatmul.mubr.f32.gmra.mrb[0].mxu0 %v1599
        %v1707 = vpop.f32.mrb[0].mxu0
        %v1708 = vadd.f32 0.0, %v1707
        %v1709 = vpop.f32.mrb[0].mxu0
        %1710 = vmatprep.mubr.f32.mxu0 0.0
        %1711 = vmatmul.mubr.f32.gmra.mrb[0].mxu0 %v1602
        %v1712 = vpop.f32.mrb[0].mxu0
        %v1713 = vadd.f32 0.0, %v1712
        %v1714 = vpop.f32.mrb[0].mxu0
        %1715 = vmatprep.mubr.f32.mxu0 0.0
        %1716 = vmatmul.mubr.f32.gmra.mrb[0].mxu0 %v1605
        %v1717 = vpop.f32.mrb[0].mxu0
        %v1718 = vadd.f32 0.0, %v1717
        %v1719 = vpop.f32.mrb[0].mxu0
        %1720 = vmatprep.mubr.f32.mxu0 0.0
        %1721 = vmatmul.mubr.f32.gmra.mrb[0].mxu0 %v1608
        %v1722 = vpop.f32.mrb[0].mxu0
        %v1723 = vadd.f32 0.0, %v1722
        %v1724 = vpop.f32.mrb[0].mxu0
        %1725 = vmatprep.mubr.f32.mxu0 0.0
        %1726 = vmatmul.mubr.f32.gmra.mrb[0].mxu0 %v1611
        %v1727 = vpop.f32.mrb[0].mxu0
        %v1728 = vadd.f32 0.0, %v1727
        %v1729 = vpop.f32.mrb[0].mxu0
        %1730 = vmatprep.mubr.f32.mxu0 0.0
        %1731 = vmatmul.mubr.f32.gmra.mrb[0].mxu0 %v1614
        %v1732 = vpop.f32.mrb[0].mxu0
        %v1733 = vadd.f32 0.0, %v1732
        %v1734 = vpop.f32.mrb[0].mxu0
        %1735 = vmatprep.mubr.f32.mxu0 0.0
        %1736 = vmatmul.mubr.f32.gmra.mrb[0].mxu0 %v1617
        %v1737 = vpop.f32.mrb[0].mxu0
        %v1738 = vadd.f32 0.0, %v1737
        %v1739 = vpop.f32.mrb[0].mxu0
        %1740 = vmatprep.mubr.f32.mxu0 0.0
        %1741 = vmatmul.mubr.f32.gmra.mrb[0].mxu0 %v1620
        %v1742 = vpop.f32.mrb[0].mxu0
        %v1743 = vadd.f32 0.0, %v1742
        %v1744 = vpop.f32.mrb[0].mxu0
        %1745 = vmatprep.mubr.f32.mxu0 0.0
        %1746 = vmatmul.mubr.f32.gmra.mrb[0].mxu0 %v1623
        %v1747 = vpop.f32.mrb[0].mxu0
        %v1748 = vadd.f32 0.0, %v1747
        %v1749 = vpop.f32.mrb[0].mxu0
        %1750 = vmatprep.mubr.f32.mxu0 0.0
        %1751 = vmatmul.mubr.f32.gmra.mrb[0].mxu0 %v1626
        %v1752 = vpop.f32.mrb[0].mxu0
        %v1753 = vadd.f32 0.0, %v1752
        %v1754 = vpop.f32.mrb[0].mxu0
        %1755 = vdwg.mxu0
        %v1756 = vadd.f32 %v1520, %v1698
        %v1757 = vadd.f32 %v1525, %v1703
        %v1758 = vadd.f32 %v1530, %v1708
        %v1759 = vadd.f32 %v1535, %v1713
        %v1760 = vadd.f32 %v1540, %v1718
        %v1761 = vadd.f32 %v1545, %v1723
        %v1762 = vadd.f32 %v1550, %v1728
        %v1763 = vadd.f32 %v1555, %v1733
        %v1764 = vadd.f32 %v1560, %v1738
        %v1765 = vadd.f32 %v1565, %v1743
        %v1766 = vadd.f32 %v1570, %v1748
        %v1767 = vadd.f32 %v1575, %v1753
        %v1768 = vld [vmem:[#allocation2 + $0x3] sm:$0xff]
        %v1769 = vld [vmem:[#allocation2 + $0xb] sm:$0xff]
        %v1770 = vld [vmem:[#allocation2 + $0x13] sm:$0xff]
        %v1771 = vld [vmem:[#allocation2 + $0x1b] sm:$0xff]
        %v1772 = vld [vmem:[#allocation2 + $0x23] sm:$0xff]
        %v1773 = vld [vmem:[#allocation2 + $0x2b] sm:$0xff]
        %v1774 = vld [vmem:[#allocation2 + $0x33] sm:$0xff]
        %v1775 = vld [vmem:[#allocation2 + $0x3b] sm:$0xff]
        %v1776 = vld [vmem:[#allocation2 + $0x43] sm:$0xff]
        %v1777 = vld [vmem:[#allocation2 + $0x4b] sm:$0xff]
        %v1778 = vld [vmem:[#allocation2 + $0x53] sm:$0xff]
        %v1779 = vld [vmem:[#allocation2 + $0x5b] sm:$0xf]
        %s1780 = scalar_lea.vmem %s3, 24
        %v1781 = vld [vmem:[%s1780] sm:$0x3f]
        %v1783 = vsel %vm1203, %v1768, 0
        %v1786 = vsel %vm1203, %v1769, 0
        %v1789 = vsel %vm1203, %v1770, 0
        %v1792 = vsel %vm1203, %v1771, 0
        %v1795 = vsel %vm1203, %v1772, 0
        %v1798 = vsel %vm1203, %v1773, 0
        %v1801 = vsel %vm1203, %v1774, 0
        %v1804 = vsel %vm1203, %v1775, 0
        %v1807 = vsel %vm1203, %v1776, 0
        %v1810 = vsel %vm1203, %v1777, 0
        %v1813 = vsel %vm1203, %v1778, 0
        %v1816 = vsel %vm1203, %v1779, 0
        %v1819 = vsel %vm1285, %v1781, 0
        %1821 = vmatprep.subr.mxu0 0.0
        %1822 = vmatpush1.msra.mxu0 %v1819
        %1823 = vmatprep.subr.mxu0 0.0
        %1824 = vmatpush1.msra.mxu0 0.0
        %1825 = vmatprep.subr.mxu0 0.0
        %1826 = vmatpush1.msra.mxu0 0.0
        %1827 = vmatprep.subr.mxu0 0.0
        %1828 = vmatpush1.msra.mxu0 0.0
        %1829 = vmatprep.subr.mxu0 0.0
        %1830 = vmatpush1.msra.mxu0 0.0
        %1831 = vmatprep.subr.mxu0 0.0
        %1832 = vmatpush1.msra.mxu0 0.0
        %1833 = vmatprep.subr.mxu0 0.0
        %1834 = vmatpush1.msra.mxu0 0.0
        %1835 = vmatprep.subr.mxu0 0.0
        %1836 = vmatpush1.msra.mxu0 0.0
        %1837 = vmatprep.subr.mxu0 0.0
        %1838 = vmatpush1.msra.mxu0 0.0
        %1839 = vmatprep.subr.mxu0 0.0
        %1840 = vmatpush1.msra.mxu0 0.0
        %1841 = vmatprep.subr.mxu0 0.0
        %1842 = vmatpush1.msra.mxu0 0.0
        %1843 = vmatprep.subr.mxu0 0.0
        %1844 = vmatpush1.msra.mxu0 0.0
        %1845 = vmatprep.subr.mxu0 0.0
        %1846 = vmatpush1.msra.mxu0 0.0
        %1847 = vmatprep.subr.mxu0 0.0
        %1848 = vmatpush1.msra.mxu0 0.0
        %1849 = vmatprep.subr.mxu0 0.0
        %1850 = vmatpush1.msra.mxu0 0.0
        %1851 = vmatprep.subr.mxu0 0.0
        %1852 = vmatpush1.msra.mxu0 0.0
        %1853 = vmatprep.subr.mxu0 0.0
        %1854 = vmatpush1.msra.mxu0 0.0
        %1855 = vmatprep.subr.mxu0 0.0
        %1856 = vmatpush1.msra.mxu0 0.0
        %1857 = vmatprep.subr.mxu0 0.0
        %1858 = vmatpush1.msra.mxu0 0.0
        %1859 = vmatprep.subr.mxu0 0.0
        %1860 = vmatpush1.msra.mxu0 0.0
        %1861 = vmatprep.subr.mxu0 0.0
        %1862 = vmatpush1.msra.mxu0 0.0
        %1863 = vmatprep.subr.mxu0 0.0
        %1864 = vmatpush1.msra.mxu0 0.0
        %1865 = vmatprep.subr.mxu0 0.0
        %1866 = vmatpush1.msra.mxu0 0.0
        %1867 = vmatprep.subr.mxu0 0.0
        %1868 = vmatpush1.msra.mxu0 0.0
        %1869 = vmatprep.subr.mxu0 0.0
        %1870 = vmatpush1.msra.mxu0 0.0
        %1871 = vmatprep.subr.mxu0 0.0
        %1872 = vmatpush1.msra.mxu0 0.0
        %1873 = vmatprep.subr.mxu0 0.0
        %1874 = vmatpush1.msra.mxu0 0.0
        %1875 = vmatprep.subr.mxu0 0.0
        %1876 = vmatpush1.msra.mxu0 0.0
        %1877 = vmatprep.subr.mxu0 0.0
        %1878 = vmatpush1.msra.mxu0 0.0
        %1879 = vmatprep.subr.mxu0 0.0
        %1880 = vmatpush1.msra.mxu0 0.0
        %1881 = vmatprep.subr.mxu0 0.0
        %1882 = vmatpush1.msra.mxu0 0.0
        %1883 = vmatprep.subr.mxu0 0.0
        %1884 = vmatpush1.msra.mxu0 0.0
        %1885 = vmatprep.mubr.f32.mxu0 0.0
        %1886 = vmatmul.mubr.f32.gmra.mrb[0].mxu0 %v1783
        %v1887 = vpop.f32.mrb[0].mxu0
        %v1888 = vadd.f32 0.0, %v1887
        %v1889 = vpop.f32.mrb[0].mxu0
        %1890 = vmatprep.mubr.f32.mxu0 0.0
        %1891 = vmatmul.mubr.f32.gmra.mrb[0].mxu0 %v1786
        %v1892 = vpop.f32.mrb[0].mxu0
        %v1893 = vadd.f32 0.0, %v1892
        %v1894 = vpop.f32.mrb[0].mxu0
        %1895 = vmatprep.mubr.f32.mxu0 0.0
        %1896 = vmatmul.mubr.f32.gmra.mrb[0].mxu0 %v1789
        %v1897 = vpop.f32.mrb[0].mxu0
        %v1898 = vadd.f32 0.0, %v1897
        %v1899 = vpop.f32.mrb[0].mxu0
        %1900 = vmatprep.mubr.f32.mxu0 0.0
        %1901 = vmatmul.mubr.f32.gmra.mrb[0].mxu0 %v1792
        %v1902 = vpop.f32.mrb[0].mxu0
        %v1903 = vadd.f32 0.0, %v1902
        %v1904 = vpop.f32.mrb[0].mxu0
        %1905 = vmatprep.mubr.f32.mxu0 0.0
        %1906 = vmatmul.mubr.f32.gmra.mrb[0].mxu0 %v1795
        %v1907 = vpop.f32.mrb[0].mxu0
        %v1908 = vadd.f32 0.0, %v1907
        %v1909 = vpop.f32.mrb[0].mxu0
        %1910 = vmatprep.mubr.f32.mxu0 0.0
        %1911 = vmatmul.mubr.f32.gmra.mrb[0].mxu0 %v1798
        %v1912 = vpop.f32.mrb[0].mxu0
        %v1913 = vadd.f32 0.0, %v1912
        %v1914 = vpop.f32.mrb[0].mxu0
        %1915 = vmatprep.mubr.f32.mxu0 0.0
        %1916 = vmatmul.mubr.f32.gmra.mrb[0].mxu0 %v1801
        %v1917 = vpop.f32.mrb[0].mxu0
        %v1918 = vadd.f32 0.0, %v1917
        %v1919 = vpop.f32.mrb[0].mxu0
        %1920 = vmatprep.mubr.f32.mxu0 0.0
        %1921 = vmatmul.mubr.f32.gmra.mrb[0].mxu0 %v1804
        %v1922 = vpop.f32.mrb[0].mxu0
        %v1923 = vadd.f32 0.0, %v1922
        %v1924 = vpop.f32.mrb[0].mxu0
        %1925 = vmatprep.mubr.f32.mxu0 0.0
        %1926 = vmatmul.mubr.f32.gmra.mrb[0].mxu0 %v1807
        %v1927 = vpop.f32.mrb[0].mxu0
        %v1928 = vadd.f32 0.0, %v1927
        %v1929 = vpop.f32.mrb[0].mxu0
        %1930 = vmatprep.mubr.f32.mxu0 0.0
        %1931 = vmatmul.mubr.f32.gmra.mrb[0].mxu0 %v1810
        %v1932 = vpop.f32.mrb[0].mxu0
        %v1933 = vadd.f32 0.0, %v1932
        %v1934 = vpop.f32.mrb[0].mxu0
        %1935 = vmatprep.mubr.f32.mxu0 0.0
        %1936 = vmatmul.mubr.f32.gmra.mrb[0].mxu0 %v1813
        %v1937 = vpop.f32.mrb[0].mxu0
        %v1938 = vadd.f32 0.0, %v1937
        %v1939 = vpop.f32.mrb[0].mxu0
        %1940 = vmatprep.mubr.f32.mxu0 0.0
        %1941 = vmatmul.mubr.f32.gmra.mrb[0].mxu0 %v1816
        %v1942 = vpop.f32.mrb[0].mxu0
        %v1943 = vadd.f32 0.0, %v1942
        %v1944 = vpop.f32.mrb[0].mxu0
        %1945 = vdwg.mxu0
        %v1946 = vadd.f32 %v1756, %v1888
        %v1947 = vadd.f32 %v1757, %v1893
        %v1948 = vadd.f32 %v1758, %v1898
        %v1949 = vadd.f32 %v1759, %v1903
        %v1950 = vadd.f32 %v1760, %v1908
        %v1951 = vadd.f32 %v1761, %v1913
        %v1952 = vadd.f32 %v1762, %v1918
        %v1953 = vadd.f32 %v1763, %v1923
        %v1954 = vadd.f32 %v1764, %v1928
        %v1955 = vadd.f32 %v1765, %v1933
        %v1956 = vadd.f32 %v1766, %v1938
        %v1957 = vadd.f32 %v1767, %v1943
        %v1958 = vld [vmem:[#allocation2 + $0x4] sm:$0xff]
        %v1959 = vld [vmem:[#allocation2 + $0xc] sm:$0xff]
        %v1960 = vld [vmem:[#allocation2 + $0x14] sm:$0xff]
        %v1961 = vld [vmem:[#allocation2 + $0x1c] sm:$0xff]
        %v1962 = vld [vmem:[#allocation2 + $0x24] sm:$0xff]
        %v1963 = vld [vmem:[#allocation2 + $0x2c] sm:$0xff]
        %v1964 = vld [vmem:[#allocation2 + $0x34] sm:$0xff]
        %v1965 = vld [vmem:[#allocation2 + $0x3c] sm:$0xff]
        %v1966 = vld [vmem:[#allocation2 + $0x44] sm:$0xff]
        %v1967 = vld [vmem:[#allocation2 + $0x4c] sm:$0xff]
        %v1968 = vld [vmem:[#allocation2 + $0x54] sm:$0xff]
        %v1969 = vld [vmem:[#allocation2 + $0x5c] sm:$0xf]
        %s1970 = scalar_lea.vmem %s3, 32
        %v1971 = vld [vmem:[%s1970] sm:$0x3f]
        %v1973 = vsel %vm1203, %v1958, 0
        %v1976 = vsel %vm1203, %v1959, 0
        %v1979 = vsel %vm1203, %v1960, 0
        %v1982 = vsel %vm1203, %v1961, 0
        %v1985 = vsel %vm1203, %v1962, 0
        %v1988 = vsel %vm1203, %v1963, 0
        %v1991 = vsel %vm1203, %v1964, 0
        %v1994 = vsel %vm1203, %v1965, 0
        %v1997 = vsel %vm1203, %v1966, 0
        %v2000 = vsel %vm1203, %v1967, 0
        %v2003 = vsel %vm1203, %v1968, 0
        %v2006 = vsel %vm1203, %v1969, 0
        %v2009 = vsel %vm1285, %v1971, 0
        %2011 = vmatprep.subr.mxu0 0.0
        %2012 = vmatpush1.msra.mxu0 %v2009
        %2013 = vmatprep.subr.mxu0 0.0
        %2014 = vmatpush1.msra.mxu0 0.0
        %2015 = vmatprep.subr.mxu0 0.0
        %2016 = vmatpush1.msra.mxu0 0.0
        %2017 = vmatprep.subr.mxu0 0.0
        %2018 = vmatpush1.msra.mxu0 0.0
        %2019 = vmatprep.subr.mxu0 0.0
        %2020 = vmatpush1.msra.mxu0 0.0
        %2021 = vmatprep.subr.mxu0 0.0
        %2022 = vmatpush1.msra.mxu0 0.0
        %2023 = vmatprep.subr.mxu0 0.0
        %2024 = vmatpush1.msra.mxu0 0.0
        %2025 = vmatprep.subr.mxu0 0.0
        %2026 = vmatpush1.msra.mxu0 0.0
        %2027 = vmatprep.subr.mxu0 0.0
        %2028 = vmatpush1.msra.mxu0 0.0
        %2029 = vmatprep.subr.mxu0 0.0
        %2030 = vmatpush1.msra.mxu0 0.0
        %2031 = vmatprep.subr.mxu0 0.0
        %2032 = vmatpush1.msra.mxu0 0.0
        %2033 = vmatprep.subr.mxu0 0.0
        %2034 = vmatpush1.msra.mxu0 0.0
        %2035 = vmatprep.subr.mxu0 0.0
        %2036 = vmatpush1.msra.mxu0 0.0
        %2037 = vmatprep.subr.mxu0 0.0
        %2038 = vmatpush1.msra.mxu0 0.0
        %2039 = vmatprep.subr.mxu0 0.0
        %2040 = vmatpush1.msra.mxu0 0.0
        %2041 = vmatprep.subr.mxu0 0.0
        %2042 = vmatpush1.msra.mxu0 0.0
        %2043 = vmatprep.subr.mxu0 0.0
        %2044 = vmatpush1.msra.mxu0 0.0
        %2045 = vmatprep.subr.mxu0 0.0
        %2046 = vmatpush1.msra.mxu0 0.0
        %2047 = vmatprep.subr.mxu0 0.0
        %2048 = vmatpush1.msra.mxu0 0.0
        %2049 = vmatprep.subr.mxu0 0.0
        %2050 = vmatpush1.msra.mxu0 0.0
        %2051 = vmatprep.subr.mxu0 0.0
        %2052 = vmatpush1.msra.mxu0 0.0
        %2053 = vmatprep.subr.mxu0 0.0
        %2054 = vmatpush1.msra.mxu0 0.0
        %2055 = vmatprep.subr.mxu0 0.0
        %2056 = vmatpush1.msra.mxu0 0.0
        %2057 = vmatprep.subr.mxu0 0.0
        %2058 = vmatpush1.msra.mxu0 0.0
        %2059 = vmatprep.subr.mxu0 0.0
        %2060 = vmatpush1.msra.mxu0 0.0
        %2061 = vmatprep.subr.mxu0 0.0
        %2062 = vmatpush1.msra.mxu0 0.0
        %2063 = vmatprep.subr.mxu0 0.0
        %2064 = vmatpush1.msra.mxu0 0.0
        %2065 = vmatprep.subr.mxu0 0.0
        %2066 = vmatpush1.msra.mxu0 0.0
        %2067 = vmatprep.subr.mxu0 0.0
        %2068 = vmatpush1.msra.mxu0 0.0
        %2069 = vmatprep.subr.mxu0 0.0
        %2070 = vmatpush1.msra.mxu0 0.0
        %2071 = vmatprep.subr.mxu0 0.0
        %2072 = vmatpush1.msra.mxu0 0.0
        %2073 = vmatprep.subr.mxu0 0.0
        %2074 = vmatpush1.msra.mxu0 0.0
        %2075 = vmatprep.mubr.f32.mxu0 0.0
        %2076 = vmatmul.mubr.f32.gmra.mrb[0].mxu0 %v1973
        %v2077 = vpop.f32.mrb[0].mxu0
        %v2078 = vadd.f32 0.0, %v2077
        %v2079 = vpop.f32.mrb[0].mxu0
        %2080 = vmatprep.mubr.f32.mxu0 0.0
        %2081 = vmatmul.mubr.f32.gmra.mrb[0].mxu0 %v1976
        %v2082 = vpop.f32.mrb[0].mxu0
        %v2083 = vadd.f32 0.0, %v2082
        %v2084 = vpop.f32.mrb[0].mxu0
        %2085 = vmatprep.mubr.f32.mxu0 0.0
        %2086 = vmatmul.mubr.f32.gmra.mrb[0].mxu0 %v1979
        %v2087 = vpop.f32.mrb[0].mxu0
        %v2088 = vadd.f32 0.0, %v2087
        %v2089 = vpop.f32.mrb[0].mxu0
        %2090 = vmatprep.mubr.f32.mxu0 0.0
        %2091 = vmatmul.mubr.f32.gmra.mrb[0].mxu0 %v1982
        %v2092 = vpop.f32.mrb[0].mxu0
        %v2093 = vadd.f32 0.0, %v2092
        %v2094 = vpop.f32.mrb[0].mxu0
        %2095 = vmatprep.mubr.f32.mxu0 0.0
        %2096 = vmatmul.mubr.f32.gmra.mrb[0].mxu0 %v1985
        %v2097 = vpop.f32.mrb[0].mxu0
        %v2098 = vadd.f32 0.0, %v2097
        %v2099 = vpop.f32.mrb[0].mxu0
        %2100 = vmatprep.mubr.f32.mxu0 0.0
        %2101 = vmatmul.mubr.f32.gmra.mrb[0].mxu0 %v1988
        %v2102 = vpop.f32.mrb[0].mxu0
        %v2103 = vadd.f32 0.0, %v2102
        %v2104 = vpop.f32.mrb[0].mxu0
        %2105 = vmatprep.mubr.f32.mxu0 0.0
        %2106 = vmatmul.mubr.f32.gmra.mrb[0].mxu0 %v1991
        %v2107 = vpop.f32.mrb[0].mxu0
        %v2108 = vadd.f32 0.0, %v2107
        %v2109 = vpop.f32.mrb[0].mxu0
        %2110 = vmatprep.mubr.f32.mxu0 0.0
        %2111 = vmatmul.mubr.f32.gmra.mrb[0].mxu0 %v1994
        %v2112 = vpop.f32.mrb[0].mxu0
        %v2113 = vadd.f32 0.0, %v2112
        %v2114 = vpop.f32.mrb[0].mxu0
        %2115 = vmatprep.mubr.f32.mxu0 0.0
        %2116 = vmatmul.mubr.f32.gmra.mrb[0].mxu0 %v1997
        %v2117 = vpop.f32.mrb[0].mxu0
        %v2118 = vadd.f32 0.0, %v2117
        %v2119 = vpop.f32.mrb[0].mxu0
        %2120 = vmatprep.mubr.f32.mxu0 0.0
        %2121 = vmatmul.mubr.f32.gmra.mrb[0].mxu0 %v2000
        %v2122 = vpop.f32.mrb[0].mxu0
        %v2123 = vadd.f32 0.0, %v2122
        %v2124 = vpop.f32.mrb[0].mxu0
        %2125 = vmatprep.mubr.f32.mxu0 0.0
        %2126 = vmatmul.mubr.f32.gmra.mrb[0].mxu0 %v2003
        %v2127 = vpop.f32.mrb[0].mxu0
        %v2128 = vadd.f32 0.0, %v2127
        %v2129 = vpop.f32.mrb[0].mxu0
        %2130 = vmatprep.mubr.f32.mxu0 0.0
        %2131 = vmatmul.mubr.f32.gmra.mrb[0].mxu0 %v2006
        %v2132 = vpop.f32.mrb[0].mxu0
        %v2133 = vadd.f32 0.0, %v2132
        %v2134 = vpop.f32.mrb[0].mxu0
        %2135 = vdwg.mxu0
        %v2136 = vadd.f32 %v1946, %v2078
        %v2137 = vadd.f32 %v1947, %v2083
        %v2138 = vadd.f32 %v1948, %v2088
        %v2139 = vadd.f32 %v1949, %v2093
        %v2140 = vadd.f32 %v1950, %v2098
        %v2141 = vadd.f32 %v1951, %v2103
        %v2142 = vadd.f32 %v1952, %v2108
        %v2143 = vadd.f32 %v1953, %v2113
        %v2144 = vadd.f32 %v1954, %v2118
        %v2145 = vadd.f32 %v1955, %v2123
        %v2146 = vadd.f32 %v1956, %v2128
        %v2147 = vadd.f32 %v1957, %v2133
        %v2148 = vld [vmem:[#allocation2 + $0xc] sm:$0xff]
        %v2149 = vld [vmem:[#allocation2 + $0x14] sm:$0xff]
        %v2150 = vld [vmem:[#allocation2 + $0x1c] sm:$0xff]
        %v2151 = vld [vmem:[#allocation2 + $0x24] sm:$0xff]
        %v2152 = vld [vmem:[#allocation2 + $0x2c] sm:$0xff]
        %v2153 = vld [vmem:[#allocation2 + $0x34] sm:$0xff]
        %v2154 = vld [vmem:[#allocation2 + $0x3c] sm:$0xff]
        %v2155 = vld [vmem:[#allocation2 + $0x44] sm:$0xff]
        %v2156 = vld [vmem:[#allocation2 + $0x4c] sm:$0xff]
        %v2157 = vld [vmem:[#allocation2 + $0x54] sm:$0xff]
        %v2158 = vld [vmem:[#allocation2 + $0x5c] sm:$0xff]
        %v2159 = vld [vmem:[#allocation2 + $0x64] sm:$0xf]
        %s2160 = scalar_lea.vmem %s3, 40
        %v2161 = vld [vmem:[%s2160] sm:$0x3f]
        %v2163 = vsel %vm1203, %v2148, 0
        %v2166 = vsel %vm1203, %v2149, 0
        %v2169 = vsel %vm1203, %v2150, 0
        %v2172 = vsel %vm1203, %v2151, 0
        %v2175 = vsel %vm1203, %v2152, 0
        %v2178 = vsel %vm1203, %v2153, 0
        %v2181 = vsel %vm1203, %v2154, 0
        %v2184 = vsel %vm1203, %v2155, 0
        %v2187 = vsel %vm1203, %v2156, 0
        %v2190 = vsel %vm1203, %v2157, 0
        %v2193 = vsel %vm1203, %v2158, 0
        %v2196 = vsel %vm1203, %v2159, 0
        %v2199 = vsel %vm1285, %v2161, 0
        %2201 = vmatprep.subr.mxu0 0.0
        %2202 = vmatpush1.msra.mxu0 %v2199
        %2203 = vmatprep.subr.mxu0 0.0
        %2204 = vmatpush1.msra.mxu0 0.0
        %2205 = vmatprep.subr.mxu0 0.0
        %2206 = vmatpush1.msra.mxu0 0.0
        %2207 = vmatprep.subr.mxu0 0.0
        %2208 = vmatpush1.msra.mxu0 0.0
        %2209 = vmatprep.subr.mxu0 0.0
        %2210 = vmatpush1.msra.mxu0 0.0
        %2211 = vmatprep.subr.mxu0 0.0
        %2212 = vmatpush1.msra.mxu0 0.0
        %2213 = vmatprep.subr.mxu0 0.0
        %2214 = vmatpush1.msra.mxu0 0.0
        %2215 = vmatprep.subr.mxu0 0.0
        %2216 = vmatpush1.msra.mxu0 0.0
        %2217 = vmatprep.subr.mxu0 0.0
        %2218 = vmatpush1.msra.mxu0 0.0
        %2219 = vmatprep.subr.mxu0 0.0
        %2220 = vmatpush1.msra.mxu0 0.0
        %2221 = vmatprep.subr.mxu0 0.0
        %2222 = vmatpush1.msra.mxu0 0.0
        %2223 = vmatprep.subr.mxu0 0.0
        %2224 = vmatpush1.msra.mxu0 0.0
        %2225 = vmatprep.subr.mxu0 0.0
        %2226 = vmatpush1.msra.mxu0 0.0
        %2227 = vmatprep.subr.mxu0 0.0
        %2228 = vmatpush1.msra.mxu0 0.0
        %2229 = vmatprep.subr.mxu0 0.0
        %2230 = vmatpush1.msra.mxu0 0.0
        %2231 = vmatprep.subr.mxu0 0.0
        %2232 = vmatpush1.msra.mxu0 0.0
        %2233 = vmatprep.subr.mxu0 0.0
        %2234 = vmatpush1.msra.mxu0 0.0
        %2235 = vmatprep.subr.mxu0 0.0
        %2236 = vmatpush1.msra.mxu0 0.0
        %2237 = vmatprep.subr.mxu0 0.0
        %2238 = vmatpush1.msra.mxu0 0.0
        %2239 = vmatprep.subr.mxu0 0.0
        %2240 = vmatpush1.msra.mxu0 0.0
        %2241 = vmatprep.subr.mxu0 0.0
        %2242 = vmatpush1.msra.mxu0 0.0
        %2243 = vmatprep.subr.mxu0 0.0
        %2244 = vmatpush1.msra.mxu0 0.0
        %2245 = vmatprep.subr.mxu0 0.0
        %2246 = vmatpush1.msra.mxu0 0.0
        %2247 = vmatprep.subr.mxu0 0.0
        %2248 = vmatpush1.msra.mxu0 0.0
        %2249 = vmatprep.subr.mxu0 0.0
        %2250 = vmatpush1.msra.mxu0 0.0
        %2251 = vmatprep.subr.mxu0 0.0
        %2252 = vmatpush1.msra.mxu0 0.0
        %2253 = vmatprep.subr.mxu0 0.0
        %2254 = vmatpush1.msra.mxu0 0.0
        %2255 = vmatprep.subr.mxu0 0.0
        %2256 = vmatpush1.msra.mxu0 0.0
        %2257 = vmatprep.subr.mxu0 0.0
        %2258 = vmatpush1.msra.mxu0 0.0
        %2259 = vmatprep.subr.mxu0 0.0
        %2260 = vmatpush1.msra.mxu0 0.0
        %2261 = vmatprep.subr.mxu0 0.0
        %2262 = vmatpush1.msra.mxu0 0.0
        %2263 = vmatprep.subr.mxu0 0.0
        %2264 = vmatpush1.msra.mxu0 0.0
        %2265 = vmatprep.mubr.f32.mxu0 0.0
        %2266 = vmatmul.mubr.f32.gmra.mrb[0].mxu0 %v2163
        %v2267 = vpop.f32.mrb[0].mxu0
        %v2268 = vadd.f32 0.0, %v2267
        %v2269 = vpop.f32.mrb[0].mxu0
        %2270 = vmatprep.mubr.f32.mxu0 0.0
        %2271 = vmatmul.mubr.f32.gmra.mrb[0].mxu0 %v2166
        %v2272 = vpop.f32.mrb[0].mxu0
        %v2273 = vadd.f32 0.0, %v2272
        %v2274 = vpop.f32.mrb[0].mxu0
        %2275 = vmatprep.mubr.f32.mxu0 0.0
        %2276 = vmatmul.mubr.f32.gmra.mrb[0].mxu0 %v2169
        %v2277 = vpop.f32.mrb[0].mxu0
        %v2278 = vadd.f32 0.0, %v2277
        %v2279 = vpop.f32.mrb[0].mxu0
        %2280 = vmatprep.mubr.f32.mxu0 0.0
        %2281 = vmatmul.mubr.f32.gmra.mrb[0].mxu0 %v2172
        %v2282 = vpop.f32.mrb[0].mxu0
        %v2283 = vadd.f32 0.0, %v2282
        %v2284 = vpop.f32.mrb[0].mxu0
        %2285 = vmatprep.mubr.f32.mxu0 0.0
        %2286 = vmatmul.mubr.f32.gmra.mrb[0].mxu0 %v2175
        %v2287 = vpop.f32.mrb[0].mxu0
        %v2288 = vadd.f32 0.0, %v2287
        %v2289 = vpop.f32.mrb[0].mxu0
        %2290 = vmatprep.mubr.f32.mxu0 0.0
        %2291 = vmatmul.mubr.f32.gmra.mrb[0].mxu0 %v2178
        %v2292 = vpop.f32.mrb[0].mxu0
        %v2293 = vadd.f32 0.0, %v2292
        %v2294 = vpop.f32.mrb[0].mxu0
        %2295 = vmatprep.mubr.f32.mxu0 0.0
        %2296 = vmatmul.mubr.f32.gmra.mrb[0].mxu0 %v2181
        %v2297 = vpop.f32.mrb[0].mxu0
        %v2298 = vadd.f32 0.0, %v2297
        %v2299 = vpop.f32.mrb[0].mxu0
        %2300 = vmatprep.mubr.f32.mxu0 0.0
        %2301 = vmatmul.mubr.f32.gmra.mrb[0].mxu0 %v2184
        %v2302 = vpop.f32.mrb[0].mxu0
        %v2303 = vadd.f32 0.0, %v2302
        %v2304 = vpop.f32.mrb[0].mxu0
        %2305 = vmatprep.mubr.f32.mxu0 0.0
        %2306 = vmatmul.mubr.f32.gmra.mrb[0].mxu0 %v2187
        %v2307 = vpop.f32.mrb[0].mxu0
        %v2308 = vadd.f32 0.0, %v2307
        %v2309 = vpop.f32.mrb[0].mxu0
        %2310 = vmatprep.mubr.f32.mxu0 0.0
        %2311 = vmatmul.mubr.f32.gmra.mrb[0].mxu0 %v2190
        %v2312 = vpop.f32.mrb[0].mxu0
        %v2313 = vadd.f32 0.0, %v2312
        %v2314 = vpop.f32.mrb[0].mxu0
        %2315 = vmatprep.mubr.f32.mxu0 0.0
        %2316 = vmatmul.mubr.f32.gmra.mrb[0].mxu0 %v2193
        %v2317 = vpop.f32.mrb[0].mxu0
        %v2318 = vadd.f32 0.0, %v2317
        %v2319 = vpop.f32.mrb[0].mxu0
        %2320 = vmatprep.mubr.f32.mxu0 0.0
        %2321 = vmatmul.mubr.f32.gmra.mrb[0].mxu0 %v2196
        %v2322 = vpop.f32.mrb[0].mxu0
        %v2323 = vadd.f32 0.0, %v2322
        %v2324 = vpop.f32.mrb[0].mxu0
        %2325 = vdwg.mxu0
        %v2326 = vadd.f32 %v2136, %v2268
        %v2327 = vadd.f32 %v2137, %v2273
        %v2328 = vadd.f32 %v2138, %v2278
        %v2329 = vadd.f32 %v2139, %v2283
        %v2330 = vadd.f32 %v2140, %v2288
        %v2331 = vadd.f32 %v2141, %v2293
        %v2332 = vadd.f32 %v2142, %v2298
        %v2333 = vadd.f32 %v2143, %v2303
        %v2334 = vadd.f32 %v2144, %v2308
        %v2335 = vadd.f32 %v2145, %v2313
        %v2336 = vadd.f32 %v2146, %v2318
        %v2337 = vadd.f32 %v2147, %v2323
        %v2338 = vld [vmem:[#allocation2 + $0xd] sm:$0xff]
        %v2339 = vld [vmem:[#allocation2 + $0x15] sm:$0xff]
        %v2340 = vld [vmem:[#allocation2 + $0x1d] sm:$0xff]
        %v2341 = vld [vmem:[#allocation2 + $0x25] sm:$0xff]
        %v2342 = vld [vmem:[#allocation2 + $0x2d] sm:$0xff]
        %v2343 = vld [vmem:[#allocation2 + $0x35] sm:$0xff]
        %v2344 = vld [vmem:[#allocation2 + $0x3d] sm:$0xff]
        %v2345 = vld [vmem:[#allocation2 + $0x45] sm:$0xff]
        %v2346 = vld [vmem:[#allocation2 + $0x4d] sm:$0xff]
        %v2347 = vld [vmem:[#allocation2 + $0x55] sm:$0xff]
        %v2348 = vld [vmem:[#allocation2 + $0x5d] sm:$0xff]
        %v2349 = vld [vmem:[#allocation2 + $0x65] sm:$0xf]
        %s2350 = scalar_lea.vmem %s3, 48
        %v2351 = vld [vmem:[%s2350] sm:$0x3f]
        %v2353 = vsel %vm1203, %v2338, 0
        %v2356 = vsel %vm1203, %v2339, 0
        %v2359 = vsel %vm1203, %v2340, 0
        %v2362 = vsel %vm1203, %v2341, 0
        %v2365 = vsel %vm1203, %v2342, 0
        %v2368 = vsel %vm1203, %v2343, 0
        %v2371 = vsel %vm1203, %v2344, 0
        %v2374 = vsel %vm1203, %v2345, 0
        %v2377 = vsel %vm1203, %v2346, 0
        %v2380 = vsel %vm1203, %v2347, 0
        %v2383 = vsel %vm1203, %v2348, 0
        %v2386 = vsel %vm1203, %v2349, 0
        %v2389 = vsel %vm1285, %v2351, 0
        %2391 = vmatprep.subr.mxu0 0.0
        %2392 = vmatpush1.msra.mxu0 %v2389
        %2393 = vmatprep.subr.mxu0 0.0
        %2394 = vmatpush1.msra.mxu0 0.0
        %2395 = vmatprep.subr.mxu0 0.0
        %2396 = vmatpush1.msra.mxu0 0.0
        %2397 = vmatprep.subr.mxu0 0.0
        %2398 = vmatpush1.msra.mxu0 0.0
        %2399 = vmatprep.subr.mxu0 0.0
        %2400 = vmatpush1.msra.mxu0 0.0
        %2401 = vmatprep.subr.mxu0 0.0
        %2402 = vmatpush1.msra.mxu0 0.0
        %2403 = vmatprep.subr.mxu0 0.0
        %2404 = vmatpush1.msra.mxu0 0.0
        %2405 = vmatprep.subr.mxu0 0.0
        %2406 = vmatpush1.msra.mxu0 0.0
        %2407 = vmatprep.subr.mxu0 0.0
        %2408 = vmatpush1.msra.mxu0 0.0
        %2409 = vmatprep.subr.mxu0 0.0
        %2410 = vmatpush1.msra.mxu0 0.0
        %2411 = vmatprep.subr.mxu0 0.0
        %2412 = vmatpush1.msra.mxu0 0.0
        %2413 = vmatprep.subr.mxu0 0.0
        %2414 = vmatpush1.msra.mxu0 0.0
        %2415 = vmatprep.subr.mxu0 0.0
        %2416 = vmatpush1.msra.mxu0 0.0
        %2417 = vmatprep.subr.mxu0 0.0
        %2418 = vmatpush1.msra.mxu0 0.0
        %2419 = vmatprep.subr.mxu0 0.0
        %2420 = vmatpush1.msra.mxu0 0.0
        %2421 = vmatprep.subr.mxu0 0.0
        %2422 = vmatpush1.msra.mxu0 0.0
        %2423 = vmatprep.subr.mxu0 0.0
        %2424 = vmatpush1.msra.mxu0 0.0
        %2425 = vmatprep.subr.mxu0 0.0
        %2426 = vmatpush1.msra.mxu0 0.0
        %2427 = vmatprep.subr.mxu0 0.0
        %2428 = vmatpush1.msra.mxu0 0.0
        %2429 = vmatprep.subr.mxu0 0.0
        %2430 = vmatpush1.msra.mxu0 0.0
        %2431 = vmatprep.subr.mxu0 0.0
        %2432 = vmatpush1.msra.mxu0 0.0
        %2433 = vmatprep.subr.mxu0 0.0
        %2434 = vmatpush1.msra.mxu0 0.0
        %2435 = vmatprep.subr.mxu0 0.0
        %2436 = vmatpush1.msra.mxu0 0.0
        %2437 = vmatprep.subr.mxu0 0.0
        %2438 = vmatpush1.msra.mxu0 0.0
        %2439 = vmatprep.subr.mxu0 0.0
        %2440 = vmatpush1.msra.mxu0 0.0
        %2441 = vmatprep.subr.mxu0 0.0
        %2442 = vmatpush1.msra.mxu0 0.0
        %2443 = vmatprep.subr.mxu0 0.0
        %2444 = vmatpush1.msra.mxu0 0.0
        %2445 = vmatprep.subr.mxu0 0.0
        %2446 = vmatpush1.msra.mxu0 0.0
        %2447 = vmatprep.subr.mxu0 0.0
        %2448 = vmatpush1.msra.mxu0 0.0
        %2449 = vmatprep.subr.mxu0 0.0
        %2450 = vmatpush1.msra.mxu0 0.0
        %2451 = vmatprep.subr.mxu0 0.0
        %2452 = vmatpush1.msra.mxu0 0.0
        %2453 = vmatprep.subr.mxu0 0.0
        %2454 = vmatpush1.msra.mxu0 0.0
        %2455 = vmatprep.mubr.f32.mxu0 0.0
        %2456 = vmatmul.mubr.f32.gmra.mrb[0].mxu0 %v2353
        %v2457 = vpop.f32.mrb[0].mxu0
        %v2458 = vadd.f32 0.0, %v2457
        %v2459 = vpop.f32.mrb[0].mxu0
        %2460 = vmatprep.mubr.f32.mxu0 0.0
        %2461 = vmatmul.mubr.f32.gmra.mrb[0].mxu0 %v2356
        %v2462 = vpop.f32.mrb[0].mxu0
        %v2463 = vadd.f32 0.0, %v2462
        %v2464 = vpop.f32.mrb[0].mxu0
        %2465 = vmatprep.mubr.f32.mxu0 0.0
        %2466 = vmatmul.mubr.f32.gmra.mrb[0].mxu0 %v2359
        %v2467 = vpop.f32.mrb[0].mxu0
        %v2468 = vadd.f32 0.0, %v2467
        %v2469 = vpop.f32.mrb[0].mxu0
        %2470 = vmatprep.mubr.f32.mxu0 0.0
        %2471 = vmatmul.mubr.f32.gmra.mrb[0].mxu0 %v2362
        %v2472 = vpop.f32.mrb[0].mxu0
        %v2473 = vadd.f32 0.0, %v2472
        %v2474 = vpop.f32.mrb[0].mxu0
        %2475 = vmatprep.mubr.f32.mxu0 0.0
        %2476 = vmatmul.mubr.f32.gmra.mrb[0].mxu0 %v2365
        %v2477 = vpop.f32.mrb[0].mxu0
        %v2478 = vadd.f32 0.0, %v2477
        %v2479 = vpop.f32.mrb[0].mxu0
        %2480 = vmatprep.mubr.f32.mxu0 0.0
        %2481 = vmatmul.mubr.f32.gmra.mrb[0].mxu0 %v2368
        %v2482 = vpop.f32.mrb[0].mxu0
        %v2483 = vadd.f32 0.0, %v2482
        %v2484 = vpop.f32.mrb[0].mxu0
        %2485 = vmatprep.mubr.f32.mxu0 0.0
        %2486 = vmatmul.mubr.f32.gmra.mrb[0].mxu0 %v2371
        %v2487 = vpop.f32.mrb[0].mxu0
        %v2488 = vadd.f32 0.0, %v2487
        %v2489 = vpop.f32.mrb[0].mxu0
        %2490 = vmatprep.mubr.f32.mxu0 0.0
        %2491 = vmatmul.mubr.f32.gmra.mrb[0].mxu0 %v2374
        %v2492 = vpop.f32.mrb[0].mxu0
        %v2493 = vadd.f32 0.0, %v2492
        %v2494 = vpop.f32.mrb[0].mxu0
        %2495 = vmatprep.mubr.f32.mxu0 0.0
        %2496 = vmatmul.mubr.f32.gmra.mrb[0].mxu0 %v2377
        %v2497 = vpop.f32.mrb[0].mxu0
        %v2498 = vadd.f32 0.0, %v2497
        %v2499 = vpop.f32.mrb[0].mxu0
        %2500 = vmatprep.mubr.f32.mxu0 0.0
        %2501 = vmatmul.mubr.f32.gmra.mrb[0].mxu0 %v2380
        %v2502 = vpop.f32.mrb[0].mxu0
        %v2503 = vadd.f32 0.0, %v2502
        %v2504 = vpop.f32.mrb[0].mxu0
        %2505 = vmatprep.mubr.f32.mxu0 0.0
        %2506 = vmatmul.mubr.f32.gmra.mrb[0].mxu0 %v2383
        %v2507 = vpop.f32.mrb[0].mxu0
        %v2508 = vadd.f32 0.0, %v2507
        %v2509 = vpop.f32.mrb[0].mxu0
        %2510 = vmatprep.mubr.f32.mxu0 0.0
        %2511 = vmatmul.mubr.f32.gmra.mrb[0].mxu0 %v2386
        %v2512 = vpop.f32.mrb[0].mxu0
        %v2513 = vadd.f32 0.0, %v2512
        %v2514 = vpop.f32.mrb[0].mxu0
        %2515 = vdwg.mxu0
        %v2516 = vadd.f32 %v2326, %v2458
        %v2517 = vadd.f32 %v2327, %v2463
        %v2518 = vadd.f32 %v2328, %v2468
        %v2519 = vadd.f32 %v2329, %v2473
        %v2520 = vadd.f32 %v2330, %v2478
        %v2521 = vadd.f32 %v2331, %v2483
        %v2522 = vadd.f32 %v2332, %v2488
        %v2523 = vadd.f32 %v2333, %v2493
        %v2524 = vadd.f32 %v2334, %v2498
        %v2525 = vadd.f32 %v2335, %v2503
        %v2526 = vadd.f32 %v2336, %v2508
        %v2527 = vadd.f32 %v2337, %v2513
        %v2528 = vld [vmem:[#allocation2 + $0xe] sm:$0xff]
        %v2529 = vld [vmem:[#allocation2 + $0x16] sm:$0xff]
        %v2530 = vld [vmem:[#allocation2 + $0x1e] sm:$0xff]
        %v2531 = vld [vmem:[#allocation2 + $0x26] sm:$0xff]
        %v2532 = vld [vmem:[#allocation2 + $0x2e] sm:$0xff]
        %v2533 = vld [vmem:[#allocation2 + $0x36] sm:$0xff]
        %v2534 = vld [vmem:[#allocation2 + $0x3e] sm:$0xff]
        %v2535 = vld [vmem:[#allocation2 + $0x46] sm:$0xff]
        %v2536 = vld [vmem:[#allocation2 + $0x4e] sm:$0xff]
        %v2537 = vld [vmem:[#allocation2 + $0x56] sm:$0xff]
        %v2538 = vld [vmem:[#allocation2 + $0x5e] sm:$0xff]
        %v2539 = vld [vmem:[#allocation2 + $0x66] sm:$0xf]
        %s2540 = scalar_lea.vmem %s3, 56
        %v2541 = vld [vmem:[%s2540] sm:$0x3f]
        %v2543 = vsel %vm1203, %v2528, 0
        %v2546 = vsel %vm1203, %v2529, 0
        %v2549 = vsel %vm1203, %v2530, 0
        %v2552 = vsel %vm1203, %v2531, 0
        %v2555 = vsel %vm1203, %v2532, 0
        %v2558 = vsel %vm1203, %v2533, 0
        %v2561 = vsel %vm1203, %v2534, 0
        %v2564 = vsel %vm1203, %v2535, 0
        %v2567 = vsel %vm1203, %v2536, 0
        %v2570 = vsel %vm1203, %v2537, 0
        %v2573 = vsel %vm1203, %v2538, 0
        %v2576 = vsel %vm1203, %v2539, 0
        %v2579 = vsel %vm1285, %v2541, 0
        %2581 = vmatprep.subr.mxu0 0.0
        %2582 = vmatpush1.msra.mxu0 %v2579
        %2583 = vmatprep.subr.mxu0 0.0
        %2584 = vmatpush1.msra.mxu0 0.0
        %2585 = vmatprep.subr.mxu0 0.0
        %2586 = vmatpush1.msra.mxu0 0.0
        %2587 = vmatprep.subr.mxu0 0.0
        %2588 = vmatpush1.msra.mxu0 0.0
        %2589 = vmatprep.subr.mxu0 0.0
        %2590 = vmatpush1.msra.mxu0 0.0
        %2591 = vmatprep.subr.mxu0 0.0
        %2592 = vmatpush1.msra.mxu0 0.0
        %2593 = vmatprep.subr.mxu0 0.0
        %2594 = vmatpush1.msra.mxu0 0.0
        %2595 = vmatprep.subr.mxu0 0.0
        %2596 = vmatpush1.msra.mxu0 0.0
        %2597 = vmatprep.subr.mxu0 0.0
        %2598 = vmatpush1.msra.mxu0 0.0
        %2599 = vmatprep.subr.mxu0 0.0
        %2600 = vmatpush1.msra.mxu0 0.0
        %2601 = vmatprep.subr.mxu0 0.0
        %2602 = vmatpush1.msra.mxu0 0.0
        %2603 = vmatprep.subr.mxu0 0.0
        %2604 = vmatpush1.msra.mxu0 0.0
        %2605 = vmatprep.subr.mxu0 0.0
        %2606 = vmatpush1.msra.mxu0 0.0
        %2607 = vmatprep.subr.mxu0 0.0
        %2608 = vmatpush1.msra.mxu0 0.0
        %2609 = vmatprep.subr.mxu0 0.0
        %2610 = vmatpush1.msra.mxu0 0.0
        %2611 = vmatprep.subr.mxu0 0.0
        %2612 = vmatpush1.msra.mxu0 0.0
        %2613 = vmatprep.subr.mxu0 0.0
        %2614 = vmatpush1.msra.mxu0 0.0
        %2615 = vmatprep.subr.mxu0 0.0
        %2616 = vmatpush1.msra.mxu0 0.0
        %2617 = vmatprep.subr.mxu0 0.0
        %2618 = vmatpush1.msra.mxu0 0.0
        %2619 = vmatprep.subr.mxu0 0.0
        %2620 = vmatpush1.msra.mxu0 0.0
        %2621 = vmatprep.subr.mxu0 0.0
        %2622 = vmatpush1.msra.mxu0 0.0
        %2623 = vmatprep.subr.mxu0 0.0
        %2624 = vmatpush1.msra.mxu0 0.0
        %2625 = vmatprep.subr.mxu0 0.0
        %2626 = vmatpush1.msra.mxu0 0.0
        %2627 = vmatprep.subr.mxu0 0.0
        %2628 = vmatpush1.msra.mxu0 0.0
        %2629 = vmatprep.subr.mxu0 0.0
        %2630 = vmatpush1.msra.mxu0 0.0
        %2631 = vmatprep.subr.mxu0 0.0
        %2632 = vmatpush1.msra.mxu0 0.0
        %2633 = vmatprep.subr.mxu0 0.0
        %2634 = vmatpush1.msra.mxu0 0.0
        %2635 = vmatprep.subr.mxu0 0.0
        %2636 = vmatpush1.msra.mxu0 0.0
        %2637 = vmatprep.subr.mxu0 0.0
        %2638 = vmatpush1.msra.mxu0 0.0
        %2639 = vmatprep.subr.mxu0 0.0
        %2640 = vmatpush1.msra.mxu0 0.0
        %2641 = vmatprep.subr.mxu0 0.0
        %2642 = vmatpush1.msra.mxu0 0.0
        %2643 = vmatprep.subr.mxu0 0.0
        %2644 = vmatpush1.msra.mxu0 0.0
        %2645 = vmatprep.mubr.f32.mxu0 0.0
        %2646 = vmatmul.mubr.f32.gmra.mrb[0].mxu0 %v2543
        %v2647 = vpop.f32.mrb[0].mxu0
        %v2648 = vadd.f32 0.0, %v2647
        %v2649 = vpop.f32.mrb[0].mxu0
        %2650 = vmatprep.mubr.f32.mxu0 0.0
        %2651 = vmatmul.mubr.f32.gmra.mrb[0].mxu0 %v2546
        %v2652 = vpop.f32.mrb[0].mxu0
        %v2653 = vadd.f32 0.0, %v2652
        %v2654 = vpop.f32.mrb[0].mxu0
        %2655 = vmatprep.mubr.f32.mxu0 0.0
        %2656 = vmatmul.mubr.f32.gmra.mrb[0].mxu0 %v2549
        %v2657 = vpop.f32.mrb[0].mxu0
        %v2658 = vadd.f32 0.0, %v2657
        %v2659 = vpop.f32.mrb[0].mxu0
        %2660 = vmatprep.mubr.f32.mxu0 0.0
        %2661 = vmatmul.mubr.f32.gmra.mrb[0].mxu0 %v2552
        %v2662 = vpop.f32.mrb[0].mxu0
        %v2663 = vadd.f32 0.0, %v2662
        %v2664 = vpop.f32.mrb[0].mxu0
        %2665 = vmatprep.mubr.f32.mxu0 0.0
        %2666 = vmatmul.mubr.f32.gmra.mrb[0].mxu0 %v2555
        %v2667 = vpop.f32.mrb[0].mxu0
        %v2668 = vadd.f32 0.0, %v2667
        %v2669 = vpop.f32.mrb[0].mxu0
        %2670 = vmatprep.mubr.f32.mxu0 0.0
        %2671 = vmatmul.mubr.f32.gmra.mrb[0].mxu0 %v2558
        %v2672 = vpop.f32.mrb[0].mxu0
        %v2673 = vadd.f32 0.0, %v2672
        %v2674 = vpop.f32.mrb[0].mxu0
        %2675 = vmatprep.mubr.f32.mxu0 0.0
        %2676 = vmatmul.mubr.f32.gmra.mrb[0].mxu0 %v2561
        %v2677 = vpop.f32.mrb[0].mxu0
        %v2678 = vadd.f32 0.0, %v2677
        %v2679 = vpop.f32.mrb[0].mxu0
        %2680 = vmatprep.mubr.f32.mxu0 0.0
        %2681 = vmatmul.mubr.f32.gmra.mrb[0].mxu0 %v2564
        %v2682 = vpop.f32.mrb[0].mxu0
        %v2683 = vadd.f32 0.0, %v2682
        %v2684 = vpop.f32.mrb[0].mxu0
        %2685 = vmatprep.mubr.f32.mxu0 0.0
        %2686 = vmatmul.mubr.f32.gmra.mrb[0].mxu0 %v2567
        %v2687 = vpop.f32.mrb[0].mxu0
        %v2688 = vadd.f32 0.0, %v2687
        %v2689 = vpop.f32.mrb[0].mxu0
        %2690 = vmatprep.mubr.f32.mxu0 0.0
        %2691 = vmatmul.mubr.f32.gmra.mrb[0].mxu0 %v2570
        %v2692 = vpop.f32.mrb[0].mxu0
        %v2693 = vadd.f32 0.0, %v2692
        %v2694 = vpop.f32.mrb[0].mxu0
        %2695 = vmatprep.mubr.f32.mxu0 0.0
        %2696 = vmatmul.mubr.f32.gmra.mrb[0].mxu0 %v2573
        %v2697 = vpop.f32.mrb[0].mxu0
        %v2698 = vadd.f32 0.0, %v2697
        %v2699 = vpop.f32.mrb[0].mxu0
        %2700 = vmatprep.mubr.f32.mxu0 0.0
        %2701 = vmatmul.mubr.f32.gmra.mrb[0].mxu0 %v2576
        %v2702 = vpop.f32.mrb[0].mxu0
        %v2703 = vadd.f32 0.0, %v2702
        %v2704 = vpop.f32.mrb[0].mxu0
        %2705 = vdwg.mxu0
        %v2706 = vadd.f32 %v2516, %v2648
        %v2707 = vadd.f32 %v2517, %v2653
        %v2708 = vadd.f32 %v2518, %v2658
        %v2709 = vadd.f32 %v2519, %v2663
        %v2710 = vadd.f32 %v2520, %v2668
        %v2711 = vadd.f32 %v2521, %v2673
        %v2712 = vadd.f32 %v2522, %v2678
        %v2713 = vadd.f32 %v2523, %v2683
        %v2714 = vadd.f32 %v2524, %v2688
        %v2715 = vadd.f32 %v2525, %v2693
        %v2716 = vadd.f32 %v2526, %v2698
        %v2717 = vadd.f32 %v2527, %v2703
        %v2718 = vld [vmem:[#allocation2 + $0xf] sm:$0xff]
        %v2719 = vld [vmem:[#allocation2 + $0x17] sm:$0xff]
        %v2720 = vld [vmem:[#allocation2 + $0x1f] sm:$0xff]
        %v2721 = vld [vmem:[#allocation2 + $0x27] sm:$0xff]
        %v2722 = vld [vmem:[#allocation2 + $0x2f] sm:$0xff]
        %v2723 = vld [vmem:[#allocation2 + $0x37] sm:$0xff]
        %v2724 = vld [vmem:[#allocation2 + $0x3f] sm:$0xff]
        %v2725 = vld [vmem:[#allocation2 + $0x47] sm:$0xff]
        %v2726 = vld [vmem:[#allocation2 + $0x4f] sm:$0xff]
        %v2727 = vld [vmem:[#allocation2 + $0x57] sm:$0xff]
        %v2728 = vld [vmem:[#allocation2 + $0x5f] sm:$0xff]
        %v2729 = vld [vmem:[#allocation2 + $0x67] sm:$0xf]
        %s2730 = scalar_lea.vmem %s3, 64
        %v2731 = vld [vmem:[%s2730] sm:$0x3f]
        %v2733 = vsel %vm1203, %v2718, 0
        %v2736 = vsel %vm1203, %v2719, 0
        %v2739 = vsel %vm1203, %v2720, 0
        %v2742 = vsel %vm1203, %v2721, 0
        %v2745 = vsel %vm1203, %v2722, 0
        %v2748 = vsel %vm1203, %v2723, 0
        %v2751 = vsel %vm1203, %v2724, 0
        %v2754 = vsel %vm1203, %v2725, 0
        %v2757 = vsel %vm1203, %v2726, 0
        %v2760 = vsel %vm1203, %v2727, 0
        %v2763 = vsel %vm1203, %v2728, 0
        %v2766 = vsel %vm1203, %v2729, 0
        %v2769 = vsel %vm1285, %v2731, 0
        %2771 = vmatprep.subr.mxu0 0.0
        %2772 = vmatpush1.msra.mxu0 %v2769
        %2773 = vmatprep.subr.mxu0 0.0
        %2774 = vmatpush1.msra.mxu0 0.0
        %2775 = vmatprep.subr.mxu0 0.0
        %2776 = vmatpush1.msra.mxu0 0.0
        %2777 = vmatprep.subr.mxu0 0.0
        %2778 = vmatpush1.msra.mxu0 0.0
        %2779 = vmatprep.subr.mxu0 0.0
        %2780 = vmatpush1.msra.mxu0 0.0
        %2781 = vmatprep.subr.mxu0 0.0
        %2782 = vmatpush1.msra.mxu0 0.0
        %2783 = vmatprep.subr.mxu0 0.0
        %2784 = vmatpush1.msra.mxu0 0.0
        %2785 = vmatprep.subr.mxu0 0.0
        %2786 = vmatpush1.msra.mxu0 0.0
        %2787 = vmatprep.subr.mxu0 0.0
        %2788 = vmatpush1.msra.mxu0 0.0
        %2789 = vmatprep.subr.mxu0 0.0
        %2790 = vmatpush1.msra.mxu0 0.0
        %2791 = vmatprep.subr.mxu0 0.0
        %2792 = vmatpush1.msra.mxu0 0.0
        %2793 = vmatprep.subr.mxu0 0.0
        %2794 = vmatpush1.msra.mxu0 0.0
        %2795 = vmatprep.subr.mxu0 0.0
        %2796 = vmatpush1.msra.mxu0 0.0
        %2797 = vmatprep.subr.mxu0 0.0
        %2798 = vmatpush1.msra.mxu0 0.0
        %2799 = vmatprep.subr.mxu0 0.0
        %2800 = vmatpush1.msra.mxu0 0.0
        %2801 = vmatprep.subr.mxu0 0.0
        %2802 = vmatpush1.msra.mxu0 0.0
        %2803 = vmatprep.subr.mxu0 0.0
        %2804 = vmatpush1.msra.mxu0 0.0
        %2805 = vmatprep.subr.mxu0 0.0
        %2806 = vmatpush1.msra.mxu0 0.0
        %2807 = vmatprep.subr.mxu0 0.0
        %2808 = vmatpush1.msra.mxu0 0.0
        %2809 = vmatprep.subr.mxu0 0.0
        %2810 = vmatpush1.msra.mxu0 0.0
        %2811 = vmatprep.subr.mxu0 0.0
        %2812 = vmatpush1.msra.mxu0 0.0
        %2813 = vmatprep.subr.mxu0 0.0
        %2814 = vmatpush1.msra.mxu0 0.0
        %2815 = vmatprep.subr.mxu0 0.0
        %2816 = vmatpush1.msra.mxu0 0.0
        %2817 = vmatprep.subr.mxu0 0.0
        %2818 = vmatpush1.msra.mxu0 0.0
        %2819 = vmatprep.subr.mxu0 0.0
        %2820 = vmatpush1.msra.mxu0 0.0
        %2821 = vmatprep.subr.mxu0 0.0
        %2822 = vmatpush1.msra.mxu0 0.0
        %2823 = vmatprep.subr.mxu0 0.0
        %2824 = vmatpush1.msra.mxu0 0.0
        %2825 = vmatprep.subr.mxu0 0.0
        %2826 = vmatpush1.msra.mxu0 0.0
        %2827 = vmatprep.subr.mxu0 0.0
        %2828 = vmatpush1.msra.mxu0 0.0
        %2829 = vmatprep.subr.mxu0 0.0
        %2830 = vmatpush1.msra.mxu0 0.0
        %2831 = vmatprep.subr.mxu0 0.0
        %2832 = vmatpush1.msra.mxu0 0.0
        %2833 = vmatprep.subr.mxu0 0.0
        %2834 = vmatpush1.msra.mxu0 0.0
        %2835 = vmatprep.mubr.f32.mxu0 0.0
        %2836 = vmatmul.mubr.f32.gmra.mrb[0].mxu0 %v2733
        %v2837 = vpop.f32.mrb[0].mxu0
        %v2838 = vadd.f32 0.0, %v2837
        %v2839 = vpop.f32.mrb[0].mxu0
        %2840 = vmatprep.mubr.f32.mxu0 0.0
        %2841 = vmatmul.mubr.f32.gmra.mrb[0].mxu0 %v2736
        %v2842 = vpop.f32.mrb[0].mxu0
        %v2843 = vadd.f32 0.0, %v2842
        %v2844 = vpop.f32.mrb[0].mxu0
        %2845 = vmatprep.mubr.f32.mxu0 0.0
        %2846 = vmatmul.mubr.f32.gmra.mrb[0].mxu0 %v2739
        %v2847 = vpop.f32.mrb[0].mxu0
        %v2848 = vadd.f32 0.0, %v2847
        %v2849 = vpop.f32.mrb[0].mxu0
        %2850 = vmatprep.mubr.f32.mxu0 0.0
        %2851 = vmatmul.mubr.f32.gmra.mrb[0].mxu0 %v2742
        %v2852 = vpop.f32.mrb[0].mxu0
        %v2853 = vadd.f32 0.0, %v2852
        %v2854 = vpop.f32.mrb[0].mxu0
        %2855 = vmatprep.mubr.f32.mxu0 0.0
        %2856 = vmatmul.mubr.f32.gmra.mrb[0].mxu0 %v2745
        %v2857 = vpop.f32.mrb[0].mxu0
        %v2858 = vadd.f32 0.0, %v2857
        %v2859 = vpop.f32.mrb[0].mxu0
        %2860 = vmatprep.mubr.f32.mxu0 0.0
        %2861 = vmatmul.mubr.f32.gmra.mrb[0].mxu0 %v2748
        %v2862 = vpop.f32.mrb[0].mxu0
        %v2863 = vadd.f32 0.0, %v2862
        %v2864 = vpop.f32.mrb[0].mxu0
        %2865 = vmatprep.mubr.f32.mxu0 0.0
        %2866 = vmatmul.mubr.f32.gmra.mrb[0].mxu0 %v2751
        %v2867 = vpop.f32.mrb[0].mxu0
        %v2868 = vadd.f32 0.0, %v2867
        %v2869 = vpop.f32.mrb[0].mxu0
        %2870 = vmatprep.mubr.f32.mxu0 0.0
        %2871 = vmatmul.mubr.f32.gmra.mrb[0].mxu0 %v2754
        %v2872 = vpop.f32.mrb[0].mxu0
        %v2873 = vadd.f32 0.0, %v2872
        %v2874 = vpop.f32.mrb[0].mxu0
        %2875 = vmatprep.mubr.f32.mxu0 0.0
        %2876 = vmatmul.mubr.f32.gmra.mrb[0].mxu0 %v2757
        %v2877 = vpop.f32.mrb[0].mxu0
        %v2878 = vadd.f32 0.0, %v2877
        %v2879 = vpop.f32.mrb[0].mxu0
        %2880 = vmatprep.mubr.f32.mxu0 0.0
        %2881 = vmatmul.mubr.f32.gmra.mrb[0].mxu0 %v2760
        %v2882 = vpop.f32.mrb[0].mxu0
        %v2883 = vadd.f32 0.0, %v2882
        %v2884 = vpop.f32.mrb[0].mxu0
        %2885 = vmatprep.mubr.f32.mxu0 0.0
        %2886 = vmatmul.mubr.f32.gmra.mrb[0].mxu0 %v2763
        %v2887 = vpop.f32.mrb[0].mxu0
        %v2888 = vadd.f32 0.0, %v2887
        %v2889 = vpop.f32.mrb[0].mxu0
        %2890 = vmatprep.mubr.f32.mxu0 0.0
        %2891 = vmatmul.mubr.f32.gmra.mrb[0].mxu0 %v2766
        %v2892 = vpop.f32.mrb[0].mxu0
        %v2893 = vadd.f32 0.0, %v2892
        %v2894 = vpop.f32.mrb[0].mxu0
        %2895 = vdwg.mxu0
        %v2896 = vadd.f32 %v2706, %v2838
        %v2897 = vadd.f32 %v2707, %v2843
        %v2898 = vadd.f32 %v2708, %v2848
        %v2899 = vadd.f32 %v2709, %v2853
        %v2900 = vadd.f32 %v2710, %v2858
        %v2901 = vadd.f32 %v2711, %v2863
        %v2902 = vadd.f32 %v2712, %v2868
        %v2903 = vadd.f32 %v2713, %v2873
        %v2904 = vadd.f32 %v2714, %v2878
        %v2905 = vadd.f32 %v2715, %v2883
        %v2906 = vadd.f32 %v2716, %v2888
        %v2907 = vadd.f32 %v2717, %v2893
        %v2908 = vld [vmem:[#allocation2 + $0x10] sm:$0xff]
        %v2909 = vld [vmem:[#allocation2 + $0x18] sm:$0xff]
        %v2910 = vld [vmem:[#allocation2 + $0x20] sm:$0xff]
        %v2911 = vld [vmem:[#allocation2 + $0x28] sm:$0xff]
        %v2912 = vld [vmem:[#allocation2 + $0x30] sm:$0xff]
        %v2913 = vld [vmem:[#allocation2 + $0x38] sm:$0xff]
        %v2914 = vld [vmem:[#allocation2 + $0x40] sm:$0xff]
        %v2915 = vld [vmem:[#allocation2 + $0x48] sm:$0xff]
        %v2916 = vld [vmem:[#allocation2 + $0x50] sm:$0xff]
        %v2917 = vld [vmem:[#allocation2 + $0x58] sm:$0xff]
        %v2918 = vld [vmem:[#allocation2 + $0x60] sm:$0xff]
        %v2919 = vld [vmem:[#allocation2 + $0x68] sm:$0xf]
        %s2920 = scalar_lea.vmem %s3, 72
        %v2921 = vld [vmem:[%s2920] sm:$0x3f]
        %v2923 = vsel %vm1203, %v2908, 0
        %v2926 = vsel %vm1203, %v2909, 0
        %v2929 = vsel %vm1203, %v2910, 0
        %v2932 = vsel %vm1203, %v2911, 0
        %v2935 = vsel %vm1203, %v2912, 0
        %v2938 = vsel %vm1203, %v2913, 0
        %v2941 = vsel %vm1203, %v2914, 0
        %v2944 = vsel %vm1203, %v2915, 0
        %v2947 = vsel %vm1203, %v2916, 0
        %v2950 = vsel %vm1203, %v2917, 0
        %v2953 = vsel %vm1203, %v2918, 0
        %v2956 = vsel %vm1203, %v2919, 0
        %v2959 = vsel %vm1285, %v2921, 0
        %2961 = vmatprep.subr.mxu0 0.0
        %2962 = vmatpush1.msra.mxu0 %v2959
        %2963 = vmatprep.subr.mxu0 0.0
        %2964 = vmatpush1.msra.mxu0 0.0
        %2965 = vmatprep.subr.mxu0 0.0
        %2966 = vmatpush1.msra.mxu0 0.0
        %2967 = vmatprep.subr.mxu0 0.0
        %2968 = vmatpush1.msra.mxu0 0.0
        %2969 = vmatprep.subr.mxu0 0.0
        %2970 = vmatpush1.msra.mxu0 0.0
        %2971 = vmatprep.subr.mxu0 0.0
        %2972 = vmatpush1.msra.mxu0 0.0
        %2973 = vmatprep.subr.mxu0 0.0
        %2974 = vmatpush1.msra.mxu0 0.0
        %2975 = vmatprep.subr.mxu0 0.0
        %2976 = vmatpush1.msra.mxu0 0.0
        %2977 = vmatprep.subr.mxu0 0.0
        %2978 = vmatpush1.msra.mxu0 0.0
        %2979 = vmatprep.subr.mxu0 0.0
        %2980 = vmatpush1.msra.mxu0 0.0
        %2981 = vmatprep.subr.mxu0 0.0
        %2982 = vmatpush1.msra.mxu0 0.0
        %2983 = vmatprep.subr.mxu0 0.0
        %2984 = vmatpush1.msra.mxu0 0.0
        %2985 = vmatprep.subr.mxu0 0.0
        %2986 = vmatpush1.msra.mxu0 0.0
        %2987 = vmatprep.subr.mxu0 0.0
        %2988 = vmatpush1.msra.mxu0 0.0
        %2989 = vmatprep.subr.mxu0 0.0
        %2990 = vmatpush1.msra.mxu0 0.0
        %2991 = vmatprep.subr.mxu0 0.0
        %2992 = vmatpush1.msra.mxu0 0.0
        %2993 = vmatprep.subr.mxu0 0.0
        %2994 = vmatpush1.msra.mxu0 0.0
        %2995 = vmatprep.subr.mxu0 0.0
        %2996 = vmatpush1.msra.mxu0 0.0
        %2997 = vmatprep.subr.mxu0 0.0
        %2998 = vmatpush1.msra.mxu0 0.0
        %2999 = vmatprep.subr.mxu0 0.0
        %3000 = vmatpush1.msra.mxu0 0.0
        %3001 = vmatprep.subr.mxu0 0.0
        %3002 = vmatpush1.msra.mxu0 0.0
        %3003 = vmatprep.subr.mxu0 0.0
        %3004 = vmatpush1.msra.mxu0 0.0
        %3005 = vmatprep.subr.mxu0 0.0
        %3006 = vmatpush1.msra.mxu0 0.0
        %3007 = vmatprep.subr.mxu0 0.0
        %3008 = vmatpush1.msra.mxu0 0.0
        %3009 = vmatprep.subr.mxu0 0.0
        %3010 = vmatpush1.msra.mxu0 0.0
        %3011 = vmatprep.subr.mxu0 0.0
        %3012 = vmatpush1.msra.mxu0 0.0
        %3013 = vmatprep.subr.mxu0 0.0
        %3014 = vmatpush1.msra.mxu0 0.0
        %3015 = vmatprep.subr.mxu0 0.0
        %3016 = vmatpush1.msra.mxu0 0.0
        %3017 = vmatprep.subr.mxu0 0.0
        %3018 = vmatpush1.msra.mxu0 0.0
        %3019 = vmatprep.subr.mxu0 0.0
        %3020 = vmatpush1.msra.mxu0 0.0
        %3021 = vmatprep.subr.mxu0 0.0
        %3022 = vmatpush1.msra.mxu0 0.0
        %3023 = vmatprep.subr.mxu0 0.0
        %3024 = vmatpush1.msra.mxu0 0.0
        %3025 = vmatprep.mubr.f32.mxu0 0.0
        %3026 = vmatmul.mubr.f32.gmra.mrb[0].mxu0 %v2923
        %v3027 = vpop.f32.mrb[0].mxu0
        %v3028 = vadd.f32 0.0, %v3027
        %v3029 = vpop.f32.mrb[0].mxu0
        %3030 = vmatprep.mubr.f32.mxu0 0.0
        %3031 = vmatmul.mubr.f32.gmra.mrb[0].mxu0 %v2926
        %v3032 = vpop.f32.mrb[0].mxu0
        %v3033 = vadd.f32 0.0, %v3032
        %v3034 = vpop.f32.mrb[0].mxu0
        %3035 = vmatprep.mubr.f32.mxu0 0.0
        %3036 = vmatmul.mubr.f32.gmra.mrb[0].mxu0 %v2929
        %v3037 = vpop.f32.mrb[0].mxu0
        %v3038 = vadd.f32 0.0, %v3037
        %v3039 = vpop.f32.mrb[0].mxu0
        %3040 = vmatprep.mubr.f32.mxu0 0.0
        %3041 = vmatmul.mubr.f32.gmra.mrb[0].mxu0 %v2932
        %v3042 = vpop.f32.mrb[0].mxu0
        %v3043 = vadd.f32 0.0, %v3042
        %v3044 = vpop.f32.mrb[0].mxu0
        %3045 = vmatprep.mubr.f32.mxu0 0.0
        %3046 = vmatmul.mubr.f32.gmra.mrb[0].mxu0 %v2935
        %v3047 = vpop.f32.mrb[0].mxu0
        %v3048 = vadd.f32 0.0, %v3047
        %v3049 = vpop.f32.mrb[0].mxu0
        %3050 = vmatprep.mubr.f32.mxu0 0.0
        %3051 = vmatmul.mubr.f32.gmra.mrb[0].mxu0 %v2938
        %v3052 = vpop.f32.mrb[0].mxu0
        %v3053 = vadd.f32 0.0, %v3052
        %v3054 = vpop.f32.mrb[0].mxu0
        %3055 = vmatprep.mubr.f32.mxu0 0.0
        %3056 = vmatmul.mubr.f32.gmra.mrb[0].mxu0 %v2941
        %v3057 = vpop.f32.mrb[0].mxu0
        %v3058 = vadd.f32 0.0, %v3057
        %v3059 = vpop.f32.mrb[0].mxu0
        %3060 = vmatprep.mubr.f32.mxu0 0.0
        %3061 = vmatmul.mubr.f32.gmra.mrb[0].mxu0 %v2944
        %v3062 = vpop.f32.mrb[0].mxu0
        %v3063 = vadd.f32 0.0, %v3062
        %v3064 = vpop.f32.mrb[0].mxu0
        %3065 = vmatprep.mubr.f32.mxu0 0.0
        %3066 = vmatmul.mubr.f32.gmra.mrb[0].mxu0 %v2947
        %v3067 = vpop.f32.mrb[0].mxu0
        %v3068 = vadd.f32 0.0, %v3067
        %v3069 = vpop.f32.mrb[0].mxu0
        %3070 = vmatprep.mubr.f32.mxu0 0.0
        %3071 = vmatmul.mubr.f32.gmra.mrb[0].mxu0 %v2950
        %v3072 = vpop.f32.mrb[0].mxu0
        %v3073 = vadd.f32 0.0, %v3072
        %v3074 = vpop.f32.mrb[0].mxu0
        %3075 = vmatprep.mubr.f32.mxu0 0.0
        %3076 = vmatmul.mubr.f32.gmra.mrb[0].mxu0 %v2953
        %v3077 = vpop.f32.mrb[0].mxu0
        %v3078 = vadd.f32 0.0, %v3077
        %v3079 = vpop.f32.mrb[0].mxu0
        %3080 = vmatprep.mubr.f32.mxu0 0.0
        %3081 = vmatmul.mubr.f32.gmra.mrb[0].mxu0 %v2956
        %v3082 = vpop.f32.mrb[0].mxu0
        %v3083 = vadd.f32 0.0, %v3082
        %v3084 = vpop.f32.mrb[0].mxu0
        %3085 = vdwg.mxu0
        %v3086 = vadd.f32 %v2896, %v3028
        %v3087 = vadd.f32 %v2897, %v3033
        %v3088 = vadd.f32 %v2898, %v3038
        %v3089 = vadd.f32 %v2899, %v3043
        %v3090 = vadd.f32 %v2900, %v3048
        %v3091 = vadd.f32 %v2901, %v3053
        %v3092 = vadd.f32 %v2902, %v3058
        %v3093 = vadd.f32 %v2903, %v3063
        %v3094 = vadd.f32 %v2904, %v3068
        %v3095 = vadd.f32 %v2905, %v3073
        %v3096 = vadd.f32 %v2906, %v3078
        %v3097 = vadd.f32 %v2907, %v3083
        %v3098 = vld [vmem:[#allocation2 + $0x18] sm:$0xff]
        %v3099 = vld [vmem:[#allocation2 + $0x20] sm:$0xff]
        %v3100 = vld [vmem:[#allocation2 + $0x28] sm:$0xff]
        %v3101 = vld [vmem:[#allocation2 + $0x30] sm:$0xff]
        %v3102 = vld [vmem:[#allocation2 + $0x38] sm:$0xff]
        %v3103 = vld [vmem:[#allocation2 + $0x40] sm:$0xff]
        %v3104 = vld [vmem:[#allocation2 + $0x48] sm:$0xff]
        %v3105 = vld [vmem:[#allocation2 + $0x50] sm:$0xff]
        %v3106 = vld [vmem:[#allocation2 + $0x58] sm:$0xff]
        %v3107 = vld [vmem:[#allocation2 + $0x60] sm:$0xff]
        %v3108 = vld [vmem:[#allocation2 + $0x68] sm:$0xff]
        %v3109 = vld [vmem:[#allocation2 + $0x70] sm:$0xf]
        %s3110 = scalar_lea.vmem %s3, 80
        %v3111 = vld [vmem:[%s3110] sm:$0x3f]
        %v3113 = vsel %vm1203, %v3098, 0
        %v3116 = vsel %vm1203, %v3099, 0
        %v3119 = vsel %vm1203, %v3100, 0
        %v3122 = vsel %vm1203, %v3101, 0
        %v3125 = vsel %vm1203, %v3102, 0
        %v3128 = vsel %vm1203, %v3103, 0
        %v3131 = vsel %vm1203, %v3104, 0
        %v3134 = vsel %vm1203, %v3105, 0
        %v3137 = vsel %vm1203, %v3106, 0
        %v3140 = vsel %vm1203, %v3107, 0
        %v3143 = vsel %vm1203, %v3108, 0
        %v3146 = vsel %vm1203, %v3109, 0
        %v3149 = vsel %vm1285, %v3111, 0
        %3151 = vmatprep.subr.mxu0 0.0
        %3152 = vmatpush1.msra.mxu0 %v3149
        %3153 = vmatprep.subr.mxu0 0.0
        %3154 = vmatpush1.msra.mxu0 0.0
        %3155 = vmatprep.subr.mxu0 0.0
        %3156 = vmatpush1.msra.mxu0 0.0
        %3157 = vmatprep.subr.mxu0 0.0
        %3158 = vmatpush1.msra.mxu0 0.0
        %3159 = vmatprep.subr.mxu0 0.0
        %3160 = vmatpush1.msra.mxu0 0.0
        %3161 = vmatprep.subr.mxu0 0.0
        %3162 = vmatpush1.msra.mxu0 0.0
        %3163 = vmatprep.subr.mxu0 0.0
        %3164 = vmatpush1.msra.mxu0 0.0
        %3165 = vmatprep.subr.mxu0 0.0
        %3166 = vmatpush1.msra.mxu0 0.0
        %3167 = vmatprep.subr.mxu0 0.0
        %3168 = vmatpush1.msra.mxu0 0.0
        %3169 = vmatprep.subr.mxu0 0.0
        %3170 = vmatpush1.msra.mxu0 0.0
        %3171 = vmatprep.subr.mxu0 0.0
        %3172 = vmatpush1.msra.mxu0 0.0
        %3173 = vmatprep.subr.mxu0 0.0
        %3174 = vmatpush1.msra.mxu0 0.0
        %3175 = vmatprep.subr.mxu0 0.0
        %3176 = vmatpush1.msra.mxu0 0.0
        %3177 = vmatprep.subr.mxu0 0.0
        %3178 = vmatpush1.msra.mxu0 0.0
        %3179 = vmatprep.subr.mxu0 0.0
        %3180 = vmatpush1.msra.mxu0 0.0
        %3181 = vmatprep.subr.mxu0 0.0
        %3182 = vmatpush1.msra.mxu0 0.0
        %3183 = vmatprep.subr.mxu0 0.0
        %3184 = vmatpush1.msra.mxu0 0.0
        %3185 = vmatprep.subr.mxu0 0.0
        %3186 = vmatpush1.msra.mxu0 0.0
        %3187 = vmatprep.subr.mxu0 0.0
        %3188 = vmatpush1.msra.mxu0 0.0
        %3189 = vmatprep.subr.mxu0 0.0
        %3190 = vmatpush1.msra.mxu0 0.0
        %3191 = vmatprep.subr.mxu0 0.0
        %3192 = vmatpush1.msra.mxu0 0.0
        %3193 = vmatprep.subr.mxu0 0.0
        %3194 = vmatpush1.msra.mxu0 0.0
        %3195 = vmatprep.subr.mxu0 0.0
        %3196 = vmatpush1.msra.mxu0 0.0
        %3197 = vmatprep.subr.mxu0 0.0
        %3198 = vmatpush1.msra.mxu0 0.0
        %3199 = vmatprep.subr.mxu0 0.0
        %3200 = vmatpush1.msra.mxu0 0.0
        %3201 = vmatprep.subr.mxu0 0.0
        %3202 = vmatpush1.msra.mxu0 0.0
        %3203 = vmatprep.subr.mxu0 0.0
        %3204 = vmatpush1.msra.mxu0 0.0
        %3205 = vmatprep.subr.mxu0 0.0
        %3206 = vmatpush1.msra.mxu0 0.0
        %3207 = vmatprep.subr.mxu0 0.0
        %3208 = vmatpush1.msra.mxu0 0.0
        %3209 = vmatprep.subr.mxu0 0.0
        %3210 = vmatpush1.msra.mxu0 0.0
        %3211 = vmatprep.subr.mxu0 0.0
        %3212 = vmatpush1.msra.mxu0 0.0
        %3213 = vmatprep.subr.mxu0 0.0
        %3214 = vmatpush1.msra.mxu0 0.0
        %3215 = vmatprep.mubr.f32.mxu0 0.0
        %3216 = vmatmul.mubr.f32.gmra.mrb[0].mxu0 %v3113
        %v3217 = vpop.f32.mrb[0].mxu0
        %v3218 = vadd.f32 0.0, %v3217
        %v3219 = vpop.f32.mrb[0].mxu0
        %3220 = vmatprep.mubr.f32.mxu0 0.0
        %3221 = vmatmul.mubr.f32.gmra.mrb[0].mxu0 %v3116
        %v3222 = vpop.f32.mrb[0].mxu0
        %v3223 = vadd.f32 0.0, %v3222
        %v3224 = vpop.f32.mrb[0].mxu0
        %3225 = vmatprep.mubr.f32.mxu0 0.0
        %3226 = vmatmul.mubr.f32.gmra.mrb[0].mxu0 %v3119
        %v3227 = vpop.f32.mrb[0].mxu0
        %v3228 = vadd.f32 0.0, %v3227
        %v3229 = vpop.f32.mrb[0].mxu0
        %3230 = vmatprep.mubr.f32.mxu0 0.0
        %3231 = vmatmul.mubr.f32.gmra.mrb[0].mxu0 %v3122
        %v3232 = vpop.f32.mrb[0].mxu0
        %v3233 = vadd.f32 0.0, %v3232
        %v3234 = vpop.f32.mrb[0].mxu0
        %3235 = vmatprep.mubr.f32.mxu0 0.0
        %3236 = vmatmul.mubr.f32.gmra.mrb[0].mxu0 %v3125
        %v3237 = vpop.f32.mrb[0].mxu0
        %v3238 = vadd.f32 0.0, %v3237
        %v3239 = vpop.f32.mrb[0].mxu0
        %3240 = vmatprep.mubr.f32.mxu0 0.0
        %3241 = vmatmul.mubr.f32.gmra.mrb[0].mxu0 %v3128
        %v3242 = vpop.f32.mrb[0].mxu0
        %v3243 = vadd.f32 0.0, %v3242
        %v3244 = vpop.f32.mrb[0].mxu0
        %3245 = vmatprep.mubr.f32.mxu0 0.0
        %3246 = vmatmul.mubr.f32.gmra.mrb[0].mxu0 %v3131
        %v3247 = vpop.f32.mrb[0].mxu0
        %v3248 = vadd.f32 0.0, %v3247
        %v3249 = vpop.f32.mrb[0].mxu0
        %3250 = vmatprep.mubr.f32.mxu0 0.0
        %3251 = vmatmul.mubr.f32.gmra.mrb[0].mxu0 %v3134
        %v3252 = vpop.f32.mrb[0].mxu0
        %v3253 = vadd.f32 0.0, %v3252
        %v3254 = vpop.f32.mrb[0].mxu0
        %3255 = vmatprep.mubr.f32.mxu0 0.0
        %3256 = vmatmul.mubr.f32.gmra.mrb[0].mxu0 %v3137
        %v3257 = vpop.f32.mrb[0].mxu0
        %v3258 = vadd.f32 0.0, %v3257
        %v3259 = vpop.f32.mrb[0].mxu0
        %3260 = vmatprep.mubr.f32.mxu0 0.0
        %3261 = vmatmul.mubr.f32.gmra.mrb[0].mxu0 %v3140
        %v3262 = vpop.f32.mrb[0].mxu0
        %v3263 = vadd.f32 0.0, %v3262
        %v3264 = vpop.f32.mrb[0].mxu0
        %3265 = vmatprep.mubr.f32.mxu0 0.0
        %3266 = vmatmul.mubr.f32.gmra.mrb[0].mxu0 %v3143
        %v3267 = vpop.f32.mrb[0].mxu0
        %v3268 = vadd.f32 0.0, %v3267
        %v3269 = vpop.f32.mrb[0].mxu0
        %3270 = vmatprep.mubr.f32.mxu0 0.0
        %3271 = vmatmul.mubr.f32.gmra.mrb[0].mxu0 %v3146
        %v3272 = vpop.f32.mrb[0].mxu0
        %v3273 = vadd.f32 0.0, %v3272
        %v3274 = vpop.f32.mrb[0].mxu0
        %3275 = vdwg.mxu0
        %v3276 = vadd.f32 %v3086, %v3218
        %v3277 = vadd.f32 %v3087, %v3223
        %v3278 = vadd.f32 %v3088, %v3228
        %v3279 = vadd.f32 %v3089, %v3233
        %v3280 = vadd.f32 %v3090, %v3238
        %v3281 = vadd.f32 %v3091, %v3243
        %v3282 = vadd.f32 %v3092, %v3248
        %v3283 = vadd.f32 %v3093, %v3253
        %v3284 = vadd.f32 %v3094, %v3258
        %v3285 = vadd.f32 %v3095, %v3263
        %v3286 = vadd.f32 %v3096, %v3268
        %v3287 = vadd.f32 %v3097, %v3273
        %v3288 = vld [vmem:[#allocation2 + $0x19] sm:$0xff]
        %v3289 = vld [vmem:[#allocation2 + $0x21] sm:$0xff]
        %v3290 = vld [vmem:[#allocation2 + $0x29] sm:$0xff]
        %v3291 = vld [vmem:[#allocation2 + $0x31] sm:$0xff]
        %v3292 = vld [vmem:[#allocation2 + $0x39] sm:$0xff]
        %v3293 = vld [vmem:[#allocation2 + $0x41] sm:$0xff]
        %v3294 = vld [vmem:[#allocation2 + $0x49] sm:$0xff]
        %v3295 = vld [vmem:[#allocation2 + $0x51] sm:$0xff]
        %v3296 = vld [vmem:[#allocation2 + $0x59] sm:$0xff]
        %v3297 = vld [vmem:[#allocation2 + $0x61] sm:$0xff]
        %v3298 = vld [vmem:[#allocation2 + $0x69] sm:$0xff]
        %v3299 = vld [vmem:[#allocation2 + $0x71] sm:$0xf]
        %s3300 = scalar_lea.vmem %s3, 88
        %v3301 = vld [vmem:[%s3300] sm:$0x3f]
        %v3303 = vsel %vm1203, %v3288, 0
        %v3306 = vsel %vm1203, %v3289, 0
        %v3309 = vsel %vm1203, %v3290, 0
        %v3312 = vsel %vm1203, %v3291, 0
        %v3315 = vsel %vm1203, %v3292, 0
        %v3318 = vsel %vm1203, %v3293, 0
        %v3321 = vsel %vm1203, %v3294, 0
        %v3324 = vsel %vm1203, %v3295, 0
        %v3327 = vsel %vm1203, %v3296, 0
        %v3330 = vsel %vm1203, %v3297, 0
        %v3333 = vsel %vm1203, %v3298, 0
        %v3336 = vsel %vm1203, %v3299, 0
        %v3339 = vsel %vm1285, %v3301, 0
        %3341 = vmatprep.subr.mxu0 0.0
        %3342 = vmatpush1.msra.mxu0 %v3339
        %3343 = vmatprep.subr.mxu0 0.0
        %3344 = vmatpush1.msra.mxu0 0.0
        %3345 = vmatprep.subr.mxu0 0.0
        %3346 = vmatpush1.msra.mxu0 0.0
        %3347 = vmatprep.subr.mxu0 0.0
        %3348 = vmatpush1.msra.mxu0 0.0
        %3349 = vmatprep.subr.mxu0 0.0
        %3350 = vmatpush1.msra.mxu0 0.0
        %3351 = vmatprep.subr.mxu0 0.0
        %3352 = vmatpush1.msra.mxu0 0.0
        %3353 = vmatprep.subr.mxu0 0.0
        %3354 = vmatpush1.msra.mxu0 0.0
        %3355 = vmatprep.subr.mxu0 0.0
        %3356 = vmatpush1.msra.mxu0 0.0
        %3357 = vmatprep.subr.mxu0 0.0
        %3358 = vmatpush1.msra.mxu0 0.0
        %3359 = vmatprep.subr.mxu0 0.0
        %3360 = vmatpush1.msra.mxu0 0.0
        %3361 = vmatprep.subr.mxu0 0.0
        %3362 = vmatpush1.msra.mxu0 0.0
        %3363 = vmatprep.subr.mxu0 0.0
        %3364 = vmatpush1.msra.mxu0 0.0
        %3365 = vmatprep.subr.mxu0 0.0
        %3366 = vmatpush1.msra.mxu0 0.0
        %3367 = vmatprep.subr.mxu0 0.0
        %3368 = vmatpush1.msra.mxu0 0.0
        %3369 = vmatprep.subr.mxu0 0.0
        %3370 = vmatpush1.msra.mxu0 0.0
        %3371 = vmatprep.subr.mxu0 0.0
        %3372 = vmatpush1.msra.mxu0 0.0
        %3373 = vmatprep.subr.mxu0 0.0
        %3374 = vmatpush1.msra.mxu0 0.0
        %3375 = vmatprep.subr.mxu0 0.0
        %3376 = vmatpush1.msra.mxu0 0.0
        %3377 = vmatprep.subr.mxu0 0.0
        %3378 = vmatpush1.msra.mxu0 0.0
        %3379 = vmatprep.subr.mxu0 0.0
        %3380 = vmatpush1.msra.mxu0 0.0
        %3381 = vmatprep.subr.mxu0 0.0
        %3382 = vmatpush1.msra.mxu0 0.0
        %3383 = vmatprep.subr.mxu0 0.0
        %3384 = vmatpush1.msra.mxu0 0.0
        %3385 = vmatprep.subr.mxu0 0.0
        %3386 = vmatpush1.msra.mxu0 0.0
        %3387 = vmatprep.subr.mxu0 0.0
        %3388 = vmatpush1.msra.mxu0 0.0
        %3389 = vmatprep.subr.mxu0 0.0
        %3390 = vmatpush1.msra.mxu0 0.0
        %3391 = vmatprep.subr.mxu0 0.0
        %3392 = vmatpush1.msra.mxu0 0.0
        %3393 = vmatprep.subr.mxu0 0.0
        %3394 = vmatpush1.msra.mxu0 0.0
        %3395 = vmatprep.subr.mxu0 0.0
        %3396 = vmatpush1.msra.mxu0 0.0
        %3397 = vmatprep.subr.mxu0 0.0
        %3398 = vmatpush1.msra.mxu0 0.0
        %3399 = vmatprep.subr.mxu0 0.0
        %3400 = vmatpush1.msra.mxu0 0.0
        %3401 = vmatprep.subr.mxu0 0.0
        %3402 = vmatpush1.msra.mxu0 0.0
        %3403 = vmatprep.subr.mxu0 0.0
        %3404 = vmatpush1.msra.mxu0 0.0
        %3405 = vmatprep.mubr.f32.mxu0 0.0
        %3406 = vmatmul.mubr.f32.gmra.mrb[0].mxu0 %v3303
        %v3407 = vpop.f32.mrb[0].mxu0
        %v3408 = vadd.f32 0.0, %v3407
        %v3409 = vpop.f32.mrb[0].mxu0
        %3410 = vmatprep.mubr.f32.mxu0 0.0
        %3411 = vmatmul.mubr.f32.gmra.mrb[0].mxu0 %v3306
        %v3412 = vpop.f32.mrb[0].mxu0
        %v3413 = vadd.f32 0.0, %v3412
        %v3414 = vpop.f32.mrb[0].mxu0
        %3415 = vmatprep.mubr.f32.mxu0 0.0
        %3416 = vmatmul.mubr.f32.gmra.mrb[0].mxu0 %v3309
        %v3417 = vpop.f32.mrb[0].mxu0
        %v3418 = vadd.f32 0.0, %v3417
        %v3419 = vpop.f32.mrb[0].mxu0
        %3420 = vmatprep.mubr.f32.mxu0 0.0
        %3421 = vmatmul.mubr.f32.gmra.mrb[0].mxu0 %v3312
        %v3422 = vpop.f32.mrb[0].mxu0
        %v3423 = vadd.f32 0.0, %v3422
        %v3424 = vpop.f32.mrb[0].mxu0
        %3425 = vmatprep.mubr.f32.mxu0 0.0
        %3426 = vmatmul.mubr.f32.gmra.mrb[0].mxu0 %v3315
        %v3427 = vpop.f32.mrb[0].mxu0
        %v3428 = vadd.f32 0.0, %v3427
        %v3429 = vpop.f32.mrb[0].mxu0
        %3430 = vmatprep.mubr.f32.mxu0 0.0
        %3431 = vmatmul.mubr.f32.gmra.mrb[0].mxu0 %v3318
        %v3432 = vpop.f32.mrb[0].mxu0
        %v3433 = vadd.f32 0.0, %v3432
        %v3434 = vpop.f32.mrb[0].mxu0
        %3435 = vmatprep.mubr.f32.mxu0 0.0
        %3436 = vmatmul.mubr.f32.gmra.mrb[0].mxu0 %v3321
        %v3437 = vpop.f32.mrb[0].mxu0
        %v3438 = vadd.f32 0.0, %v3437
        %v3439 = vpop.f32.mrb[0].mxu0
        %3440 = vmatprep.mubr.f32.mxu0 0.0
        %3441 = vmatmul.mubr.f32.gmra.mrb[0].mxu0 %v3324
        %v3442 = vpop.f32.mrb[0].mxu0
        %v3443 = vadd.f32 0.0, %v3442
        %v3444 = vpop.f32.mrb[0].mxu0
        %3445 = vmatprep.mubr.f32.mxu0 0.0
        %3446 = vmatmul.mubr.f32.gmra.mrb[0].mxu0 %v3327
        %v3447 = vpop.f32.mrb[0].mxu0
        %v3448 = vadd.f32 0.0, %v3447
        %v3449 = vpop.f32.mrb[0].mxu0
        %3450 = vmatprep.mubr.f32.mxu0 0.0
        %3451 = vmatmul.mubr.f32.gmra.mrb[0].mxu0 %v3330
        %v3452 = vpop.f32.mrb[0].mxu0
        %v3453 = vadd.f32 0.0, %v3452
        %v3454 = vpop.f32.mrb[0].mxu0
        %3455 = vmatprep.mubr.f32.mxu0 0.0
        %3456 = vmatmul.mubr.f32.gmra.mrb[0].mxu0 %v3333
        %v3457 = vpop.f32.mrb[0].mxu0
        %v3458 = vadd.f32 0.0, %v3457
        %v3459 = vpop.f32.mrb[0].mxu0
        %3460 = vmatprep.mubr.f32.mxu0 0.0
        %3461 = vmatmul.mubr.f32.gmra.mrb[0].mxu0 %v3336
        %v3462 = vpop.f32.mrb[0].mxu0
        %v3463 = vadd.f32 0.0, %v3462
        %v3464 = vpop.f32.mrb[0].mxu0
        %3465 = vdwg.mxu0
        %v3466 = vadd.f32 %v3276, %v3408
        %v3467 = vadd.f32 %v3277, %v3413
        %v3468 = vadd.f32 %v3278, %v3418
        %v3469 = vadd.f32 %v3279, %v3423
        %v3470 = vadd.f32 %v3280, %v3428
        %v3471 = vadd.f32 %v3281, %v3433
        %v3472 = vadd.f32 %v3282, %v3438
        %v3473 = vadd.f32 %v3283, %v3443
        %v3474 = vadd.f32 %v3284, %v3448
        %v3475 = vadd.f32 %v3285, %v3453
        %v3476 = vadd.f32 %v3286, %v3458
        %v3477 = vadd.f32 %v3287, %v3463
        %v3478 = vld [vmem:[#allocation2 + $0x1a] sm:$0xff]
        %v3479 = vld [vmem:[#allocation2 + $0x22] sm:$0xff]
        %v3480 = vld [vmem:[#allocation2 + $0x2a] sm:$0xff]
        %v3481 = vld [vmem:[#allocation2 + $0x32] sm:$0xff]
        %v3482 = vld [vmem:[#allocation2 + $0x3a] sm:$0xff]
        %v3483 = vld [vmem:[#allocation2 + $0x42] sm:$0xff]
        %v3484 = vld [vmem:[#allocation2 + $0x4a] sm:$0xff]
        %v3485 = vld [vmem:[#allocation2 + $0x52] sm:$0xff]
        %v3486 = vld [vmem:[#allocation2 + $0x5a] sm:$0xff]
        %v3487 = vld [vmem:[#allocation2 + $0x62] sm:$0xff]
        %v3488 = vld [vmem:[#allocation2 + $0x6a] sm:$0xff]
        %v3489 = vld [vmem:[#allocation2 + $0x72] sm:$0xf]
        %s3490 = scalar_lea.vmem %s3, 96
        %v3491 = vld [vmem:[%s3490] sm:$0x3f]
        %v3493 = vsel %vm1203, %v3478, 0
        %v3496 = vsel %vm1203, %v3479, 0
        %v3499 = vsel %vm1203, %v3480, 0
        %v3502 = vsel %vm1203, %v3481, 0
        %v3505 = vsel %vm1203, %v3482, 0
        %v3508 = vsel %vm1203, %v3483, 0
        %v3511 = vsel %vm1203, %v3484, 0
        %v3514 = vsel %vm1203, %v3485, 0
        %v3517 = vsel %vm1203, %v3486, 0
        %v3520 = vsel %vm1203, %v3487, 0
        %v3523 = vsel %vm1203, %v3488, 0
        %v3526 = vsel %vm1203, %v3489, 0
        %v3529 = vsel %vm1285, %v3491, 0
        %3531 = vmatprep.subr.mxu0 0.0
        %3532 = vmatpush1.msra.mxu0 %v3529
        %3533 = vmatprep.subr.mxu0 0.0
        %3534 = vmatpush1.msra.mxu0 0.0
        %3535 = vmatprep.subr.mxu0 0.0
        %3536 = vmatpush1.msra.mxu0 0.0
        %3537 = vmatprep.subr.mxu0 0.0
        %3538 = vmatpush1.msra.mxu0 0.0
        %3539 = vmatprep.subr.mxu0 0.0
        %3540 = vmatpush1.msra.mxu0 0.0
        %3541 = vmatprep.subr.mxu0 0.0
        %3542 = vmatpush1.msra.mxu0 0.0
        %3543 = vmatprep.subr.mxu0 0.0
        %3544 = vmatpush1.msra.mxu0 0.0
        %3545 = vmatprep.subr.mxu0 0.0
        %3546 = vmatpush1.msra.mxu0 0.0
        %3547 = vmatprep.subr.mxu0 0.0
        %3548 = vmatpush1.msra.mxu0 0.0
        %3549 = vmatprep.subr.mxu0 0.0
        %3550 = vmatpush1.msra.mxu0 0.0
        %3551 = vmatprep.subr.mxu0 0.0
        %3552 = vmatpush1.msra.mxu0 0.0
        %3553 = vmatprep.subr.mxu0 0.0
        %3554 = vmatpush1.msra.mxu0 0.0
        %3555 = vmatprep.subr.mxu0 0.0
        %3556 = vmatpush1.msra.mxu0 0.0
        %3557 = vmatprep.subr.mxu0 0.0
        %3558 = vmatpush1.msra.mxu0 0.0
        %3559 = vmatprep.subr.mxu0 0.0
        %3560 = vmatpush1.msra.mxu0 0.0
        %3561 = vmatprep.subr.mxu0 0.0
        %3562 = vmatpush1.msra.mxu0 0.0
        %3563 = vmatprep.subr.mxu0 0.0
        %3564 = vmatpush1.msra.mxu0 0.0
        %3565 = vmatprep.subr.mxu0 0.0
        %3566 = vmatpush1.msra.mxu0 0.0
        %3567 = vmatprep.subr.mxu0 0.0
        %3568 = vmatpush1.msra.mxu0 0.0
        %3569 = vmatprep.subr.mxu0 0.0
        %3570 = vmatpush1.msra.mxu0 0.0
        %3571 = vmatprep.subr.mxu0 0.0
        %3572 = vmatpush1.msra.mxu0 0.0
        %3573 = vmatprep.subr.mxu0 0.0
        %3574 = vmatpush1.msra.mxu0 0.0
        %3575 = vmatprep.subr.mxu0 0.0
        %3576 = vmatpush1.msra.mxu0 0.0
        %3577 = vmatprep.subr.mxu0 0.0
        %3578 = vmatpush1.msra.mxu0 0.0
        %3579 = vmatprep.subr.mxu0 0.0
        %3580 = vmatpush1.msra.mxu0 0.0
        %3581 = vmatprep.subr.mxu0 0.0
        %3582 = vmatpush1.msra.mxu0 0.0
        %3583 = vmatprep.subr.mxu0 0.0
        %3584 = vmatpush1.msra.mxu0 0.0
        %3585 = vmatprep.subr.mxu0 0.0
        %3586 = vmatpush1.msra.mxu0 0.0
        %3587 = vmatprep.subr.mxu0 0.0
        %3588 = vmatpush1.msra.mxu0 0.0
        %3589 = vmatprep.subr.mxu0 0.0
        %3590 = vmatpush1.msra.mxu0 0.0
        %3591 = vmatprep.subr.mxu0 0.0
        %3592 = vmatpush1.msra.mxu0 0.0
        %3593 = vmatprep.subr.mxu0 0.0
        %3594 = vmatpush1.msra.mxu0 0.0
        %3595 = vmatprep.mubr.f32.mxu0 0.0
        %3596 = vmatmul.mubr.f32.gmra.mrb[0].mxu0 %v3493
        %v3597 = vpop.f32.mrb[0].mxu0
        %v3598 = vadd.f32 0.0, %v3597
        %v3599 = vpop.f32.mrb[0].mxu0
        %3600 = vmatprep.mubr.f32.mxu0 0.0
        %3601 = vmatmul.mubr.f32.gmra.mrb[0].mxu0 %v3496
        %v3602 = vpop.f32.mrb[0].mxu0
        %v3603 = vadd.f32 0.0, %v3602
        %v3604 = vpop.f32.mrb[0].mxu0
        %3605 = vmatprep.mubr.f32.mxu0 0.0
        %3606 = vmatmul.mubr.f32.gmra.mrb[0].mxu0 %v3499
        %v3607 = vpop.f32.mrb[0].mxu0
        %v3608 = vadd.f32 0.0, %v3607
        %v3609 = vpop.f32.mrb[0].mxu0
        %3610 = vmatprep.mubr.f32.mxu0 0.0
        %3611 = vmatmul.mubr.f32.gmra.mrb[0].mxu0 %v3502
        %v3612 = vpop.f32.mrb[0].mxu0
        %v3613 = vadd.f32 0.0, %v3612
        %v3614 = vpop.f32.mrb[0].mxu0
        %3615 = vmatprep.mubr.f32.mxu0 0.0
        %3616 = vmatmul.mubr.f32.gmra.mrb[0].mxu0 %v3505
        %v3617 = vpop.f32.mrb[0].mxu0
        %v3618 = vadd.f32 0.0, %v3617
        %v3619 = vpop.f32.mrb[0].mxu0
        %3620 = vmatprep.mubr.f32.mxu0 0.0
        %3621 = vmatmul.mubr.f32.gmra.mrb[0].mxu0 %v3508
        %v3622 = vpop.f32.mrb[0].mxu0
        %v3623 = vadd.f32 0.0, %v3622
        %v3624 = vpop.f32.mrb[0].mxu0
        %3625 = vmatprep.mubr.f32.mxu0 0.0
        %3626 = vmatmul.mubr.f32.gmra.mrb[0].mxu0 %v3511
        %v3627 = vpop.f32.mrb[0].mxu0
        %v3628 = vadd.f32 0.0, %v3627
        %v3629 = vpop.f32.mrb[0].mxu0
        %3630 = vmatprep.mubr.f32.mxu0 0.0
        %3631 = vmatmul.mubr.f32.gmra.mrb[0].mxu0 %v3514
        %v3632 = vpop.f32.mrb[0].mxu0
        %v3633 = vadd.f32 0.0, %v3632
        %v3634 = vpop.f32.mrb[0].mxu0
        %3635 = vmatprep.mubr.f32.mxu0 0.0
        %3636 = vmatmul.mubr.f32.gmra.mrb[0].mxu0 %v3517
        %v3637 = vpop.f32.mrb[0].mxu0
        %v3638 = vadd.f32 0.0, %v3637
        %v3639 = vpop.f32.mrb[0].mxu0
        %3640 = vmatprep.mubr.f32.mxu0 0.0
        %3641 = vmatmul.mubr.f32.gmra.mrb[0].mxu0 %v3520
        %v3642 = vpop.f32.mrb[0].mxu0
        %v3643 = vadd.f32 0.0, %v3642
        %v3644 = vpop.f32.mrb[0].mxu0
        %3645 = vmatprep.mubr.f32.mxu0 0.0
        %3646 = vmatmul.mubr.f32.gmra.mrb[0].mxu0 %v3523
        %v3647 = vpop.f32.mrb[0].mxu0
        %v3648 = vadd.f32 0.0, %v3647
        %v3649 = vpop.f32.mrb[0].mxu0
        %3650 = vmatprep.mubr.f32.mxu0 0.0
        %3651 = vmatmul.mubr.f32.gmra.mrb[0].mxu0 %v3526
        %v3652 = vpop.f32.mrb[0].mxu0
        %v3653 = vadd.f32 0.0, %v3652
        %v3654 = vpop.f32.mrb[0].mxu0
        %3655 = vdwg.mxu0
        %v3656 = vadd.f32 %v3466, %v3598
        %v3657 = vadd.f32 %v3467, %v3603
        %v3658 = vadd.f32 %v3468, %v3608
        %v3659 = vadd.f32 %v3469, %v3613
        %v3660 = vadd.f32 %v3470, %v3618
        %v3661 = vadd.f32 %v3471, %v3623
        %v3662 = vadd.f32 %v3472, %v3628
        %v3663 = vadd.f32 %v3473, %v3633
        %v3664 = vadd.f32 %v3474, %v3638
        %v3665 = vadd.f32 %v3475, %v3643
        %v3666 = vadd.f32 %v3476, %v3648
        %v3667 = vadd.f32 %v3477, %v3653
        %v3668 = vld [vmem:[#allocation2 + $0x1b] sm:$0xff]
        %v3669 = vld [vmem:[#allocation2 + $0x23] sm:$0xff]
        %v3670 = vld [vmem:[#allocation2 + $0x2b] sm:$0xff]
        %v3671 = vld [vmem:[#allocation2 + $0x33] sm:$0xff]
        %v3672 = vld [vmem:[#allocation2 + $0x3b] sm:$0xff]
        %v3673 = vld [vmem:[#allocation2 + $0x43] sm:$0xff]
        %v3674 = vld [vmem:[#allocation2 + $0x4b] sm:$0xff]
        %v3675 = vld [vmem:[#allocation2 + $0x53] sm:$0xff]
        %v3676 = vld [vmem:[#allocation2 + $0x5b] sm:$0xff]
        %v3677 = vld [vmem:[#allocation2 + $0x63] sm:$0xff]
        %v3678 = vld [vmem:[#allocation2 + $0x6b] sm:$0xff]
        %v3679 = vld [vmem:[#allocation2 + $0x73] sm:$0xf]
        %s3680 = scalar_lea.vmem %s3, 104
        %v3681 = vld [vmem:[%s3680] sm:$0x3f]
        %v3683 = vsel %vm1203, %v3668, 0
        %v3686 = vsel %vm1203, %v3669, 0
        %v3689 = vsel %vm1203, %v3670, 0
        %v3692 = vsel %vm1203, %v3671, 0
        %v3695 = vsel %vm1203, %v3672, 0
        %v3698 = vsel %vm1203, %v3673, 0
        %v3701 = vsel %vm1203, %v3674, 0
        %v3704 = vsel %vm1203, %v3675, 0
        %v3707 = vsel %vm1203, %v3676, 0
        %v3710 = vsel %vm1203, %v3677, 0
        %v3713 = vsel %vm1203, %v3678, 0
        %v3716 = vsel %vm1203, %v3679, 0
        %v3719 = vsel %vm1285, %v3681, 0
        %3721 = vmatprep.subr.mxu0 0.0
        %3722 = vmatpush1.msra.mxu0 %v3719
        %3723 = vmatprep.subr.mxu0 0.0
        %3724 = vmatpush1.msra.mxu0 0.0
        %3725 = vmatprep.subr.mxu0 0.0
        %3726 = vmatpush1.msra.mxu0 0.0
        %3727 = vmatprep.subr.mxu0 0.0
        %3728 = vmatpush1.msra.mxu0 0.0
        %3729 = vmatprep.subr.mxu0 0.0
        %3730 = vmatpush1.msra.mxu0 0.0
        %3731 = vmatprep.subr.mxu0 0.0
        %3732 = vmatpush1.msra.mxu0 0.0
        %3733 = vmatprep.subr.mxu0 0.0
        %3734 = vmatpush1.msra.mxu0 0.0
        %3735 = vmatprep.subr.mxu0 0.0
        %3736 = vmatpush1.msra.mxu0 0.0
        %3737 = vmatprep.subr.mxu0 0.0
        %3738 = vmatpush1.msra.mxu0 0.0
        %3739 = vmatprep.subr.mxu0 0.0
        %3740 = vmatpush1.msra.mxu0 0.0
        %3741 = vmatprep.subr.mxu0 0.0
        %3742 = vmatpush1.msra.mxu0 0.0
        %3743 = vmatprep.subr.mxu0 0.0
        %3744 = vmatpush1.msra.mxu0 0.0
        %3745 = vmatprep.subr.mxu0 0.0
        %3746 = vmatpush1.msra.mxu0 0.0
        %3747 = vmatprep.subr.mxu0 0.0
        %3748 = vmatpush1.msra.mxu0 0.0
        %3749 = vmatprep.subr.mxu0 0.0
        %3750 = vmatpush1.msra.mxu0 0.0
        %3751 = vmatprep.subr.mxu0 0.0
        %3752 = vmatpush1.msra.mxu0 0.0
        %3753 = vmatprep.subr.mxu0 0.0
        %3754 = vmatpush1.msra.mxu0 0.0
        %3755 = vmatprep.subr.mxu0 0.0
        %3756 = vmatpush1.msra.mxu0 0.0
        %3757 = vmatprep.subr.mxu0 0.0
        %3758 = vmatpush1.msra.mxu0 0.0
        %3759 = vmatprep.subr.mxu0 0.0
        %3760 = vmatpush1.msra.mxu0 0.0
        %3761 = vmatprep.subr.mxu0 0.0
        %3762 = vmatpush1.msra.mxu0 0.0
        %3763 = vmatprep.subr.mxu0 0.0
        %3764 = vmatpush1.msra.mxu0 0.0
        %3765 = vmatprep.subr.mxu0 0.0
        %3766 = vmatpush1.msra.mxu0 0.0
        %3767 = vmatprep.subr.mxu0 0.0
        %3768 = vmatpush1.msra.mxu0 0.0
        %3769 = vmatprep.subr.mxu0 0.0
        %3770 = vmatpush1.msra.mxu0 0.0
        %3771 = vmatprep.subr.mxu0 0.0
        %3772 = vmatpush1.msra.mxu0 0.0
        %3773 = vmatprep.subr.mxu0 0.0
        %3774 = vmatpush1.msra.mxu0 0.0
        %3775 = vmatprep.subr.mxu0 0.0
        %3776 = vmatpush1.msra.mxu0 0.0
        %3777 = vmatprep.subr.mxu0 0.0
        %3778 = vmatpush1.msra.mxu0 0.0
        %3779 = vmatprep.subr.mxu0 0.0
        %3780 = vmatpush1.msra.mxu0 0.0
        %3781 = vmatprep.subr.mxu0 0.0
        %3782 = vmatpush1.msra.mxu0 0.0
        %3783 = vmatprep.subr.mxu0 0.0
        %3784 = vmatpush1.msra.mxu0 0.0
        %3785 = vmatprep.mubr.f32.mxu0 0.0
        %3786 = vmatmul.mubr.f32.gmra.mrb[0].mxu0 %v3683
        %v3787 = vpop.f32.mrb[0].mxu0
        %v3788 = vadd.f32 0.0, %v3787
        %v3789 = vpop.f32.mrb[0].mxu0
        %3790 = vmatprep.mubr.f32.mxu0 0.0
        %3791 = vmatmul.mubr.f32.gmra.mrb[0].mxu0 %v3686
        %v3792 = vpop.f32.mrb[0].mxu0
        %v3793 = vadd.f32 0.0, %v3792
        %v3794 = vpop.f32.mrb[0].mxu0
        %3795 = vmatprep.mubr.f32.mxu0 0.0
        %3796 = vmatmul.mubr.f32.gmra.mrb[0].mxu0 %v3689
        %v3797 = vpop.f32.mrb[0].mxu0
        %v3798 = vadd.f32 0.0, %v3797
        %v3799 = vpop.f32.mrb[0].mxu0
        %3800 = vmatprep.mubr.f32.mxu0 0.0
        %3801 = vmatmul.mubr.f32.gmra.mrb[0].mxu0 %v3692
        %v3802 = vpop.f32.mrb[0].mxu0
        %v3803 = vadd.f32 0.0, %v3802
        %v3804 = vpop.f32.mrb[0].mxu0
        %3805 = vmatprep.mubr.f32.mxu0 0.0
        %3806 = vmatmul.mubr.f32.gmra.mrb[0].mxu0 %v3695
        %v3807 = vpop.f32.mrb[0].mxu0
        %v3808 = vadd.f32 0.0, %v3807
        %v3809 = vpop.f32.mrb[0].mxu0
        %3810 = vmatprep.mubr.f32.mxu0 0.0
        %3811 = vmatmul.mubr.f32.gmra.mrb[0].mxu0 %v3698
        %v3812 = vpop.f32.mrb[0].mxu0
        %v3813 = vadd.f32 0.0, %v3812
        %v3814 = vpop.f32.mrb[0].mxu0
        %3815 = vmatprep.mubr.f32.mxu0 0.0
        %3816 = vmatmul.mubr.f32.gmra.mrb[0].mxu0 %v3701
        %v3817 = vpop.f32.mrb[0].mxu0
        %v3818 = vadd.f32 0.0, %v3817
        %v3819 = vpop.f32.mrb[0].mxu0
        %3820 = vmatprep.mubr.f32.mxu0 0.0
        %3821 = vmatmul.mubr.f32.gmra.mrb[0].mxu0 %v3704
        %v3822 = vpop.f32.mrb[0].mxu0
        %v3823 = vadd.f32 0.0, %v3822
        %v3824 = vpop.f32.mrb[0].mxu0
        %3825 = vmatprep.mubr.f32.mxu0 0.0
        %3826 = vmatmul.mubr.f32.gmra.mrb[0].mxu0 %v3707
        %v3827 = vpop.f32.mrb[0].mxu0
        %v3828 = vadd.f32 0.0, %v3827
        %v3829 = vpop.f32.mrb[0].mxu0
        %3830 = vmatprep.mubr.f32.mxu0 0.0
        %3831 = vmatmul.mubr.f32.gmra.mrb[0].mxu0 %v3710
        %v3832 = vpop.f32.mrb[0].mxu0
        %v3833 = vadd.f32 0.0, %v3832
        %v3834 = vpop.f32.mrb[0].mxu0
        %3835 = vmatprep.mubr.f32.mxu0 0.0
        %3836 = vmatmul.mubr.f32.gmra.mrb[0].mxu0 %v3713
        %v3837 = vpop.f32.mrb[0].mxu0
        %v3838 = vadd.f32 0.0, %v3837
        %v3839 = vpop.f32.mrb[0].mxu0
        %3840 = vmatprep.mubr.f32.mxu0 0.0
        %3841 = vmatmul.mubr.f32.gmra.mrb[0].mxu0 %v3716
        %v3842 = vpop.f32.mrb[0].mxu0
        %v3843 = vadd.f32 0.0, %v3842
        %v3844 = vpop.f32.mrb[0].mxu0
        %3845 = vdwg.mxu0
        %v3846 = vadd.f32 %v3656, %v3788
        %v3847 = vadd.f32 %v3657, %v3793
        %v3848 = vadd.f32 %v3658, %v3798
        %v3849 = vadd.f32 %v3659, %v3803
        %v3850 = vadd.f32 %v3660, %v3808
        %v3851 = vadd.f32 %v3661, %v3813
        %v3852 = vadd.f32 %v3662, %v3818
        %v3853 = vadd.f32 %v3663, %v3823
        %v3854 = vadd.f32 %v3664, %v3828
        %v3855 = vadd.f32 %v3665, %v3833
        %v3856 = vadd.f32 %v3666, %v3838
        %v3857 = vadd.f32 %v3667, %v3843
        %v3858 = vld [vmem:[#allocation2 + $0x1c] sm:$0xff]
        %v3859 = vld [vmem:[#allocation2 + $0x24] sm:$0xff]
        %v3860 = vld [vmem:[#allocation2 + $0x2c] sm:$0xff]
        %v3861 = vld [vmem:[#allocation2 + $0x34] sm:$0xff]
        %v3862 = vld [vmem:[#allocation2 + $0x3c] sm:$0xff]
        %v3863 = vld [vmem:[#allocation2 + $0x44] sm:$0xff]
        %v3864 = vld [vmem:[#allocation2 + $0x4c] sm:$0xff]
        %v3865 = vld [vmem:[#allocation2 + $0x54] sm:$0xff]
        %v3866 = vld [vmem:[#allocation2 + $0x5c] sm:$0xff]
        %v3867 = vld [vmem:[#allocation2 + $0x64] sm:$0xff]
        %v3868 = vld [vmem:[#allocation2 + $0x6c] sm:$0xff]
        %v3869 = vld [vmem:[#allocation2 + $0x74] sm:$0xf]
        %s3870 = scalar_lea.vmem %s3, 112
        %v3871 = vld [vmem:[%s3870] sm:$0x3f]
        %v3873 = vsel %vm1203, %v3858, 0
        %v3876 = vsel %vm1203, %v3859, 0
        %v3879 = vsel %vm1203, %v3860, 0
        %v3882 = vsel %vm1203, %v3861, 0
        %v3885 = vsel %vm1203, %v3862, 0
        %v3888 = vsel %vm1203, %v3863, 0
        %v3891 = vsel %vm1203, %v3864, 0
        %v3894 = vsel %vm1203, %v3865, 0
        %v3897 = vsel %vm1203, %v3866, 0
        %v3900 = vsel %vm1203, %v3867, 0
        %v3903 = vsel %vm1203, %v3868, 0
        %v3906 = vsel %vm1203, %v3869, 0
        %v3909 = vsel %vm1285, %v3871, 0
        %3911 = vmatprep.subr.mxu0 0.0
        %3912 = vmatpush1.msra.mxu0 %v3909
        %3913 = vmatprep.subr.mxu0 0.0
        %3914 = vmatpush1.msra.mxu0 0.0
        %3915 = vmatprep.subr.mxu0 0.0
        %3916 = vmatpush1.msra.mxu0 0.0
        %3917 = vmatprep.subr.mxu0 0.0
        %3918 = vmatpush1.msra.mxu0 0.0
        %3919 = vmatprep.subr.mxu0 0.0
        %3920 = vmatpush1.msra.mxu0 0.0
        %3921 = vmatprep.subr.mxu0 0.0
        %3922 = vmatpush1.msra.mxu0 0.0
        %3923 = vmatprep.subr.mxu0 0.0
        %3924 = vmatpush1.msra.mxu0 0.0
        %3925 = vmatprep.subr.mxu0 0.0
        %3926 = vmatpush1.msra.mxu0 0.0
        %3927 = vmatprep.subr.mxu0 0.0
        %3928 = vmatpush1.msra.mxu0 0.0
        %3929 = vmatprep.subr.mxu0 0.0
        %3930 = vmatpush1.msra.mxu0 0.0
        %3931 = vmatprep.subr.mxu0 0.0
        %3932 = vmatpush1.msra.mxu0 0.0
        %3933 = vmatprep.subr.mxu0 0.0
        %3934 = vmatpush1.msra.mxu0 0.0
        %3935 = vmatprep.subr.mxu0 0.0
        %3936 = vmatpush1.msra.mxu0 0.0
        %3937 = vmatprep.subr.mxu0 0.0
        %3938 = vmatpush1.msra.mxu0 0.0
        %3939 = vmatprep.subr.mxu0 0.0
        %3940 = vmatpush1.msra.mxu0 0.0
        %3941 = vmatprep.subr.mxu0 0.0
        %3942 = vmatpush1.msra.mxu0 0.0
        %3943 = vmatprep.subr.mxu0 0.0
        %3944 = vmatpush1.msra.mxu0 0.0
        %3945 = vmatprep.subr.mxu0 0.0
        %3946 = vmatpush1.msra.mxu0 0.0
        %3947 = vmatprep.subr.mxu0 0.0
        %3948 = vmatpush1.msra.mxu0 0.0
        %3949 = vmatprep.subr.mxu0 0.0
        %3950 = vmatpush1.msra.mxu0 0.0
        %3951 = vmatprep.subr.mxu0 0.0
        %3952 = vmatpush1.msra.mxu0 0.0
        %3953 = vmatprep.subr.mxu0 0.0
        %3954 = vmatpush1.msra.mxu0 0.0
        %3955 = vmatprep.subr.mxu0 0.0
        %3956 = vmatpush1.msra.mxu0 0.0
        %3957 = vmatprep.subr.mxu0 0.0
        %3958 = vmatpush1.msra.mxu0 0.0
        %3959 = vmatprep.subr.mxu0 0.0
        %3960 = vmatpush1.msra.mxu0 0.0
        %3961 = vmatprep.subr.mxu0 0.0
        %3962 = vmatpush1.msra.mxu0 0.0
        %3963 = vmatprep.subr.mxu0 0.0
        %3964 = vmatpush1.msra.mxu0 0.0
        %3965 = vmatprep.subr.mxu0 0.0
        %3966 = vmatpush1.msra.mxu0 0.0
        %3967 = vmatprep.subr.mxu0 0.0
        %3968 = vmatpush1.msra.mxu0 0.0
        %3969 = vmatprep.subr.mxu0 0.0
        %3970 = vmatpush1.msra.mxu0 0.0
        %3971 = vmatprep.subr.mxu0 0.0
        %3972 = vmatpush1.msra.mxu0 0.0
        %3973 = vmatprep.subr.mxu0 0.0
        %3974 = vmatpush1.msra.mxu0 0.0
        %3975 = vmatprep.mubr.f32.mxu0 0.0
        %3976 = vmatmul.mubr.f32.gmra.mrb[0].mxu0 %v3873
        %v3977 = vpop.f32.mrb[0].mxu0
        %v3978 = vadd.f32 0.0, %v3977
        %v3979 = vpop.f32.mrb[0].mxu0
        %3980 = vmatprep.mubr.f32.mxu0 0.0
        %3981 = vmatmul.mubr.f32.gmra.mrb[0].mxu0 %v3876
        %v3982 = vpop.f32.mrb[0].mxu0
        %v3983 = vadd.f32 0.0, %v3982
        %v3984 = vpop.f32.mrb[0].mxu0
        %3985 = vmatprep.mubr.f32.mxu0 0.0
        %3986 = vmatmul.mubr.f32.gmra.mrb[0].mxu0 %v3879
        %v3987 = vpop.f32.mrb[0].mxu0
        %v3988 = vadd.f32 0.0, %v3987
        %v3989 = vpop.f32.mrb[0].mxu0
        %3990 = vmatprep.mubr.f32.mxu0 0.0
        %3991 = vmatmul.mubr.f32.gmra.mrb[0].mxu0 %v3882
        %v3992 = vpop.f32.mrb[0].mxu0
        %v3993 = vadd.f32 0.0, %v3992
        %v3994 = vpop.f32.mrb[0].mxu0
        %3995 = vmatprep.mubr.f32.mxu0 0.0
        %3996 = vmatmul.mubr.f32.gmra.mrb[0].mxu0 %v3885
        %v3997 = vpop.f32.mrb[0].mxu0
        %v3998 = vadd.f32 0.0, %v3997
        %v3999 = vpop.f32.mrb[0].mxu0
        %4000 = vmatprep.mubr.f32.mxu0 0.0
        %4001 = vmatmul.mubr.f32.gmra.mrb[0].mxu0 %v3888
        %v4002 = vpop.f32.mrb[0].mxu0
        %v4003 = vadd.f32 0.0, %v4002
        %v4004 = vpop.f32.mrb[0].mxu0
        %4005 = vmatprep.mubr.f32.mxu0 0.0
        %4006 = vmatmul.mubr.f32.gmra.mrb[0].mxu0 %v3891
        %v4007 = vpop.f32.mrb[0].mxu0
        %v4008 = vadd.f32 0.0, %v4007
        %v4009 = vpop.f32.mrb[0].mxu0
        %4010 = vmatprep.mubr.f32.mxu0 0.0
        %4011 = vmatmul.mubr.f32.gmra.mrb[0].mxu0 %v3894
        %v4012 = vpop.f32.mrb[0].mxu0
        %v4013 = vadd.f32 0.0, %v4012
        %v4014 = vpop.f32.mrb[0].mxu0
        %4015 = vmatprep.mubr.f32.mxu0 0.0
        %4016 = vmatmul.mubr.f32.gmra.mrb[0].mxu0 %v3897
        %v4017 = vpop.f32.mrb[0].mxu0
        %v4018 = vadd.f32 0.0, %v4017
        %v4019 = vpop.f32.mrb[0].mxu0
        %4020 = vmatprep.mubr.f32.mxu0 0.0
        %4021 = vmatmul.mubr.f32.gmra.mrb[0].mxu0 %v3900
        %v4022 = vpop.f32.mrb[0].mxu0
        %v4023 = vadd.f32 0.0, %v4022
        %v4024 = vpop.f32.mrb[0].mxu0
        %4025 = vmatprep.mubr.f32.mxu0 0.0
        %4026 = vmatmul.mubr.f32.gmra.mrb[0].mxu0 %v3903
        %v4027 = vpop.f32.mrb[0].mxu0
        %v4028 = vadd.f32 0.0, %v4027
        %v4029 = vpop.f32.mrb[0].mxu0
        %4030 = vmatprep.mubr.f32.mxu0 0.0
        %4031 = vmatmul.mubr.f32.gmra.mrb[0].mxu0 %v3906
        %v4032 = vpop.f32.mrb[0].mxu0
        %v4033 = vadd.f32 0.0, %v4032
        %v4034 = vpop.f32.mrb[0].mxu0
        %4035 = vdwg.mxu0
        %v4036 = vadd.f32 %v3846, %v3978
        %v4037 = vadd.f32 %v3847, %v3983
        %v4038 = vadd.f32 %v3848, %v3988
        %v4039 = vadd.f32 %v3849, %v3993
        %v4040 = vadd.f32 %v3850, %v3998
        %v4041 = vadd.f32 %v3851, %v4003
        %v4042 = vadd.f32 %v3852, %v4008
        %v4043 = vadd.f32 %v3853, %v4013
        %v4044 = vadd.f32 %v3854, %v4018
        %v4045 = vadd.f32 %v3855, %v4023
        %v4046 = vadd.f32 %v3856, %v4028
        %v4047 = vadd.f32 %v3857, %v4033
        %v4048 = vld [vmem:[#allocation2 + $0x24] sm:$0xff]
        %v4049 = vld [vmem:[#allocation2 + $0x2c] sm:$0xff]
        %v4050 = vld [vmem:[#allocation2 + $0x34] sm:$0xff]
        %v4051 = vld [vmem:[#allocation2 + $0x3c] sm:$0xff]
        %v4052 = vld [vmem:[#allocation2 + $0x44] sm:$0xff]
        %v4053 = vld [vmem:[#allocation2 + $0x4c] sm:$0xff]
        %v4054 = vld [vmem:[#allocation2 + $0x54] sm:$0xff]
        %v4055 = vld [vmem:[#allocation2 + $0x5c] sm:$0xff]
        %v4056 = vld [vmem:[#allocation2 + $0x64] sm:$0xff]
        %v4057 = vld [vmem:[#allocation2 + $0x6c] sm:$0xff]
        %v4058 = vld [vmem:[#allocation2 + $0x74] sm:$0xff]
        %v4059 = vld [vmem:[#allocation2 + $0x7c] sm:$0xf]
        %s4060 = scalar_lea.vmem %s3, 120
        %v4061 = vld [vmem:[%s4060] sm:$0x3f]
        %v4063 = vsel %vm1203, %v4048, 0
        %v4066 = vsel %vm1203, %v4049, 0
        %v4069 = vsel %vm1203, %v4050, 0
        %v4072 = vsel %vm1203, %v4051, 0
        %v4075 = vsel %vm1203, %v4052, 0
        %v4078 = vsel %vm1203, %v4053, 0
        %v4081 = vsel %vm1203, %v4054, 0
        %v4084 = vsel %vm1203, %v4055, 0
        %v4087 = vsel %vm1203, %v4056, 0
        %v4090 = vsel %vm1203, %v4057, 0
        %v4093 = vsel %vm1203, %v4058, 0
        %v4096 = vsel %vm1203, %v4059, 0
        %v4099 = vsel %vm1285, %v4061, 0
        %4101 = vmatprep.subr.mxu0 0.0
        %4102 = vmatpush1.msra.mxu0 %v4099
        %4103 = vmatprep.subr.mxu0 0.0
        %4104 = vmatpush1.msra.mxu0 0.0
        %4105 = vmatprep.subr.mxu0 0.0
        %4106 = vmatpush1.msra.mxu0 0.0
        %4107 = vmatprep.subr.mxu0 0.0
        %4108 = vmatpush1.msra.mxu0 0.0
        %4109 = vmatprep.subr.mxu0 0.0
        %4110 = vmatpush1.msra.mxu0 0.0
        %4111 = vmatprep.subr.mxu0 0.0
        %4112 = vmatpush1.msra.mxu0 0.0
        %4113 = vmatprep.subr.mxu0 0.0
        %4114 = vmatpush1.msra.mxu0 0.0
        %4115 = vmatprep.subr.mxu0 0.0
        %4116 = vmatpush1.msra.mxu0 0.0
        %4117 = vmatprep.subr.mxu0 0.0
        %4118 = vmatpush1.msra.mxu0 0.0
        %4119 = vmatprep.subr.mxu0 0.0
        %4120 = vmatpush1.msra.mxu0 0.0
        %4121 = vmatprep.subr.mxu0 0.0
        %4122 = vmatpush1.msra.mxu0 0.0
        %4123 = vmatprep.subr.mxu0 0.0
        %4124 = vmatpush1.msra.mxu0 0.0
        %4125 = vmatprep.subr.mxu0 0.0
        %4126 = vmatpush1.msra.mxu0 0.0
        %4127 = vmatprep.subr.mxu0 0.0
        %4128 = vmatpush1.msra.mxu0 0.0
        %4129 = vmatprep.subr.mxu0 0.0
        %4130 = vmatpush1.msra.mxu0 0.0
        %4131 = vmatprep.subr.mxu0 0.0
        %4132 = vmatpush1.msra.mxu0 0.0
        %4133 = vmatprep.subr.mxu0 0.0
        %4134 = vmatpush1.msra.mxu0 0.0
        %4135 = vmatprep.subr.mxu0 0.0
        %4136 = vmatpush1.msra.mxu0 0.0
        %4137 = vmatprep.subr.mxu0 0.0
        %4138 = vmatpush1.msra.mxu0 0.0
        %4139 = vmatprep.subr.mxu0 0.0
        %4140 = vmatpush1.msra.mxu0 0.0
        %4141 = vmatprep.subr.mxu0 0.0
        %4142 = vmatpush1.msra.mxu0 0.0
        %4143 = vmatprep.subr.mxu0 0.0
        %4144 = vmatpush1.msra.mxu0 0.0
        %4145 = vmatprep.subr.mxu0 0.0
        %4146 = vmatpush1.msra.mxu0 0.0
        %4147 = vmatprep.subr.mxu0 0.0
        %4148 = vmatpush1.msra.mxu0 0.0
        %4149 = vmatprep.subr.mxu0 0.0
        %4150 = vmatpush1.msra.mxu0 0.0
        %4151 = vmatprep.subr.mxu0 0.0
        %4152 = vmatpush1.msra.mxu0 0.0
        %4153 = vmatprep.subr.mxu0 0.0
        %4154 = vmatpush1.msra.mxu0 0.0
        %4155 = vmatprep.subr.mxu0 0.0
        %4156 = vmatpush1.msra.mxu0 0.0
        %4157 = vmatprep.subr.mxu0 0.0
        %4158 = vmatpush1.msra.mxu0 0.0
        %4159 = vmatprep.subr.mxu0 0.0
        %4160 = vmatpush1.msra.mxu0 0.0
        %4161 = vmatprep.subr.mxu0 0.0
        %4162 = vmatpush1.msra.mxu0 0.0
        %4163 = vmatprep.subr.mxu0 0.0
        %4164 = vmatpush1.msra.mxu0 0.0
        %4165 = vmatprep.mubr.f32.mxu0 0.0
        %4166 = vmatmul.mubr.f32.gmra.mrb[0].mxu0 %v4063
        %v4167 = vpop.f32.mrb[0].mxu0
        %v4168 = vadd.f32 0.0, %v4167
        %v4169 = vpop.f32.mrb[0].mxu0
        %4170 = vmatprep.mubr.f32.mxu0 0.0
        %4171 = vmatmul.mubr.f32.gmra.mrb[0].mxu0 %v4066
        %v4172 = vpop.f32.mrb[0].mxu0
        %v4173 = vadd.f32 0.0, %v4172
        %v4174 = vpop.f32.mrb[0].mxu0
        %4175 = vmatprep.mubr.f32.mxu0 0.0
        %4176 = vmatmul.mubr.f32.gmra.mrb[0].mxu0 %v4069
        %v4177 = vpop.f32.mrb[0].mxu0
        %v4178 = vadd.f32 0.0, %v4177
        %v4179 = vpop.f32.mrb[0].mxu0
        %4180 = vmatprep.mubr.f32.mxu0 0.0
        %4181 = vmatmul.mubr.f32.gmra.mrb[0].mxu0 %v4072
        %v4182 = vpop.f32.mrb[0].mxu0
        %v4183 = vadd.f32 0.0, %v4182
        %v4184 = vpop.f32.mrb[0].mxu0
        %4185 = vmatprep.mubr.f32.mxu0 0.0
        %4186 = vmatmul.mubr.f32.gmra.mrb[0].mxu0 %v4075
        %v4187 = vpop.f32.mrb[0].mxu0
        %v4188 = vadd.f32 0.0, %v4187
        %v4189 = vpop.f32.mrb[0].mxu0
        %4190 = vmatprep.mubr.f32.mxu0 0.0
        %4191 = vmatmul.mubr.f32.gmra.mrb[0].mxu0 %v4078
        %v4192 = vpop.f32.mrb[0].mxu0
        %v4193 = vadd.f32 0.0, %v4192
        %v4194 = vpop.f32.mrb[0].mxu0
        %4195 = vmatprep.mubr.f32.mxu0 0.0
        %4196 = vmatmul.mubr.f32.gmra.mrb[0].mxu0 %v4081
        %v4197 = vpop.f32.mrb[0].mxu0
        %v4198 = vadd.f32 0.0, %v4197
        %v4199 = vpop.f32.mrb[0].mxu0
        %4200 = vmatprep.mubr.f32.mxu0 0.0
        %4201 = vmatmul.mubr.f32.gmra.mrb[0].mxu0 %v4084
        %v4202 = vpop.f32.mrb[0].mxu0
        %v4203 = vadd.f32 0.0, %v4202
        %v4204 = vpop.f32.mrb[0].mxu0
        %4205 = vmatprep.mubr.f32.mxu0 0.0
        %4206 = vmatmul.mubr.f32.gmra.mrb[0].mxu0 %v4087
        %v4207 = vpop.f32.mrb[0].mxu0
        %v4208 = vadd.f32 0.0, %v4207
        %v4209 = vpop.f32.mrb[0].mxu0
        %4210 = vmatprep.mubr.f32.mxu0 0.0
        %4211 = vmatmul.mubr.f32.gmra.mrb[0].mxu0 %v4090
        %v4212 = vpop.f32.mrb[0].mxu0
        %v4213 = vadd.f32 0.0, %v4212
        %v4214 = vpop.f32.mrb[0].mxu0
        %4215 = vmatprep.mubr.f32.mxu0 0.0
        %4216 = vmatmul.mubr.f32.gmra.mrb[0].mxu0 %v4093
        %v4217 = vpop.f32.mrb[0].mxu0
        %v4218 = vadd.f32 0.0, %v4217
        %v4219 = vpop.f32.mrb[0].mxu0
        %4220 = vmatprep.mubr.f32.mxu0 0.0
        %4221 = vmatmul.mubr.f32.gmra.mrb[0].mxu0 %v4096
        %v4222 = vpop.f32.mrb[0].mxu0
        %v4223 = vadd.f32 0.0, %v4222
        %v4224 = vpop.f32.mrb[0].mxu0
        %4225 = vdwg.mxu0
        %v4226 = vadd.f32 %v4036, %v4168
        %v4227 = vadd.f32 %v4037, %v4173
        %v4228 = vadd.f32 %v4038, %v4178
        %v4229 = vadd.f32 %v4039, %v4183
        %v4230 = vadd.f32 %v4040, %v4188
        %v4231 = vadd.f32 %v4041, %v4193
        %v4232 = vadd.f32 %v4042, %v4198
        %v4233 = vadd.f32 %v4043, %v4203
        %v4234 = vadd.f32 %v4044, %v4208
        %v4235 = vadd.f32 %v4045, %v4213
        %v4236 = vadd.f32 %v4046, %v4218
        %v4237 = vadd.f32 %v4047, %v4223
        %v4238 = vld [vmem:[#allocation2 + $0x25] sm:$0xff]
        %v4239 = vld [vmem:[#allocation2 + $0x2d] sm:$0xff]
        %v4240 = vld [vmem:[#allocation2 + $0x35] sm:$0xff]
        %v4241 = vld [vmem:[#allocation2 + $0x3d] sm:$0xff]
        %v4242 = vld [vmem:[#allocation2 + $0x45] sm:$0xff]
        %v4243 = vld [vmem:[#allocation2 + $0x4d] sm:$0xff]
        %v4244 = vld [vmem:[#allocation2 + $0x55] sm:$0xff]
        %v4245 = vld [vmem:[#allocation2 + $0x5d] sm:$0xff]
        %v4246 = vld [vmem:[#allocation2 + $0x65] sm:$0xff]
        %v4247 = vld [vmem:[#allocation2 + $0x6d] sm:$0xff]
        %v4248 = vld [vmem:[#allocation2 + $0x75] sm:$0xff]
        %v4249 = vld [vmem:[#allocation2 + $0x7d] sm:$0xf]
        %s4250 = scalar_lea.vmem %s3, 128
        %v4251 = vld [vmem:[%s4250] sm:$0x3f]
        %v4253 = vsel %vm1203, %v4238, 0
        %v4256 = vsel %vm1203, %v4239, 0
        %v4259 = vsel %vm1203, %v4240, 0
        %v4262 = vsel %vm1203, %v4241, 0
        %v4265 = vsel %vm1203, %v4242, 0
        %v4268 = vsel %vm1203, %v4243, 0
        %v4271 = vsel %vm1203, %v4244, 0
        %v4274 = vsel %vm1203, %v4245, 0
        %v4277 = vsel %vm1203, %v4246, 0
        %v4280 = vsel %vm1203, %v4247, 0
        %v4283 = vsel %vm1203, %v4248, 0
        %v4286 = vsel %vm1203, %v4249, 0
        %v4289 = vsel %vm1285, %v4251, 0
        %4291 = vmatprep.subr.mxu0 0.0
        %4292 = vmatpush1.msra.mxu0 %v4289
        %4293 = vmatprep.subr.mxu0 0.0
        %4294 = vmatpush1.msra.mxu0 0.0
        %4295 = vmatprep.subr.mxu0 0.0
        %4296 = vmatpush1.msra.mxu0 0.0
        %4297 = vmatprep.subr.mxu0 0.0
        %4298 = vmatpush1.msra.mxu0 0.0
        %4299 = vmatprep.subr.mxu0 0.0
        %4300 = vmatpush1.msra.mxu0 0.0
        %4301 = vmatprep.subr.mxu0 0.0
        %4302 = vmatpush1.msra.mxu0 0.0
        %4303 = vmatprep.subr.mxu0 0.0
        %4304 = vmatpush1.msra.mxu0 0.0
        %4305 = vmatprep.subr.mxu0 0.0
        %4306 = vmatpush1.msra.mxu0 0.0
        %4307 = vmatprep.subr.mxu0 0.0
        %4308 = vmatpush1.msra.mxu0 0.0
        %4309 = vmatprep.subr.mxu0 0.0
        %4310 = vmatpush1.msra.mxu0 0.0
        %4311 = vmatprep.subr.mxu0 0.0
        %4312 = vmatpush1.msra.mxu0 0.0
        %4313 = vmatprep.subr.mxu0 0.0
        %4314 = vmatpush1.msra.mxu0 0.0
        %4315 = vmatprep.subr.mxu0 0.0
        %4316 = vmatpush1.msra.mxu0 0.0
        %4317 = vmatprep.subr.mxu0 0.0
        %4318 = vmatpush1.msra.mxu0 0.0
        %4319 = vmatprep.subr.mxu0 0.0
        %4320 = vmatpush1.msra.mxu0 0.0
        %4321 = vmatprep.subr.mxu0 0.0
        %4322 = vmatpush1.msra.mxu0 0.0
        %4323 = vmatprep.subr.mxu0 0.0
        %4324 = vmatpush1.msra.mxu0 0.0
        %4325 = vmatprep.subr.mxu0 0.0
        %4326 = vmatpush1.msra.mxu0 0.0
        %4327 = vmatprep.subr.mxu0 0.0
        %4328 = vmatpush1.msra.mxu0 0.0
        %4329 = vmatprep.subr.mxu0 0.0
        %4330 = vmatpush1.msra.mxu0 0.0
        %4331 = vmatprep.subr.mxu0 0.0
        %4332 = vmatpush1.msra.mxu0 0.0
        %4333 = vmatprep.subr.mxu0 0.0
        %4334 = vmatpush1.msra.mxu0 0.0
        %4335 = vmatprep.subr.mxu0 0.0
        %4336 = vmatpush1.msra.mxu0 0.0
        %4337 = vmatprep.subr.mxu0 0.0
        %4338 = vmatpush1.msra.mxu0 0.0
        %4339 = vmatprep.subr.mxu0 0.0
        %4340 = vmatpush1.msra.mxu0 0.0
        %4341 = vmatprep.subr.mxu0 0.0
        %4342 = vmatpush1.msra.mxu0 0.0
        %4343 = vmatprep.subr.mxu0 0.0
        %4344 = vmatpush1.msra.mxu0 0.0
        %4345 = vmatprep.subr.mxu0 0.0
        %4346 = vmatpush1.msra.mxu0 0.0
        %4347 = vmatprep.subr.mxu0 0.0
        %4348 = vmatpush1.msra.mxu0 0.0
        %4349 = vmatprep.subr.mxu0 0.0
        %4350 = vmatpush1.msra.mxu0 0.0
        %4351 = vmatprep.subr.mxu0 0.0
        %4352 = vmatpush1.msra.mxu0 0.0
        %4353 = vmatprep.subr.mxu0 0.0
        %4354 = vmatpush1.msra.mxu0 0.0
        %4355 = vmatprep.mubr.f32.mxu0 0.0
        %4356 = vmatmul.mubr.f32.gmra.mrb[0].mxu0 %v4253
        %v4357 = vpop.f32.mrb[0].mxu0
        %v4358 = vadd.f32 0.0, %v4357
        %v4359 = vpop.f32.mrb[0].mxu0
        %4360 = vmatprep.mubr.f32.mxu0 0.0
        %4361 = vmatmul.mubr.f32.gmra.mrb[0].mxu0 %v4256
        %v4362 = vpop.f32.mrb[0].mxu0
        %v4363 = vadd.f32 0.0, %v4362
        %v4364 = vpop.f32.mrb[0].mxu0
        %4365 = vmatprep.mubr.f32.mxu0 0.0
        %4366 = vmatmul.mubr.f32.gmra.mrb[0].mxu0 %v4259
        %v4367 = vpop.f32.mrb[0].mxu0
        %v4368 = vadd.f32 0.0, %v4367
        %v4369 = vpop.f32.mrb[0].mxu0
        %4370 = vmatprep.mubr.f32.mxu0 0.0
        %4371 = vmatmul.mubr.f32.gmra.mrb[0].mxu0 %v4262
        %v4372 = vpop.f32.mrb[0].mxu0
        %v4373 = vadd.f32 0.0, %v4372
        %v4374 = vpop.f32.mrb[0].mxu0
        %4375 = vmatprep.mubr.f32.mxu0 0.0
        %4376 = vmatmul.mubr.f32.gmra.mrb[0].mxu0 %v4265
        %v4377 = vpop.f32.mrb[0].mxu0
        %v4378 = vadd.f32 0.0, %v4377
        %v4379 = vpop.f32.mrb[0].mxu0
        %4380 = vmatprep.mubr.f32.mxu0 0.0
        %4381 = vmatmul.mubr.f32.gmra.mrb[0].mxu0 %v4268
        %v4382 = vpop.f32.mrb[0].mxu0
        %v4383 = vadd.f32 0.0, %v4382
        %v4384 = vpop.f32.mrb[0].mxu0
        %4385 = vmatprep.mubr.f32.mxu0 0.0
        %4386 = vmatmul.mubr.f32.gmra.mrb[0].mxu0 %v4271
        %v4387 = vpop.f32.mrb[0].mxu0
        %v4388 = vadd.f32 0.0, %v4387
        %v4389 = vpop.f32.mrb[0].mxu0
        %4390 = vmatprep.mubr.f32.mxu0 0.0
        %4391 = vmatmul.mubr.f32.gmra.mrb[0].mxu0 %v4274
        %v4392 = vpop.f32.mrb[0].mxu0
        %v4393 = vadd.f32 0.0, %v4392
        %v4394 = vpop.f32.mrb[0].mxu0
        %4395 = vmatprep.mubr.f32.mxu0 0.0
        %4396 = vmatmul.mubr.f32.gmra.mrb[0].mxu0 %v4277
        %v4397 = vpop.f32.mrb[0].mxu0
        %v4398 = vadd.f32 0.0, %v4397
        %v4399 = vpop.f32.mrb[0].mxu0
        %4400 = vmatprep.mubr.f32.mxu0 0.0
        %4401 = vmatmul.mubr.f32.gmra.mrb[0].mxu0 %v4280
        %v4402 = vpop.f32.mrb[0].mxu0
        %v4403 = vadd.f32 0.0, %v4402
        %v4404 = vpop.f32.mrb[0].mxu0
        %4405 = vmatprep.mubr.f32.mxu0 0.0
        %4406 = vmatmul.mubr.f32.gmra.mrb[0].mxu0 %v4283
        %v4407 = vpop.f32.mrb[0].mxu0
        %v4408 = vadd.f32 0.0, %v4407
        %v4409 = vpop.f32.mrb[0].mxu0
        %4410 = vmatprep.mubr.f32.mxu0 0.0
        %4411 = vmatmul.mubr.f32.gmra.mrb[0].mxu0 %v4286
        %v4412 = vpop.f32.mrb[0].mxu0
        %v4413 = vadd.f32 0.0, %v4412
        %v4414 = vpop.f32.mrb[0].mxu0
        %4415 = vdwg.mxu0
        %v4416 = vadd.f32 %v4226, %v4358
        %v4417 = vadd.f32 %v4227, %v4363
        %v4418 = vadd.f32 %v4228, %v4368
        %v4419 = vadd.f32 %v4229, %v4373
        %v4420 = vadd.f32 %v4230, %v4378
        %v4421 = vadd.f32 %v4231, %v4383
        %v4422 = vadd.f32 %v4232, %v4388
        %v4423 = vadd.f32 %v4233, %v4393
        %v4424 = vadd.f32 %v4234, %v4398
        %v4425 = vadd.f32 %v4235, %v4403
        %v4426 = vadd.f32 %v4236, %v4408
        %v4427 = vadd.f32 %v4237, %v4413
        %v4428 = vld [vmem:[#allocation2 + $0x26] sm:$0xff]
        %v4429 = vld [vmem:[#allocation2 + $0x2e] sm:$0xff]
        %v4430 = vld [vmem:[#allocation2 + $0x36] sm:$0xff]
        %v4431 = vld [vmem:[#allocation2 + $0x3e] sm:$0xff]
        %v4432 = vld [vmem:[#allocation2 + $0x46] sm:$0xff]
        %v4433 = vld [vmem:[#allocation2 + $0x4e] sm:$0xff]
        %v4434 = vld [vmem:[#allocation2 + $0x56] sm:$0xff]
        %v4435 = vld [vmem:[#allocation2 + $0x5e] sm:$0xff]
        %v4436 = vld [vmem:[#allocation2 + $0x66] sm:$0xff]
        %v4437 = vld [vmem:[#allocation2 + $0x6e] sm:$0xff]
        %v4438 = vld [vmem:[#allocation2 + $0x76] sm:$0xff]
        %v4439 = vld [vmem:[#allocation2 + $0x7e] sm:$0xf]
        %s4440 = scalar_lea.vmem %s3, 136
        %v4441 = vld [vmem:[%s4440] sm:$0x3f]
        %v4443 = vsel %vm1203, %v4428, 0
        %v4446 = vsel %vm1203, %v4429, 0
        %v4449 = vsel %vm1203, %v4430, 0
        %v4452 = vsel %vm1203, %v4431, 0
        %v4455 = vsel %vm1203, %v4432, 0
        %v4458 = vsel %vm1203, %v4433, 0
        %v4461 = vsel %vm1203, %v4434, 0
        %v4464 = vsel %vm1203, %v4435, 0
        %v4467 = vsel %vm1203, %v4436, 0
        %v4470 = vsel %vm1203, %v4437, 0
        %v4473 = vsel %vm1203, %v4438, 0
        %v4476 = vsel %vm1203, %v4439, 0
        %v4479 = vsel %vm1285, %v4441, 0
        %4481 = vmatprep.subr.mxu0 0.0
        %4482 = vmatpush1.msra.mxu0 %v4479
        %4483 = vmatprep.subr.mxu0 0.0
        %4484 = vmatpush1.msra.mxu0 0.0
        %4485 = vmatprep.subr.mxu0 0.0
        %4486 = vmatpush1.msra.mxu0 0.0
        %4487 = vmatprep.subr.mxu0 0.0
        %4488 = vmatpush1.msra.mxu0 0.0
        %4489 = vmatprep.subr.mxu0 0.0
        %4490 = vmatpush1.msra.mxu0 0.0
        %4491 = vmatprep.subr.mxu0 0.0
        %4492 = vmatpush1.msra.mxu0 0.0
        %4493 = vmatprep.subr.mxu0 0.0
        %4494 = vmatpush1.msra.mxu0 0.0
        %4495 = vmatprep.subr.mxu0 0.0
        %4496 = vmatpush1.msra.mxu0 0.0
        %4497 = vmatprep.subr.mxu0 0.0
        %4498 = vmatpush1.msra.mxu0 0.0
        %4499 = vmatprep.subr.mxu0 0.0
        %4500 = vmatpush1.msra.mxu0 0.0
        %4501 = vmatprep.subr.mxu0 0.0
        %4502 = vmatpush1.msra.mxu0 0.0
        %4503 = vmatprep.subr.mxu0 0.0
        %4504 = vmatpush1.msra.mxu0 0.0
        %4505 = vmatprep.subr.mxu0 0.0
        %4506 = vmatpush1.msra.mxu0 0.0
        %4507 = vmatprep.subr.mxu0 0.0
        %4508 = vmatpush1.msra.mxu0 0.0
        %4509 = vmatprep.subr.mxu0 0.0
        %4510 = vmatpush1.msra.mxu0 0.0
        %4511 = vmatprep.subr.mxu0 0.0
        %4512 = vmatpush1.msra.mxu0 0.0
        %4513 = vmatprep.subr.mxu0 0.0
        %4514 = vmatpush1.msra.mxu0 0.0
        %4515 = vmatprep.subr.mxu0 0.0
        %4516 = vmatpush1.msra.mxu0 0.0
        %4517 = vmatprep.subr.mxu0 0.0
        %4518 = vmatpush1.msra.mxu0 0.0
        %4519 = vmatprep.subr.mxu0 0.0
        %4520 = vmatpush1.msra.mxu0 0.0
        %4521 = vmatprep.subr.mxu0 0.0
        %4522 = vmatpush1.msra.mxu0 0.0
        %4523 = vmatprep.subr.mxu0 0.0
        %4524 = vmatpush1.msra.mxu0 0.0
        %4525 = vmatprep.subr.mxu0 0.0
        %4526 = vmatpush1.msra.mxu0 0.0
        %4527 = vmatprep.subr.mxu0 0.0
        %4528 = vmatpush1.msra.mxu0 0.0
        %4529 = vmatprep.subr.mxu0 0.0
        %4530 = vmatpush1.msra.mxu0 0.0
        %4531 = vmatprep.subr.mxu0 0.0
        %4532 = vmatpush1.msra.mxu0 0.0
        %4533 = vmatprep.subr.mxu0 0.0
        %4534 = vmatpush1.msra.mxu0 0.0
        %4535 = vmatprep.subr.mxu0 0.0
        %4536 = vmatpush1.msra.mxu0 0.0
        %4537 = vmatprep.subr.mxu0 0.0
        %4538 = vmatpush1.msra.mxu0 0.0
        %4539 = vmatprep.subr.mxu0 0.0
        %4540 = vmatpush1.msra.mxu0 0.0
        %4541 = vmatprep.subr.mxu0 0.0
        %4542 = vmatpush1.msra.mxu0 0.0
        %4543 = vmatprep.subr.mxu0 0.0
        %4544 = vmatpush1.msra.mxu0 0.0
        %4545 = vmatprep.mubr.f32.mxu0 0.0
        %4546 = vmatmul.mubr.f32.gmra.mrb[0].mxu0 %v4443
        %v4547 = vpop.f32.mrb[0].mxu0
        %v4548 = vadd.f32 0.0, %v4547
        %v4549 = vpop.f32.mrb[0].mxu0
        %4550 = vmatprep.mubr.f32.mxu0 0.0
        %4551 = vmatmul.mubr.f32.gmra.mrb[0].mxu0 %v4446
        %v4552 = vpop.f32.mrb[0].mxu0
        %v4553 = vadd.f32 0.0, %v4552
        %v4554 = vpop.f32.mrb[0].mxu0
        %4555 = vmatprep.mubr.f32.mxu0 0.0
        %4556 = vmatmul.mubr.f32.gmra.mrb[0].mxu0 %v4449
        %v4557 = vpop.f32.mrb[0].mxu0
        %v4558 = vadd.f32 0.0, %v4557
        %v4559 = vpop.f32.mrb[0].mxu0
        %4560 = vmatprep.mubr.f32.mxu0 0.0
        %4561 = vmatmul.mubr.f32.gmra.mrb[0].mxu0 %v4452
        %v4562 = vpop.f32.mrb[0].mxu0
        %v4563 = vadd.f32 0.0, %v4562
        %v4564 = vpop.f32.mrb[0].mxu0
        %4565 = vmatprep.mubr.f32.mxu0 0.0
        %4566 = vmatmul.mubr.f32.gmra.mrb[0].mxu0 %v4455
        %v4567 = vpop.f32.mrb[0].mxu0
        %v4568 = vadd.f32 0.0, %v4567
        %v4569 = vpop.f32.mrb[0].mxu0
        %4570 = vmatprep.mubr.f32.mxu0 0.0
        %4571 = vmatmul.mubr.f32.gmra.mrb[0].mxu0 %v4458
        %v4572 = vpop.f32.mrb[0].mxu0
        %v4573 = vadd.f32 0.0, %v4572
        %v4574 = vpop.f32.mrb[0].mxu0
        %4575 = vmatprep.mubr.f32.mxu0 0.0
        %4576 = vmatmul.mubr.f32.gmra.mrb[0].mxu0 %v4461
        %v4577 = vpop.f32.mrb[0].mxu0
        %v4578 = vadd.f32 0.0, %v4577
        %v4579 = vpop.f32.mrb[0].mxu0
        %4580 = vmatprep.mubr.f32.mxu0 0.0
        %4581 = vmatmul.mubr.f32.gmra.mrb[0].mxu0 %v4464
        %v4582 = vpop.f32.mrb[0].mxu0
        %v4583 = vadd.f32 0.0, %v4582
        %v4584 = vpop.f32.mrb[0].mxu0
        %4585 = vmatprep.mubr.f32.mxu0 0.0
        %4586 = vmatmul.mubr.f32.gmra.mrb[0].mxu0 %v4467
        %v4587 = vpop.f32.mrb[0].mxu0
        %v4588 = vadd.f32 0.0, %v4587
        %v4589 = vpop.f32.mrb[0].mxu0
        %4590 = vmatprep.mubr.f32.mxu0 0.0
        %4591 = vmatmul.mubr.f32.gmra.mrb[0].mxu0 %v4470
        %v4592 = vpop.f32.mrb[0].mxu0
        %v4593 = vadd.f32 0.0, %v4592
        %v4594 = vpop.f32.mrb[0].mxu0
        %4595 = vmatprep.mubr.f32.mxu0 0.0
        %4596 = vmatmul.mubr.f32.gmra.mrb[0].mxu0 %v4473
        %v4597 = vpop.f32.mrb[0].mxu0
        %v4598 = vadd.f32 0.0, %v4597
        %v4599 = vpop.f32.mrb[0].mxu0
        %4600 = vmatprep.mubr.f32.mxu0 0.0
        %4601 = vmatmul.mubr.f32.gmra.mrb[0].mxu0 %v4476
        %v4602 = vpop.f32.mrb[0].mxu0
        %v4603 = vadd.f32 0.0, %v4602
        %v4604 = vpop.f32.mrb[0].mxu0
        %4605 = vdwg.mxu0
        %v4606 = vadd.f32 %v4416, %v4548
        %v4607 = vadd.f32 %v4417, %v4553
        %v4608 = vadd.f32 %v4418, %v4558
        %v4609 = vadd.f32 %v4419, %v4563
        %v4610 = vadd.f32 %v4420, %v4568
        %v4611 = vadd.f32 %v4421, %v4573
        %v4612 = vadd.f32 %v4422, %v4578
        %v4613 = vadd.f32 %v4423, %v4583
        %v4614 = vadd.f32 %v4424, %v4588
        %v4615 = vadd.f32 %v4425, %v4593
        %v4616 = vadd.f32 %v4426, %v4598
        %v4617 = vadd.f32 %v4427, %v4603
        %v4618 = vld [vmem:[#allocation2 + $0x27] sm:$0xff]
        %v4619 = vld [vmem:[#allocation2 + $0x2f] sm:$0xff]
        %v4620 = vld [vmem:[#allocation2 + $0x37] sm:$0xff]
        %v4621 = vld [vmem:[#allocation2 + $0x3f] sm:$0xff]
        %v4622 = vld [vmem:[#allocation2 + $0x47] sm:$0xff]
        %v4623 = vld [vmem:[#allocation2 + $0x4f] sm:$0xff]
        %v4624 = vld [vmem:[#allocation2 + $0x57] sm:$0xff]
        %v4625 = vld [vmem:[#allocation2 + $0x5f] sm:$0xff]
        %v4626 = vld [vmem:[#allocation2 + $0x67] sm:$0xff]
        %v4627 = vld [vmem:[#allocation2 + $0x6f] sm:$0xff]
        %v4628 = vld [vmem:[#allocation2 + $0x77] sm:$0xff]
        %v4629 = vld [vmem:[#allocation2 + $0x7f] sm:$0xf]
        %s4630 = scalar_lea.vmem %s3, 144
        %v4631 = vld [vmem:[%s4630] sm:$0x3f]
        %v4633 = vsel %vm1203, %v4618, 0
        %v4636 = vsel %vm1203, %v4619, 0
        %v4639 = vsel %vm1203, %v4620, 0
        %v4642 = vsel %vm1203, %v4621, 0
        %v4645 = vsel %vm1203, %v4622, 0
        %v4648 = vsel %vm1203, %v4623, 0
        %v4651 = vsel %vm1203, %v4624, 0
        %v4654 = vsel %vm1203, %v4625, 0
        %v4657 = vsel %vm1203, %v4626, 0
        %v4660 = vsel %vm1203, %v4627, 0
        %v4663 = vsel %vm1203, %v4628, 0
        %v4666 = vsel %vm1203, %v4629, 0
        %v4669 = vsel %vm1285, %v4631, 0
        %4671 = vmatprep.subr.mxu0 0.0
        %4672 = vmatpush1.msra.mxu0 %v4669
        %4673 = vmatprep.subr.mxu0 0.0
        %4674 = vmatpush1.msra.mxu0 0.0
        %4675 = vmatprep.subr.mxu0 0.0
        %4676 = vmatpush1.msra.mxu0 0.0
        %4677 = vmatprep.subr.mxu0 0.0
        %4678 = vmatpush1.msra.mxu0 0.0
        %4679 = vmatprep.subr.mxu0 0.0
        %4680 = vmatpush1.msra.mxu0 0.0
        %4681 = vmatprep.subr.mxu0 0.0
        %4682 = vmatpush1.msra.mxu0 0.0
        %4683 = vmatprep.subr.mxu0 0.0
        %4684 = vmatpush1.msra.mxu0 0.0
        %4685 = vmatprep.subr.mxu0 0.0
        %4686 = vmatpush1.msra.mxu0 0.0
        %4687 = vmatprep.subr.mxu0 0.0
        %4688 = vmatpush1.msra.mxu0 0.0
        %4689 = vmatprep.subr.mxu0 0.0
        %4690 = vmatpush1.msra.mxu0 0.0
        %4691 = vmatprep.subr.mxu0 0.0
        %4692 = vmatpush1.msra.mxu0 0.0
        %4693 = vmatprep.subr.mxu0 0.0
        %4694 = vmatpush1.msra.mxu0 0.0
        %4695 = vmatprep.subr.mxu0 0.0
        %4696 = vmatpush1.msra.mxu0 0.0
        %4697 = vmatprep.subr.mxu0 0.0
        %4698 = vmatpush1.msra.mxu0 0.0
        %4699 = vmatprep.subr.mxu0 0.0
        %4700 = vmatpush1.msra.mxu0 0.0
        %4701 = vmatprep.subr.mxu0 0.0
        %4702 = vmatpush1.msra.mxu0 0.0
        %4703 = vmatprep.subr.mxu0 0.0
        %4704 = vmatpush1.msra.mxu0 0.0
        %4705 = vmatprep.subr.mxu0 0.0
        %4706 = vmatpush1.msra.mxu0 0.0
        %4707 = vmatprep.subr.mxu0 0.0
        %4708 = vmatpush1.msra.mxu0 0.0
        %4709 = vmatprep.subr.mxu0 0.0
        %4710 = vmatpush1.msra.mxu0 0.0
        %4711 = vmatprep.subr.mxu0 0.0
        %4712 = vmatpush1.msra.mxu0 0.0
        %4713 = vmatprep.subr.mxu0 0.0
        %4714 = vmatpush1.msra.mxu0 0.0
        %4715 = vmatprep.subr.mxu0 0.0
        %4716 = vmatpush1.msra.mxu0 0.0
        %4717 = vmatprep.subr.mxu0 0.0
        %4718 = vmatpush1.msra.mxu0 0.0
        %4719 = vmatprep.subr.mxu0 0.0
        %4720 = vmatpush1.msra.mxu0 0.0
        %4721 = vmatprep.subr.mxu0 0.0
        %4722 = vmatpush1.msra.mxu0 0.0
        %4723 = vmatprep.subr.mxu0 0.0
        %4724 = vmatpush1.msra.mxu0 0.0
        %4725 = vmatprep.subr.mxu0 0.0
        %4726 = vmatpush1.msra.mxu0 0.0
        %4727 = vmatprep.subr.mxu0 0.0
        %4728 = vmatpush1.msra.mxu0 0.0
        %4729 = vmatprep.subr.mxu0 0.0
        %4730 = vmatpush1.msra.mxu0 0.0
        %4731 = vmatprep.subr.mxu0 0.0
        %4732 = vmatpush1.msra.mxu0 0.0
        %4733 = vmatprep.subr.mxu0 0.0
        %4734 = vmatpush1.msra.mxu0 0.0
        %4735 = vmatprep.mubr.f32.mxu0 0.0
        %4736 = vmatmul.mubr.f32.gmra.mrb[0].mxu0 %v4633
        %v4737 = vpop.f32.mrb[0].mxu0
        %v4738 = vadd.f32 0.0, %v4737
        %v4739 = vpop.f32.mrb[0].mxu0
        %4740 = vmatprep.mubr.f32.mxu0 0.0
        %4741 = vmatmul.mubr.f32.gmra.mrb[0].mxu0 %v4636
        %v4742 = vpop.f32.mrb[0].mxu0
        %v4743 = vadd.f32 0.0, %v4742
        %v4744 = vpop.f32.mrb[0].mxu0
        %4745 = vmatprep.mubr.f32.mxu0 0.0
        %4746 = vmatmul.mubr.f32.gmra.mrb[0].mxu0 %v4639
        %v4747 = vpop.f32.mrb[0].mxu0
        %v4748 = vadd.f32 0.0, %v4747
        %v4749 = vpop.f32.mrb[0].mxu0
        %4750 = vmatprep.mubr.f32.mxu0 0.0
        %4751 = vmatmul.mubr.f32.gmra.mrb[0].mxu0 %v4642
        %v4752 = vpop.f32.mrb[0].mxu0
        %v4753 = vadd.f32 0.0, %v4752
        %v4754 = vpop.f32.mrb[0].mxu0
        %4755 = vmatprep.mubr.f32.mxu0 0.0
        %4756 = vmatmul.mubr.f32.gmra.mrb[0].mxu0 %v4645
        %v4757 = vpop.f32.mrb[0].mxu0
        %v4758 = vadd.f32 0.0, %v4757
        %v4759 = vpop.f32.mrb[0].mxu0
        %4760 = vmatprep.mubr.f32.mxu0 0.0
        %4761 = vmatmul.mubr.f32.gmra.mrb[0].mxu0 %v4648
        %v4762 = vpop.f32.mrb[0].mxu0
        %v4763 = vadd.f32 0.0, %v4762
        %v4764 = vpop.f32.mrb[0].mxu0
        %4765 = vmatprep.mubr.f32.mxu0 0.0
        %4766 = vmatmul.mubr.f32.gmra.mrb[0].mxu0 %v4651
        %v4767 = vpop.f32.mrb[0].mxu0
        %v4768 = vadd.f32 0.0, %v4767
        %v4769 = vpop.f32.mrb[0].mxu0
        %4770 = vmatprep.mubr.f32.mxu0 0.0
        %4771 = vmatmul.mubr.f32.gmra.mrb[0].mxu0 %v4654
        %v4772 = vpop.f32.mrb[0].mxu0
        %v4773 = vadd.f32 0.0, %v4772
        %v4774 = vpop.f32.mrb[0].mxu0
        %4775 = vmatprep.mubr.f32.mxu0 0.0
        %4776 = vmatmul.mubr.f32.gmra.mrb[0].mxu0 %v4657
        %v4777 = vpop.f32.mrb[0].mxu0
        %v4778 = vadd.f32 0.0, %v4777
        %v4779 = vpop.f32.mrb[0].mxu0
        %4780 = vmatprep.mubr.f32.mxu0 0.0
        %4781 = vmatmul.mubr.f32.gmra.mrb[0].mxu0 %v4660
        %v4782 = vpop.f32.mrb[0].mxu0
        %v4783 = vadd.f32 0.0, %v4782
        %v4784 = vpop.f32.mrb[0].mxu0
        %4785 = vmatprep.mubr.f32.mxu0 0.0
        %4786 = vmatmul.mubr.f32.gmra.mrb[0].mxu0 %v4663
        %v4787 = vpop.f32.mrb[0].mxu0
        %v4788 = vadd.f32 0.0, %v4787
        %v4789 = vpop.f32.mrb[0].mxu0
        %4790 = vmatprep.mubr.f32.mxu0 0.0
        %4791 = vmatmul.mubr.f32.gmra.mrb[0].mxu0 %v4666
        %v4792 = vpop.f32.mrb[0].mxu0
        %v4793 = vadd.f32 0.0, %v4792
        %v4794 = vpop.f32.mrb[0].mxu0
        %4795 = vdwg.mxu0
        %v4796 = vadd.f32 %v4606, %v4738
        %v4797 = vadd.f32 %v4607, %v4743
        %v4798 = vadd.f32 %v4608, %v4748
        %v4799 = vadd.f32 %v4609, %v4753
        %v4800 = vadd.f32 %v4610, %v4758
        %v4801 = vadd.f32 %v4611, %v4763
        %v4802 = vadd.f32 %v4612, %v4768
        %v4803 = vadd.f32 %v4613, %v4773
        %v4804 = vadd.f32 %v4614, %v4778
        %v4805 = vadd.f32 %v4615, %v4783
        %v4806 = vadd.f32 %v4616, %v4788
        %v4807 = vadd.f32 %v4617, %v4793
        %v4808 = vld [vmem:[#allocation2 + $0x28] sm:$0xff]
        %v4809 = vld [vmem:[#allocation2 + $0x30] sm:$0xff]
        %v4810 = vld [vmem:[#allocation2 + $0x38] sm:$0xff]
        %v4811 = vld [vmem:[#allocation2 + $0x40] sm:$0xff]
        %v4812 = vld [vmem:[#allocation2 + $0x48] sm:$0xff]
        %v4813 = vld [vmem:[#allocation2 + $0x50] sm:$0xff]
        %v4814 = vld [vmem:[#allocation2 + $0x58] sm:$0xff]
        %v4815 = vld [vmem:[#allocation2 + $0x60] sm:$0xff]
        %v4816 = vld [vmem:[#allocation2 + $0x68] sm:$0xff]
        %v4817 = vld [vmem:[#allocation2 + $0x70] sm:$0xff]
        %v4818 = vld [vmem:[#allocation2 + $0x78] sm:$0xff]
        %v4819 = vld [vmem:[#allocation2 + $0x80] sm:$0xf]
        %s4820 = scalar_lea.vmem %s3, 152
        %v4821 = vld [vmem:[%s4820] sm:$0x3f]
        %v4823 = vsel %vm1203, %v4808, 0
        %v4826 = vsel %vm1203, %v4809, 0
        %v4829 = vsel %vm1203, %v4810, 0
        %v4832 = vsel %vm1203, %v4811, 0
        %v4835 = vsel %vm1203, %v4812, 0
        %v4838 = vsel %vm1203, %v4813, 0
        %v4841 = vsel %vm1203, %v4814, 0
        %v4844 = vsel %vm1203, %v4815, 0
        %v4847 = vsel %vm1203, %v4816, 0
        %v4850 = vsel %vm1203, %v4817, 0
        %v4853 = vsel %vm1203, %v4818, 0
        %v4856 = vsel %vm1203, %v4819, 0
        %v4859 = vsel %vm1285, %v4821, 0
        %4861 = vmatprep.subr.mxu0 0.0
        %4862 = vmatpush1.msra.mxu0 %v4859
        %4863 = vmatprep.subr.mxu0 0.0
        %4864 = vmatpush1.msra.mxu0 0.0
        %4865 = vmatprep.subr.mxu0 0.0
        %4866 = vmatpush1.msra.mxu0 0.0
        %4867 = vmatprep.subr.mxu0 0.0
        %4868 = vmatpush1.msra.mxu0 0.0
        %4869 = vmatprep.subr.mxu0 0.0
        %4870 = vmatpush1.msra.mxu0 0.0
        %4871 = vmatprep.subr.mxu0 0.0
        %4872 = vmatpush1.msra.mxu0 0.0
        %4873 = vmatprep.subr.mxu0 0.0
        %4874 = vmatpush1.msra.mxu0 0.0
        %4875 = vmatprep.subr.mxu0 0.0
        %4876 = vmatpush1.msra.mxu0 0.0
        %4877 = vmatprep.subr.mxu0 0.0
        %4878 = vmatpush1.msra.mxu0 0.0
        %4879 = vmatprep.subr.mxu0 0.0
        %4880 = vmatpush1.msra.mxu0 0.0
        %4881 = vmatprep.subr.mxu0 0.0
        %4882 = vmatpush1.msra.mxu0 0.0
        %4883 = vmatprep.subr.mxu0 0.0
        %4884 = vmatpush1.msra.mxu0 0.0
        %4885 = vmatprep.subr.mxu0 0.0
        %4886 = vmatpush1.msra.mxu0 0.0
        %4887 = vmatprep.subr.mxu0 0.0
        %4888 = vmatpush1.msra.mxu0 0.0
        %4889 = vmatprep.subr.mxu0 0.0
        %4890 = vmatpush1.msra.mxu0 0.0
        %4891 = vmatprep.subr.mxu0 0.0
        %4892 = vmatpush1.msra.mxu0 0.0
        %4893 = vmatprep.subr.mxu0 0.0
        %4894 = vmatpush1.msra.mxu0 0.0
        %4895 = vmatprep.subr.mxu0 0.0
        %4896 = vmatpush1.msra.mxu0 0.0
        %4897 = vmatprep.subr.mxu0 0.0
        %4898 = vmatpush1.msra.mxu0 0.0
        %4899 = vmatprep.subr.mxu0 0.0
        %4900 = vmatpush1.msra.mxu0 0.0
        %4901 = vmatprep.subr.mxu0 0.0
        %4902 = vmatpush1.msra.mxu0 0.0
        %4903 = vmatprep.subr.mxu0 0.0
        %4904 = vmatpush1.msra.mxu0 0.0
        %4905 = vmatprep.subr.mxu0 0.0
        %4906 = vmatpush1.msra.mxu0 0.0
        %4907 = vmatprep.subr.mxu0 0.0
        %4908 = vmatpush1.msra.mxu0 0.0
        %4909 = vmatprep.subr.mxu0 0.0
        %4910 = vmatpush1.msra.mxu0 0.0
        %4911 = vmatprep.subr.mxu0 0.0
        %4912 = vmatpush1.msra.mxu0 0.0
        %4913 = vmatprep.subr.mxu0 0.0
        %4914 = vmatpush1.msra.mxu0 0.0
        %4915 = vmatprep.subr.mxu0 0.0
        %4916 = vmatpush1.msra.mxu0 0.0
        %4917 = vmatprep.subr.mxu0 0.0
        %4918 = vmatpush1.msra.mxu0 0.0
        %4919 = vmatprep.subr.mxu0 0.0
        %4920 = vmatpush1.msra.mxu0 0.0
        %4921 = vmatprep.subr.mxu0 0.0
        %4922 = vmatpush1.msra.mxu0 0.0
        %4923 = vmatprep.subr.mxu0 0.0
        %4924 = vmatpush1.msra.mxu0 0.0
        %4925 = vmatprep.mubr.f32.mxu0 0.0
        %4926 = vmatmul.mubr.f32.gmra.mrb[0].mxu0 %v4823
        %v4927 = vpop.f32.mrb[0].mxu0
        %v4928 = vadd.f32 0.0, %v4927
        %v4929 = vpop.f32.mrb[0].mxu0
        %4930 = vmatprep.mubr.f32.mxu0 0.0
        %4931 = vmatmul.mubr.f32.gmra.mrb[0].mxu0 %v4826
        %v4932 = vpop.f32.mrb[0].mxu0
        %v4933 = vadd.f32 0.0, %v4932
        %v4934 = vpop.f32.mrb[0].mxu0
        %4935 = vmatprep.mubr.f32.mxu0 0.0
        %4936 = vmatmul.mubr.f32.gmra.mrb[0].mxu0 %v4829
        %v4937 = vpop.f32.mrb[0].mxu0
        %v4938 = vadd.f32 0.0, %v4937
        %v4939 = vpop.f32.mrb[0].mxu0
        %4940 = vmatprep.mubr.f32.mxu0 0.0
        %4941 = vmatmul.mubr.f32.gmra.mrb[0].mxu0 %v4832
        %v4942 = vpop.f32.mrb[0].mxu0
        %v4943 = vadd.f32 0.0, %v4942
        %v4944 = vpop.f32.mrb[0].mxu0
        %4945 = vmatprep.mubr.f32.mxu0 0.0
        %4946 = vmatmul.mubr.f32.gmra.mrb[0].mxu0 %v4835
        %v4947 = vpop.f32.mrb[0].mxu0
        %v4948 = vadd.f32 0.0, %v4947
        %v4949 = vpop.f32.mrb[0].mxu0
        %4950 = vmatprep.mubr.f32.mxu0 0.0
        %4951 = vmatmul.mubr.f32.gmra.mrb[0].mxu0 %v4838
        %v4952 = vpop.f32.mrb[0].mxu0
        %v4953 = vadd.f32 0.0, %v4952
        %v4954 = vpop.f32.mrb[0].mxu0
        %4955 = vmatprep.mubr.f32.mxu0 0.0
        %4956 = vmatmul.mubr.f32.gmra.mrb[0].mxu0 %v4841
        %v4957 = vpop.f32.mrb[0].mxu0
        %v4958 = vadd.f32 0.0, %v4957
        %v4959 = vpop.f32.mrb[0].mxu0
        %4960 = vmatprep.mubr.f32.mxu0 0.0
        %4961 = vmatmul.mubr.f32.gmra.mrb[0].mxu0 %v4844
        %v4962 = vpop.f32.mrb[0].mxu0
        %v4963 = vadd.f32 0.0, %v4962
        %v4964 = vpop.f32.mrb[0].mxu0
        %4965 = vmatprep.mubr.f32.mxu0 0.0
        %4966 = vmatmul.mubr.f32.gmra.mrb[0].mxu0 %v4847
        %v4967 = vpop.f32.mrb[0].mxu0
        %v4968 = vadd.f32 0.0, %v4967
        %v4969 = vpop.f32.mrb[0].mxu0
        %4970 = vmatprep.mubr.f32.mxu0 0.0
        %4971 = vmatmul.mubr.f32.gmra.mrb[0].mxu0 %v4850
        %v4972 = vpop.f32.mrb[0].mxu0
        %v4973 = vadd.f32 0.0, %v4972
        %v4974 = vpop.f32.mrb[0].mxu0
        %4975 = vmatprep.mubr.f32.mxu0 0.0
        %4976 = vmatmul.mubr.f32.gmra.mrb[0].mxu0 %v4853
        %v4977 = vpop.f32.mrb[0].mxu0
        %v4978 = vadd.f32 0.0, %v4977
        %v4979 = vpop.f32.mrb[0].mxu0
        %4980 = vmatprep.mubr.f32.mxu0 0.0
        %4981 = vmatmul.mubr.f32.gmra.mrb[0].mxu0 %v4856
        %v4982 = vpop.f32.mrb[0].mxu0
        %v4983 = vadd.f32 0.0, %v4982
        %v4984 = vpop.f32.mrb[0].mxu0
        %4985 = vdwg.mxu0
        %v4986 = vadd.f32 %v4796, %v4928
        %v4987 = vadd.f32 %v4797, %v4933
        %v4988 = vadd.f32 %v4798, %v4938
        %v4989 = vadd.f32 %v4799, %v4943
        %v4990 = vadd.f32 %v4800, %v4948
        %v4991 = vadd.f32 %v4801, %v4953
        %v4992 = vadd.f32 %v4802, %v4958
        %v4993 = vadd.f32 %v4803, %v4963
        %v4994 = vadd.f32 %v4804, %v4968
        %v4995 = vadd.f32 %v4805, %v4973
        %v4996 = vadd.f32 %v4806, %v4978
        %v4997 = vadd.f32 %v4807, %v4983
        %v4998 = vld [vmem:[#allocation2 + $0x30] sm:$0xff]
        %v4999 = vld [vmem:[#allocation2 + $0x38] sm:$0xff]
        %v5000 = vld [vmem:[#allocation2 + $0x40] sm:$0xff]
        %v5001 = vld [vmem:[#allocation2 + $0x48] sm:$0xff]
        %v5002 = vld [vmem:[#allocation2 + $0x50] sm:$0xff]
        %v5003 = vld [vmem:[#allocation2 + $0x58] sm:$0xff]
        %v5004 = vld [vmem:[#allocation2 + $0x60] sm:$0xff]
        %v5005 = vld [vmem:[#allocation2 + $0x68] sm:$0xff]
        %v5006 = vld [vmem:[#allocation2 + $0x70] sm:$0xff]
        %v5007 = vld [vmem:[#allocation2 + $0x78] sm:$0xff]
        %v5008 = vld [vmem:[#allocation2 + $0x80] sm:$0xff]
        %v5009 = vld [vmem:[#allocation2 + $0x88] sm:$0xf]
        %s5010 = scalar_lea.vmem %s3, 160
        %v5011 = vld [vmem:[%s5010] sm:$0x3f]
        %v5013 = vsel %vm1203, %v4998, 0
        %v5016 = vsel %vm1203, %v4999, 0
        %v5019 = vsel %vm1203, %v5000, 0
        %v5022 = vsel %vm1203, %v5001, 0
        %v5025 = vsel %vm1203, %v5002, 0
        %v5028 = vsel %vm1203, %v5003, 0
        %v5031 = vsel %vm1203, %v5004, 0
        %v5034 = vsel %vm1203, %v5005, 0
        %v5037 = vsel %vm1203, %v5006, 0
        %v5040 = vsel %vm1203, %v5007, 0
        %v5043 = vsel %vm1203, %v5008, 0
        %v5046 = vsel %vm1203, %v5009, 0
        %v5049 = vsel %vm1285, %v5011, 0
        %5051 = vmatprep.subr.mxu0 0.0
        %5052 = vmatpush1.msra.mxu0 %v5049
        %5053 = vmatprep.subr.mxu0 0.0
        %5054 = vmatpush1.msra.mxu0 0.0
        %5055 = vmatprep.subr.mxu0 0.0
        %5056 = vmatpush1.msra.mxu0 0.0
        %5057 = vmatprep.subr.mxu0 0.0
        %5058 = vmatpush1.msra.mxu0 0.0
        %5059 = vmatprep.subr.mxu0 0.0
        %5060 = vmatpush1.msra.mxu0 0.0
        %5061 = vmatprep.subr.mxu0 0.0
        %5062 = vmatpush1.msra.mxu0 0.0
        %5063 = vmatprep.subr.mxu0 0.0
        %5064 = vmatpush1.msra.mxu0 0.0
        %5065 = vmatprep.subr.mxu0 0.0
        %5066 = vmatpush1.msra.mxu0 0.0
        %5067 = vmatprep.subr.mxu0 0.0
        %5068 = vmatpush1.msra.mxu0 0.0
        %5069 = vmatprep.subr.mxu0 0.0
        %5070 = vmatpush1.msra.mxu0 0.0
        %5071 = vmatprep.subr.mxu0 0.0
        %5072 = vmatpush1.msra.mxu0 0.0
        %5073 = vmatprep.subr.mxu0 0.0
        %5074 = vmatpush1.msra.mxu0 0.0
        %5075 = vmatprep.subr.mxu0 0.0
        %5076 = vmatpush1.msra.mxu0 0.0
        %5077 = vmatprep.subr.mxu0 0.0
        %5078 = vmatpush1.msra.mxu0 0.0
        %5079 = vmatprep.subr.mxu0 0.0
        %5080 = vmatpush1.msra.mxu0 0.0
        %5081 = vmatprep.subr.mxu0 0.0
        %5082 = vmatpush1.msra.mxu0 0.0
        %5083 = vmatprep.subr.mxu0 0.0
        %5084 = vmatpush1.msra.mxu0 0.0
        %5085 = vmatprep.subr.mxu0 0.0
        %5086 = vmatpush1.msra.mxu0 0.0
        %5087 = vmatprep.subr.mxu0 0.0
        %5088 = vmatpush1.msra.mxu0 0.0
        %5089 = vmatprep.subr.mxu0 0.0
        %5090 = vmatpush1.msra.mxu0 0.0
        %5091 = vmatprep.subr.mxu0 0.0
        %5092 = vmatpush1.msra.mxu0 0.0
        %5093 = vmatprep.subr.mxu0 0.0
        %5094 = vmatpush1.msra.mxu0 0.0
        %5095 = vmatprep.subr.mxu0 0.0
        %5096 = vmatpush1.msra.mxu0 0.0
        %5097 = vmatprep.subr.mxu0 0.0
        %5098 = vmatpush1.msra.mxu0 0.0
        %5099 = vmatprep.subr.mxu0 0.0
        %5100 = vmatpush1.msra.mxu0 0.0
        %5101 = vmatprep.subr.mxu0 0.0
        %5102 = vmatpush1.msra.mxu0 0.0
        %5103 = vmatprep.subr.mxu0 0.0
        %5104 = vmatpush1.msra.mxu0 0.0
        %5105 = vmatprep.subr.mxu0 0.0
        %5106 = vmatpush1.msra.mxu0 0.0
        %5107 = vmatprep.subr.mxu0 0.0
        %5108 = vmatpush1.msra.mxu0 0.0
        %5109 = vmatprep.subr.mxu0 0.0
        %5110 = vmatpush1.msra.mxu0 0.0
        %5111 = vmatprep.subr.mxu0 0.0
        %5112 = vmatpush1.msra.mxu0 0.0
        %5113 = vmatprep.subr.mxu0 0.0
        %5114 = vmatpush1.msra.mxu0 0.0
        %5115 = vmatprep.mubr.f32.mxu0 0.0
        %5116 = vmatmul.mubr.f32.gmra.mrb[0].mxu0 %v5013
        %v5117 = vpop.f32.mrb[0].mxu0
        %v5118 = vadd.f32 0.0, %v5117
        %v5119 = vpop.f32.mrb[0].mxu0
        %5120 = vmatprep.mubr.f32.mxu0 0.0
        %5121 = vmatmul.mubr.f32.gmra.mrb[0].mxu0 %v5016
        %v5122 = vpop.f32.mrb[0].mxu0
        %v5123 = vadd.f32 0.0, %v5122
        %v5124 = vpop.f32.mrb[0].mxu0
        %5125 = vmatprep.mubr.f32.mxu0 0.0
        %5126 = vmatmul.mubr.f32.gmra.mrb[0].mxu0 %v5019
        %v5127 = vpop.f32.mrb[0].mxu0
        %v5128 = vadd.f32 0.0, %v5127
        %v5129 = vpop.f32.mrb[0].mxu0
        %5130 = vmatprep.mubr.f32.mxu0 0.0
        %5131 = vmatmul.mubr.f32.gmra.mrb[0].mxu0 %v5022
        %v5132 = vpop.f32.mrb[0].mxu0
        %v5133 = vadd.f32 0.0, %v5132
        %v5134 = vpop.f32.mrb[0].mxu0
        %5135 = vmatprep.mubr.f32.mxu0 0.0
        %5136 = vmatmul.mubr.f32.gmra.mrb[0].mxu0 %v5025
        %v5137 = vpop.f32.mrb[0].mxu0
        %v5138 = vadd.f32 0.0, %v5137
        %v5139 = vpop.f32.mrb[0].mxu0
        %5140 = vmatprep.mubr.f32.mxu0 0.0
        %5141 = vmatmul.mubr.f32.gmra.mrb[0].mxu0 %v5028
        %v5142 = vpop.f32.mrb[0].mxu0
        %v5143 = vadd.f32 0.0, %v5142
        %v5144 = vpop.f32.mrb[0].mxu0
        %5145 = vmatprep.mubr.f32.mxu0 0.0
        %5146 = vmatmul.mubr.f32.gmra.mrb[0].mxu0 %v5031
        %v5147 = vpop.f32.mrb[0].mxu0
        %v5148 = vadd.f32 0.0, %v5147
        %v5149 = vpop.f32.mrb[0].mxu0
        %5150 = vmatprep.mubr.f32.mxu0 0.0
        %5151 = vmatmul.mubr.f32.gmra.mrb[0].mxu0 %v5034
        %v5152 = vpop.f32.mrb[0].mxu0
        %v5153 = vadd.f32 0.0, %v5152
        %v5154 = vpop.f32.mrb[0].mxu0
        %5155 = vmatprep.mubr.f32.mxu0 0.0
        %5156 = vmatmul.mubr.f32.gmra.mrb[0].mxu0 %v5037
        %v5157 = vpop.f32.mrb[0].mxu0
        %v5158 = vadd.f32 0.0, %v5157
        %v5159 = vpop.f32.mrb[0].mxu0
        %5160 = vmatprep.mubr.f32.mxu0 0.0
        %5161 = vmatmul.mubr.f32.gmra.mrb[0].mxu0 %v5040
        %v5162 = vpop.f32.mrb[0].mxu0
        %v5163 = vadd.f32 0.0, %v5162
        %v5164 = vpop.f32.mrb[0].mxu0
        %5165 = vmatprep.mubr.f32.mxu0 0.0
        %5166 = vmatmul.mubr.f32.gmra.mrb[0].mxu0 %v5043
        %v5167 = vpop.f32.mrb[0].mxu0
        %v5168 = vadd.f32 0.0, %v5167
        %v5169 = vpop.f32.mrb[0].mxu0
        %5170 = vmatprep.mubr.f32.mxu0 0.0
        %5171 = vmatmul.mubr.f32.gmra.mrb[0].mxu0 %v5046
        %v5172 = vpop.f32.mrb[0].mxu0
        %v5173 = vadd.f32 0.0, %v5172
        %v5174 = vpop.f32.mrb[0].mxu0
        %5175 = vdwg.mxu0
        %v5176 = vadd.f32 %v4986, %v5118
        %v5177 = vadd.f32 %v4987, %v5123
        %v5178 = vadd.f32 %v4988, %v5128
        %v5179 = vadd.f32 %v4989, %v5133
        %v5180 = vadd.f32 %v4990, %v5138
        %v5181 = vadd.f32 %v4991, %v5143
        %v5182 = vadd.f32 %v4992, %v5148
        %v5183 = vadd.f32 %v4993, %v5153
        %v5184 = vadd.f32 %v4994, %v5158
        %v5185 = vadd.f32 %v4995, %v5163
        %v5186 = vadd.f32 %v4996, %v5168
        %v5187 = vadd.f32 %v4997, %v5173
        %v5188 = vld [vmem:[#allocation2 + $0x31] sm:$0xff]
        %v5189 = vld [vmem:[#allocation2 + $0x39] sm:$0xff]
        %v5190 = vld [vmem:[#allocation2 + $0x41] sm:$0xff]
        %v5191 = vld [vmem:[#allocation2 + $0x49] sm:$0xff]
        %v5192 = vld [vmem:[#allocation2 + $0x51] sm:$0xff]
        %v5193 = vld [vmem:[#allocation2 + $0x59] sm:$0xff]
        %v5194 = vld [vmem:[#allocation2 + $0x61] sm:$0xff]
        %v5195 = vld [vmem:[#allocation2 + $0x69] sm:$0xff]
        %v5196 = vld [vmem:[#allocation2 + $0x71] sm:$0xff]
        %v5197 = vld [vmem:[#allocation2 + $0x79] sm:$0xff]
        %v5198 = vld [vmem:[#allocation2 + $0x81] sm:$0xff]
        %v5199 = vld [vmem:[#allocation2 + $0x89] sm:$0xf]
        %s5200 = scalar_lea.vmem %s3, 168
        %v5201 = vld [vmem:[%s5200] sm:$0x3f]
        %v5203 = vsel %vm1203, %v5188, 0
        %v5206 = vsel %vm1203, %v5189, 0
        %v5209 = vsel %vm1203, %v5190, 0
        %v5212 = vsel %vm1203, %v5191, 0
        %v5215 = vsel %vm1203, %v5192, 0
        %v5218 = vsel %vm1203, %v5193, 0
        %v5221 = vsel %vm1203, %v5194, 0
        %v5224 = vsel %vm1203, %v5195, 0
        %v5227 = vsel %vm1203, %v5196, 0
        %v5230 = vsel %vm1203, %v5197, 0
        %v5233 = vsel %vm1203, %v5198, 0
        %v5236 = vsel %vm1203, %v5199, 0
        %v5239 = vsel %vm1285, %v5201, 0
        %5241 = vmatprep.subr.mxu0 0.0
        %5242 = vmatpush1.msra.mxu0 %v5239
        %5243 = vmatprep.subr.mxu0 0.0
        %5244 = vmatpush1.msra.mxu0 0.0
        %5245 = vmatprep.subr.mxu0 0.0
        %5246 = vmatpush1.msra.mxu0 0.0
        %5247 = vmatprep.subr.mxu0 0.0
        %5248 = vmatpush1.msra.mxu0 0.0
        %5249 = vmatprep.subr.mxu0 0.0
        %5250 = vmatpush1.msra.mxu0 0.0
        %5251 = vmatprep.subr.mxu0 0.0
        %5252 = vmatpush1.msra.mxu0 0.0
        %5253 = vmatprep.subr.mxu0 0.0
        %5254 = vmatpush1.msra.mxu0 0.0
        %5255 = vmatprep.subr.mxu0 0.0
        %5256 = vmatpush1.msra.mxu0 0.0
        %5257 = vmatprep.subr.mxu0 0.0
        %5258 = vmatpush1.msra.mxu0 0.0
        %5259 = vmatprep.subr.mxu0 0.0
        %5260 = vmatpush1.msra.mxu0 0.0
        %5261 = vmatprep.subr.mxu0 0.0
        %5262 = vmatpush1.msra.mxu0 0.0
        %5263 = vmatprep.subr.mxu0 0.0
        %5264 = vmatpush1.msra.mxu0 0.0
        %5265 = vmatprep.subr.mxu0 0.0
        %5266 = vmatpush1.msra.mxu0 0.0
        %5267 = vmatprep.subr.mxu0 0.0
        %5268 = vmatpush1.msra.mxu0 0.0
        %5269 = vmatprep.subr.mxu0 0.0
        %5270 = vmatpush1.msra.mxu0 0.0
        %5271 = vmatprep.subr.mxu0 0.0
        %5272 = vmatpush1.msra.mxu0 0.0
        %5273 = vmatprep.subr.mxu0 0.0
        %5274 = vmatpush1.msra.mxu0 0.0
        %5275 = vmatprep.subr.mxu0 0.0
        %5276 = vmatpush1.msra.mxu0 0.0
        %5277 = vmatprep.subr.mxu0 0.0
        %5278 = vmatpush1.msra.mxu0 0.0
        %5279 = vmatprep.subr.mxu0 0.0
        %5280 = vmatpush1.msra.mxu0 0.0
        %5281 = vmatprep.subr.mxu0 0.0
        %5282 = vmatpush1.msra.mxu0 0.0
        %5283 = vmatprep.subr.mxu0 0.0
        %5284 = vmatpush1.msra.mxu0 0.0
        %5285 = vmatprep.subr.mxu0 0.0
        %5286 = vmatpush1.msra.mxu0 0.0
        %5287 = vmatprep.subr.mxu0 0.0
        %5288 = vmatpush1.msra.mxu0 0.0
        %5289 = vmatprep.subr.mxu0 0.0
        %5290 = vmatpush1.msra.mxu0 0.0
        %5291 = vmatprep.subr.mxu0 0.0
        %5292 = vmatpush1.msra.mxu0 0.0
        %5293 = vmatprep.subr.mxu0 0.0
        %5294 = vmatpush1.msra.mxu0 0.0
        %5295 = vmatprep.subr.mxu0 0.0
        %5296 = vmatpush1.msra.mxu0 0.0
        %5297 = vmatprep.subr.mxu0 0.0
        %5298 = vmatpush1.msra.mxu0 0.0
        %5299 = vmatprep.subr.mxu0 0.0
        %5300 = vmatpush1.msra.mxu0 0.0
        %5301 = vmatprep.subr.mxu0 0.0
        %5302 = vmatpush1.msra.mxu0 0.0
        %5303 = vmatprep.subr.mxu0 0.0
        %5304 = vmatpush1.msra.mxu0 0.0
        %5305 = vmatprep.mubr.f32.mxu0 0.0
        %5306 = vmatmul.mubr.f32.gmra.mrb[0].mxu0 %v5203
        %v5307 = vpop.f32.mrb[0].mxu0
        %v5308 = vadd.f32 0.0, %v5307
        %v5309 = vpop.f32.mrb[0].mxu0
        %5310 = vmatprep.mubr.f32.mxu0 0.0
        %5311 = vmatmul.mubr.f32.gmra.mrb[0].mxu0 %v5206
        %v5312 = vpop.f32.mrb[0].mxu0
        %v5313 = vadd.f32 0.0, %v5312
        %v5314 = vpop.f32.mrb[0].mxu0
        %5315 = vmatprep.mubr.f32.mxu0 0.0
        %5316 = vmatmul.mubr.f32.gmra.mrb[0].mxu0 %v5209
        %v5317 = vpop.f32.mrb[0].mxu0
        %v5318 = vadd.f32 0.0, %v5317
        %v5319 = vpop.f32.mrb[0].mxu0
        %5320 = vmatprep.mubr.f32.mxu0 0.0
        %5321 = vmatmul.mubr.f32.gmra.mrb[0].mxu0 %v5212
        %v5322 = vpop.f32.mrb[0].mxu0
        %v5323 = vadd.f32 0.0, %v5322
        %v5324 = vpop.f32.mrb[0].mxu0
        %5325 = vmatprep.mubr.f32.mxu0 0.0
        %5326 = vmatmul.mubr.f32.gmra.mrb[0].mxu0 %v5215
        %v5327 = vpop.f32.mrb[0].mxu0
        %v5328 = vadd.f32 0.0, %v5327
        %v5329 = vpop.f32.mrb[0].mxu0
        %5330 = vmatprep.mubr.f32.mxu0 0.0
        %5331 = vmatmul.mubr.f32.gmra.mrb[0].mxu0 %v5218
        %v5332 = vpop.f32.mrb[0].mxu0
        %v5333 = vadd.f32 0.0, %v5332
        %v5334 = vpop.f32.mrb[0].mxu0
        %5335 = vmatprep.mubr.f32.mxu0 0.0
        %5336 = vmatmul.mubr.f32.gmra.mrb[0].mxu0 %v5221
        %v5337 = vpop.f32.mrb[0].mxu0
        %v5338 = vadd.f32 0.0, %v5337
        %v5339 = vpop.f32.mrb[0].mxu0
        %5340 = vmatprep.mubr.f32.mxu0 0.0
        %5341 = vmatmul.mubr.f32.gmra.mrb[0].mxu0 %v5224
        %v5342 = vpop.f32.mrb[0].mxu0
        %v5343 = vadd.f32 0.0, %v5342
        %v5344 = vpop.f32.mrb[0].mxu0
        %5345 = vmatprep.mubr.f32.mxu0 0.0
        %5346 = vmatmul.mubr.f32.gmra.mrb[0].mxu0 %v5227
        %v5347 = vpop.f32.mrb[0].mxu0
        %v5348 = vadd.f32 0.0, %v5347
        %v5349 = vpop.f32.mrb[0].mxu0
        %5350 = vmatprep.mubr.f32.mxu0 0.0
        %5351 = vmatmul.mubr.f32.gmra.mrb[0].mxu0 %v5230
        %v5352 = vpop.f32.mrb[0].mxu0
        %v5353 = vadd.f32 0.0, %v5352
        %v5354 = vpop.f32.mrb[0].mxu0
        %5355 = vmatprep.mubr.f32.mxu0 0.0
        %5356 = vmatmul.mubr.f32.gmra.mrb[0].mxu0 %v5233
        %v5357 = vpop.f32.mrb[0].mxu0
        %v5358 = vadd.f32 0.0, %v5357
        %v5359 = vpop.f32.mrb[0].mxu0
        %5360 = vmatprep.mubr.f32.mxu0 0.0
        %5361 = vmatmul.mubr.f32.gmra.mrb[0].mxu0 %v5236
        %v5362 = vpop.f32.mrb[0].mxu0
        %v5363 = vadd.f32 0.0, %v5362
        %v5364 = vpop.f32.mrb[0].mxu0
        %5365 = vdwg.mxu0
        %v5366 = vadd.f32 %v5176, %v5308
        %v5367 = vadd.f32 %v5177, %v5313
        %v5368 = vadd.f32 %v5178, %v5318
        %v5369 = vadd.f32 %v5179, %v5323
        %v5370 = vadd.f32 %v5180, %v5328
        %v5371 = vadd.f32 %v5181, %v5333
        %v5372 = vadd.f32 %v5182, %v5338
        %v5373 = vadd.f32 %v5183, %v5343
        %v5374 = vadd.f32 %v5184, %v5348
        %v5375 = vadd.f32 %v5185, %v5353
        %v5376 = vadd.f32 %v5186, %v5358
        %v5377 = vadd.f32 %v5187, %v5363
        %v5378 = vld [vmem:[#allocation2 + $0x32] sm:$0xff]
        %v5379 = vld [vmem:[#allocation2 + $0x3a] sm:$0xff]
        %v5380 = vld [vmem:[#allocation2 + $0x42] sm:$0xff]
        %v5381 = vld [vmem:[#allocation2 + $0x4a] sm:$0xff]
        %v5382 = vld [vmem:[#allocation2 + $0x52] sm:$0xff]
        %v5383 = vld [vmem:[#allocation2 + $0x5a] sm:$0xff]
        %v5384 = vld [vmem:[#allocation2 + $0x62] sm:$0xff]
        %v5385 = vld [vmem:[#allocation2 + $0x6a] sm:$0xff]
        %v5386 = vld [vmem:[#allocation2 + $0x72] sm:$0xff]
        %v5387 = vld [vmem:[#allocation2 + $0x7a] sm:$0xff]
        %v5388 = vld [vmem:[#allocation2 + $0x82] sm:$0xff]
        %v5389 = vld [vmem:[#allocation2 + $0x8a] sm:$0xf]
        %s5390 = scalar_lea.vmem %s3, 176
        %v5391 = vld [vmem:[%s5390] sm:$0x3f]
        %v5393 = vsel %vm1203, %v5378, 0
        %v5396 = vsel %vm1203, %v5379, 0
        %v5399 = vsel %vm1203, %v5380, 0
        %v5402 = vsel %vm1203, %v5381, 0
        %v5405 = vsel %vm1203, %v5382, 0
        %v5408 = vsel %vm1203, %v5383, 0
        %v5411 = vsel %vm1203, %v5384, 0
        %v5414 = vsel %vm1203, %v5385, 0
        %v5417 = vsel %vm1203, %v5386, 0
        %v5420 = vsel %vm1203, %v5387, 0
        %v5423 = vsel %vm1203, %v5388, 0
        %v5426 = vsel %vm1203, %v5389, 0
        %v5429 = vsel %vm1285, %v5391, 0
        %5431 = vmatprep.subr.mxu0 0.0
        %5432 = vmatpush1.msra.mxu0 %v5429
        %5433 = vmatprep.subr.mxu0 0.0
        %5434 = vmatpush1.msra.mxu0 0.0
        %5435 = vmatprep.subr.mxu0 0.0
        %5436 = vmatpush1.msra.mxu0 0.0
        %5437 = vmatprep.subr.mxu0 0.0
        %5438 = vmatpush1.msra.mxu0 0.0
        %5439 = vmatprep.subr.mxu0 0.0
        %5440 = vmatpush1.msra.mxu0 0.0
        %5441 = vmatprep.subr.mxu0 0.0
        %5442 = vmatpush1.msra.mxu0 0.0
        %5443 = vmatprep.subr.mxu0 0.0
        %5444 = vmatpush1.msra.mxu0 0.0
        %5445 = vmatprep.subr.mxu0 0.0
        %5446 = vmatpush1.msra.mxu0 0.0
        %5447 = vmatprep.subr.mxu0 0.0
        %5448 = vmatpush1.msra.mxu0 0.0
        %5449 = vmatprep.subr.mxu0 0.0
        %5450 = vmatpush1.msra.mxu0 0.0
        %5451 = vmatprep.subr.mxu0 0.0
        %5452 = vmatpush1.msra.mxu0 0.0
        %5453 = vmatprep.subr.mxu0 0.0
        %5454 = vmatpush1.msra.mxu0 0.0
        %5455 = vmatprep.subr.mxu0 0.0
        %5456 = vmatpush1.msra.mxu0 0.0
        %5457 = vmatprep.subr.mxu0 0.0
        %5458 = vmatpush1.msra.mxu0 0.0
        %5459 = vmatprep.subr.mxu0 0.0
        %5460 = vmatpush1.msra.mxu0 0.0
        %5461 = vmatprep.subr.mxu0 0.0
        %5462 = vmatpush1.msra.mxu0 0.0
        %5463 = vmatprep.subr.mxu0 0.0
        %5464 = vmatpush1.msra.mxu0 0.0
        %5465 = vmatprep.subr.mxu0 0.0
        %5466 = vmatpush1.msra.mxu0 0.0
        %5467 = vmatprep.subr.mxu0 0.0
        %5468 = vmatpush1.msra.mxu0 0.0
        %5469 = vmatprep.subr.mxu0 0.0
        %5470 = vmatpush1.msra.mxu0 0.0
        %5471 = vmatprep.subr.mxu0 0.0
        %5472 = vmatpush1.msra.mxu0 0.0
        %5473 = vmatprep.subr.mxu0 0.0
        %5474 = vmatpush1.msra.mxu0 0.0
        %5475 = vmatprep.subr.mxu0 0.0
        %5476 = vmatpush1.msra.mxu0 0.0
        %5477 = vmatprep.subr.mxu0 0.0
        %5478 = vmatpush1.msra.mxu0 0.0
        %5479 = vmatprep.subr.mxu0 0.0
        %5480 = vmatpush1.msra.mxu0 0.0
        %5481 = vmatprep.subr.mxu0 0.0
        %5482 = vmatpush1.msra.mxu0 0.0
        %5483 = vmatprep.subr.mxu0 0.0
        %5484 = vmatpush1.msra.mxu0 0.0
        %5485 = vmatprep.subr.mxu0 0.0
        %5486 = vmatpush1.msra.mxu0 0.0
        %5487 = vmatprep.subr.mxu0 0.0
        %5488 = vmatpush1.msra.mxu0 0.0
        %5489 = vmatprep.subr.mxu0 0.0
        %5490 = vmatpush1.msra.mxu0 0.0
        %5491 = vmatprep.subr.mxu0 0.0
        %5492 = vmatpush1.msra.mxu0 0.0
        %5493 = vmatprep.subr.mxu0 0.0
        %5494 = vmatpush1.msra.mxu0 0.0
        %5495 = vmatprep.mubr.f32.mxu0 0.0
        %5496 = vmatmul.mubr.f32.gmra.mrb[0].mxu0 %v5393
        %v5497 = vpop.f32.mrb[0].mxu0
        %v5498 = vadd.f32 0.0, %v5497
        %v5499 = vpop.f32.mrb[0].mxu0
        %5500 = vmatprep.mubr.f32.mxu0 0.0
        %5501 = vmatmul.mubr.f32.gmra.mrb[0].mxu0 %v5396
        %v5502 = vpop.f32.mrb[0].mxu0
        %v5503 = vadd.f32 0.0, %v5502
        %v5504 = vpop.f32.mrb[0].mxu0
        %5505 = vmatprep.mubr.f32.mxu0 0.0
        %5506 = vmatmul.mubr.f32.gmra.mrb[0].mxu0 %v5399
        %v5507 = vpop.f32.mrb[0].mxu0
        %v5508 = vadd.f32 0.0, %v5507
        %v5509 = vpop.f32.mrb[0].mxu0
        %5510 = vmatprep.mubr.f32.mxu0 0.0
        %5511 = vmatmul.mubr.f32.gmra.mrb[0].mxu0 %v5402
        %v5512 = vpop.f32.mrb[0].mxu0
        %v5513 = vadd.f32 0.0, %v5512
        %v5514 = vpop.f32.mrb[0].mxu0
        %5515 = vmatprep.mubr.f32.mxu0 0.0
        %5516 = vmatmul.mubr.f32.gmra.mrb[0].mxu0 %v5405
        %v5517 = vpop.f32.mrb[0].mxu0
        %v5518 = vadd.f32 0.0, %v5517
        %v5519 = vpop.f32.mrb[0].mxu0
        %5520 = vmatprep.mubr.f32.mxu0 0.0
        %5521 = vmatmul.mubr.f32.gmra.mrb[0].mxu0 %v5408
        %v5522 = vpop.f32.mrb[0].mxu0
        %v5523 = vadd.f32 0.0, %v5522
        %v5524 = vpop.f32.mrb[0].mxu0
        %5525 = vmatprep.mubr.f32.mxu0 0.0
        %5526 = vmatmul.mubr.f32.gmra.mrb[0].mxu0 %v5411
        %v5527 = vpop.f32.mrb[0].mxu0
        %v5528 = vadd.f32 0.0, %v5527
        %v5529 = vpop.f32.mrb[0].mxu0
        %5530 = vmatprep.mubr.f32.mxu0 0.0
        %5531 = vmatmul.mubr.f32.gmra.mrb[0].mxu0 %v5414
        %v5532 = vpop.f32.mrb[0].mxu0
        %v5533 = vadd.f32 0.0, %v5532
        %v5534 = vpop.f32.mrb[0].mxu0
        %5535 = vmatprep.mubr.f32.mxu0 0.0
        %5536 = vmatmul.mubr.f32.gmra.mrb[0].mxu0 %v5417
        %v5537 = vpop.f32.mrb[0].mxu0
        %v5538 = vadd.f32 0.0, %v5537
        %v5539 = vpop.f32.mrb[0].mxu0
        %5540 = vmatprep.mubr.f32.mxu0 0.0
        %5541 = vmatmul.mubr.f32.gmra.mrb[0].mxu0 %v5420
        %v5542 = vpop.f32.mrb[0].mxu0
        %v5543 = vadd.f32 0.0, %v5542
        %v5544 = vpop.f32.mrb[0].mxu0
        %5545 = vmatprep.mubr.f32.mxu0 0.0
        %5546 = vmatmul.mubr.f32.gmra.mrb[0].mxu0 %v5423
        %v5547 = vpop.f32.mrb[0].mxu0
        %v5548 = vadd.f32 0.0, %v5547
        %v5549 = vpop.f32.mrb[0].mxu0
        %5550 = vmatprep.mubr.f32.mxu0 0.0
        %5551 = vmatmul.mubr.f32.gmra.mrb[0].mxu0 %v5426
        %v5552 = vpop.f32.mrb[0].mxu0
        %v5553 = vadd.f32 0.0, %v5552
        %v5554 = vpop.f32.mrb[0].mxu0
        %5555 = vdwg.mxu0
        %v5556 = vadd.f32 %v5366, %v5498
        %v5557 = vadd.f32 %v5367, %v5503
        %v5558 = vadd.f32 %v5368, %v5508
        %v5559 = vadd.f32 %v5369, %v5513
        %v5560 = vadd.f32 %v5370, %v5518
        %v5561 = vadd.f32 %v5371, %v5523
        %v5562 = vadd.f32 %v5372, %v5528
        %v5563 = vadd.f32 %v5373, %v5533
        %v5564 = vadd.f32 %v5374, %v5538
        %v5565 = vadd.f32 %v5375, %v5543
        %v5566 = vadd.f32 %v5376, %v5548
        %v5567 = vadd.f32 %v5377, %v5553
        %v5568 = vld [vmem:[#allocation2 + $0x33] sm:$0xff]
        %v5569 = vld [vmem:[#allocation2 + $0x3b] sm:$0xff]
        %v5570 = vld [vmem:[#allocation2 + $0x43] sm:$0xff]
        %v5571 = vld [vmem:[#allocation2 + $0x4b] sm:$0xff]
        %v5572 = vld [vmem:[#allocation2 + $0x53] sm:$0xff]
        %v5573 = vld [vmem:[#allocation2 + $0x5b] sm:$0xff]
        %v5574 = vld [vmem:[#allocation2 + $0x63] sm:$0xff]
        %v5575 = vld [vmem:[#allocation2 + $0x6b] sm:$0xff]
        %v5576 = vld [vmem:[#allocation2 + $0x73] sm:$0xff]
        %v5577 = vld [vmem:[#allocation2 + $0x7b] sm:$0xff]
        %v5578 = vld [vmem:[#allocation2 + $0x83] sm:$0xff]
        %v5579 = vld [vmem:[#allocation2 + $0x8b] sm:$0xf]
        %s5580 = scalar_lea.vmem %s3, 184
        %v5581 = vld [vmem:[%s5580] sm:$0x3f]
        %v5583 = vsel %vm1203, %v5568, 0
        %v5586 = vsel %vm1203, %v5569, 0
        %v5589 = vsel %vm1203, %v5570, 0
        %v5592 = vsel %vm1203, %v5571, 0
        %v5595 = vsel %vm1203, %v5572, 0
        %v5598 = vsel %vm1203, %v5573, 0
        %v5601 = vsel %vm1203, %v5574, 0
        %v5604 = vsel %vm1203, %v5575, 0
        %v5607 = vsel %vm1203, %v5576, 0
        %v5610 = vsel %vm1203, %v5577, 0
        %v5613 = vsel %vm1203, %v5578, 0
        %v5616 = vsel %vm1203, %v5579, 0
        %v5619 = vsel %vm1285, %v5581, 0
        %5621 = vmatprep.subr.mxu0 0.0
        %5622 = vmatpush1.msra.mxu0 %v5619
        %5623 = vmatprep.subr.mxu0 0.0
        %5624 = vmatpush1.msra.mxu0 0.0
        %5625 = vmatprep.subr.mxu0 0.0
        %5626 = vmatpush1.msra.mxu0 0.0
        %5627 = vmatprep.subr.mxu0 0.0
        %5628 = vmatpush1.msra.mxu0 0.0
        %5629 = vmatprep.subr.mxu0 0.0
        %5630 = vmatpush1.msra.mxu0 0.0
        %5631 = vmatprep.subr.mxu0 0.0
        %5632 = vmatpush1.msra.mxu0 0.0
        %5633 = vmatprep.subr.mxu0 0.0
        %5634 = vmatpush1.msra.mxu0 0.0
        %5635 = vmatprep.subr.mxu0 0.0
        %5636 = vmatpush1.msra.mxu0 0.0
        %5637 = vmatprep.subr.mxu0 0.0
        %5638 = vmatpush1.msra.mxu0 0.0
        %5639 = vmatprep.subr.mxu0 0.0
        %5640 = vmatpush1.msra.mxu0 0.0
        %5641 = vmatprep.subr.mxu0 0.0
        %5642 = vmatpush1.msra.mxu0 0.0
        %5643 = vmatprep.subr.mxu0 0.0
        %5644 = vmatpush1.msra.mxu0 0.0
        %5645 = vmatprep.subr.mxu0 0.0
        %5646 = vmatpush1.msra.mxu0 0.0
        %5647 = vmatprep.subr.mxu0 0.0
        %5648 = vmatpush1.msra.mxu0 0.0
        %5649 = vmatprep.subr.mxu0 0.0
        %5650 = vmatpush1.msra.mxu0 0.0
        %5651 = vmatprep.subr.mxu0 0.0
        %5652 = vmatpush1.msra.mxu0 0.0
        %5653 = vmatprep.subr.mxu0 0.0
        %5654 = vmatpush1.msra.mxu0 0.0
        %5655 = vmatprep.subr.mxu0 0.0
        %5656 = vmatpush1.msra.mxu0 0.0
        %5657 = vmatprep.subr.mxu0 0.0
        %5658 = vmatpush1.msra.mxu0 0.0
        %5659 = vmatprep.subr.mxu0 0.0
        %5660 = vmatpush1.msra.mxu0 0.0
        %5661 = vmatprep.subr.mxu0 0.0
        %5662 = vmatpush1.msra.mxu0 0.0
        %5663 = vmatprep.subr.mxu0 0.0
        %5664 = vmatpush1.msra.mxu0 0.0
        %5665 = vmatprep.subr.mxu0 0.0
        %5666 = vmatpush1.msra.mxu0 0.0
        %5667 = vmatprep.subr.mxu0 0.0
        %5668 = vmatpush1.msra.mxu0 0.0
        %5669 = vmatprep.subr.mxu0 0.0
        %5670 = vmatpush1.msra.mxu0 0.0
        %5671 = vmatprep.subr.mxu0 0.0
        %5672 = vmatpush1.msra.mxu0 0.0
        %5673 = vmatprep.subr.mxu0 0.0
        %5674 = vmatpush1.msra.mxu0 0.0
        %5675 = vmatprep.subr.mxu0 0.0
        %5676 = vmatpush1.msra.mxu0 0.0
        %5677 = vmatprep.subr.mxu0 0.0
        %5678 = vmatpush1.msra.mxu0 0.0
        %5679 = vmatprep.subr.mxu0 0.0
        %5680 = vmatpush1.msra.mxu0 0.0
        %5681 = vmatprep.subr.mxu0 0.0
        %5682 = vmatpush1.msra.mxu0 0.0
        %5683 = vmatprep.subr.mxu0 0.0
        %5684 = vmatpush1.msra.mxu0 0.0
        %5685 = vmatprep.mubr.f32.mxu0 0.0
        %5686 = vmatmul.mubr.f32.gmra.mrb[0].mxu0 %v5583
        %v5687 = vpop.f32.mrb[0].mxu0
        %v5688 = vadd.f32 0.0, %v5687
        %v5689 = vpop.f32.mrb[0].mxu0
        %5690 = vmatprep.mubr.f32.mxu0 0.0
        %5691 = vmatmul.mubr.f32.gmra.mrb[0].mxu0 %v5586
        %v5692 = vpop.f32.mrb[0].mxu0
        %v5693 = vadd.f32 0.0, %v5692
        %v5694 = vpop.f32.mrb[0].mxu0
        %5695 = vmatprep.mubr.f32.mxu0 0.0
        %5696 = vmatmul.mubr.f32.gmra.mrb[0].mxu0 %v5589
        %v5697 = vpop.f32.mrb[0].mxu0
        %v5698 = vadd.f32 0.0, %v5697
        %v5699 = vpop.f32.mrb[0].mxu0
        %5700 = vmatprep.mubr.f32.mxu0 0.0
        %5701 = vmatmul.mubr.f32.gmra.mrb[0].mxu0 %v5592
        %v5702 = vpop.f32.mrb[0].mxu0
        %v5703 = vadd.f32 0.0, %v5702
        %v5704 = vpop.f32.mrb[0].mxu0
        %5705 = vmatprep.mubr.f32.mxu0 0.0
        %5706 = vmatmul.mubr.f32.gmra.mrb[0].mxu0 %v5595
        %v5707 = vpop.f32.mrb[0].mxu0
        %v5708 = vadd.f32 0.0, %v5707
        %v5709 = vpop.f32.mrb[0].mxu0
        %5710 = vmatprep.mubr.f32.mxu0 0.0
        %5711 = vmatmul.mubr.f32.gmra.mrb[0].mxu0 %v5598
        %v5712 = vpop.f32.mrb[0].mxu0
        %v5713 = vadd.f32 0.0, %v5712
        %v5714 = vpop.f32.mrb[0].mxu0
        %5715 = vmatprep.mubr.f32.mxu0 0.0
        %5716 = vmatmul.mubr.f32.gmra.mrb[0].mxu0 %v5601
        %v5717 = vpop.f32.mrb[0].mxu0
        %v5718 = vadd.f32 0.0, %v5717
        %v5719 = vpop.f32.mrb[0].mxu0
        %5720 = vmatprep.mubr.f32.mxu0 0.0
        %5721 = vmatmul.mubr.f32.gmra.mrb[0].mxu0 %v5604
        %v5722 = vpop.f32.mrb[0].mxu0
        %v5723 = vadd.f32 0.0, %v5722
        %v5724 = vpop.f32.mrb[0].mxu0
        %5725 = vmatprep.mubr.f32.mxu0 0.0
        %5726 = vmatmul.mubr.f32.gmra.mrb[0].mxu0 %v5607
        %v5727 = vpop.f32.mrb[0].mxu0
        %v5728 = vadd.f32 0.0, %v5727
        %v5729 = vpop.f32.mrb[0].mxu0
        %5730 = vmatprep.mubr.f32.mxu0 0.0
        %5731 = vmatmul.mubr.f32.gmra.mrb[0].mxu0 %v5610
        %v5732 = vpop.f32.mrb[0].mxu0
        %v5733 = vadd.f32 0.0, %v5732
        %v5734 = vpop.f32.mrb[0].mxu0
        %5735 = vmatprep.mubr.f32.mxu0 0.0
        %5736 = vmatmul.mubr.f32.gmra.mrb[0].mxu0 %v5613
        %v5737 = vpop.f32.mrb[0].mxu0
        %v5738 = vadd.f32 0.0, %v5737
        %v5739 = vpop.f32.mrb[0].mxu0
        %5740 = vmatprep.mubr.f32.mxu0 0.0
        %5741 = vmatmul.mubr.f32.gmra.mrb[0].mxu0 %v5616
        %v5742 = vpop.f32.mrb[0].mxu0
        %v5743 = vadd.f32 0.0, %v5742
        %v5744 = vpop.f32.mrb[0].mxu0
        %5745 = vdwg.mxu0
        %v5746 = vadd.f32 %v5556, %v5688
        %v5747 = vadd.f32 %v5557, %v5693
        %v5748 = vadd.f32 %v5558, %v5698
        %v5749 = vadd.f32 %v5559, %v5703
        %v5750 = vadd.f32 %v5560, %v5708
        %v5751 = vadd.f32 %v5561, %v5713
        %v5752 = vadd.f32 %v5562, %v5718
        %v5753 = vadd.f32 %v5563, %v5723
        %v5754 = vadd.f32 %v5564, %v5728
        %v5755 = vadd.f32 %v5565, %v5733
        %v5756 = vadd.f32 %v5566, %v5738
        %v5757 = vadd.f32 %v5567, %v5743
        %v5758 = vld [vmem:[#allocation2 + $0x34] sm:$0xff]
        %v5759 = vld [vmem:[#allocation2 + $0x3c] sm:$0xff]
        %v5760 = vld [vmem:[#allocation2 + $0x44] sm:$0xff]
        %v5761 = vld [vmem:[#allocation2 + $0x4c] sm:$0xff]
        %v5762 = vld [vmem:[#allocation2 + $0x54] sm:$0xff]
        %v5763 = vld [vmem:[#allocation2 + $0x5c] sm:$0xff]
        %v5764 = vld [vmem:[#allocation2 + $0x64] sm:$0xff]
        %v5765 = vld [vmem:[#allocation2 + $0x6c] sm:$0xff]
        %v5766 = vld [vmem:[#allocation2 + $0x74] sm:$0xff]
        %v5767 = vld [vmem:[#allocation2 + $0x7c] sm:$0xff]
        %v5768 = vld [vmem:[#allocation2 + $0x84] sm:$0xff]
        %v5769 = vld [vmem:[#allocation2 + $0x8c] sm:$0xf]
        %s5770 = scalar_lea.vmem %s3, 192
        %v5771 = vld [vmem:[%s5770] sm:$0x3f]
        %v5773 = vsel %vm1203, %v5758, 0
        %v5776 = vsel %vm1203, %v5759, 0
        %v5779 = vsel %vm1203, %v5760, 0
        %v5782 = vsel %vm1203, %v5761, 0
        %v5785 = vsel %vm1203, %v5762, 0
        %v5788 = vsel %vm1203, %v5763, 0
        %v5791 = vsel %vm1203, %v5764, 0
        %v5794 = vsel %vm1203, %v5765, 0
        %v5797 = vsel %vm1203, %v5766, 0
        %v5800 = vsel %vm1203, %v5767, 0
        %v5803 = vsel %vm1203, %v5768, 0
        %v5806 = vsel %vm1203, %v5769, 0
        %v5809 = vsel %vm1285, %v5771, 0
        %5811 = vmatprep.subr.mxu0 0.0
        %5812 = vmatpush1.msra.mxu0 %v5809
        %5813 = vmatprep.subr.mxu0 0.0
        %5814 = vmatpush1.msra.mxu0 0.0
        %5815 = vmatprep.subr.mxu0 0.0
        %5816 = vmatpush1.msra.mxu0 0.0
        %5817 = vmatprep.subr.mxu0 0.0
        %5818 = vmatpush1.msra.mxu0 0.0
        %5819 = vmatprep.subr.mxu0 0.0
        %5820 = vmatpush1.msra.mxu0 0.0
        %5821 = vmatprep.subr.mxu0 0.0
        %5822 = vmatpush1.msra.mxu0 0.0
        %5823 = vmatprep.subr.mxu0 0.0
        %5824 = vmatpush1.msra.mxu0 0.0
        %5825 = vmatprep.subr.mxu0 0.0
        %5826 = vmatpush1.msra.mxu0 0.0
        %5827 = vmatprep.subr.mxu0 0.0
        %5828 = vmatpush1.msra.mxu0 0.0
        %5829 = vmatprep.subr.mxu0 0.0
        %5830 = vmatpush1.msra.mxu0 0.0
        %5831 = vmatprep.subr.mxu0 0.0
        %5832 = vmatpush1.msra.mxu0 0.0
        %5833 = vmatprep.subr.mxu0 0.0
        %5834 = vmatpush1.msra.mxu0 0.0
        %5835 = vmatprep.subr.mxu0 0.0
        %5836 = vmatpush1.msra.mxu0 0.0
        %5837 = vmatprep.subr.mxu0 0.0
        %5838 = vmatpush1.msra.mxu0 0.0
        %5839 = vmatprep.subr.mxu0 0.0
        %5840 = vmatpush1.msra.mxu0 0.0
        %5841 = vmatprep.subr.mxu0 0.0
        %5842 = vmatpush1.msra.mxu0 0.0
        %5843 = vmatprep.subr.mxu0 0.0
        %5844 = vmatpush1.msra.mxu0 0.0
        %5845 = vmatprep.subr.mxu0 0.0
        %5846 = vmatpush1.msra.mxu0 0.0
        %5847 = vmatprep.subr.mxu0 0.0
        %5848 = vmatpush1.msra.mxu0 0.0
        %5849 = vmatprep.subr.mxu0 0.0
        %5850 = vmatpush1.msra.mxu0 0.0
        %5851 = vmatprep.subr.mxu0 0.0
        %5852 = vmatpush1.msra.mxu0 0.0
        %5853 = vmatprep.subr.mxu0 0.0
        %5854 = vmatpush1.msra.mxu0 0.0
        %5855 = vmatprep.subr.mxu0 0.0
        %5856 = vmatpush1.msra.mxu0 0.0
        %5857 = vmatprep.subr.mxu0 0.0
        %5858 = vmatpush1.msra.mxu0 0.0
        %5859 = vmatprep.subr.mxu0 0.0
        %5860 = vmatpush1.msra.mxu0 0.0
        %5861 = vmatprep.subr.mxu0 0.0
        %5862 = vmatpush1.msra.mxu0 0.0
        %5863 = vmatprep.subr.mxu0 0.0
        %5864 = vmatpush1.msra.mxu0 0.0
        %5865 = vmatprep.subr.mxu0 0.0
        %5866 = vmatpush1.msra.mxu0 0.0
        %5867 = vmatprep.subr.mxu0 0.0
        %5868 = vmatpush1.msra.mxu0 0.0
        %5869 = vmatprep.subr.mxu0 0.0
        %5870 = vmatpush1.msra.mxu0 0.0
        %5871 = vmatprep.subr.mxu0 0.0
        %5872 = vmatpush1.msra.mxu0 0.0
        %5873 = vmatprep.subr.mxu0 0.0
        %5874 = vmatpush1.msra.mxu0 0.0
        %5875 = vmatprep.mubr.f32.mxu0 0.0
        %5876 = vmatmul.mubr.f32.gmra.mrb[0].mxu0 %v5773
        %v5877 = vpop.f32.mrb[0].mxu0
        %v5878 = vadd.f32 0.0, %v5877
        %v5879 = vpop.f32.mrb[0].mxu0
        %5880 = vmatprep.mubr.f32.mxu0 0.0
        %5881 = vmatmul.mubr.f32.gmra.mrb[0].mxu0 %v5776
        %v5882 = vpop.f32.mrb[0].mxu0
        %v5883 = vadd.f32 0.0, %v5882
        %v5884 = vpop.f32.mrb[0].mxu0
        %5885 = vmatprep.mubr.f32.mxu0 0.0
        %5886 = vmatmul.mubr.f32.gmra.mrb[0].mxu0 %v5779
        %v5887 = vpop.f32.mrb[0].mxu0
        %v5888 = vadd.f32 0.0, %v5887
        %v5889 = vpop.f32.mrb[0].mxu0
        %5890 = vmatprep.mubr.f32.mxu0 0.0
        %5891 = vmatmul.mubr.f32.gmra.mrb[0].mxu0 %v5782
        %v5892 = vpop.f32.mrb[0].mxu0
        %v5893 = vadd.f32 0.0, %v5892
        %v5894 = vpop.f32.mrb[0].mxu0
        %5895 = vmatprep.mubr.f32.mxu0 0.0
        %5896 = vmatmul.mubr.f32.gmra.mrb[0].mxu0 %v5785
        %v5897 = vpop.f32.mrb[0].mxu0
        %v5898 = vadd.f32 0.0, %v5897
        %v5899 = vpop.f32.mrb[0].mxu0
        %5900 = vmatprep.mubr.f32.mxu0 0.0
        %5901 = vmatmul.mubr.f32.gmra.mrb[0].mxu0 %v5788
        %v5902 = vpop.f32.mrb[0].mxu0
        %v5903 = vadd.f32 0.0, %v5902
        %v5904 = vpop.f32.mrb[0].mxu0
        %5905 = vmatprep.mubr.f32.mxu0 0.0
        %5906 = vmatmul.mubr.f32.gmra.mrb[0].mxu0 %v5791
        %v5907 = vpop.f32.mrb[0].mxu0
        %v5908 = vadd.f32 0.0, %v5907
        %v5909 = vpop.f32.mrb[0].mxu0
        %5910 = vmatprep.mubr.f32.mxu0 0.0
        %5911 = vmatmul.mubr.f32.gmra.mrb[0].mxu0 %v5794
        %v5912 = vpop.f32.mrb[0].mxu0
        %v5913 = vadd.f32 0.0, %v5912
        %v5914 = vpop.f32.mrb[0].mxu0
        %5915 = vmatprep.mubr.f32.mxu0 0.0
        %5916 = vmatmul.mubr.f32.gmra.mrb[0].mxu0 %v5797
        %v5917 = vpop.f32.mrb[0].mxu0
        %v5918 = vadd.f32 0.0, %v5917
        %v5919 = vpop.f32.mrb[0].mxu0
        %5920 = vmatprep.mubr.f32.mxu0 0.0
        %5921 = vmatmul.mubr.f32.gmra.mrb[0].mxu0 %v5800
        %v5922 = vpop.f32.mrb[0].mxu0
        %v5923 = vadd.f32 0.0, %v5922
        %v5924 = vpop.f32.mrb[0].mxu0
        %5925 = vmatprep.mubr.f32.mxu0 0.0
        %5926 = vmatmul.mubr.f32.gmra.mrb[0].mxu0 %v5803
        %v5927 = vpop.f32.mrb[0].mxu0
        %v5928 = vadd.f32 0.0, %v5927
        %v5929 = vpop.f32.mrb[0].mxu0
        %5930 = vmatprep.mubr.f32.mxu0 0.0
        %5931 = vmatmul.mubr.f32.gmra.mrb[0].mxu0 %v5806
        %v5932 = vpop.f32.mrb[0].mxu0
        %v5933 = vadd.f32 0.0, %v5932
        %v5934 = vpop.f32.mrb[0].mxu0
        %5935 = vdwg.mxu0
        %v5936 = vadd.f32 %v5746, %v5878
        %v5937 = vadd.f32 %v5747, %v5883
        %v5938 = vadd.f32 %v5748, %v5888
        %v5939 = vadd.f32 %v5749, %v5893
        %v5940 = vadd.f32 %v5750, %v5898
        %v5941 = vadd.f32 %v5751, %v5903
        %v5942 = vadd.f32 %v5752, %v5908
        %v5943 = vadd.f32 %v5753, %v5913
        %v5944 = vadd.f32 %v5754, %v5918
        %v5945 = vadd.f32 %v5755, %v5923
        %v5946 = vadd.f32 %v5756, %v5928
        %v5947 = vadd.f32 %v5757, %v5933
        %vm5948 = vcmask 130048
        %5949 = vst.msk [vmem:[#allocation3] sm:$0xff] %vm5948, %v5936
        %5950 = vst.msk [vmem:[#allocation3 + $0x8] sm:$0xff] %vm5948, %v5937
        %5951 = vst.msk [vmem:[#allocation3 + $0x10] sm:$0xff] %vm5948, %v5938
        %5952 = vst.msk [vmem:[#allocation3 + $0x18] sm:$0xff] %vm5948, %v5939
        %5953 = vst.msk [vmem:[#allocation3 + $0x20] sm:$0xff] %vm5948, %v5940
        %5954 = vst.msk [vmem:[#allocation3 + $0x28] sm:$0xff] %vm5948, %v5941
        %5955 = vst.msk [vmem:[#allocation3 + $0x30] sm:$0xff] %vm5948, %v5942
        %5956 = vst.msk [vmem:[#allocation3 + $0x38] sm:$0xff] %vm5948, %v5943
        %5957 = vst.msk [vmem:[#allocation3 + $0x40] sm:$0xff] %vm5948, %v5944
        %5958 = vst.msk [vmem:[#allocation3 + $0x48] sm:$0xff] %vm5948, %v5945
        %5959 = vst.msk [vmem:[#allocation3 + $0x50] sm:$0xff] %vm5948, %v5946
        %vm5960 = vcmask 125952
        %5961 = vst.msk [vmem:[#allocation3 + $0x58] sm:$0xf] %vm5960, %v5947
        %v5962 = vld [vmem:[#allocation3] sm:$0xff]
        %v5963 = vld [vmem:[#allocation3 + $0x8] sm:$0xff]
        %v5964 = vld [vmem:[#allocation3 + $0x10] sm:$0xff]
        %v5965 = vld [vmem:[#allocation3 + $0x18] sm:$0xff]
        %v5966 = vld [vmem:[#allocation3 + $0x20] sm:$0xff]
        %v5967 = vld [vmem:[#allocation3 + $0x28] sm:$0xff]
        %v5968 = vld [vmem:[#allocation3 + $0x30] sm:$0xff]
        %v5969 = vld [vmem:[#allocation3 + $0x38] sm:$0xff]
        %v5970 = vld [vmem:[#allocation3 + $0x40] sm:$0xff]
        %v5971 = vld [vmem:[#allocation3 + $0x48] sm:$0x7f]
        %v5972 = vld [vmem:[#allocation3 + $0x1] sm:$0xff]
        %v5973 = vld [vmem:[#allocation3 + $0x9] sm:$0xff]
        %v5974 = vld [vmem:[#allocation3 + $0x11] sm:$0xff]
        %v5975 = vld [vmem:[#allocation3 + $0x19] sm:$0xff]
        %v5976 = vld [vmem:[#allocation3 + $0x21] sm:$0xff]
        %v5977 = vld [vmem:[#allocation3 + $0x29] sm:$0xff]
        %v5978 = vld [vmem:[#allocation3 + $0x31] sm:$0xff]
        %v5979 = vld [vmem:[#allocation3 + $0x39] sm:$0xff]
        %v5980 = vld [vmem:[#allocation3 + $0x41] sm:$0xff]
        %v5981 = vld [vmem:[#allocation3 + $0x49] sm:$0x7f]
        %v5982 = vmax.f32 %v5962, %v5972
        %v5983 = vmax.f32 %v5963, %v5973
        %v5984 = vmax.f32 %v5964, %v5974
        %v5985 = vmax.f32 %v5965, %v5975
        %v5986 = vmax.f32 %v5966, %v5976
        %v5987 = vmax.f32 %v5967, %v5977
        %v5988 = vmax.f32 %v5968, %v5978
        %v5989 = vmax.f32 %v5969, %v5979
        %v5990 = vmax.f32 %v5970, %v5980
        %v5991 = vmax.f32 %v5971, %v5981
        %v5992 = vld [vmem:[#allocation3 + $0xc] sm:$0xff]
        %v5993 = vld [vmem:[#allocation3 + $0x14] sm:$0xff]
        %v5994 = vld [vmem:[#allocation3 + $0x1c] sm:$0xff]
        %v5995 = vld [vmem:[#allocation3 + $0x24] sm:$0xff]
        %v5996 = vld [vmem:[#allocation3 + $0x2c] sm:$0xff]
        %v5997 = vld [vmem:[#allocation3 + $0x34] sm:$0xff]
        %v5998 = vld [vmem:[#allocation3 + $0x3c] sm:$0xff]
        %v5999 = vld [vmem:[#allocation3 + $0x44] sm:$0xff]
        %v6000 = vld [vmem:[#allocation3 + $0x4c] sm:$0xff]
        %v6001 = vld [vmem:[#allocation3 + $0x54] sm:$0x7f]
        %v6002 = vld [vmem:[#allocation3 + $0xd] sm:$0xff]
        %v6003 = vld [vmem:[#allocation3 + $0x15] sm:$0xff]
        %v6004 = vld [vmem:[#allocation3 + $0x1d] sm:$0xff]
        %v6005 = vld [vmem:[#allocation3 + $0x25] sm:$0xff]
        %v6006 = vld [vmem:[#allocation3 + $0x2d] sm:$0xff]
        %v6007 = vld [vmem:[#allocation3 + $0x35] sm:$0xff]
        %v6008 = vld [vmem:[#allocation3 + $0x3d] sm:$0xff]
        %v6009 = vld [vmem:[#allocation3 + $0x45] sm:$0xff]
        %v6010 = vld [vmem:[#allocation3 + $0x4d] sm:$0xff]
        %v6011 = vld [vmem:[#allocation3 + $0x55] sm:$0x7f]
        %v6012 = vmax.f32 %v5992, %v6002
        %v6013 = vmax.f32 %v5993, %v6003
        %v6014 = vmax.f32 %v5994, %v6004
        %v6015 = vmax.f32 %v5995, %v6005
        %v6016 = vmax.f32 %v5996, %v6006
        %v6017 = vmax.f32 %v5997, %v6007
        %v6018 = vmax.f32 %v5998, %v6008
        %v6019 = vmax.f32 %v5999, %v6009
        %v6020 = vmax.f32 %v6000, %v6010
        %v6021 = vmax.f32 %v6001, %v6011
        %v6022 = vmax.f32 %v5982, %v6012
        %v6023 = vmax.f32 %v5983, %v6013
        %v6024 = vmax.f32 %v5984, %v6014
        %v6025 = vmax.f32 %v5985, %v6015
        %v6026 = vmax.f32 %v5986, %v6016
        %v6027 = vmax.f32 %v5987, %v6017
        %v6028 = vmax.f32 %v5988, %v6018
        %v6029 = vmax.f32 %v5989, %v6019
        %v6030 = vmax.f32 %v5990, %v6020
        %v6031 = vmax.f32 %v5991, %v6021
        %v6032 = vld [vmem:[%s4] sm:$0x1]
        %v6034 = vlaneseq
        %v6035 = vshrl.u32 %v6034, 7
        %v6036 = vsub.s32 0, %v6035
        %v6037 = vrot.slane %v6032, %v6036
        %v6039 = vadd.f32 %v6022, %v6037
        %v6040 = vadd.f32 %v6023, %v6037
        %v6041 = vadd.f32 %v6024, %v6037
        %v6042 = vadd.f32 %v6025, %v6037
        %v6043 = vadd.f32 %v6026, %v6037
        %v6044 = vadd.f32 %v6027, %v6037
        %v6045 = vadd.f32 %v6028, %v6037
        %v6046 = vadd.f32 %v6029, %v6037
        %v6047 = vadd.f32 %v6030, %v6037
        %v6048 = vadd.f32 %v6031, %v6037
        %v6049 = vmax.f32 %v6039, 0.0
        %v6050 = vmax.f32 %v6040, 0.0
        %v6051 = vmax.f32 %v6041, 0.0
        %v6052 = vmax.f32 %v6042, 0.0
        %v6053 = vmax.f32 %v6043, 0.0
        %v6054 = vmax.f32 %v6044, 0.0
        %v6055 = vmax.f32 %v6045, 0.0
        %v6056 = vmax.f32 %v6046, 0.0
        %v6057 = vmax.f32 %v6047, 0.0
        %v6058 = vmax.f32 %v6048, 0.0
        %6059 = vst.msk [vmem:[#allocation4] sm:$0xff] %vm5948, %v6049
        %6060 = vst.msk [vmem:[#allocation4 + $0x8] sm:$0xff] %vm5948, %v6050
        %6061 = vst.msk [vmem:[#allocation4 + $0x10] sm:$0xff] %vm5948, %v6051
        %6062 = vst.msk [vmem:[#allocation4 + $0x18] sm:$0xff] %vm5948, %v6052
        %6063 = vst.msk [vmem:[#allocation4 + $0x20] sm:$0xff] %vm5948, %v6053
        %6064 = vst.msk [vmem:[#allocation4 + $0x28] sm:$0xff] %vm5948, %v6054
        %6065 = vst.msk [vmem:[#allocation4 + $0x30] sm:$0xff] %vm5948, %v6055
        %6066 = vst.msk [vmem:[#allocation4 + $0x38] sm:$0xff] %vm5948, %v6056
        %6067 = vst.msk [vmem:[#allocation4 + $0x40] sm:$0xff] %vm5948, %v6057
        %vm6068 = vcmask 129024
        %6069 = vst.msk [vmem:[#allocation4 + $0x48] sm:$0x7f] %vm6068, %v6058
        %v6070 = vld [vmem:[%s6] sm:$0x1]
        %v6071 = vld [vmem:[#allocation4] sm:$0x1]
        %v6072 = vld [vmem:[%s5] sm:$0xff]
        %v6073 = vld [vmem:[%s5 + $0x8] sm:$0xff]
        %v6075 = vsel %vm5948, %v6071, 0
        %6077 = vmatprep.subr.mxu0 0.0
        %6078 = vmatpush1.msra.mxu0 %v6072
        %6079 = vmatprep.subr.mxu0 0.0
        %6080 = vmatpush1.msra.mxu0 %v6073
        %6081 = vmatprep.subr.mxu0 0.0
        %6082 = vmatpush1.msra.mxu0 0.0
        %6083 = vmatprep.subr.mxu0 0.0
        %6084 = vmatpush1.msra.mxu0 0.0
        %6085 = vmatprep.subr.mxu0 0.0
        %6086 = vmatpush1.msra.mxu0 0.0
        %6087 = vmatprep.subr.mxu0 0.0
        %6088 = vmatpush1.msra.mxu0 0.0
        %6089 = vmatprep.subr.mxu0 0.0
        %6090 = vmatpush1.msra.mxu0 0.0
        %6091 = vmatprep.subr.mxu0 0.0
        %6092 = vmatpush1.msra.mxu0 0.0
        %6093 = vmatprep.subr.mxu0 0.0
        %6094 = vmatpush1.msra.mxu0 0.0
        %6095 = vmatprep.subr.mxu0 0.0
        %6096 = vmatpush1.msra.mxu0 0.0
        %6097 = vmatprep.subr.mxu0 0.0
        %6098 = vmatpush1.msra.mxu0 0.0
        %6099 = vmatprep.subr.mxu0 0.0
        %6100 = vmatpush1.msra.mxu0 0.0
        %6101 = vmatprep.subr.mxu0 0.0
        %6102 = vmatpush1.msra.mxu0 0.0
        %6103 = vmatprep.subr.mxu0 0.0
        %6104 = vmatpush1.msra.mxu0 0.0
        %6105 = vmatprep.subr.mxu0 0.0
        %6106 = vmatpush1.msra.mxu0 0.0
        %6107 = vmatprep.subr.mxu0 0.0
        %6108 = vmatpush1.msra.mxu0 0.0
        %6109 = vmatprep.subr.mxu0 0.0
        %6110 = vmatpush1.msra.mxu0 0.0
        %6111 = vmatprep.subr.mxu0 0.0
        %6112 = vmatpush1.msra.mxu0 0.0
        %6113 = vmatprep.subr.mxu0 0.0
        %6114 = vmatpush1.msra.mxu0 0.0
        %6115 = vmatprep.subr.mxu0 0.0
        %6116 = vmatpush1.msra.mxu0 0.0
        %6117 = vmatprep.subr.mxu0 0.0
        %6118 = vmatpush1.msra.mxu0 0.0
        %6119 = vmatprep.subr.mxu0 0.0
        %6120 = vmatpush1.msra.mxu0 0.0
        %6121 = vmatprep.subr.mxu0 0.0
        %6122 = vmatpush1.msra.mxu0 0.0
        %6123 = vmatprep.subr.mxu0 0.0
        %6124 = vmatpush1.msra.mxu0 0.0
        %6125 = vmatprep.subr.mxu0 0.0
        %6126 = vmatpush1.msra.mxu0 0.0
        %6127 = vmatprep.subr.mxu0 0.0
        %6128 = vmatpush1.msra.mxu0 0.0
        %6129 = vmatprep.subr.mxu0 0.0
        %6130 = vmatpush1.msra.mxu0 0.0
        %6131 = vmatprep.subr.mxu0 0.0
        %6132 = vmatpush1.msra.mxu0 0.0
        %6133 = vmatprep.subr.mxu0 0.0
        %6134 = vmatpush1.msra.mxu0 0.0
        %6135 = vmatprep.subr.mxu0 0.0
        %6136 = vmatpush1.msra.mxu0 0.0
        %6137 = vmatprep.subr.mxu0 0.0
        %6138 = vmatpush1.msra.mxu0 0.0
        %6139 = vmatprep.subr.mxu0 0.0
        %6140 = vmatpush1.msra.mxu0 0.0
        %6141 = vmatprep.mubr.f32.mxu0 0.0
        %6142 = vmatmul.mubr.f32.gmra.mrb[0].mxu0 %v6075
        %v6143 = vpop.f32.mrb[0].mxu0
        %v6144 = vadd.f32 0.0, %v6143
        %v6145 = vpop.f32.mrb[0].mxu0
        %6146 = vdwg.mxu0
        %v6147 = vadd.f32 %v6070, %v6144
        %v6148 = vld [vmem:[#allocation4 + $0x2] sm:$0x1]
        %s6149 = scalar_lea.vmem %s5, 16
        %v6150 = vld [vmem:[%s6149] sm:$0xff]
        %v6151 = vld [vmem:[%s6149 + $0x8] sm:$0xff]
        %v6153 = vsel %vm5948, %v6148, 0
        %6155 = vmatprep.subr.mxu0 0.0
        %6156 = vmatpush1.msra.mxu0 %v6150
        %6157 = vmatprep.subr.mxu0 0.0
        %6158 = vmatpush1.msra.mxu0 %v6151
        %6159 = vmatprep.subr.mxu0 0.0
        %6160 = vmatpush1.msra.mxu0 0.0
        %6161 = vmatprep.subr.mxu0 0.0
        %6162 = vmatpush1.msra.mxu0 0.0
        %6163 = vmatprep.subr.mxu0 0.0
        %6164 = vmatpush1.msra.mxu0 0.0
        %6165 = vmatprep.subr.mxu0 0.0
        %6166 = vmatpush1.msra.mxu0 0.0
        %6167 = vmatprep.subr.mxu0 0.0
        %6168 = vmatpush1.msra.mxu0 0.0
        %6169 = vmatprep.subr.mxu0 0.0
        %6170 = vmatpush1.msra.mxu0 0.0
        %6171 = vmatprep.subr.mxu0 0.0
        %6172 = vmatpush1.msra.mxu0 0.0
        %6173 = vmatprep.subr.mxu0 0.0
        %6174 = vmatpush1.msra.mxu0 0.0
        %6175 = vmatprep.subr.mxu0 0.0
        %6176 = vmatpush1.msra.mxu0 0.0
        %6177 = vmatprep.subr.mxu0 0.0
        %6178 = vmatpush1.msra.mxu0 0.0
        %6179 = vmatprep.subr.mxu0 0.0
        %6180 = vmatpush1.msra.mxu0 0.0
        %6181 = vmatprep.subr.mxu0 0.0
        %6182 = vmatpush1.msra.mxu0 0.0
        %6183 = vmatprep.subr.mxu0 0.0
        %6184 = vmatpush1.msra.mxu0 0.0
        %6185 = vmatprep.subr.mxu0 0.0
        %6186 = vmatpush1.msra.mxu0 0.0
        %6187 = vmatprep.subr.mxu0 0.0
        %6188 = vmatpush1.msra.mxu0 0.0
        %6189 = vmatprep.subr.mxu0 0.0
        %6190 = vmatpush1.msra.mxu0 0.0
        %6191 = vmatprep.subr.mxu0 0.0
        %6192 = vmatpush1.msra.mxu0 0.0
        %6193 = vmatprep.subr.mxu0 0.0
        %6194 = vmatpush1.msra.mxu0 0.0
        %6195 = vmatprep.subr.mxu0 0.0
        %6196 = vmatpush1.msra.mxu0 0.0
        %6197 = vmatprep.subr.mxu0 0.0
        %6198 = vmatpush1.msra.mxu0 0.0
        %6199 = vmatprep.subr.mxu0 0.0
        %6200 = vmatpush1.msra.mxu0 0.0
        %6201 = vmatprep.subr.mxu0 0.0
        %6202 = vmatpush1.msra.mxu0 0.0
        %6203 = vmatprep.subr.mxu0 0.0
        %6204 = vmatpush1.msra.mxu0 0.0
        %6205 = vmatprep.subr.mxu0 0.0
        %6206 = vmatpush1.msra.mxu0 0.0
        %6207 = vmatprep.subr.mxu0 0.0
        %6208 = vmatpush1.msra.mxu0 0.0
        %6209 = vmatprep.subr.mxu0 0.0
        %6210 = vmatpush1.msra.mxu0 0.0
        %6211 = vmatprep.subr.mxu0 0.0
        %6212 = vmatpush1.msra.mxu0 0.0
        %6213 = vmatprep.subr.mxu0 0.0
        %6214 = vmatpush1.msra.mxu0 0.0
        %6215 = vmatprep.subr.mxu0 0.0
        %6216 = vmatpush1.msra.mxu0 0.0
        %6217 = vmatprep.subr.mxu0 0.0
        %6218 = vmatpush1.msra.mxu0 0.0
        %6219 = vmatprep.mubr.f32.mxu0 0.0
        %6220 = vmatmul.mubr.f32.gmra.mrb[0].mxu0 %v6153
        %v6221 = vpop.f32.mrb[0].mxu0
        %v6222 = vadd.f32 0.0, %v6221
        %v6223 = vpop.f32.mrb[0].mxu0
        %6224 = vdwg.mxu0
        %v6225 = vadd.f32 %v6147, %v6222
        %v6226 = vld [vmem:[#allocation4 + $0x4] sm:$0x1]
        %s6227 = scalar_lea.vmem %s5, 32
        %v6228 = vld [vmem:[%s6227] sm:$0xff]
        %v6229 = vld [vmem:[%s6227 + $0x8] sm:$0xff]
        %v6231 = vsel %vm5948, %v6226, 0
        %6233 = vmatprep.subr.mxu0 0.0
        %6234 = vmatpush1.msra.mxu0 %v6228
        %6235 = vmatprep.subr.mxu0 0.0
        %6236 = vmatpush1.msra.mxu0 %v6229
        %6237 = vmatprep.subr.mxu0 0.0
        %6238 = vmatpush1.msra.mxu0 0.0
        %6239 = vmatprep.subr.mxu0 0.0
        %6240 = vmatpush1.msra.mxu0 0.0
        %6241 = vmatprep.subr.mxu0 0.0
        %6242 = vmatpush1.msra.mxu0 0.0
        %6243 = vmatprep.subr.mxu0 0.0
        %6244 = vmatpush1.msra.mxu0 0.0
        %6245 = vmatprep.subr.mxu0 0.0
        %6246 = vmatpush1.msra.mxu0 0.0
        %6247 = vmatprep.subr.mxu0 0.0
        %6248 = vmatpush1.msra.mxu0 0.0
        %6249 = vmatprep.subr.mxu0 0.0
        %6250 = vmatpush1.msra.mxu0 0.0
        %6251 = vmatprep.subr.mxu0 0.0
        %6252 = vmatpush1.msra.mxu0 0.0
        %6253 = vmatprep.subr.mxu0 0.0
        %6254 = vmatpush1.msra.mxu0 0.0
        %6255 = vmatprep.subr.mxu0 0.0
        %6256 = vmatpush1.msra.mxu0 0.0
        %6257 = vmatprep.subr.mxu0 0.0
        %6258 = vmatpush1.msra.mxu0 0.0
        %6259 = vmatprep.subr.mxu0 0.0
        %6260 = vmatpush1.msra.mxu0 0.0
        %6261 = vmatprep.subr.mxu0 0.0
        %6262 = vmatpush1.msra.mxu0 0.0
        %6263 = vmatprep.subr.mxu0 0.0
        %6264 = vmatpush1.msra.mxu0 0.0
        %6265 = vmatprep.subr.mxu0 0.0
        %6266 = vmatpush1.msra.mxu0 0.0
        %6267 = vmatprep.subr.mxu0 0.0
        %6268 = vmatpush1.msra.mxu0 0.0
        %6269 = vmatprep.subr.mxu0 0.0
        %6270 = vmatpush1.msra.mxu0 0.0
        %6271 = vmatprep.subr.mxu0 0.0
        %6272 = vmatpush1.msra.mxu0 0.0
        %6273 = vmatprep.subr.mxu0 0.0
        %6274 = vmatpush1.msra.mxu0 0.0
        %6275 = vmatprep.subr.mxu0 0.0
        %6276 = vmatpush1.msra.mxu0 0.0
        %6277 = vmatprep.subr.mxu0 0.0
        %6278 = vmatpush1.msra.mxu0 0.0
        %6279 = vmatprep.subr.mxu0 0.0
        %6280 = vmatpush1.msra.mxu0 0.0
        %6281 = vmatprep.subr.mxu0 0.0
        %6282 = vmatpush1.msra.mxu0 0.0
        %6283 = vmatprep.subr.mxu0 0.0
        %6284 = vmatpush1.msra.mxu0 0.0
        %6285 = vmatprep.subr.mxu0 0.0
        %6286 = vmatpush1.msra.mxu0 0.0
        %6287 = vmatprep.subr.mxu0 0.0
        %6288 = vmatpush1.msra.mxu0 0.0
        %6289 = vmatprep.subr.mxu0 0.0
        %6290 = vmatpush1.msra.mxu0 0.0
        %6291 = vmatprep.subr.mxu0 0.0
        %6292 = vmatpush1.msra.mxu0 0.0
        %6293 = vmatprep.subr.mxu0 0.0
        %6294 = vmatpush1.msra.mxu0 0.0
        %6295 = vmatprep.subr.mxu0 0.0
        %6296 = vmatpush1.msra.mxu0 0.0
        %6297 = vmatprep.mubr.f32.mxu0 0.0
        %6298 = vmatmul.mubr.f32.gmra.mrb[0].mxu0 %v6231
        %v6299 = vpop.f32.mrb[0].mxu0
        %v6300 = vadd.f32 0.0, %v6299
        %v6301 = vpop.f32.mrb[0].mxu0
        %6302 = vdwg.mxu0
        %v6303 = vadd.f32 %v6225, %v6300
        %v6304 = vld [vmem:[#allocation4 + $0x6] sm:$0x1]
        %s6305 = scalar_lea.vmem %s5, 48
        %v6306 = vld [vmem:[%s6305] sm:$0xff]
        %v6307 = vld [vmem:[%s6305 + $0x8] sm:$0xff]
        %v6309 = vsel %vm5948, %v6304, 0
        %6311 = vmatprep.subr.mxu0 0.0
        %6312 = vmatpush1.msra.mxu0 %v6306
        %6313 = vmatprep.subr.mxu0 0.0
        %6314 = vmatpush1.msra.mxu0 %v6307
        %6315 = vmatprep.subr.mxu0 0.0
        %6316 = vmatpush1.msra.mxu0 0.0
        %6317 = vmatprep.subr.mxu0 0.0
        %6318 = vmatpush1.msra.mxu0 0.0
        %6319 = vmatprep.subr.mxu0 0.0
        %6320 = vmatpush1.msra.mxu0 0.0
        %6321 = vmatprep.subr.mxu0 0.0
        %6322 = vmatpush1.msra.mxu0 0.0
        %6323 = vmatprep.subr.mxu0 0.0
        %6324 = vmatpush1.msra.mxu0 0.0
        %6325 = vmatprep.subr.mxu0 0.0
        %6326 = vmatpush1.msra.mxu0 0.0
        %6327 = vmatprep.subr.mxu0 0.0
        %6328 = vmatpush1.msra.mxu0 0.0
        %6329 = vmatprep.subr.mxu0 0.0
        %6330 = vmatpush1.msra.mxu0 0.0
        %6331 = vmatprep.subr.mxu0 0.0
        %6332 = vmatpush1.msra.mxu0 0.0
        %6333 = vmatprep.subr.mxu0 0.0
        %6334 = vmatpush1.msra.mxu0 0.0
        %6335 = vmatprep.subr.mxu0 0.0
        %6336 = vmatpush1.msra.mxu0 0.0
        %6337 = vmatprep.subr.mxu0 0.0
        %6338 = vmatpush1.msra.mxu0 0.0
        %6339 = vmatprep.subr.mxu0 0.0
        %6340 = vmatpush1.msra.mxu0 0.0
        %6341 = vmatprep.subr.mxu0 0.0
        %6342 = vmatpush1.msra.mxu0 0.0
        %6343 = vmatprep.subr.mxu0 0.0
        %6344 = vmatpush1.msra.mxu0 0.0
        %6345 = vmatprep.subr.mxu0 0.0
        %6346 = vmatpush1.msra.mxu0 0.0
        %6347 = vmatprep.subr.mxu0 0.0
        %6348 = vmatpush1.msra.mxu0 0.0
        %6349 = vmatprep.subr.mxu0 0.0
        %6350 = vmatpush1.msra.mxu0 0.0
        %6351 = vmatprep.subr.mxu0 0.0
        %6352 = vmatpush1.msra.mxu0 0.0
        %6353 = vmatprep.subr.mxu0 0.0
        %6354 = vmatpush1.msra.mxu0 0.0
        %6355 = vmatprep.subr.mxu0 0.0
        %6356 = vmatpush1.msra.mxu0 0.0
        %6357 = vmatprep.subr.mxu0 0.0
        %6358 = vmatpush1.msra.mxu0 0.0
        %6359 = vmatprep.subr.mxu0 0.0
        %6360 = vmatpush1.msra.mxu0 0.0
        %6361 = vmatprep.subr.mxu0 0.0
        %6362 = vmatpush1.msra.mxu0 0.0
        %6363 = vmatprep.subr.mxu0 0.0
        %6364 = vmatpush1.msra.mxu0 0.0
        %6365 = vmatprep.subr.mxu0 0.0
        %6366 = vmatpush1.msra.mxu0 0.0
        %6367 = vmatprep.subr.mxu0 0.0
        %6368 = vmatpush1.msra.mxu0 0.0
        %6369 = vmatprep.subr.mxu0 0.0
        %6370 = vmatpush1.msra.mxu0 0.0
        %6371 = vmatprep.subr.mxu0 0.0
        %6372 = vmatpush1.msra.mxu0 0.0
        %6373 = vmatprep.subr.mxu0 0.0
        %6374 = vmatpush1.msra.mxu0 0.0
        %6375 = vmatprep.mubr.f32.mxu0 0.0
        %6376 = vmatmul.mubr.f32.gmra.mrb[0].mxu0 %v6309
        %v6377 = vpop.f32.mrb[0].mxu0
        %v6378 = vadd.f32 0.0, %v6377
        %v6379 = vpop.f32.mrb[0].mxu0
        %6380 = vdwg.mxu0
        %v6381 = vadd.f32 %v6303, %v6378
        %v6382 = vld [vmem:[#allocation4 + $0x18] sm:$0x1]
        %s6383 = scalar_lea.vmem %s5, 64
        %v6384 = vld [vmem:[%s6383] sm:$0xff]
        %v6385 = vld [vmem:[%s6383 + $0x8] sm:$0xff]
        %v6387 = vsel %vm5948, %v6382, 0
        %6389 = vmatprep.subr.mxu0 0.0
        %6390 = vmatpush1.msra.mxu0 %v6384
        %6391 = vmatprep.subr.mxu0 0.0
        %6392 = vmatpush1.msra.mxu0 %v6385
        %6393 = vmatprep.subr.mxu0 0.0
        %6394 = vmatpush1.msra.mxu0 0.0
        %6395 = vmatprep.subr.mxu0 0.0
        %6396 = vmatpush1.msra.mxu0 0.0
        %6397 = vmatprep.subr.mxu0 0.0
        %6398 = vmatpush1.msra.mxu0 0.0
        %6399 = vmatprep.subr.mxu0 0.0
        %6400 = vmatpush1.msra.mxu0 0.0
        %6401 = vmatprep.subr.mxu0 0.0
        %6402 = vmatpush1.msra.mxu0 0.0
        %6403 = vmatprep.subr.mxu0 0.0
        %6404 = vmatpush1.msra.mxu0 0.0
        %6405 = vmatprep.subr.mxu0 0.0
        %6406 = vmatpush1.msra.mxu0 0.0
        %6407 = vmatprep.subr.mxu0 0.0
        %6408 = vmatpush1.msra.mxu0 0.0
        %6409 = vmatprep.subr.mxu0 0.0
        %6410 = vmatpush1.msra.mxu0 0.0
        %6411 = vmatprep.subr.mxu0 0.0
        %6412 = vmatpush1.msra.mxu0 0.0
        %6413 = vmatprep.subr.mxu0 0.0
        %6414 = vmatpush1.msra.mxu0 0.0
        %6415 = vmatprep.subr.mxu0 0.0
        %6416 = vmatpush1.msra.mxu0 0.0
        %6417 = vmatprep.subr.mxu0 0.0
        %6418 = vmatpush1.msra.mxu0 0.0
        %6419 = vmatprep.subr.mxu0 0.0
        %6420 = vmatpush1.msra.mxu0 0.0
        %6421 = vmatprep.subr.mxu0 0.0
        %6422 = vmatpush1.msra.mxu0 0.0
        %6423 = vmatprep.subr.mxu0 0.0
        %6424 = vmatpush1.msra.mxu0 0.0
        %6425 = vmatprep.subr.mxu0 0.0
        %6426 = vmatpush1.msra.mxu0 0.0
        %6427 = vmatprep.subr.mxu0 0.0
        %6428 = vmatpush1.msra.mxu0 0.0
        %6429 = vmatprep.subr.mxu0 0.0
        %6430 = vmatpush1.msra.mxu0 0.0
        %6431 = vmatprep.subr.mxu0 0.0
        %6432 = vmatpush1.msra.mxu0 0.0
        %6433 = vmatprep.subr.mxu0 0.0
        %6434 = vmatpush1.msra.mxu0 0.0
        %6435 = vmatprep.subr.mxu0 0.0
        %6436 = vmatpush1.msra.mxu0 0.0
        %6437 = vmatprep.subr.mxu0 0.0
        %6438 = vmatpush1.msra.mxu0 0.0
        %6439 = vmatprep.subr.mxu0 0.0
        %6440 = vmatpush1.msra.mxu0 0.0
        %6441 = vmatprep.subr.mxu0 0.0
        %6442 = vmatpush1.msra.mxu0 0.0
        %6443 = vmatprep.subr.mxu0 0.0
        %6444 = vmatpush1.msra.mxu0 0.0
        %6445 = vmatprep.subr.mxu0 0.0
        %6446 = vmatpush1.msra.mxu0 0.0
        %6447 = vmatprep.subr.mxu0 0.0
        %6448 = vmatpush1.msra.mxu0 0.0
        %6449 = vmatprep.subr.mxu0 0.0
        %6450 = vmatpush1.msra.mxu0 0.0
        %6451 = vmatprep.subr.mxu0 0.0
        %6452 = vmatpush1.msra.mxu0 0.0
        %6453 = vmatprep.mubr.f32.mxu0 0.0
        %6454 = vmatmul.mubr.f32.gmra.mrb[0].mxu0 %v6387
        %v6455 = vpop.f32.mrb[0].mxu0
        %v6456 = vadd.f32 0.0, %v6455
        %v6457 = vpop.f32.mrb[0].mxu0
        %6458 = vdwg.mxu0
        %v6459 = vadd.f32 %v6381, %v6456
        %v6460 = vld [vmem:[#allocation4 + $0x1a] sm:$0x1]
        %s6461 = scalar_lea.vmem %s5, 80
        %v6462 = vld [vmem:[%s6461] sm:$0xff]
        %v6463 = vld [vmem:[%s6461 + $0x8] sm:$0xff]
        %v6465 = vsel %vm5948, %v6460, 0
        %6467 = vmatprep.subr.mxu0 0.0
        %6468 = vmatpush1.msra.mxu0 %v6462
        %6469 = vmatprep.subr.mxu0 0.0
        %6470 = vmatpush1.msra.mxu0 %v6463
        %6471 = vmatprep.subr.mxu0 0.0
        %6472 = vmatpush1.msra.mxu0 0.0
        %6473 = vmatprep.subr.mxu0 0.0
        %6474 = vmatpush1.msra.mxu0 0.0
        %6475 = vmatprep.subr.mxu0 0.0
        %6476 = vmatpush1.msra.mxu0 0.0
        %6477 = vmatprep.subr.mxu0 0.0
        %6478 = vmatpush1.msra.mxu0 0.0
        %6479 = vmatprep.subr.mxu0 0.0
        %6480 = vmatpush1.msra.mxu0 0.0
        %6481 = vmatprep.subr.mxu0 0.0
        %6482 = vmatpush1.msra.mxu0 0.0
        %6483 = vmatprep.subr.mxu0 0.0
        %6484 = vmatpush1.msra.mxu0 0.0
        %6485 = vmatprep.subr.mxu0 0.0
        %6486 = vmatpush1.msra.mxu0 0.0
        %6487 = vmatprep.subr.mxu0 0.0
        %6488 = vmatpush1.msra.mxu0 0.0
        %6489 = vmatprep.subr.mxu0 0.0
        %6490 = vmatpush1.msra.mxu0 0.0
        %6491 = vmatprep.subr.mxu0 0.0
        %6492 = vmatpush1.msra.mxu0 0.0
        %6493 = vmatprep.subr.mxu0 0.0
        %6494 = vmatpush1.msra.mxu0 0.0
        %6495 = vmatprep.subr.mxu0 0.0
        %6496 = vmatpush1.msra.mxu0 0.0
        %6497 = vmatprep.subr.mxu0 0.0
        %6498 = vmatpush1.msra.mxu0 0.0
        %6499 = vmatprep.subr.mxu0 0.0
        %6500 = vmatpush1.msra.mxu0 0.0
        %6501 = vmatprep.subr.mxu0 0.0
        %6502 = vmatpush1.msra.mxu0 0.0
        %6503 = vmatprep.subr.mxu0 0.0
        %6504 = vmatpush1.msra.mxu0 0.0
        %6505 = vmatprep.subr.mxu0 0.0
        %6506 = vmatpush1.msra.mxu0 0.0
        %6507 = vmatprep.subr.mxu0 0.0
        %6508 = vmatpush1.msra.mxu0 0.0
        %6509 = vmatprep.subr.mxu0 0.0
        %6510 = vmatpush1.msra.mxu0 0.0
        %6511 = vmatprep.subr.mxu0 0.0
        %6512 = vmatpush1.msra.mxu0 0.0
        %6513 = vmatprep.subr.mxu0 0.0
        %6514 = vmatpush1.msra.mxu0 0.0
        %6515 = vmatprep.subr.mxu0 0.0
        %6516 = vmatpush1.msra.mxu0 0.0
        %6517 = vmatprep.subr.mxu0 0.0
        %6518 = vmatpush1.msra.mxu0 0.0
        %6519 = vmatprep.subr.mxu0 0.0
        %6520 = vmatpush1.msra.mxu0 0.0
        %6521 = vmatprep.subr.mxu0 0.0
        %6522 = vmatpush1.msra.mxu0 0.0
        %6523 = vmatprep.subr.mxu0 0.0
        %6524 = vmatpush1.msra.mxu0 0.0
        %6525 = vmatprep.subr.mxu0 0.0
        %6526 = vmatpush1.msra.mxu0 0.0
        %6527 = vmatprep.subr.mxu0 0.0
        %6528 = vmatpush1.msra.mxu0 0.0
        %6529 = vmatprep.subr.mxu0 0.0
        %6530 = vmatpush1.msra.mxu0 0.0
        %6531 = vmatprep.mubr.f32.mxu0 0.0
        %6532 = vmatmul.mubr.f32.gmra.mrb[0].mxu0 %v6465
        %v6533 = vpop.f32.mrb[0].mxu0
        %v6534 = vadd.f32 0.0, %v6533
        %v6535 = vpop.f32.mrb[0].mxu0
        %6536 = vdwg.mxu0
        %v6537 = vadd.f32 %v6459, %v6534
        %v6538 = vld [vmem:[#allocation4 + $0x1c] sm:$0x1]
        %s6539 = scalar_lea.vmem %s5, 96
        %v6540 = vld [vmem:[%s6539] sm:$0xff]
        %v6541 = vld [vmem:[%s6539 + $0x8] sm:$0xff]
        %v6543 = vsel %vm5948, %v6538, 0
        %6545 = vmatprep.subr.mxu0 0.0
        %6546 = vmatpush1.msra.mxu0 %v6540
        %6547 = vmatprep.subr.mxu0 0.0
        %6548 = vmatpush1.msra.mxu0 %v6541
        %6549 = vmatprep.subr.mxu0 0.0
        %6550 = vmatpush1.msra.mxu0 0.0
        %6551 = vmatprep.subr.mxu0 0.0
        %6552 = vmatpush1.msra.mxu0 0.0
        %6553 = vmatprep.subr.mxu0 0.0
        %6554 = vmatpush1.msra.mxu0 0.0
        %6555 = vmatprep.subr.mxu0 0.0
        %6556 = vmatpush1.msra.mxu0 0.0
        %6557 = vmatprep.subr.mxu0 0.0
        %6558 = vmatpush1.msra.mxu0 0.0
        %6559 = vmatprep.subr.mxu0 0.0
        %6560 = vmatpush1.msra.mxu0 0.0
        %6561 = vmatprep.subr.mxu0 0.0
        %6562 = vmatpush1.msra.mxu0 0.0
        %6563 = vmatprep.subr.mxu0 0.0
        %6564 = vmatpush1.msra.mxu0 0.0
        %6565 = vmatprep.subr.mxu0 0.0
        %6566 = vmatpush1.msra.mxu0 0.0
        %6567 = vmatprep.subr.mxu0 0.0
        %6568 = vmatpush1.msra.mxu0 0.0
        %6569 = vmatprep.subr.mxu0 0.0
        %6570 = vmatpush1.msra.mxu0 0.0
        %6571 = vmatprep.subr.mxu0 0.0
        %6572 = vmatpush1.msra.mxu0 0.0
        %6573 = vmatprep.subr.mxu0 0.0
        %6574 = vmatpush1.msra.mxu0 0.0
        %6575 = vmatprep.subr.mxu0 0.0
        %6576 = vmatpush1.msra.mxu0 0.0
        %6577 = vmatprep.subr.mxu0 0.0
        %6578 = vmatpush1.msra.mxu0 0.0
        %6579 = vmatprep.subr.mxu0 0.0
        %6580 = vmatpush1.msra.mxu0 0.0
        %6581 = vmatprep.subr.mxu0 0.0
        %6582 = vmatpush1.msra.mxu0 0.0
        %6583 = vmatprep.subr.mxu0 0.0
        %6584 = vmatpush1.msra.mxu0 0.0
        %6585 = vmatprep.subr.mxu0 0.0
        %6586 = vmatpush1.msra.mxu0 0.0
        %6587 = vmatprep.subr.mxu0 0.0
        %6588 = vmatpush1.msra.mxu0 0.0
        %6589 = vmatprep.subr.mxu0 0.0
        %6590 = vmatpush1.msra.mxu0 0.0
        %6591 = vmatprep.subr.mxu0 0.0
        %6592 = vmatpush1.msra.mxu0 0.0
        %6593 = vmatprep.subr.mxu0 0.0
        %6594 = vmatpush1.msra.mxu0 0.0
        %6595 = vmatprep.subr.mxu0 0.0
        %6596 = vmatpush1.msra.mxu0 0.0
        %6597 = vmatprep.subr.mxu0 0.0
        %6598 = vmatpush1.msra.mxu0 0.0
        %6599 = vmatprep.subr.mxu0 0.0
        %6600 = vmatpush1.msra.mxu0 0.0
        %6601 = vmatprep.subr.mxu0 0.0
        %6602 = vmatpush1.msra.mxu0 0.0
        %6603 = vmatprep.subr.mxu0 0.0
        %6604 = vmatpush1.msra.mxu0 0.0
        %6605 = vmatprep.subr.mxu0 0.0
        %6606 = vmatpush1.msra.mxu0 0.0
        %6607 = vmatprep.subr.mxu0 0.0
        %6608 = vmatpush1.msra.mxu0 0.0
        %6609 = vmatprep.mubr.f32.mxu0 0.0
        %6610 = vmatmul.mubr.f32.gmra.mrb[0].mxu0 %v6543
        %v6611 = vpop.f32.mrb[0].mxu0
        %v6612 = vadd.f32 0.0, %v6611
        %v6613 = vpop.f32.mrb[0].mxu0
        %6614 = vdwg.mxu0
        %v6615 = vadd.f32 %v6537, %v6612
        %v6616 = vld [vmem:[#allocation4 + $0x1e] sm:$0x1]
        %s6617 = scalar_lea.vmem %s5, 112
        %v6618 = vld [vmem:[%s6617] sm:$0xff]
        %v6619 = vld [vmem:[%s6617 + $0x8] sm:$0xff]
        %v6621 = vsel %vm5948, %v6616, 0
        %6623 = vmatprep.subr.mxu0 0.0
        %6624 = vmatpush1.msra.mxu0 %v6618
        %6625 = vmatprep.subr.mxu0 0.0
        %6626 = vmatpush1.msra.mxu0 %v6619
        %6627 = vmatprep.subr.mxu0 0.0
        %6628 = vmatpush1.msra.mxu0 0.0
        %6629 = vmatprep.subr.mxu0 0.0
        %6630 = vmatpush1.msra.mxu0 0.0
        %6631 = vmatprep.subr.mxu0 0.0
        %6632 = vmatpush1.msra.mxu0 0.0
        %6633 = vmatprep.subr.mxu0 0.0
        %6634 = vmatpush1.msra.mxu0 0.0
        %6635 = vmatprep.subr.mxu0 0.0
        %6636 = vmatpush1.msra.mxu0 0.0
        %6637 = vmatprep.subr.mxu0 0.0
        %6638 = vmatpush1.msra.mxu0 0.0
        %6639 = vmatprep.subr.mxu0 0.0
        %6640 = vmatpush1.msra.mxu0 0.0
        %6641 = vmatprep.subr.mxu0 0.0
        %6642 = vmatpush1.msra.mxu0 0.0
        %6643 = vmatprep.subr.mxu0 0.0
        %6644 = vmatpush1.msra.mxu0 0.0
        %6645 = vmatprep.subr.mxu0 0.0
        %6646 = vmatpush1.msra.mxu0 0.0
        %6647 = vmatprep.subr.mxu0 0.0
        %6648 = vmatpush1.msra.mxu0 0.0
        %6649 = vmatprep.subr.mxu0 0.0
        %6650 = vmatpush1.msra.mxu0 0.0
        %6651 = vmatprep.subr.mxu0 0.0
        %6652 = vmatpush1.msra.mxu0 0.0
        %6653 = vmatprep.subr.mxu0 0.0
        %6654 = vmatpush1.msra.mxu0 0.0
        %6655 = vmatprep.subr.mxu0 0.0
        %6656 = vmatpush1.msra.mxu0 0.0
        %6657 = vmatprep.subr.mxu0 0.0
        %6658 = vmatpush1.msra.mxu0 0.0
        %6659 = vmatprep.subr.mxu0 0.0
        %6660 = vmatpush1.msra.mxu0 0.0
        %6661 = vmatprep.subr.mxu0 0.0
        %6662 = vmatpush1.msra.mxu0 0.0
        %6663 = vmatprep.subr.mxu0 0.0
        %6664 = vmatpush1.msra.mxu0 0.0
        %6665 = vmatprep.subr.mxu0 0.0
        %6666 = vmatpush1.msra.mxu0 0.0
        %6667 = vmatprep.subr.mxu0 0.0
        %6668 = vmatpush1.msra.mxu0 0.0
        %6669 = vmatprep.subr.mxu0 0.0
        %6670 = vmatpush1.msra.mxu0 0.0
        %6671 = vmatprep.subr.mxu0 0.0
        %6672 = vmatpush1.msra.mxu0 0.0
        %6673 = vmatprep.subr.mxu0 0.0
        %6674 = vmatpush1.msra.mxu0 0.0
        %6675 = vmatprep.subr.mxu0 0.0
        %6676 = vmatpush1.msra.mxu0 0.0
        %6677 = vmatprep.subr.mxu0 0.0
        %6678 = vmatpush1.msra.mxu0 0.0
        %6679 = vmatprep.subr.mxu0 0.0
        %6680 = vmatpush1.msra.mxu0 0.0
        %6681 = vmatprep.subr.mxu0 0.0
        %6682 = vmatpush1.msra.mxu0 0.0
        %6683 = vmatprep.subr.mxu0 0.0
        %6684 = vmatpush1.msra.mxu0 0.0
        %6685 = vmatprep.subr.mxu0 0.0
        %6686 = vmatpush1.msra.mxu0 0.0
        %6687 = vmatprep.mubr.f32.mxu0 0.0
        %6688 = vmatmul.mubr.f32.gmra.mrb[0].mxu0 %v6621
        %v6689 = vpop.f32.mrb[0].mxu0
        %v6690 = vadd.f32 0.0, %v6689
        %v6691 = vpop.f32.mrb[0].mxu0
        %6692 = vdwg.mxu0
        %v6693 = vadd.f32 %v6615, %v6690
        %v6694 = vld [vmem:[#allocation4 + $0x30] sm:$0x1]
        %s6695 = scalar_lea.vmem %s5, 128
        %v6696 = vld [vmem:[%s6695] sm:$0xff]
        %v6697 = vld [vmem:[%s6695 + $0x8] sm:$0xff]
        %v6699 = vsel %vm5948, %v6694, 0
        %6701 = vmatprep.subr.mxu0 0.0
        %6702 = vmatpush1.msra.mxu0 %v6696
        %6703 = vmatprep.subr.mxu0 0.0
        %6704 = vmatpush1.msra.mxu0 %v6697
        %6705 = vmatprep.subr.mxu0 0.0
        %6706 = vmatpush1.msra.mxu0 0.0
        %6707 = vmatprep.subr.mxu0 0.0
        %6708 = vmatpush1.msra.mxu0 0.0
        %6709 = vmatprep.subr.mxu0 0.0
        %6710 = vmatpush1.msra.mxu0 0.0
        %6711 = vmatprep.subr.mxu0 0.0
        %6712 = vmatpush1.msra.mxu0 0.0
        %6713 = vmatprep.subr.mxu0 0.0
        %6714 = vmatpush1.msra.mxu0 0.0
        %6715 = vmatprep.subr.mxu0 0.0
        %6716 = vmatpush1.msra.mxu0 0.0
        %6717 = vmatprep.subr.mxu0 0.0
        %6718 = vmatpush1.msra.mxu0 0.0
        %6719 = vmatprep.subr.mxu0 0.0
        %6720 = vmatpush1.msra.mxu0 0.0
        %6721 = vmatprep.subr.mxu0 0.0
        %6722 = vmatpush1.msra.mxu0 0.0
        %6723 = vmatprep.subr.mxu0 0.0
        %6724 = vmatpush1.msra.mxu0 0.0
        %6725 = vmatprep.subr.mxu0 0.0
        %6726 = vmatpush1.msra.mxu0 0.0
        %6727 = vmatprep.subr.mxu0 0.0
        %6728 = vmatpush1.msra.mxu0 0.0
        %6729 = vmatprep.subr.mxu0 0.0
        %6730 = vmatpush1.msra.mxu0 0.0
        %6731 = vmatprep.subr.mxu0 0.0
        %6732 = vmatpush1.msra.mxu0 0.0
        %6733 = vmatprep.subr.mxu0 0.0
        %6734 = vmatpush1.msra.mxu0 0.0
        %6735 = vmatprep.subr.mxu0 0.0
        %6736 = vmatpush1.msra.mxu0 0.0
        %6737 = vmatprep.subr.mxu0 0.0
        %6738 = vmatpush1.msra.mxu0 0.0
        %6739 = vmatprep.subr.mxu0 0.0
        %6740 = vmatpush1.msra.mxu0 0.0
        %6741 = vmatprep.subr.mxu0 0.0
        %6742 = vmatpush1.msra.mxu0 0.0
        %6743 = vmatprep.subr.mxu0 0.0
        %6744 = vmatpush1.msra.mxu0 0.0
        %6745 = vmatprep.subr.mxu0 0.0
        %6746 = vmatpush1.msra.mxu0 0.0
        %6747 = vmatprep.subr.mxu0 0.0
        %6748 = vmatpush1.msra.mxu0 0.0
        %6749 = vmatprep.subr.mxu0 0.0
        %6750 = vmatpush1.msra.mxu0 0.0
        %6751 = vmatprep.subr.mxu0 0.0
        %6752 = vmatpush1.msra.mxu0 0.0
        %6753 = vmatprep.subr.mxu0 0.0
        %6754 = vmatpush1.msra.mxu0 0.0
        %6755 = vmatprep.subr.mxu0 0.0
        %6756 = vmatpush1.msra.mxu0 0.0
        %6757 = vmatprep.subr.mxu0 0.0
        %6758 = vmatpush1.msra.mxu0 0.0
        %6759 = vmatprep.subr.mxu0 0.0
        %6760 = vmatpush1.msra.mxu0 0.0
        %6761 = vmatprep.subr.mxu0 0.0
        %6762 = vmatpush1.msra.mxu0 0.0
        %6763 = vmatprep.subr.mxu0 0.0
        %6764 = vmatpush1.msra.mxu0 0.0
        %6765 = vmatprep.mubr.f32.mxu0 0.0
        %6766 = vmatmul.mubr.f32.gmra.mrb[0].mxu0 %v6699
        %v6767 = vpop.f32.mrb[0].mxu0
        %v6768 = vadd.f32 0.0, %v6767
        %v6769 = vpop.f32.mrb[0].mxu0
        %6770 = vdwg.mxu0
        %v6771 = vadd.f32 %v6693, %v6768
        %v6772 = vld [vmem:[#allocation4 + $0x32] sm:$0x1]
        %s6773 = scalar_lea.vmem %s5, 144
        %v6774 = vld [vmem:[%s6773] sm:$0xff]
        %v6775 = vld [vmem:[%s6773 + $0x8] sm:$0xff]
        %v6777 = vsel %vm5948, %v6772, 0
        %6779 = vmatprep.subr.mxu0 0.0
        %6780 = vmatpush1.msra.mxu0 %v6774
        %6781 = vmatprep.subr.mxu0 0.0
        %6782 = vmatpush1.msra.mxu0 %v6775
        %6783 = vmatprep.subr.mxu0 0.0
        %6784 = vmatpush1.msra.mxu0 0.0
        %6785 = vmatprep.subr.mxu0 0.0
        %6786 = vmatpush1.msra.mxu0 0.0
        %6787 = vmatprep.subr.mxu0 0.0
        %6788 = vmatpush1.msra.mxu0 0.0
        %6789 = vmatprep.subr.mxu0 0.0
        %6790 = vmatpush1.msra.mxu0 0.0
        %6791 = vmatprep.subr.mxu0 0.0
        %6792 = vmatpush1.msra.mxu0 0.0
        %6793 = vmatprep.subr.mxu0 0.0
        %6794 = vmatpush1.msra.mxu0 0.0
        %6795 = vmatprep.subr.mxu0 0.0
        %6796 = vmatpush1.msra.mxu0 0.0
        %6797 = vmatprep.subr.mxu0 0.0
        %6798 = vmatpush1.msra.mxu0 0.0
        %6799 = vmatprep.subr.mxu0 0.0
        %6800 = vmatpush1.msra.mxu0 0.0
        %6801 = vmatprep.subr.mxu0 0.0
        %6802 = vmatpush1.msra.mxu0 0.0
        %6803 = vmatprep.subr.mxu0 0.0
        %6804 = vmatpush1.msra.mxu0 0.0
        %6805 = vmatprep.subr.mxu0 0.0
        %6806 = vmatpush1.msra.mxu0 0.0
        %6807 = vmatprep.subr.mxu0 0.0
        %6808 = vmatpush1.msra.mxu0 0.0
        %6809 = vmatprep.subr.mxu0 0.0
        %6810 = vmatpush1.msra.mxu0 0.0
        %6811 = vmatprep.subr.mxu0 0.0
        %6812 = vmatpush1.msra.mxu0 0.0
        %6813 = vmatprep.subr.mxu0 0.0
        %6814 = vmatpush1.msra.mxu0 0.0
        %6815 = vmatprep.subr.mxu0 0.0
        %6816 = vmatpush1.msra.mxu0 0.0
        %6817 = vmatprep.subr.mxu0 0.0
        %6818 = vmatpush1.msra.mxu0 0.0
        %6819 = vmatprep.subr.mxu0 0.0
        %6820 = vmatpush1.msra.mxu0 0.0
        %6821 = vmatprep.subr.mxu0 0.0
        %6822 = vmatpush1.msra.mxu0 0.0
        %6823 = vmatprep.subr.mxu0 0.0
        %6824 = vmatpush1.msra.mxu0 0.0
        %6825 = vmatprep.subr.mxu0 0.0
        %6826 = vmatpush1.msra.mxu0 0.0
        %6827 = vmatprep.subr.mxu0 0.0
        %6828 = vmatpush1.msra.mxu0 0.0
        %6829 = vmatprep.subr.mxu0 0.0
        %6830 = vmatpush1.msra.mxu0 0.0
        %6831 = vmatprep.subr.mxu0 0.0
        %6832 = vmatpush1.msra.mxu0 0.0
        %6833 = vmatprep.subr.mxu0 0.0
        %6834 = vmatpush1.msra.mxu0 0.0
        %6835 = vmatprep.subr.mxu0 0.0
        %6836 = vmatpush1.msra.mxu0 0.0
        %6837 = vmatprep.subr.mxu0 0.0
        %6838 = vmatpush1.msra.mxu0 0.0
        %6839 = vmatprep.subr.mxu0 0.0
        %6840 = vmatpush1.msra.mxu0 0.0
        %6841 = vmatprep.subr.mxu0 0.0
        %6842 = vmatpush1.msra.mxu0 0.0
        %6843 = vmatprep.mubr.f32.mxu0 0.0
        %6844 = vmatmul.mubr.f32.gmra.mrb[0].mxu0 %v6777
        %v6845 = vpop.f32.mrb[0].mxu0
        %v6846 = vadd.f32 0.0, %v6845
        %v6847 = vpop.f32.mrb[0].mxu0
        %6848 = vdwg.mxu0
        %v6849 = vadd.f32 %v6771, %v6846
        %v6850 = vld [vmem:[#allocation4 + $0x34] sm:$0x1]
        %s6851 = scalar_lea.vmem %s5, 160
        %v6852 = vld [vmem:[%s6851] sm:$0xff]
        %v6853 = vld [vmem:[%s6851 + $0x8] sm:$0xff]
        %v6855 = vsel %vm5948, %v6850, 0
        %6857 = vmatprep.subr.mxu0 0.0
        %6858 = vmatpush1.msra.mxu0 %v6852
        %6859 = vmatprep.subr.mxu0 0.0
        %6860 = vmatpush1.msra.mxu0 %v6853
        %6861 = vmatprep.subr.mxu0 0.0
        %6862 = vmatpush1.msra.mxu0 0.0
        %6863 = vmatprep.subr.mxu0 0.0
        %6864 = vmatpush1.msra.mxu0 0.0
        %6865 = vmatprep.subr.mxu0 0.0
        %6866 = vmatpush1.msra.mxu0 0.0
        %6867 = vmatprep.subr.mxu0 0.0
        %6868 = vmatpush1.msra.mxu0 0.0
        %6869 = vmatprep.subr.mxu0 0.0
        %6870 = vmatpush1.msra.mxu0 0.0
        %6871 = vmatprep.subr.mxu0 0.0
        %6872 = vmatpush1.msra.mxu0 0.0
        %6873 = vmatprep.subr.mxu0 0.0
        %6874 = vmatpush1.msra.mxu0 0.0
        %6875 = vmatprep.subr.mxu0 0.0
        %6876 = vmatpush1.msra.mxu0 0.0
        %6877 = vmatprep.subr.mxu0 0.0
        %6878 = vmatpush1.msra.mxu0 0.0
        %6879 = vmatprep.subr.mxu0 0.0
        %6880 = vmatpush1.msra.mxu0 0.0
        %6881 = vmatprep.subr.mxu0 0.0
        %6882 = vmatpush1.msra.mxu0 0.0
        %6883 = vmatprep.subr.mxu0 0.0
        %6884 = vmatpush1.msra.mxu0 0.0
        %6885 = vmatprep.subr.mxu0 0.0
        %6886 = vmatpush1.msra.mxu0 0.0
        %6887 = vmatprep.subr.mxu0 0.0
        %6888 = vmatpush1.msra.mxu0 0.0
        %6889 = vmatprep.subr.mxu0 0.0
        %6890 = vmatpush1.msra.mxu0 0.0
        %6891 = vmatprep.subr.mxu0 0.0
        %6892 = vmatpush1.msra.mxu0 0.0
        %6893 = vmatprep.subr.mxu0 0.0
        %6894 = vmatpush1.msra.mxu0 0.0
        %6895 = vmatprep.subr.mxu0 0.0
        %6896 = vmatpush1.msra.mxu0 0.0
        %6897 = vmatprep.subr.mxu0 0.0
        %6898 = vmatpush1.msra.mxu0 0.0
        %6899 = vmatprep.subr.mxu0 0.0
        %6900 = vmatpush1.msra.mxu0 0.0
        %6901 = vmatprep.subr.mxu0 0.0
        %6902 = vmatpush1.msra.mxu0 0.0
        %6903 = vmatprep.subr.mxu0 0.0
        %6904 = vmatpush1.msra.mxu0 0.0
        %6905 = vmatprep.subr.mxu0 0.0
        %6906 = vmatpush1.msra.mxu0 0.0
        %6907 = vmatprep.subr.mxu0 0.0
        %6908 = vmatpush1.msra.mxu0 0.0
        %6909 = vmatprep.subr.mxu0 0.0
        %6910 = vmatpush1.msra.mxu0 0.0
        %6911 = vmatprep.subr.mxu0 0.0
        %6912 = vmatpush1.msra.mxu0 0.0
        %6913 = vmatprep.subr.mxu0 0.0
        %6914 = vmatpush1.msra.mxu0 0.0
        %6915 = vmatprep.subr.mxu0 0.0
        %6916 = vmatpush1.msra.mxu0 0.0
        %6917 = vmatprep.subr.mxu0 0.0
        %6918 = vmatpush1.msra.mxu0 0.0
        %6919 = vmatprep.subr.mxu0 0.0
        %6920 = vmatpush1.msra.mxu0 0.0
        %6921 = vmatprep.mubr.f32.mxu0 0.0
        %6922 = vmatmul.mubr.f32.gmra.mrb[0].mxu0 %v6855
        %v6923 = vpop.f32.mrb[0].mxu0
        %v6924 = vadd.f32 0.0, %v6923
        %v6925 = vpop.f32.mrb[0].mxu0
        %6926 = vdwg.mxu0
        %v6927 = vadd.f32 %v6849, %v6924
        %v6928 = vld [vmem:[#allocation4 + $0x36] sm:$0x1]
        %s6929 = scalar_lea.vmem %s5, 176
        %v6930 = vld [vmem:[%s6929] sm:$0xff]
        %v6931 = vld [vmem:[%s6929 + $0x8] sm:$0xff]
        %v6933 = vsel %vm5948, %v6928, 0
        %6935 = vmatprep.subr.mxu0 0.0
        %6936 = vmatpush1.msra.mxu0 %v6930
        %6937 = vmatprep.subr.mxu0 0.0
        %6938 = vmatpush1.msra.mxu0 %v6931
        %6939 = vmatprep.subr.mxu0 0.0
        %6940 = vmatpush1.msra.mxu0 0.0
        %6941 = vmatprep.subr.mxu0 0.0
        %6942 = vmatpush1.msra.mxu0 0.0
        %6943 = vmatprep.subr.mxu0 0.0
        %6944 = vmatpush1.msra.mxu0 0.0
        %6945 = vmatprep.subr.mxu0 0.0
        %6946 = vmatpush1.msra.mxu0 0.0
        %6947 = vmatprep.subr.mxu0 0.0
        %6948 = vmatpush1.msra.mxu0 0.0
        %6949 = vmatprep.subr.mxu0 0.0
        %6950 = vmatpush1.msra.mxu0 0.0
        %6951 = vmatprep.subr.mxu0 0.0
        %6952 = vmatpush1.msra.mxu0 0.0
        %6953 = vmatprep.subr.mxu0 0.0
        %6954 = vmatpush1.msra.mxu0 0.0
        %6955 = vmatprep.subr.mxu0 0.0
        %6956 = vmatpush1.msra.mxu0 0.0
        %6957 = vmatprep.subr.mxu0 0.0
        %6958 = vmatpush1.msra.mxu0 0.0
        %6959 = vmatprep.subr.mxu0 0.0
        %6960 = vmatpush1.msra.mxu0 0.0
        %6961 = vmatprep.subr.mxu0 0.0
        %6962 = vmatpush1.msra.mxu0 0.0
        %6963 = vmatprep.subr.mxu0 0.0
        %6964 = vmatpush1.msra.mxu0 0.0
        %6965 = vmatprep.subr.mxu0 0.0
        %6966 = vmatpush1.msra.mxu0 0.0
        %6967 = vmatprep.subr.mxu0 0.0
        %6968 = vmatpush1.msra.mxu0 0.0
        %6969 = vmatprep.subr.mxu0 0.0
        %6970 = vmatpush1.msra.mxu0 0.0
        %6971 = vmatprep.subr.mxu0 0.0
        %6972 = vmatpush1.msra.mxu0 0.0
        %6973 = vmatprep.subr.mxu0 0.0
        %6974 = vmatpush1.msra.mxu0 0.0
        %6975 = vmatprep.subr.mxu0 0.0
        %6976 = vmatpush1.msra.mxu0 0.0
        %6977 = vmatprep.subr.mxu0 0.0
        %6978 = vmatpush1.msra.mxu0 0.0
        %6979 = vmatprep.subr.mxu0 0.0
        %6980 = vmatpush1.msra.mxu0 0.0
        %6981 = vmatprep.subr.mxu0 0.0
        %6982 = vmatpush1.msra.mxu0 0.0
        %6983 = vmatprep.subr.mxu0 0.0
        %6984 = vmatpush1.msra.mxu0 0.0
        %6985 = vmatprep.subr.mxu0 0.0
        %6986 = vmatpush1.msra.mxu0 0.0
        %6987 = vmatprep.subr.mxu0 0.0
        %6988 = vmatpush1.msra.mxu0 0.0
        %6989 = vmatprep.subr.mxu0 0.0
        %6990 = vmatpush1.msra.mxu0 0.0
        %6991 = vmatprep.subr.mxu0 0.0
        %6992 = vmatpush1.msra.mxu0 0.0
        %6993 = vmatprep.subr.mxu0 0.0
        %6994 = vmatpush1.msra.mxu0 0.0
        %6995 = vmatprep.subr.mxu0 0.0
        %6996 = vmatpush1.msra.mxu0 0.0
        %6997 = vmatprep.subr.mxu0 0.0
        %6998 = vmatpush1.msra.mxu0 0.0
        %6999 = vmatprep.mubr.f32.mxu0 0.0
        %7000 = vmatmul.mubr.f32.gmra.mrb[0].mxu0 %v6933
        %v7001 = vpop.f32.mrb[0].mxu0
        %v7002 = vadd.f32 0.0, %v7001
        %v7003 = vpop.f32.mrb[0].mxu0
        %7004 = vdwg.mxu0
        %v7005 = vadd.f32 %v6927, %v7002
        %v7006 = vld [vmem:[#allocation4 + $0x48] sm:$0x1]
        %s7007 = scalar_lea.vmem %s5, 192
        %v7008 = vld [vmem:[%s7007] sm:$0xff]
        %v7009 = vld [vmem:[%s7007 + $0x8] sm:$0xff]
        %v7011 = vsel %vm5948, %v7006, 0
        %7013 = vmatprep.subr.mxu0 0.0
        %7014 = vmatpush1.msra.mxu0 %v7008
        %7015 = vmatprep.subr.mxu0 0.0
        %7016 = vmatpush1.msra.mxu0 %v7009
        %7017 = vmatprep.subr.mxu0 0.0
        %7018 = vmatpush1.msra.mxu0 0.0
        %7019 = vmatprep.subr.mxu0 0.0
        %7020 = vmatpush1.msra.mxu0 0.0
        %7021 = vmatprep.subr.mxu0 0.0
        %7022 = vmatpush1.msra.mxu0 0.0
        %7023 = vmatprep.subr.mxu0 0.0
        %7024 = vmatpush1.msra.mxu0 0.0
        %7025 = vmatprep.subr.mxu0 0.0
        %7026 = vmatpush1.msra.mxu0 0.0
        %7027 = vmatprep.subr.mxu0 0.0
        %7028 = vmatpush1.msra.mxu0 0.0
        %7029 = vmatprep.subr.mxu0 0.0
        %7030 = vmatpush1.msra.mxu0 0.0
        %7031 = vmatprep.subr.mxu0 0.0
        %7032 = vmatpush1.msra.mxu0 0.0
        %7033 = vmatprep.subr.mxu0 0.0
        %7034 = vmatpush1.msra.mxu0 0.0
        %7035 = vmatprep.subr.mxu0 0.0
        %7036 = vmatpush1.msra.mxu0 0.0
        %7037 = vmatprep.subr.mxu0 0.0
        %7038 = vmatpush1.msra.mxu0 0.0
        %7039 = vmatprep.subr.mxu0 0.0
        %7040 = vmatpush1.msra.mxu0 0.0
        %7041 = vmatprep.subr.mxu0 0.0
        %7042 = vmatpush1.msra.mxu0 0.0
        %7043 = vmatprep.subr.mxu0 0.0
        %7044 = vmatpush1.msra.mxu0 0.0
        %7045 = vmatprep.subr.mxu0 0.0
        %7046 = vmatpush1.msra.mxu0 0.0
        %7047 = vmatprep.subr.mxu0 0.0
        %7048 = vmatpush1.msra.mxu0 0.0
        %7049 = vmatprep.subr.mxu0 0.0
        %7050 = vmatpush1.msra.mxu0 0.0
        %7051 = vmatprep.subr.mxu0 0.0
        %7052 = vmatpush1.msra.mxu0 0.0
        %7053 = vmatprep.subr.mxu0 0.0
        %7054 = vmatpush1.msra.mxu0 0.0
        %7055 = vmatprep.subr.mxu0 0.0
        %7056 = vmatpush1.msra.mxu0 0.0
        %7057 = vmatprep.subr.mxu0 0.0
        %7058 = vmatpush1.msra.mxu0 0.0
        %7059 = vmatprep.subr.mxu0 0.0
        %7060 = vmatpush1.msra.mxu0 0.0
        %7061 = vmatprep.subr.mxu0 0.0
        %7062 = vmatpush1.msra.mxu0 0.0
        %7063 = vmatprep.subr.mxu0 0.0
        %7064 = vmatpush1.msra.mxu0 0.0
        %7065 = vmatprep.subr.mxu0 0.0
        %7066 = vmatpush1.msra.mxu0 0.0
        %7067 = vmatprep.subr.mxu0 0.0
        %7068 = vmatpush1.msra.mxu0 0.0
        %7069 = vmatprep.subr.mxu0 0.0
        %7070 = vmatpush1.msra.mxu0 0.0
        %7071 = vmatprep.subr.mxu0 0.0
        %7072 = vmatpush1.msra.mxu0 0.0
        %7073 = vmatprep.subr.mxu0 0.0
        %7074 = vmatpush1.msra.mxu0 0.0
        %7075 = vmatprep.subr.mxu0 0.0
        %7076 = vmatpush1.msra.mxu0 0.0
        %7077 = vmatprep.mubr.f32.mxu0 0.0
        %7078 = vmatmul.mubr.f32.gmra.mrb[0].mxu0 %v7011
        %v7079 = vpop.f32.mrb[0].mxu0
        %v7080 = vadd.f32 0.0, %v7079
        %v7081 = vpop.f32.mrb[0].mxu0
        %7082 = vdwg.mxu0
        %v7083 = vadd.f32 %v7005, %v7080
        %v7084 = vld [vmem:[#allocation4 + $0x4a] sm:$0x1]
        %s7085 = scalar_lea.vmem %s5, 208
        %v7086 = vld [vmem:[%s7085] sm:$0xff]
        %v7087 = vld [vmem:[%s7085 + $0x8] sm:$0xff]
        %v7089 = vsel %vm5948, %v7084, 0
        %7091 = vmatprep.subr.mxu0 0.0
        %7092 = vmatpush1.msra.mxu0 %v7086
        %7093 = vmatprep.subr.mxu0 0.0
        %7094 = vmatpush1.msra.mxu0 %v7087
        %7095 = vmatprep.subr.mxu0 0.0
        %7096 = vmatpush1.msra.mxu0 0.0
        %7097 = vmatprep.subr.mxu0 0.0
        %7098 = vmatpush1.msra.mxu0 0.0
        %7099 = vmatprep.subr.mxu0 0.0
        %7100 = vmatpush1.msra.mxu0 0.0
        %7101 = vmatprep.subr.mxu0 0.0
        %7102 = vmatpush1.msra.mxu0 0.0
        %7103 = vmatprep.subr.mxu0 0.0
        %7104 = vmatpush1.msra.mxu0 0.0
        %7105 = vmatprep.subr.mxu0 0.0
        %7106 = vmatpush1.msra.mxu0 0.0
        %7107 = vmatprep.subr.mxu0 0.0
        %7108 = vmatpush1.msra.mxu0 0.0
        %7109 = vmatprep.subr.mxu0 0.0
        %7110 = vmatpush1.msra.mxu0 0.0
        %7111 = vmatprep.subr.mxu0 0.0
        %7112 = vmatpush1.msra.mxu0 0.0
        %7113 = vmatprep.subr.mxu0 0.0
        %7114 = vmatpush1.msra.mxu0 0.0
        %7115 = vmatprep.subr.mxu0 0.0
        %7116 = vmatpush1.msra.mxu0 0.0
        %7117 = vmatprep.subr.mxu0 0.0
        %7118 = vmatpush1.msra.mxu0 0.0
        %7119 = vmatprep.subr.mxu0 0.0
        %7120 = vmatpush1.msra.mxu0 0.0
        %7121 = vmatprep.subr.mxu0 0.0
        %7122 = vmatpush1.msra.mxu0 0.0
        %7123 = vmatprep.subr.mxu0 0.0
        %7124 = vmatpush1.msra.mxu0 0.0
        %7125 = vmatprep.subr.mxu0 0.0
        %7126 = vmatpush1.msra.mxu0 0.0
        %7127 = vmatprep.subr.mxu0 0.0
        %7128 = vmatpush1.msra.mxu0 0.0
        %7129 = vmatprep.subr.mxu0 0.0
        %7130 = vmatpush1.msra.mxu0 0.0
        %7131 = vmatprep.subr.mxu0 0.0
        %7132 = vmatpush1.msra.mxu0 0.0
        %7133 = vmatprep.subr.mxu0 0.0
        %7134 = vmatpush1.msra.mxu0 0.0
        %7135 = vmatprep.subr.mxu0 0.0
        %7136 = vmatpush1.msra.mxu0 0.0
        %7137 = vmatprep.subr.mxu0 0.0
        %7138 = vmatpush1.msra.mxu0 0.0
        %7139 = vmatprep.subr.mxu0 0.0
        %7140 = vmatpush1.msra.mxu0 0.0
        %7141 = vmatprep.subr.mxu0 0.0
        %7142 = vmatpush1.msra.mxu0 0.0
        %7143 = vmatprep.subr.mxu0 0.0
        %7144 = vmatpush1.msra.mxu0 0.0
        %7145 = vmatprep.subr.mxu0 0.0
        %7146 = vmatpush1.msra.mxu0 0.0
        %7147 = vmatprep.subr.mxu0 0.0
        %7148 = vmatpush1.msra.mxu0 0.0
        %7149 = vmatprep.subr.mxu0 0.0
        %7150 = vmatpush1.msra.mxu0 0.0
        %7151 = vmatprep.subr.mxu0 0.0
        %7152 = vmatpush1.msra.mxu0 0.0
        %7153 = vmatprep.subr.mxu0 0.0
        %7154 = vmatpush1.msra.mxu0 0.0
        %7155 = vmatprep.mubr.f32.mxu0 0.0
        %7156 = vmatmul.mubr.f32.gmra.mrb[0].mxu0 %v7089
        %v7157 = vpop.f32.mrb[0].mxu0
        %v7158 = vadd.f32 0.0, %v7157
        %v7159 = vpop.f32.mrb[0].mxu0
        %7160 = vdwg.mxu0
        %v7161 = vadd.f32 %v7083, %v7158
        %v7162 = vld [vmem:[#allocation4 + $0x4c] sm:$0x1]
        %s7163 = scalar_lea.vmem %s5, 224
        %v7164 = vld [vmem:[%s7163] sm:$0xff]
        %v7165 = vld [vmem:[%s7163 + $0x8] sm:$0xff]
        %v7167 = vsel %vm5948, %v7162, 0
        %7169 = vmatprep.subr.mxu0 0.0
        %7170 = vmatpush1.msra.mxu0 %v7164
        %7171 = vmatprep.subr.mxu0 0.0
        %7172 = vmatpush1.msra.mxu0 %v7165
        %7173 = vmatprep.subr.mxu0 0.0
        %7174 = vmatpush1.msra.mxu0 0.0
        %7175 = vmatprep.subr.mxu0 0.0
        %7176 = vmatpush1.msra.mxu0 0.0
        %7177 = vmatprep.subr.mxu0 0.0
        %7178 = vmatpush1.msra.mxu0 0.0
        %7179 = vmatprep.subr.mxu0 0.0
        %7180 = vmatpush1.msra.mxu0 0.0
        %7181 = vmatprep.subr.mxu0 0.0
        %7182 = vmatpush1.msra.mxu0 0.0
        %7183 = vmatprep.subr.mxu0 0.0
        %7184 = vmatpush1.msra.mxu0 0.0
        %7185 = vmatprep.subr.mxu0 0.0
        %7186 = vmatpush1.msra.mxu0 0.0
        %7187 = vmatprep.subr.mxu0 0.0
        %7188 = vmatpush1.msra.mxu0 0.0
        %7189 = vmatprep.subr.mxu0 0.0
        %7190 = vmatpush1.msra.mxu0 0.0
        %7191 = vmatprep.subr.mxu0 0.0
        %7192 = vmatpush1.msra.mxu0 0.0
        %7193 = vmatprep.subr.mxu0 0.0
        %7194 = vmatpush1.msra.mxu0 0.0
        %7195 = vmatprep.subr.mxu0 0.0
        %7196 = vmatpush1.msra.mxu0 0.0
        %7197 = vmatprep.subr.mxu0 0.0
        %7198 = vmatpush1.msra.mxu0 0.0
        %7199 = vmatprep.subr.mxu0 0.0
        %7200 = vmatpush1.msra.mxu0 0.0
        %7201 = vmatprep.subr.mxu0 0.0
        %7202 = vmatpush1.msra.mxu0 0.0
        %7203 = vmatprep.subr.mxu0 0.0
        %7204 = vmatpush1.msra.mxu0 0.0
        %7205 = vmatprep.subr.mxu0 0.0
        %7206 = vmatpush1.msra.mxu0 0.0
        %7207 = vmatprep.subr.mxu0 0.0
        %7208 = vmatpush1.msra.mxu0 0.0
        %7209 = vmatprep.subr.mxu0 0.0
        %7210 = vmatpush1.msra.mxu0 0.0
        %7211 = vmatprep.subr.mxu0 0.0
        %7212 = vmatpush1.msra.mxu0 0.0
        %7213 = vmatprep.subr.mxu0 0.0
        %7214 = vmatpush1.msra.mxu0 0.0
        %7215 = vmatprep.subr.mxu0 0.0
        %7216 = vmatpush1.msra.mxu0 0.0
        %7217 = vmatprep.subr.mxu0 0.0
        %7218 = vmatpush1.msra.mxu0 0.0
        %7219 = vmatprep.subr.mxu0 0.0
        %7220 = vmatpush1.msra.mxu0 0.0
        %7221 = vmatprep.subr.mxu0 0.0
        %7222 = vmatpush1.msra.mxu0 0.0
        %7223 = vmatprep.subr.mxu0 0.0
        %7224 = vmatpush1.msra.mxu0 0.0
        %7225 = vmatprep.subr.mxu0 0.0
        %7226 = vmatpush1.msra.mxu0 0.0
        %7227 = vmatprep.subr.mxu0 0.0
        %7228 = vmatpush1.msra.mxu0 0.0
        %7229 = vmatprep.subr.mxu0 0.0
        %7230 = vmatpush1.msra.mxu0 0.0
        %7231 = vmatprep.subr.mxu0 0.0
        %7232 = vmatpush1.msra.mxu0 0.0
        %7233 = vmatprep.mubr.f32.mxu0 0.0
        %7234 = vmatmul.mubr.f32.gmra.mrb[0].mxu0 %v7167
        %v7235 = vpop.f32.mrb[0].mxu0
        %v7236 = vadd.f32 0.0, %v7235
        %v7237 = vpop.f32.mrb[0].mxu0
        %7238 = vdwg.mxu0
        %v7239 = vadd.f32 %v7161, %v7236
        %v7240 = vld [vmem:[#allocation4 + $0x4e] sm:$0x1]
        %s7241 = scalar_lea.vmem %s5, 240
        %v7242 = vld [vmem:[%s7241] sm:$0xff]
        %v7243 = vld [vmem:[%s7241 + $0x8] sm:$0xff]
        %v7245 = vsel %vm5948, %v7240, 0
        %7247 = vmatprep.subr.mxu0 0.0
        %7248 = vmatpush1.msra.mxu0 %v7242
        %7249 = vmatprep.subr.mxu0 0.0
        %7250 = vmatpush1.msra.mxu0 %v7243
        %7251 = vmatprep.subr.mxu0 0.0
        %7252 = vmatpush1.msra.mxu0 0.0
        %7253 = vmatprep.subr.mxu0 0.0
        %7254 = vmatpush1.msra.mxu0 0.0
        %7255 = vmatprep.subr.mxu0 0.0
        %7256 = vmatpush1.msra.mxu0 0.0
        %7257 = vmatprep.subr.mxu0 0.0
        %7258 = vmatpush1.msra.mxu0 0.0
        %7259 = vmatprep.subr.mxu0 0.0
        %7260 = vmatpush1.msra.mxu0 0.0
        %7261 = vmatprep.subr.mxu0 0.0
        %7262 = vmatpush1.msra.mxu0 0.0
        %7263 = vmatprep.subr.mxu0 0.0
        %7264 = vmatpush1.msra.mxu0 0.0
        %7265 = vmatprep.subr.mxu0 0.0
        %7266 = vmatpush1.msra.mxu0 0.0
        %7267 = vmatprep.subr.mxu0 0.0
        %7268 = vmatpush1.msra.mxu0 0.0
        %7269 = vmatprep.subr.mxu0 0.0
        %7270 = vmatpush1.msra.mxu0 0.0
        %7271 = vmatprep.subr.mxu0 0.0
        %7272 = vmatpush1.msra.mxu0 0.0
        %7273 = vmatprep.subr.mxu0 0.0
        %7274 = vmatpush1.msra.mxu0 0.0
        %7275 = vmatprep.subr.mxu0 0.0
        %7276 = vmatpush1.msra.mxu0 0.0
        %7277 = vmatprep.subr.mxu0 0.0
        %7278 = vmatpush1.msra.mxu0 0.0
        %7279 = vmatprep.subr.mxu0 0.0
        %7280 = vmatpush1.msra.mxu0 0.0
        %7281 = vmatprep.subr.mxu0 0.0
        %7282 = vmatpush1.msra.mxu0 0.0
        %7283 = vmatprep.subr.mxu0 0.0
        %7284 = vmatpush1.msra.mxu0 0.0
        %7285 = vmatprep.subr.mxu0 0.0
        %7286 = vmatpush1.msra.mxu0 0.0
        %7287 = vmatprep.subr.mxu0 0.0
        %7288 = vmatpush1.msra.mxu0 0.0
        %7289 = vmatprep.subr.mxu0 0.0
        %7290 = vmatpush1.msra.mxu0 0.0
        %7291 = vmatprep.subr.mxu0 0.0
        %7292 = vmatpush1.msra.mxu0 0.0
        %7293 = vmatprep.subr.mxu0 0.0
        %7294 = vmatpush1.msra.mxu0 0.0
        %7295 = vmatprep.subr.mxu0 0.0
        %7296 = vmatpush1.msra.mxu0 0.0
        %7297 = vmatprep.subr.mxu0 0.0
        %7298 = vmatpush1.msra.mxu0 0.0
        %7299 = vmatprep.subr.mxu0 0.0
        %7300 = vmatpush1.msra.mxu0 0.0
        %7301 = vmatprep.subr.mxu0 0.0
        %7302 = vmatpush1.msra.mxu0 0.0
        %7303 = vmatprep.subr.mxu0 0.0
        %7304 = vmatpush1.msra.mxu0 0.0
        %7305 = vmatprep.subr.mxu0 0.0
        %7306 = vmatpush1.msra.mxu0 0.0
        %7307 = vmatprep.subr.mxu0 0.0
        %7308 = vmatpush1.msra.mxu0 0.0
        %7309 = vmatprep.subr.mxu0 0.0
        %7310 = vmatpush1.msra.mxu0 0.0
        %7311 = vmatprep.mubr.f32.mxu0 0.0
        %7312 = vmatmul.mubr.f32.gmra.mrb[0].mxu0 %v7245
        %v7313 = vpop.f32.mrb[0].mxu0
        %v7314 = vadd.f32 0.0, %v7313
        %v7315 = vpop.f32.mrb[0].mxu0
        %7316 = vdwg.mxu0
        %v7317 = vadd.f32 %v7239, %v7314
        %v7318 = vmax.f32 %v7317, 0.0
        %v7319 = vld [vmem:[%s7] sm:$0xff]
        %v7320 = vld [vmem:[%s7 + $0x8] sm:$0xff]
        %v7321 = vld [vmem:[%s7 + $0x10] sm:$0xff]
        %v7322 = vld [vmem:[%s7 + $0x18] sm:$0xff]
        %v7323 = vld [vmem:[%s7 + $0x20] sm:$0xff]
        %v7324 = vld [vmem:[%s7 + $0x28] sm:$0xff]
        %v7325 = vld [vmem:[%s7 + $0x30] sm:$0xff]
        %v7326 = vld [vmem:[%s7 + $0x38] sm:$0xff]
        %v7327 = vld [vmem:[%s7 + $0x40] sm:$0xff]
        %v7328 = vld [vmem:[%s7 + $0x48] sm:$0xff]
        %v7329 = vld [vmem:[%s7 + $0x50] sm:$0xff]
        %v7330 = vld [vmem:[%s7 + $0x58] sm:$0xff]
        %v7331 = vld [vmem:[%s7 + $0x60] sm:$0xff]
        %v7332 = vld [vmem:[%s7 + $0x68] sm:$0xff]
        %v7333 = vld [vmem:[%s7 + $0x70] sm:$0xff]
        %v7334 = vld [vmem:[%s8] sm:$0x1]
        %vm7335 = vcmask 982016
        %v7337 = vsel %vm7335, %v7318, 0
        %7339 = vmatprep.subr.mxu0 0.0
        %7340 = vmatpush1.msra.mxu0 %v7319
        %7341 = vmatprep.subr.mxu0 0.0
        %7342 = vmatpush1.msra.mxu0 %v7320
        %7343 = vmatprep.subr.mxu0 0.0
        %7344 = vmatpush1.msra.mxu0 %v7321
        %7345 = vmatprep.subr.mxu0 0.0
        %7346 = vmatpush1.msra.mxu0 %v7322
        %7347 = vmatprep.subr.mxu0 0.0
        %7348 = vmatpush1.msra.mxu0 %v7323
        %7349 = vmatprep.subr.mxu0 0.0
        %7350 = vmatpush1.msra.mxu0 %v7324
        %7351 = vmatprep.subr.mxu0 0.0
        %7352 = vmatpush1.msra.mxu0 %v7325
        %7353 = vmatprep.subr.mxu0 0.0
        %7354 = vmatpush1.msra.mxu0 %v7326
        %7355 = vmatprep.subr.mxu0 0.0
        %7356 = vmatpush1.msra.mxu0 %v7327
        %7357 = vmatprep.subr.mxu0 0.0
        %7358 = vmatpush1.msra.mxu0 %v7328
        %7359 = vmatprep.subr.mxu0 0.0
        %7360 = vmatpush1.msra.mxu0 %v7329
        %7361 = vmatprep.subr.mxu0 0.0
        %7362 = vmatpush1.msra.mxu0 %v7330
        %7363 = vmatprep.subr.mxu0 0.0
        %7364 = vmatpush1.msra.mxu0 %v7331
        %7365 = vmatprep.subr.mxu0 0.0
        %7366 = vmatpush1.msra.mxu0 %v7332
        %7367 = vmatprep.subr.mxu0 0.0
        %7368 = vmatpush1.msra.mxu0 %v7333
        %7369 = vmatprep.subr.mxu0 0.0
        %7370 = vmatpush1.msra.mxu0 0.0
        %7371 = vmatprep.subr.mxu0 0.0
        %7372 = vmatpush1.msra.mxu0 0.0
        %7373 = vmatprep.subr.mxu0 0.0
        %7374 = vmatpush1.msra.mxu0 0.0
        %7375 = vmatprep.subr.mxu0 0.0
        %7376 = vmatpush1.msra.mxu0 0.0
        %7377 = vmatprep.subr.mxu0 0.0
        %7378 = vmatpush1.msra.mxu0 0.0
        %7379 = vmatprep.subr.mxu0 0.0
        %7380 = vmatpush1.msra.mxu0 0.0
        %7381 = vmatprep.subr.mxu0 0.0
        %7382 = vmatpush1.msra.mxu0 0.0
        %7383 = vmatprep.subr.mxu0 0.0
        %7384 = vmatpush1.msra.mxu0 0.0
        %7385 = vmatprep.subr.mxu0 0.0
        %7386 = vmatpush1.msra.mxu0 0.0
        %7387 = vmatprep.subr.mxu0 0.0
        %7388 = vmatpush1.msra.mxu0 0.0
        %7389 = vmatprep.subr.mxu0 0.0
        %7390 = vmatpush1.msra.mxu0 0.0
        %7391 = vmatprep.subr.mxu0 0.0
        %7392 = vmatpush1.msra.mxu0 0.0
        %7393 = vmatprep.subr.mxu0 0.0
        %7394 = vmatpush1.msra.mxu0 0.0
        %7395 = vmatprep.subr.mxu0 0.0
        %7396 = vmatpush1.msra.mxu0 0.0
        %7397 = vmatprep.subr.mxu0 0.0
        %7398 = vmatpush1.msra.mxu0 0.0
        %7399 = vmatprep.subr.mxu0 0.0
        %7400 = vmatpush1.msra.mxu0 0.0
        %7401 = vmatprep.subr.mxu0 0.0
        %7402 = vmatpush1.msra.mxu0 0.0
        %7403 = vmatprep.mubr.f32.mxu0 0.0
        %7404 = vmatmul.mubr.f32.gmra.mrb[0].mxu0 %v7337
        %v7405 = vpop.f32.mrb[0].mxu0
        %v7406 = vadd.f32 %v7334, %v7405
        %v7407 = vpop.f32.mrb[0].mxu0
        %7408 = vdwg.mxu0
        %v7409 = vmax.f32 %v7406, 0.0
        %v7410 = vld [vmem:[%s9] sm:$0xff]
        %v7411 = vld [vmem:[%s9 + $0x8] sm:$0xff]
        %v7412 = vld [vmem:[%s9 + $0x10] sm:$0xff]
        %v7413 = vld [vmem:[%s9 + $0x18] sm:$0xff]
        %v7414 = vld [vmem:[%s9 + $0x20] sm:$0xff]
        %v7415 = vld [vmem:[%s9 + $0x28] sm:$0xff]
        %v7416 = vld [vmem:[%s9 + $0x30] sm:$0xff]
        %v7417 = vld [vmem:[%s9 + $0x38] sm:$0xff]
        %v7418 = vld [vmem:[%s9 + $0x40] sm:$0xff]
        %v7419 = vld [vmem:[%s9 + $0x48] sm:$0xff]
        %v7420 = vld [vmem:[%s9 + $0x50] sm:$0xf]
        %v7421 = vld [vmem:[%s10] sm:$0x1]
        %vm7422 = vcmask 687104
        %v7424 = vsel %vm7422, %v7409, 0
        %vm7426 = vcmask 1043456
        %v7428 = vsel %vm7426, %v7420, 0
        %7430 = vmatprep.subr.mxu0 0.0
        %7431 = vmatpush1.msra.mxu0 %v7410
        %7432 = vmatprep.subr.mxu0 0.0
        %7433 = vmatpush1.msra.mxu0 %v7411
        %7434 = vmatprep.subr.mxu0 0.0
        %7435 = vmatpush1.msra.mxu0 %v7412
        %7436 = vmatprep.subr.mxu0 0.0
        %7437 = vmatpush1.msra.mxu0 %v7413
        %7438 = vmatprep.subr.mxu0 0.0
        %7439 = vmatpush1.msra.mxu0 %v7414
        %7440 = vmatprep.subr.mxu0 0.0
        %7441 = vmatpush1.msra.mxu0 %v7415
        %7442 = vmatprep.subr.mxu0 0.0
        %7443 = vmatpush1.msra.mxu0 %v7416
        %7444 = vmatprep.subr.mxu0 0.0
        %7445 = vmatpush1.msra.mxu0 %v7417
        %7446 = vmatprep.subr.mxu0 0.0
        %7447 = vmatpush1.msra.mxu0 %v7418
        %7448 = vmatprep.subr.mxu0 0.0
        %7449 = vmatpush1.msra.mxu0 %v7419
        %7450 = vmatprep.subr.mxu0 0.0
        %7451 = vmatpush1.msra.mxu0 %v7428
        %7452 = vmatprep.subr.mxu0 0.0
        %7453 = vmatpush1.msra.mxu0 0.0
        %7454 = vmatprep.subr.mxu0 0.0
        %7455 = vmatpush1.msra.mxu0 0.0
        %7456 = vmatprep.subr.mxu0 0.0
        %7457 = vmatpush1.msra.mxu0 0.0
        %7458 = vmatprep.subr.mxu0 0.0
        %7459 = vmatpush1.msra.mxu0 0.0
        %7460 = vmatprep.subr.mxu0 0.0
        %7461 = vmatpush1.msra.mxu0 0.0
        %7462 = vmatprep.subr.mxu0 0.0
        %7463 = vmatpush1.msra.mxu0 0.0
        %7464 = vmatprep.subr.mxu0 0.0
        %7465 = vmatpush1.msra.mxu0 0.0
        %7466 = vmatprep.subr.mxu0 0.0
        %7467 = vmatpush1.msra.mxu0 0.0
        %7468 = vmatprep.subr.mxu0 0.0
        %7469 = vmatpush1.msra.mxu0 0.0
        %7470 = vmatprep.subr.mxu0 0.0
        %7471 = vmatpush1.msra.mxu0 0.0
        %7472 = vmatprep.subr.mxu0 0.0
        %7473 = vmatpush1.msra.mxu0 0.0
        %7474 = vmatprep.subr.mxu0 0.0
        %7475 = vmatpush1.msra.mxu0 0.0
        %7476 = vmatprep.subr.mxu0 0.0
        %7477 = vmatpush1.msra.mxu0 0.0
        %7478 = vmatprep.subr.mxu0 0.0
        %7479 = vmatpush1.msra.mxu0 0.0
        %7480 = vmatprep.subr.mxu0 0.0
        %7481 = vmatpush1.msra.mxu0 0.0
        %7482 = vmatprep.subr.mxu0 0.0
        %7483 = vmatpush1.msra.mxu0 0.0
        %7484 = vmatprep.subr.mxu0 0.0
        %7485 = vmatpush1.msra.mxu0 0.0
        %7486 = vmatprep.subr.mxu0 0.0
        %7487 = vmatpush1.msra.mxu0 0.0
        %7488 = vmatprep.subr.mxu0 0.0
        %7489 = vmatpush1.msra.mxu0 0.0
        %7490 = vmatprep.subr.mxu0 0.0
        %7491 = vmatpush1.msra.mxu0 0.0
        %7492 = vmatprep.subr.mxu0 0.0
        %7493 = vmatpush1.msra.mxu0 0.0
        %7494 = vmatprep.mubr.f32.mxu0 0.0
        %7495 = vmatmul.mubr.f32.gmra.mrb[0].mxu0 %v7424
        %v7496 = vpop.f32.mrb[0].mxu0
        %v7497 = vadd.f32 %v7421, %v7496
        %v7498 = vpop.f32.mrb[0].mxu0
        %7499 = vdwg.mxu0
        %7500 = vst [vmem:[%s378] sm:$0x1] %v7497
        %s7501 = sand.u32 %s269, 1
        %s7502 = scalar_lea.sflag [#allocation6], %s7501
        %s7503 = sand.u32 %s269, 1
        %s7504 = scalar_lea.vmem [#allocation5], %s7503
        // Predicated region
        $region65: #{lenet_forward.1} parent=63 // pred_check
          %p7505 = pneg %p279
        $region66: #{lenet_forward.1} parent=63 // pred_check_branch
          %7507 = sbr.rel (%p7505) target = $region68
        $region67: #{lenet_forward.1} parent=63 // pred_region
          %s7509 = ssub.s32 16, 16
          %7510 = vsyncadd %s7502, %s7509
          %s7511 = smul.addr %s25, 16
          %s7512 = scalar_lea.hbm %s11, %s7511
          %s7514 = sshll.u32 %s7504, 4
          %s7515 = int_to_ptr.vmem [resolvable:$true] %s7514
          %7517 = dma.vmem_to_hbm [thread:$0]  %s7515, 16, %s7512, %s7502
        $region68: #{lenet_forward.1} parent=63 // pred_fallthru
          _
      $region64: #{lenet_forward.1} parent=5 // pred_fallthru
        _
      %p7518 = scmp.le.s32.totalorder 2, %s20
      // Predicated region
      $region69: #{lenet_forward.1} parent=5 // pred_check
        %p7519 = pneg %p7518
      $region70: #{lenet_forward.1} parent=5 // pred_check_branch
        %7521 = sbr.rel (%p7519) target = $region72
      $region71: #{lenet_forward.1} parent=5 // pred_region
        %s7522 = ssub.s32 %s20, 2
        // Predicated region
        $region73: #{lenet_forward.1} parent=71 // pred_check
          %p7523 = pneg %p285
        $region74: #{lenet_forward.1} parent=71 // pred_check_branch
          %7525 = sbr.rel (%p7523) target = $region76
        $region75: #{lenet_forward.1} parent=71 // pred_region
          %s7526 = sand.u32 %s270, 1
          %s7527 = scalar_lea.sflag [#allocation6], %s7526
          %s7528 = sand.u32 %s270, 1
          %s7529 = scalar_lea.vmem [#allocation5], %s7528
          %7530 = dma.done %s7527, 16
        $region76: #{lenet_forward.1} parent=71 // pred_fallthru
          _
      $region72: #{lenet_forward.1} parent=5 // pred_fallthru
        _
    $region6: #{lenet_forward.1} parent=1 // loop_footer
      %s24 = sadd.s32 1, %s20
    $region7: #{lenet_forward.1} parent=1 // loop_footer_branch
      %19 = sbr.rel target = $region3
    $region8: #{lenet_forward.1} parent=1 // loop_exit
      _
    %7531 = vsyncpa [#allocation6], 1
    %s7532 = scalar_lea.sflag [#allocation6], 1
    %7533 = vsyncpa %s7532, 1

</llo_original>
